<compile_context>
chip_gen: v5e
topology: v5e:2x2
jax: 0.10.0
libtpu: 0.0.40
codegen_flags: <defaults>
</compile_context>

<pallas_src>
import functools

import jax
import jax.numpy as jnp
import numpy as np
from jax import lax
from jax.experimental import pallas as pl
from jax.experimental.pallas import tpu as pltpu


def _round_up(x, m):
    return ((x + m - 1) // m) * m


def _vmem_capacity_bytes():
    """Physical per-core VMEM of the current generation (conservative fallback)."""
    try:
        cap = getattr(pltpu.get_tpu_info(), "vmem_capacity_bytes", None)
        if cap:
            return int(cap)
    except Exception:
        pass
    return 64 * (1 << 20)   # v7x-sized fallback; v5e/v6e have 128 MiB


def _bigru_kernel(x2d_ref, wih_ref, bih_ref, whh_ref, bhh_ref, h0_ref,
                  out_ref, hid_ref, projf_ref, projb_ref,
                  *, seq_len, chunk, inner_unroll):
    """Fused bidirectional GRU, both directions interleaved, chunked projection.

    x2d_ref:   (Tp*Bp, Ip)      bf16 inputs, time-major, flattened in wrapper
    wih_ref:   (Ip, 6*Hp)       bf16 input->gate weights, both directions
    bih_ref:   (1, 6*Hp)        f32
    whh_ref:   (2, Hp, 3*Hp)    bf16 hidden->gate weights per direction
    bhh_ref:   (2, 1, 3*Hp)     f32
    h0_ref:    (2, Bp, Hp)      f32 initial hidden state per direction
    out_ref:   (Tp*Bp, Hp)      f32 fwd+bwd summed outputs
    hid_ref:   (2, Bp, Hp)      f32 final hidden per direction
    projf_ref: (2, Tc*Bp, 3Hp)  f32 scratch: double-buffered fwd chunk proj
    projb_ref: (2, Tc*Bp, 3Hp)  f32 scratch: double-buffered bwd chunk proj
    """
    Bp = h0_ref.shape[1]
    Hp = h0_ref.shape[2]
    G3 = 3 * Hp
    T = seq_len                       # real (unpadded) sequence length, static
    Tc = chunk                        # timesteps per projection chunk, static
    n_chunks = (T + Tc - 1) // Tc

    # Both directions accumulate into out; zero it once (replaces the old
    # separate fwd-output scratch + full-array epilogue add).
    out_ref[...] = jnp.zeros_like(out_ref)

    def project(c, slot):
        """Project input chunk c (both directions) into double-buffer `slot`.

        fwd rows cover timesteps [c*Tc, c*Tc+Tc)            (tail may be pad)
        bwd rows cover timesteps [max(T-(c+1)*Tc,0), ..+Tc) (head may overlap)
        c and slot are static Python ints -> fully static, aligned slices.
        """
        rf = c * Tc * Bp
        rb = max(T - (c + 1) * Tc, 0) * Bp
        projf_ref[slot] = (
            jnp.dot(x2d_ref[pl.ds(rf, Tc * Bp), :], wih_ref[:, 0:G3],
                    preferred_element_type=jnp.float32)
            + bih_ref[:, 0:G3])
        projb_ref[slot] = (
            jnp.dot(x2d_ref[pl.ds(rb, Tc * Bp), :], wih_ref[:, G3:2 * G3],
                    preferred_element_type=jnp.float32)
            + bih_ref[:, G3:2 * G3])

    def gru_cell(gi, gh, h):
        # PyTorch gate order [r, z, n];  n = tanh(gi_n + r * gh_n).  All f32.
        r = jax.nn.sigmoid(gi[:, 0:Hp] + gh[:, 0:Hp])
        z = jax.nn.sigmoid(gi[:, Hp:2 * Hp] + gh[:, Hp:2 * Hp])
        n = jnp.tanh(gi[:, 2 * Hp:G3] + r * gh[:, 2 * Hp:G3])
        return (1.0 - z) * n + z * h

    def make_step(slot, base, steps):
        def step(j, carry):
            h_f, h_b = carry
            # fwd consumes buffer row j      (timestep base + j)
            # bwd consumes buffer row steps-1-j (timestep T - 1 - base - j)
            pf = pl.multiple_of(j * Bp, Bp)
            pb = pl.multiple_of((steps - 1 - j) * Bp, Bp)
            of = pl.multiple_of((base + j) * Bp, Bp)
            ob = pl.multiple_of((T - 1 - base - j) * Bp, Bp)

            gi_f = projf_ref[slot, pl.ds(pf, Bp), :]
            gi_b = projb_ref[slot, pl.ds(pb, Bp), :]

            # Two independent recurrence chains per iteration (ILP to hide MXU
            # result / EUP latency); bf16 only at the MXU operand boundary.
            gh_f = jnp.dot(h_f.astype(jnp.bfloat16), whh_ref[0],
                           preferred_element_type=jnp.float32) + bhh_ref[0]
            gh_b = jnp.dot(h_b.astype(jnp.bfloat16), whh_ref[1],
                           preferred_element_type=jnp.float32) + bhh_ref[1]

            h_f_new = gru_cell(gi_f, gh_f, h_f)
            h_b_new = gru_cell(gi_b, gh_b, h_b)

            # Whichever direction visits a row second accumulates on top of the
            # first (out was zero-initialised) -> fwd+bwd sum happens in-loop.
            out_ref[pl.ds(of, Bp), :] = out_ref[pl.ds(of, Bp), :] + h_f_new
            out_ref[pl.ds(ob, Bp), :] = out_ref[pl.ds(ob, Bp), :] + h_b_new
            return h_f_new, h_b_new
        return step

    # Software pipeline over chunks: issue the projection of chunk c+1 before
    # running the (MXU-light, latency-bound) recurrence over chunk c.
    project(0, 0)
    carry = (h0_ref[0], h0_ref[1])
    for c in range(n_chunks):                        # static: slots & offsets
        slot = c & 1
        if c + 1 < n_chunks:
            project(c + 1, 1 - slot)
        steps = min(Tc, T - c * Tc)
        carry = lax.fori_loop(0, steps, make_step(slot, c * Tc, steps), carry,
                              unroll=inner_unroll)

    h_f_fin, h_b_fin = carry
    hid_ref[0] = h_f_fin
    hid_ref[1] = h_b_fin


@functools.partial(jax.jit, static_argnums=(2,))
def encoder_forward(src, params, hidden_size):
    """Pallas-backed equivalent of Encoder.forward(src, hidden=None)."""
    T, B, I = src.shape
    H = hidden_size
    Bp = _round_up(B, 16)          # 16: bf16 sublane packing
    Hp = _round_up(H, 128)         # lane-aligned gate blocks
    Ip = _round_up(I, 128)
    Tc = min(16, T)                # timesteps per projection chunk
    Tp = _round_up(T, Tc)
    inner_unroll = True if T <= 128 else 2

    f32, bf16 = jnp.float32, jnp.bfloat16

    # ---- layout plumbing on the wrapper side (free for the kernel) ----
    src_p = jnp.zeros((Tp, Bp, Ip), bf16).at[:T, :B, :I].set(src.astype(bf16))
    x2d = src_p.reshape(Tp * Bp, Ip)

    def pad_gates(w, rows, rows_p, dtype):
        # (rows, 3H) -> (rows_p, 3Hp) with each gate block lane-aligned.
        out = jnp.zeros((rows_p, 3 * Hp), dtype)
        for g in range(3):
            out = out.at[:rows, g * Hp:g * Hp + H].set(
                w[:, g * H:(g + 1) * H].astype(dtype))
        return out

    # Fuse both directions' input weights along the gate axis: (Ip, 6Hp).
    wih = jnp.concatenate([pad_gates(params["w_ih"][0], I, Ip, bf16),
                           pad_gates(params["w_ih"][1], I, Ip, bf16)], axis=1)
    bih = jnp.concatenate([pad_gates(params["b_ih"][0], 1, 1, f32),
                           pad_gates(params["b_ih"][1], 1, 1, f32)], axis=1)
    whh = jnp.stack([pad_gates(params["w_hh"][0], H, Hp, bf16),
                     pad_gates(params["w_hh"][1], H, Hp, bf16)])
    bhh = jnp.stack([pad_gates(params["b_hh"][0], 1, 1, f32),
                     pad_gates(params["b_hh"][1], 1, 1, f32)])
    h0 = jnp.zeros((2, Bp, Hp), f32)        # hidden=None in the PyTorch module

    # ---- VMEM budget: single-buffered resident footprint + margin, clamped
    # to the generation's physical capacity (v5e/v6e 128 MiB, v7x 64 MiB) ----
    footprint = (x2d.size * 2 + wih.size * 2 + whh.size * 2          # bf16
                 + (bih.size + bhh.size + h0.size) * 4               # f32 in
                 + (Tp * Bp * Hp + 2 * Bp * Hp) * 4                  # outputs
                 + 2 * (2 * Tc * Bp * 3 * Hp) * 4)                   # scratch
    vmem_limit = int(min(max(int(footprint * 1.2) + (4 << 20), 16 << 20),
                         int(_vmem_capacity_bytes() * 0.85)))

    kernel = functools.partial(_bigru_kernel, seq_len=T, chunk=Tc,
                               inner_unroll=inner_unroll)

    out2d, hid_p = pl.pallas_call(
        kernel,
        out_shape=(jax.ShapeDtypeStruct((Tp * Bp, Hp), f32),
                   jax.ShapeDtypeStruct((2, Bp, Hp), f32)),
        in_specs=[pl.BlockSpec(memory_space=pltpu.MemorySpace.VMEM)] * 6,
        out_specs=(pl.BlockSpec(memory_space=pltpu.MemorySpace.VMEM),
                   pl.BlockSpec(memory_space=pltpu.MemorySpace.VMEM)),
        scratch_shapes=[pltpu.VMEM((2, Tc * Bp, 3 * Hp), f32),
                        pltpu.VMEM((2, Tc * Bp, 3 * Hp), f32)],
        compiler_params=pltpu.CompilerParams(vmem_limit_bytes=vmem_limit),
    )(x2d, wih, bih, whh, bhh, h0)

    out = out2d.reshape(Tp, Bp, Hp)[:T, :B, :H]
    hid = hid_p[:, :B, :H]
    return out, hid


def encoder_reference(src, params, hidden_size):
    """Pure-JAX reference (PyTorch GRU semantics) for correctness checking."""
    T, B, _ = src.shape
    H = hidden_size
    outs, hids = [], []
    for d in range(2):
        wih, whh = params["w_ih"][d], params["w_hh"][d]
        bih, bhh = params["b_ih"][d], params["b_hh"][d]
        h = jnp.zeros((B, H), jnp.float32)
        order = range(T) if d == 0 else range(T - 1, -1, -1)
        out_d = [None] * T
        for t in order:
            gi = src[t] @ wih + bih
            gh = h @ whh + bhh
            r = jax.nn.sigmoid(gi[:, 0:H] + gh[:, 0:H])
            z = jax.nn.sigmoid(gi[:, H:2 * H] + gh[:, H:2 * H])
            n = jnp.tanh(gi[:, 2 * H:3 * H] + r * gh[:, 2 * H:3 * H])
            h = (1.0 - z) * n + z * h
            out_d[t] = h
        outs.append(jnp.stack(out_d))
        hids.append(h)
    return outs[0] + outs[1], jnp.stack(hids)


def init_params(key, input_size, hidden_size):
    """Deterministic PyTorch-style init: U(-1/sqrt(H), 1/sqrt(H))."""
    H, I = hidden_size, input_size
    k = 1.0 / np.sqrt(H)
    ks = jax.random.split(key, 4)
    return {
        "w_ih": jax.random.uniform(ks[0], (2, I, 3 * H), jnp.float32, -k, k),
        "w_hh": jax.random.uniform(ks[1], (2, H, 3 * H), jnp.float32, -k, k),
        "b_ih": jax.random.uniform(ks[2], (2, 1, 3 * H), jnp.float32, -k, k),
        "b_hh": jax.random.uniform(ks[3], (2, 1, 3 * H), jnp.float32, -k, k),
    }


if __name__ == "__main__":
    T, B, I, H = 8, 4, 16, 32   # seq_len, batch, input_size, hidden_size

    key = jax.random.PRNGKey(0)
    k_src, k_par = jax.random.split(key)
    src = jax.random.normal(k_src, (T, B, I), jnp.float32)
    params = init_params(k_par, I, H)

    out, hid = encoder_forward(src, params, H)
    jax.block_until_ready((out, hid))

    out_ref, hid_ref = encoder_reference(src, params, H)
    # bf16 MXU operands -> looser tolerance than a pure-f32 kernel; real bugs
    # (gate order / index errors) show up as O(0.1-1) discrepancies.
    np.testing.assert_allclose(np.asarray(out), np.asarray(out_ref),
                               rtol=3e-2, atol=3e-2)
    np.testing.assert_allclose(np.asarray(hid), np.asarray(hid_ref),
                               rtol=3e-2, atol=3e-2)

    assert out.shape == (T, B, H) and hid.shape == (2, B, H)
    print("KERNEL_OK")
</pallas_src>

<mosaic_0001>
module attributes {stable_mosaic.version = 11 : i64} {
  func.func @_bigru_kernel(%arg0: memref<128x128xbf16, #tpu.memory_space<vmem>>, %arg1: memref<128x768xbf16, #tpu.memory_space<vmem>>, %arg2: memref<1x768xf32, #tpu.memory_space<vmem>>, %arg3: memref<2x128x384xbf16, #tpu.memory_space<vmem>>, %arg4: memref<2x1x384xf32, #tpu.memory_space<vmem>>, %arg5: memref<2x16x128xf32, #tpu.memory_space<vmem>>, %arg6: memref<128x128xf32, #tpu.memory_space<vmem>>, %arg7: memref<2x16x128xf32, #tpu.memory_space<vmem>>, %arg8: memref<2x128x384xf32, #tpu.memory_space<vmem>>, %arg9: memref<2x128x384xf32, #tpu.memory_space<vmem>>) attributes {dimension_semantics = [], scalar_prefetch = 0 : i64, scratch_operands = 2 : i64, tpu.core_type = #tpu.core_type<tc>} {
    %cst = arith.constant 0.000000e+00 : f32
    %0 = vector.broadcast %cst : f32 to vector<128x128xf32>
    %c0 = arith.constant 0 : index
    %c0_0 = arith.constant 0 : index
    %1 = vector.load %arg6[%c0, %c0_0] : memref<128x128xf32, #tpu.memory_space<vmem>>, vector<128x128xf32>
    tpu.vector_store %arg6[%c0, %c0_0], %0 {strides = array<i32>} : memref<128x128xf32, #tpu.memory_space<vmem>>, vector<128x128xf32>,
    %c0_1 = arith.constant 0 : index
    %c0_2 = arith.constant 0 : index
    %2 = vector.load %arg0[%c0_1, %c0_2] : memref<128x128xbf16, #tpu.memory_space<vmem>>, vector<128x128xbf16>
    %c0_3 = arith.constant 0 : index
    %c0_4 = arith.constant 0 : index
    %3 = vector.load %arg1[%c0_3, %c0_4] : memref<128x768xbf16, #tpu.memory_space<vmem>>, vector<128x384xbf16>
    %cst_5 = arith.constant dense<0.000000e+00> : vector<128x384xf32>
    %4 = tpu.matmul %2, %3, %cst_5 {dimension_numbers = #tpu.dot_dimension_numbers<[1], [0], [0], [1], [0, 0, 1, 1], [], []>} : vector<128x128xbf16>, vector<128x384xbf16>, vector<128x384xf32> -> vector<128x384xf32>
    %c0_6 = arith.constant 0 : index
    %c0_7 = arith.constant 0 : index
    %5 = vector.load %arg2[%c0_6, %c0_7] : memref<1x768xf32, #tpu.memory_space<vmem>>, vector<1x384xf32>
    %6 = vector.broadcast %5 : vector<1x384xf32> to vector<128x384xf32>
    %7 = arith.addf %4, %6 : vector<128x384xf32>
    %c0_8 = arith.constant 0 : index
    %c0_9 = arith.constant 0 : index
    %c0_10 = arith.constant 0 : index
    %8 = vector.load %arg8[%c0_8, %c0_9, %c0_10] : memref<2x128x384xf32, #tpu.memory_space<vmem>>, vector<1x128x384xf32>
    %9 = vector.shape_cast %8 : vector<1x128x384xf32> to vector<128x384xf32>
    %10 = vector.shape_cast %7 : vector<128x384xf32> to vector<1x128x384xf32>
    tpu.vector_store %arg8[%c0_8, %c0_9, %c0_10], %10 {strides = array<i32>} : memref<2x128x384xf32, #tpu.memory_space<vmem>>, vector<1x128x384xf32>,
    %c0_11 = arith.constant 0 : index
    %c0_12 = arith.constant 0 : index
    %11 = vector.load %arg0[%c0_11, %c0_12] : memref<128x128xbf16, #tpu.memory_space<vmem>>, vector<128x128xbf16>
    %c0_13 = arith.constant 0 : index
    %c384 = arith.constant 384 : index
    %12 = vector.load %arg1[%c0_13, %c384] : memref<128x768xbf16, #tpu.memory_space<vmem>>, vector<128x384xbf16>
    %cst_14 = arith.constant dense<0.000000e+00> : vector<128x384xf32>
    %13 = tpu.matmul %11, %12, %cst_14 {dimension_numbers = #tpu.dot_dimension_numbers<[1], [0], [0], [1], [0, 0, 1, 1], [], []>} : vector<128x128xbf16>, vector<128x384xbf16>, vector<128x384xf32> -> vector<128x384xf32>
    %c0_15 = arith.constant 0 : index
    %c384_16 = arith.constant 384 : index
    %14 = vector.load %arg2[%c0_15, %c384_16] : memref<1x768xf32, #tpu.memory_space<vmem>>, vector<1x384xf32>
    %15 = vector.broadcast %14 : vector<1x384xf32> to vector<128x384xf32>
    %16 = arith.addf %13, %15 : vector<128x384xf32>
    %c0_17 = arith.constant 0 : index
    %c0_18 = arith.constant 0 : index
    %c0_19 = arith.constant 0 : index
    %17 = vector.load %arg9[%c0_17, %c0_18, %c0_19] : memref<2x128x384xf32, #tpu.memory_space<vmem>>, vector<1x128x384xf32>
    %18 = vector.shape_cast %17 : vector<1x128x384xf32> to vector<128x384xf32>
    %19 = vector.shape_cast %16 : vector<128x384xf32> to vector<1x128x384xf32>
    tpu.vector_store %arg9[%c0_17, %c0_18, %c0_19], %19 {strides = array<i32>} : memref<2x128x384xf32, #tpu.memory_space<vmem>>, vector<1x128x384xf32>,
    %c0_20 = arith.constant 0 : index
    %c0_21 = arith.constant 0 : index
    %c0_22 = arith.constant 0 : index
    %20 = vector.load %arg5[%c0_20, %c0_21, %c0_22] : memref<2x16x128xf32, #tpu.memory_space<vmem>>, vector<1x16x128xf32>
    %21 = vector.shape_cast %20 : vector<1x16x128xf32> to vector<16x128xf32>
    %c1 = arith.constant 1 : index
    %c0_23 = arith.constant 0 : index
    %c0_24 = arith.constant 0 : index
    %22 = vector.load %arg5[%c1, %c0_23, %c0_24] : memref<2x16x128xf32, #tpu.memory_space<vmem>>, vector<1x16x128xf32>
    %23 = vector.shape_cast %22 : vector<1x16x128xf32> to vector<16x128xf32>
    %c0_i32 = arith.constant 0 : i32
    %c16_i32 = arith.constant 16 : i32
    %24 = arith.muli %c0_i32, %c16_i32 : i32
    %25 = tpu.assume_multiple %24, 16 : i32
    %c7_i32 = arith.constant 7 : i32
    %26 = arith.subi %c7_i32, %c0_i32 : i32
    %c16_i32_25 = arith.constant 16 : i32
    %27 = arith.muli %26, %c16_i32_25 : i32
    %28 = tpu.assume_multiple %27, 16 : i32
    %c0_i32_26 = arith.constant 0 : i32
    %29 = arith.addi %c0_i32_26, %c0_i32 : i32
    %c16_i32_27 = arith.constant 16 : i32
    %30 = arith.muli %29, %c16_i32_27 : i32
    %31 = tpu.assume_multiple %30, 16 : i32
    %c7_i32_28 = arith.constant 7 : i32
    %32 = arith.subi %c7_i32_28, %c0_i32 : i32
    %c16_i32_29 = arith.constant 16 : i32
    %33 = arith.muli %32, %c16_i32_29 : i32
    %34 = tpu.assume_multiple %33, 16 : i32
    %c0_30 = arith.constant 0 : index
    %35 = arith.index_cast %25 : i32 to index
    %c0_31 = arith.constant 0 : index
    %36 = vector.load %arg8[%c0_30, %35, %c0_31] : memref<2x128x384xf32, #tpu.memory_space<vmem>>, vector<1x16x384xf32>
    %37 = vector.shape_cast %36 : vector<1x16x384xf32> to vector<16x384xf32>
    %c0_32 = arith.constant 0 : index
    %38 = arith.index_cast %28 : i32 to index
    %c0_33 = arith.constant 0 : index
    %39 = vector.load %arg9[%c0_32, %38, %c0_33] : memref<2x128x384xf32, #tpu.memory_space<vmem>>, vector<1x16x384xf32>
    %40 = vector.shape_cast %39 : vector<1x16x384xf32> to vector<16x384xf32>
    %41 = arith.truncf %21 : vector<16x128xf32> to vector<16x128xbf16>
    %c0_34 = arith.constant 0 : index
    %c0_35 = arith.constant 0 : index
    %c0_36 = arith.constant 0 : index
    %42 = vector.load %arg3[%c0_34, %c0_35, %c0_36] : memref<2x128x384xbf16, #tpu.memory_space<vmem>>, vector<1x128x384xbf16>
    %43 = vector.shape_cast %42 : vector<1x128x384xbf16> to vector<128x384xbf16>
    %cst_37 = arith.constant dense<0.000000e+00> : vector<16x384xf32>
    %44 = tpu.matmul %41, %43, %cst_37 {dimension_numbers = #tpu.dot_dimension_numbers<[1], [0], [0], [1], [0, 0, 1, 1], [], []>} : vector<16x128xbf16>, vector<128x384xbf16>, vector<16x384xf32> -> vector<16x384xf32>
    %c0_38 = arith.constant 0 : index
    %c0_39 = arith.constant 0 : index
    %c0_40 = arith.constant 0 : index
    %45 = vector.load %arg4[%c0_38, %c0_39, %c0_40] : memref<2x1x384xf32, #tpu.memory_space<vmem>>, vector<1x1x384xf32>
    %46 = vector.shape_cast %45 : vector<1x1x384xf32> to vector<1x384xf32>
    %47 = vector.broadcast %46 : vector<1x384xf32> to vector<16x384xf32>
    %48 = arith.addf %44, %47 : vector<16x384xf32>
    %49 = arith.truncf %23 : vector<16x128xf32> to vector<16x128xbf16>
    %c1_41 = arith.constant 1 : index
    %c0_42 = arith.constant 0 : index
    %c0_43 = arith.constant 0 : index
    %50 = vector.load %arg3[%c1_41, %c0_42, %c0_43] : memref<2x128x384xbf16, #tpu.memory_space<vmem>>, vector<1x128x384xbf16>
    %51 = vector.shape_cast %50 : vector<1x128x384xbf16> to vector<128x384xbf16>
    %cst_44 = arith.constant dense<0.000000e+00> : vector<16x384xf32>
    %52 = tpu.matmul %49, %51, %cst_44 {dimension_numbers = #tpu.dot_dimension_numbers<[1], [0], [0], [1], [0, 0, 1, 1], [], []>} : vector<16x128xbf16>, vector<128x384xbf16>, vector<16x384xf32> -> vector<16x384xf32>
    %c1_45 = arith.constant 1 : index
    %c0_46 = arith.constant 0 : index
    %c0_47 = arith.constant 0 : index
    %53 = vector.load %arg4[%c1_45, %c0_46, %c0_47] : memref<2x1x384xf32, #tpu.memory_space<vmem>>, vector<1x1x384xf32>
    %54 = vector.shape_cast %53 : vector<1x1x384xf32> to vector<1x384xf32>
    %55 = vector.broadcast %54 : vector<1x384xf32> to vector<16x384xf32>
    %56 = arith.addf %52, %55 : vector<16x384xf32>
    %57 = vector.extract_strided_slice %37 {offsets = [0, 0], sizes = [16, 128], strides = [1, 1]} : vector<16x384xf32> to vector<16x128xf32>
    %58 = vector.extract_strided_slice %48 {offsets = [0, 0], sizes = [16, 128], strides = [1, 1]} : vector<16x384xf32> to vector<16x128xf32>
    %59 = arith.addf %57, %58 : vector<16x128xf32>
    %60 = arith.negf %59 : vector<16x128xf32>
    %61 = math.exp %60 : vector<16x128xf32>
    %cst_48 = arith.constant 1.000000e+00 : f32
    %62 = vector.broadcast %cst_48 : f32 to vector<16x128xf32>
    %63 = arith.addf %62, %61 : vector<16x128xf32>
    %64 = arith.divf %62, %63 : vector<16x128xf32>
    %65 = vector.extract_strided_slice %37 {offsets = [0, 128], sizes = [16, 128], strides = [1, 1]} : vector<16x384xf32> to vector<16x128xf32>
    %66 = vector.extract_strided_slice %48 {offsets = [0, 128], sizes = [16, 128], strides = [1, 1]} : vector<16x384xf32> to vector<16x128xf32>
    %67 = arith.addf %65, %66 : vector<16x128xf32>
    %68 = arith.negf %67 : vector<16x128xf32>
    %69 = math.exp %68 : vector<16x128xf32>
    %cst_49 = arith.constant 1.000000e+00 : f32
    %70 = vector.broadcast %cst_49 : f32 to vector<16x128xf32>
    %71 = arith.addf %70, %69 : vector<16x128xf32>
    %72 = arith.divf %70, %71 : vector<16x128xf32>
    %73 = vector.extract_strided_slice %37 {offsets = [0, 256], sizes = [16, 128], strides = [1, 1]} : vector<16x384xf32> to vector<16x128xf32>
    %74 = vector.extract_strided_slice %48 {offsets = [0, 256], sizes = [16, 128], strides = [1, 1]} : vector<16x384xf32> to vector<16x128xf32>
    %75 = arith.mulf %64, %74 : vector<16x128xf32>
    %76 = arith.addf %73, %75 : vector<16x128xf32>
    %77 = math.tanh %76 : vector<16x128xf32>
    %cst_50 = arith.constant 1.000000e+00 : f32
    %78 = vector.broadcast %cst_50 : f32 to vector<16x128xf32>
    %79 = arith.subf %78, %72 : vector<16x128xf32>
    %80 = arith.mulf %79, %77 : vector<16x128xf32>
    %81 = arith.mulf %72, %21 : vector<16x128xf32>
    %82 = arith.addf %80, %81 : vector<16x128xf32>
    %83 = vector.extract_strided_slice %40 {offsets = [0, 0], sizes = [16, 128], strides = [1, 1]} : vector<16x384xf32> to vector<16x128xf32>
    %84 = vector.extract_strided_slice %56 {offsets = [0, 0], sizes = [16, 128], strides = [1, 1]} : vector<16x384xf32> to vector<16x128xf32>
    %85 = arith.addf %83, %84 : vector<16x128xf32>
    %86 = arith.negf %85 : vector<16x128xf32>
    %87 = math.exp %86 : vector<16x128xf32>
    %cst_51 = arith.constant 1.000000e+00 : f32
    %88 = vector.broadcast %cst_51 : f32 to vector<16x128xf32>
    %89 = arith.addf %88, %87 : vector<16x128xf32>
    %90 = arith.divf %88, %89 : vector<16x128xf32>
    %91 = vector.extract_strided_slice %40 {offsets = [0, 128], sizes = [16, 128], strides = [1, 1]} : vector<16x384xf32> to vector<16x128xf32>
    %92 = vector.extract_strided_slice %56 {offsets = [0, 128], sizes = [16, 128], strides = [1, 1]} : vector<16x384xf32> to vector<16x128xf32>
    %93 = arith.addf %91, %92 : vector<16x128xf32>
    %94 = arith.negf %93 : vector<16x128xf32>
    %95 = math.exp %94 : vector<16x128xf32>
    %cst_52 = arith.constant 1.000000e+00 : f32
    %96 = vector.broadcast %cst_52 : f32 to vector<16x128xf32>
    %97 = arith.addf %96, %95 : vector<16x128xf32>
    %98 = arith.divf %96, %97 : vector<16x128xf32>
    %99 = vector.extract_strided_slice %40 {offsets = [0, 256], sizes = [16, 128], strides = [1, 1]} : vector<16x384xf32> to vector<16x128xf32>
    %100 = vector.extract_strided_slice %56 {offsets = [0, 256], sizes = [16, 128], strides = [1, 1]} : vector<16x384xf32> to vector<16x128xf32>
    %101 = arith.mulf %90, %100 : vector<16x128xf32>
    %102 = arith.addf %99, %101 : vector<16x128xf32>
    %103 = math.tanh %102 : vector<16x128xf32>
    %cst_53 = arith.constant 1.000000e+00 : f32
    %104 = vector.broadcast %cst_53 : f32 to vector<16x128xf32>
    %105 = arith.subf %104, %98 : vector<16x128xf32>
    %106 = arith.mulf %105, %103 : vector<16x128xf32>
    %107 = arith.mulf %98, %23 : vector<16x128xf32>
    %108 = arith.addf %106, %107 : vector<16x128xf32>
    %109 = arith.index_cast %31 : i32 to index
    %c0_54 = arith.constant 0 : index
    %110 = vector.load %arg6[%109, %c0_54] : memref<128x128xf32, #tpu.memory_space<vmem>>, vector<16x128xf32>
    %111 = arith.addf %110, %82 : vector<16x128xf32>
    %112 = arith.index_cast %31 : i32 to index
    %c0_55 = arith.constant 0 : index
    %113 = vector.load %arg6[%112, %c0_55] : memref<128x128xf32, #tpu.memory_space<vmem>>, vector<16x128xf32>
    tpu.vector_store %arg6[%112, %c0_55], %111 {strides = array<i32>} : memref<128x128xf32, #tpu.memory_space<vmem>>, vector<16x128xf32>,
    %114 = arith.index_cast %34 : i32 to index
    %c0_56 = arith.constant 0 : index
    %115 = vector.load %arg6[%114, %c0_56] : memref<128x128xf32, #tpu.memory_space<vmem>>, vector<16x128xf32>
    %116 = arith.addf %115, %108 : vector<16x128xf32>
    %117 = arith.index_cast %34 : i32 to index
    %c0_57 = arith.constant 0 : index
    %118 = vector.load %arg6[%117, %c0_57] : memref<128x128xf32, #tpu.memory_space<vmem>>, vector<16x128xf32>
    tpu.vector_store %arg6[%117, %c0_57], %116 {strides = array<i32>} : memref<128x128xf32, #tpu.memory_space<vmem>>, vector<16x128xf32>,
    %c1_i32 = arith.constant 1 : i32
    %c16_i32_58 = arith.constant 16 : i32
    %119 = arith.muli %c1_i32, %c16_i32_58 : i32
    %120 = tpu.assume_multiple %119, 16 : i32
    %c7_i32_59 = arith.constant 7 : i32
    %121 = arith.subi %c7_i32_59, %c1_i32 : i32
    %c16_i32_60 = arith.constant 16 : i32
    %122 = arith.muli %121, %c16_i32_60 : i32
    %123 = tpu.assume_multiple %122, 16 : i32
    %c0_i32_61 = arith.constant 0 : i32
    %124 = arith.addi %c0_i32_61, %c1_i32 : i32
    %c16_i32_62 = arith.constant 16 : i32
    %125 = arith.muli %124, %c16_i32_62 : i32
    %126 = tpu.assume_multiple %125, 16 : i32
    %c7_i32_63 = arith.constant 7 : i32
    %127 = arith.subi %c7_i32_63, %c1_i32 : i32
    %c16_i32_64 = arith.constant 16 : i32
    %128 = arith.muli %127, %c16_i32_64 : i32
    %129 = tpu.assume_multiple %128, 16 : i32
    %c0_65 = arith.constant 0 : index
    %130 = arith.index_cast %120 : i32 to index
    %c0_66 = arith.constant 0 : index
    %131 = vector.load %arg8[%c0_65, %130, %c0_66] : memref<2x128x384xf32, #tpu.memory_space<vmem>>, vector<1x16x384xf32>
    %132 = vector.shape_cast %131 : vector<1x16x384xf32> to vector<16x384xf32>
    %c0_67 = arith.constant 0 : index
    %133 = arith.index_cast %123 : i32 to index
    %c0_68 = arith.constant 0 : index
    %134 = vector.load %arg9[%c0_67, %133, %c0_68] : memref<2x128x384xf32, #tpu.memory_space<vmem>>, vector<1x16x384xf32>
    %135 = vector.shape_cast %134 : vector<1x16x384xf32> to vector<16x384xf32>
    %136 = arith.truncf %82 : vector<16x128xf32> to vector<16x128xbf16>
    %c0_69 = arith.constant 0 : index
    %c0_70 = arith.constant 0 : index
    %c0_71 = arith.constant 0 : index
    %137 = vector.load %arg3[%c0_69, %c0_70, %c0_71] : memref<2x128x384xbf16, #tpu.memory_space<vmem>>, vector<1x128x384xbf16>
    %138 = vector.shape_cast %137 : vector<1x128x384xbf16> to vector<128x384xbf16>
    %cst_72 = arith.constant dense<0.000000e+00> : vector<16x384xf32>
    %139 = tpu.matmul %136, %138, %cst_72 {dimension_numbers = #tpu.dot_dimension_numbers<[1], [0], [0], [1], [0, 0, 1, 1], [], []>} : vector<16x128xbf16>, vector<128x384xbf16>, vector<16x384xf32> -> vector<16x384xf32>
    %c0_73 = arith.constant 0 : index
    %c0_74 = arith.constant 0 : index
    %c0_75 = arith.constant 0 : index
    %140 = vector.load %arg4[%c0_73, %c0_74, %c0_75] : memref<2x1x384xf32, #tpu.memory_space<vmem>>, vector<1x1x384xf32>
    %141 = vector.shape_cast %140 : vector<1x1x384xf32> to vector<1x384xf32>
    %142 = vector.broadcast %141 : vector<1x384xf32> to vector<16x384xf32>
    %143 = arith.addf %139, %142 : vector<16x384xf32>
    %144 = arith.truncf %108 : vector<16x128xf32> to vector<16x128xbf16>
    %c1_76 = arith.constant 1 : index
    %c0_77 = arith.constant 0 : index
    %c0_78 = arith.constant 0 : index
    %145 = vector.load %arg3[%c1_76, %c0_77, %c0_78] : memref<2x128x384xbf16, #tpu.memory_space<vmem>>, vector<1x128x384xbf16>
    %146 = vector.shape_cast %145 : vector<1x128x384xbf16> to vector<128x384xbf16>
    %cst_79 = arith.constant dense<0.000000e+00> : vector<16x384xf32>
    %147 = tpu.matmul %144, %146, %cst_79 {dimension_numbers = #tpu.dot_dimension_numbers<[1], [0], [0], [1], [0, 0, 1, 1], [], []>} : vector<16x128xbf16>, vector<128x384xbf16>, vector<16x384xf32> -> vector<16x384xf32>
    %c1_80 = arith.constant 1 : index
    %c0_81 = arith.constant 0 : index
    %c0_82 = arith.constant 0 : index
    %148 = vector.load %arg4[%c1_80, %c0_81, %c0_82] : memref<2x1x384xf32, #tpu.memory_space<vmem>>, vector<1x1x384xf32>
    %149 = vector.shape_cast %148 : vector<1x1x384xf32> to vector<1x384xf32>
    %150 = vector.broadcast %149 : vector<1x384xf32> to vector<16x384xf32>
    %151 = arith.addf %147, %150 : vector<16x384xf32>
    %152 = vector.extract_strided_slice %132 {offsets = [0, 0], sizes = [16, 128], strides = [1, 1]} : vector<16x384xf32> to vector<16x128xf32>
    %153 = vector.extract_strided_slice %143 {offsets = [0, 0], sizes = [16, 128], strides = [1, 1]} : vector<16x384xf32> to vector<16x128xf32>
    %154 = arith.addf %152, %153 : vector<16x128xf32>
    %155 = arith.negf %154 : vector<16x128xf32>
    %156 = math.exp %155 : vector<16x128xf32>
    %cst_83 = arith.constant 1.000000e+00 : f32
    %157 = vector.broadcast %cst_83 : f32 to vector<16x128xf32>
    %158 = arith.addf %157, %156 : vector<16x128xf32>
    %159 = arith.divf %157, %158 : vector<16x128xf32>
    %160 = vector.extract_strided_slice %132 {offsets = [0, 128], sizes = [16, 128], strides = [1, 1]} : vector<16x384xf32> to vector<16x128xf32>
    %161 = vector.extract_strided_slice %143 {offsets = [0, 128], sizes = [16, 128], strides = [1, 1]} : vector<16x384xf32> to vector<16x128xf32>
    %162 = arith.addf %160, %161 : vector<16x128xf32>
    %163 = arith.negf %162 : vector<16x128xf32>
    %164 = math.exp %163 : vector<16x128xf32>
    %cst_84 = arith.constant 1.000000e+00 : f32
    %165 = vector.broadcast %cst_84 : f32 to vector<16x128xf32>
    %166 = arith.addf %165, %164 : vector<16x128xf32>
    %167 = arith.divf %165, %166 : vector<16x128xf32>
    %168 = vector.extract_strided_slice %132 {offsets = [0, 256], sizes = [16, 128], strides = [1, 1]} : vector<16x384xf32> to vector<16x128xf32>
    %169 = vector.extract_strided_slice %143 {offsets = [0, 256], sizes = [16, 128], strides = [1, 1]} : vector<16x384xf32> to vector<16x128xf32>
    %170 = arith.mulf %159, %169 : vector<16x128xf32>
    %171 = arith.addf %168, %170 : vector<16x128xf32>
    %172 = math.tanh %171 : vector<16x128xf32>
    %cst_85 = arith.constant 1.000000e+00 : f32
    %173 = vector.broadcast %cst_85 : f32 to vector<16x128xf32>
    %174 = arith.subf %173, %167 : vector<16x128xf32>
    %175 = arith.mulf %174, %172 : vector<16x128xf32>
    %176 = arith.mulf %167, %82 : vector<16x128xf32>
    %177 = arith.addf %175, %176 : vector<16x128xf32>
    %178 = vector.extract_strided_slice %135 {offsets = [0, 0], sizes = [16, 128], strides = [1, 1]} : vector<16x384xf32> to vector<16x128xf32>
    %179 = vector.extract_strided_slice %151 {offsets = [0, 0], sizes = [16, 128], strides = [1, 1]} : vector<16x384xf32> to vector<16x128xf32>
    %180 = arith.addf %178, %179 : vector<16x128xf32>
    %181 = arith.negf %180 : vector<16x128xf32>
    %182 = math.exp %181 : vector<16x128xf32>
    %cst_86 = arith.constant 1.000000e+00 : f32
    %183 = vector.broadcast %cst_86 : f32 to vector<16x128xf32>
    %184 = arith.addf %183, %182 : vector<16x128xf32>
    %185 = arith.divf %183, %184 : vector<16x128xf32>
    %186 = vector.extract_strided_slice %135 {offsets = [0, 128], sizes = [16, 128], strides = [1, 1]} : vector<16x384xf32> to vector<16x128xf32>
    %187 = vector.extract_strided_slice %151 {offsets = [0, 128], sizes = [16, 128], strides = [1, 1]} : vector<16x384xf32> to vector<16x128xf32>
    %188 = arith.addf %186, %187 : vector<16x128xf32>
    %189 = arith.negf %188 : vector<16x128xf32>
    %190 = math.exp %189 : vector<16x128xf32>
    %cst_87 = arith.constant 1.000000e+00 : f32
    %191 = vector.broadcast %cst_87 : f32 to vector<16x128xf32>
    %192 = arith.addf %191, %190 : vector<16x128xf32>
    %193 = arith.divf %191, %192 : vector<16x128xf32>
    %194 = vector.extract_strided_slice %135 {offsets = [0, 256], sizes = [16, 128], strides = [1, 1]} : vector<16x384xf32> to vector<16x128xf32>
    %195 = vector.extract_strided_slice %151 {offsets = [0, 256], sizes = [16, 128], strides = [1, 1]} : vector<16x384xf32> to vector<16x128xf32>
    %196 = arith.mulf %185, %195 : vector<16x128xf32>
    %197 = arith.addf %194, %196 : vector<16x128xf32>
    %198 = math.tanh %197 : vector<16x128xf32>
    %cst_88 = arith.constant 1.000000e+00 : f32
    %199 = vector.broadcast %cst_88 : f32 to vector<16x128xf32>
    %200 = arith.subf %199, %193 : vector<16x128xf32>
    %201 = arith.mulf %200, %198 : vector<16x128xf32>
    %202 = arith.mulf %193, %108 : vector<16x128xf32>
    %203 = arith.addf %201, %202 : vector<16x128xf32>
    %204 = arith.index_cast %126 : i32 to index
    %c0_89 = arith.constant 0 : index
    %205 = vector.load %arg6[%204, %c0_89] : memref<128x128xf32, #tpu.memory_space<vmem>>, vector<16x128xf32>
    %206 = arith.addf %205, %177 : vector<16x128xf32>
    %207 = arith.index_cast %126 : i32 to index
    %c0_90 = arith.constant 0 : index
    %208 = vector.load %arg6[%207, %c0_90] : memref<128x128xf32, #tpu.memory_space<vmem>>, vector<16x128xf32>
    tpu.vector_store %arg6[%207, %c0_90], %206 {strides = array<i32>} : memref<128x128xf32, #tpu.memory_space<vmem>>, vector<16x128xf32>,
    %209 = arith.index_cast %129 : i32 to index
    %c0_91 = arith.constant 0 : index
    %210 = vector.load %arg6[%209, %c0_91] : memref<128x128xf32, #tpu.memory_space<vmem>>, vector<16x128xf32>
    %211 = arith.addf %210, %203 : vector<16x128xf32>
    %212 = arith.index_cast %129 : i32 to index
    %c0_92 = arith.constant 0 : index
    %213 = vector.load %arg6[%212, %c0_92] : memref<128x128xf32, #tpu.memory_space<vmem>>, vector<16x128xf32>
    tpu.vector_store %arg6[%212, %c0_92], %211 {strides = array<i32>} : memref<128x128xf32, #tpu.memory_space<vmem>>, vector<16x128xf32>,
    %c2_i32 = arith.constant 2 : i32
    %c16_i32_93 = arith.constant 16 : i32
    %214 = arith.muli %c2_i32, %c16_i32_93 : i32
    %215 = tpu.assume_multiple %214, 16 : i32
    %c7_i32_94 = arith.constant 7 : i32
    %216 = arith.subi %c7_i32_94, %c2_i32 : i32
    %c16_i32_95 = arith.constant 16 : i32
    %217 = arith.muli %216, %c16_i32_95 : i32
    %218 = tpu.assume_multiple %217, 16 : i32
    %c0_i32_96 = arith.constant 0 : i32
    %219 = arith.addi %c0_i32_96, %c2_i32 : i32
    %c16_i32_97 = arith.constant 16 : i32
    %220 = arith.muli %219, %c16_i32_97 : i32
    %221 = tpu.assume_multiple %220, 16 : i32
    %c7_i32_98 = arith.constant 7 : i32
    %222 = arith.subi %c7_i32_98, %c2_i32 : i32
    %c16_i32_99 = arith.constant 16 : i32
    %223 = arith.muli %222, %c16_i32_99 : i32
    %224 = tpu.assume_multiple %223, 16 : i32
    %c0_100 = arith.constant 0 : index
    %225 = arith.index_cast %215 : i32 to index
    %c0_101 = arith.constant 0 : index
    %226 = vector.load %arg8[%c0_100, %225, %c0_101] : memref<2x128x384xf32, #tpu.memory_space<vmem>>, vector<1x16x384xf32>
    %227 = vector.shape_cast %226 : vector<1x16x384xf32> to vector<16x384xf32>
    %c0_102 = arith.constant 0 : index
    %228 = arith.index_cast %218 : i32 to index
    %c0_103 = arith.constant 0 : index
    %229 = vector.load %arg9[%c0_102, %228, %c0_103] : memref<2x128x384xf32, #tpu.memory_space<vmem>>, vector<1x16x384xf32>
    %230 = vector.shape_cast %229 : vector<1x16x384xf32> to vector<16x384xf32>
    %231 = arith.truncf %177 : vector<16x128xf32> to vector<16x128xbf16>
    %c0_104 = arith.constant 0 : index
    %c0_105 = arith.constant 0 : index
    %c0_106 = arith.constant 0 : index
    %232 = vector.load %arg3[%c0_104, %c0_105, %c0_106] : memref<2x128x384xbf16, #tpu.memory_space<vmem>>, vector<1x128x384xbf16>
    %233 = vector.shape_cast %232 : vector<1x128x384xbf16> to vector<128x384xbf16>
    %cst_107 = arith.constant dense<0.000000e+00> : vector<16x384xf32>
    %234 = tpu.matmul %231, %233, %cst_107 {dimension_numbers = #tpu.dot_dimension_numbers<[1], [0], [0], [1], [0, 0, 1, 1], [], []>} : vector<16x128xbf16>, vector<128x384xbf16>, vector<16x384xf32> -> vector<16x384xf32>
    %c0_108 = arith.constant 0 : index
    %c0_109 = arith.constant 0 : index
    %c0_110 = arith.constant 0 : index
    %235 = vector.load %arg4[%c0_108, %c0_109, %c0_110] : memref<2x1x384xf32, #tpu.memory_space<vmem>>, vector<1x1x384xf32>
    %236 = vector.shape_cast %235 : vector<1x1x384xf32> to vector<1x384xf32>
    %237 = vector.broadcast %236 : vector<1x384xf32> to vector<16x384xf32>
    %238 = arith.addf %234, %237 : vector<16x384xf32>
    %239 = arith.truncf %203 : vector<16x128xf32> to vector<16x128xbf16>
    %c1_111 = arith.constant 1 : index
    %c0_112 = arith.constant 0 : index
    %c0_113 = arith.constant 0 : index
    %240 = vector.load %arg3[%c1_111, %c0_112, %c0_113] : memref<2x128x384xbf16, #tpu.memory_space<vmem>>, vector<1x128x384xbf16>
    %241 = vector.shape_cast %240 : vector<1x128x384xbf16> to vector<128x384xbf16>
    %cst_114 = arith.constant dense<0.000000e+00> : vector<16x384xf32>
    %242 = tpu.matmul %239, %241, %cst_114 {dimension_numbers = #tpu.dot_dimension_numbers<[1], [0], [0], [1], [0, 0, 1, 1], [], []>} : vector<16x128xbf16>, vector<128x384xbf16>, vector<16x384xf32> -> vector<16x384xf32>
    %c1_115 = arith.constant 1 : index
    %c0_116 = arith.constant 0 : index
    %c0_117 = arith.constant 0 : index
    %243 = vector.load %arg4[%c1_115, %c0_116, %c0_117] : memref<2x1x384xf32, #tpu.memory_space<vmem>>, vector<1x1x384xf32>
    %244 = vector.shape_cast %243 : vector<1x1x384xf32> to vector<1x384xf32>
    %245 = vector.broadcast %244 : vector<1x384xf32> to vector<16x384xf32>
    %246 = arith.addf %242, %245 : vector<16x384xf32>
    %247 = vector.extract_strided_slice %227 {offsets = [0, 0], sizes = [16, 128], strides = [1, 1]} : vector<16x384xf32> to vector<16x128xf32>
    %248 = vector.extract_strided_slice %238 {offsets = [0, 0], sizes = [16, 128], strides = [1, 1]} : vector<16x384xf32> to vector<16x128xf32>
    %249 = arith.addf %247, %248 : vector<16x128xf32>
    %250 = arith.negf %249 : vector<16x128xf32>
    %251 = math.exp %250 : vector<16x128xf32>
    %cst_118 = arith.constant 1.000000e+00 : f32
    %252 = vector.broadcast %cst_118 : f32 to vector<16x128xf32>
    %253 = arith.addf %252, %251 : vector<16x128xf32>
    %254 = arith.divf %252, %253 : vector<16x128xf32>
    %255 = vector.extract_strided_slice %227 {offsets = [0, 128], sizes = [16, 128], strides = [1, 1]} : vector<16x384xf32> to vector<16x128xf32>
    %256 = vector.extract_strided_slice %238 {offsets = [0, 128], sizes = [16, 128], strides = [1, 1]} : vector<16x384xf32> to vector<16x128xf32>
    %257 = arith.addf %255, %256 : vector<16x128xf32>
    %258 = arith.negf %257 : vector<16x128xf32>
    %259 = math.exp %258 : vector<16x128xf32>
    %cst_119 = arith.constant 1.000000e+00 : f32
    %260 = vector.broadcast %cst_119 : f32 to vector<16x128xf32>
    %261 = arith.addf %260, %259 : vector<16x128xf32>
    %262 = arith.divf %260, %261 : vector<16x128xf32>
    %263 = vector.extract_strided_slice %227 {offsets = [0, 256], sizes = [16, 128], strides = [1, 1]} : vector<16x384xf32> to vector<16x128xf32>
    %264 = vector.extract_strided_slice %238 {offsets = [0, 256], sizes = [16, 128], strides = [1, 1]} : vector<16x384xf32> to vector<16x128xf32>
    %265 = arith.mulf %254, %264 : vector<16x128xf32>
    %266 = arith.addf %263, %265 : vector<16x128xf32>
    %267 = math.tanh %266 : vector<16x128xf32>
    %cst_120 = arith.constant 1.000000e+00 : f32
    %268 = vector.broadcast %cst_120 : f32 to vector<16x128xf32>
    %269 = arith.subf %268, %262 : vector<16x128xf32>
    %270 = arith.mulf %269, %267 : vector<16x128xf32>
    %271 = arith.mulf %262, %177 : vector<16x128xf32>
    %272 = arith.addf %270, %271 : vector<16x128xf32>
    %273 = vector.extract_strided_slice %230 {offsets = [0, 0], sizes = [16, 128], strides = [1, 1]} : vector<16x384xf32> to vector<16x128xf32>
    %274 = vector.extract_strided_slice %246 {offsets = [0, 0], sizes = [16, 128], strides = [1, 1]} : vector<16x384xf32> to vector<16x128xf32>
    %275 = arith.addf %273, %274 : vector<16x128xf32>
    %276 = arith.negf %275 : vector<16x128xf32>
    %277 = math.exp %276 : vector<16x128xf32>
    %cst_121 = arith.constant 1.000000e+00 : f32
    %278 = vector.broadcast %cst_121 : f32 to vector<16x128xf32>
    %279 = arith.addf %278, %277 : vector<16x128xf32>
    %280 = arith.divf %278, %279 : vector<16x128xf32>
    %281 = vector.extract_strided_slice %230 {offsets = [0, 128], sizes = [16, 128], strides = [1, 1]} : vector<16x384xf32> to vector<16x128xf32>
    %282 = vector.extract_strided_slice %246 {offsets = [0, 128], sizes = [16, 128], strides = [1, 1]} : vector<16x384xf32> to vector<16x128xf32>
    %283 = arith.addf %281, %282 : vector<16x128xf32>
    %284 = arith.negf %283 : vector<16x128xf32>
    %285 = math.exp %284 : vector<16x128xf32>
    %cst_122 = arith.constant 1.000000e+00 : f32
    %286 = vector.broadcast %cst_122 : f32 to vector<16x128xf32>
    %287 = arith.addf %286, %285 : vector<16x128xf32>
    %288 = arith.divf %286, %287 : vector<16x128xf32>
    %289 = vector.extract_strided_slice %230 {offsets = [0, 256], sizes = [16, 128], strides = [1, 1]} : vector<16x384xf32> to vector<16x128xf32>
    %290 = vector.extract_strided_slice %246 {offsets = [0, 256], sizes = [16, 128], strides = [1, 1]} : vector<16x384xf32> to vector<16x128xf32>
    %291 = arith.mulf %280, %290 : vector<16x128xf32>
    %292 = arith.addf %289, %291 : vector<16x128xf32>
    %293 = math.tanh %292 : vector<16x128xf32>
    %cst_123 = arith.constant 1.000000e+00 : f32
    %294 = vector.broadcast %cst_123 : f32 to vector<16x128xf32>
    %295 = arith.subf %294, %288 : vector<16x128xf32>
    %296 = arith.mulf %295, %293 : vector<16x128xf32>
    %297 = arith.mulf %288, %203 : vector<16x128xf32>
    %298 = arith.addf %296, %297 : vector<16x128xf32>
    %299 = arith.index_cast %221 : i32 to index
    %c0_124 = arith.constant 0 : index
    %300 = vector.load %arg6[%299, %c0_124] : memref<128x128xf32, #tpu.memory_space<vmem>>, vector<16x128xf32>
    %301 = arith.addf %300, %272 : vector<16x128xf32>
    %302 = arith.index_cast %221 : i32 to index
    %c0_125 = arith.constant 0 : index
    %303 = vector.load %arg6[%302, %c0_125] : memref<128x128xf32, #tpu.memory_space<vmem>>, vector<16x128xf32>
    tpu.vector_store %arg6[%302, %c0_125], %301 {strides = array<i32>} : memref<128x128xf32, #tpu.memory_space<vmem>>, vector<16x128xf32>,
    %304 = arith.index_cast %224 : i32 to index
    %c0_126 = arith.constant 0 : index
    %305 = vector.load %arg6[%304, %c0_126] : memref<128x128xf32, #tpu.memory_space<vmem>>, vector<16x128xf32>
    %306 = arith.addf %305, %298 : vector<16x128xf32>
    %307 = arith.index_cast %224 : i32 to index
    %c0_127 = arith.constant 0 : index
    %308 = vector.load %arg6[%307, %c0_127] : memref<128x128xf32, #tpu.memory_space<vmem>>, vector<16x128xf32>
    tpu.vector_store %arg6[%307, %c0_127], %306 {strides = array<i32>} : memref<128x128xf32, #tpu.memory_space<vmem>>, vector<16x128xf32>,
    %c3_i32 = arith.constant 3 : i32
    %c16_i32_128 = arith.constant 16 : i32
    %309 = arith.muli %c3_i32, %c16_i32_128 : i32
    %310 = tpu.assume_multiple %309, 16 : i32
    %c7_i32_129 = arith.constant 7 : i32
    %311 = arith.subi %c7_i32_129, %c3_i32 : i32
    %c16_i32_130 = arith.constant 16 : i32
    %312 = arith.muli %311, %c16_i32_130 : i32
    %313 = tpu.assume_multiple %312, 16 : i32
    %c0_i32_131 = arith.constant 0 : i32
    %314 = arith.addi %c0_i32_131, %c3_i32 : i32
    %c16_i32_132 = arith.constant 16 : i32
    %315 = arith.muli %314, %c16_i32_132 : i32
    %316 = tpu.assume_multiple %315, 16 : i32
    %c7_i32_133 = arith.constant 7 : i32
    %317 = arith.subi %c7_i32_133, %c3_i32 : i32
    %c16_i32_134 = arith.constant 16 : i32
    %318 = arith.muli %317, %c16_i32_134 : i32
    %319 = tpu.assume_multiple %318, 16 : i32
    %c0_135 = arith.constant 0 : index
    %320 = arith.index_cast %310 : i32 to index
    %c0_136 = arith.constant 0 : index
    %321 = vector.load %arg8[%c0_135, %320, %c0_136] : memref<2x128x384xf32, #tpu.memory_space<vmem>>, vector<1x16x384xf32>
    %322 = vector.shape_cast %321 : vector<1x16x384xf32> to vector<16x384xf32>
    %c0_137 = arith.constant 0 : index
    %323 = arith.index_cast %313 : i32 to index
    %c0_138 = arith.constant 0 : index
    %324 = vector.load %arg9[%c0_137, %323, %c0_138] : memref<2x128x384xf32, #tpu.memory_space<vmem>>, vector<1x16x384xf32>
    %325 = vector.shape_cast %324 : vector<1x16x384xf32> to vector<16x384xf32>
    %326 = arith.truncf %272 : vector<16x128xf32> to vector<16x128xbf16>
    %c0_139 = arith.constant 0 : index
    %c0_140 = arith.constant 0 : index
    %c0_141 = arith.constant 0 : index
    %327 = vector.load %arg3[%c0_139, %c0_140, %c0_141] : memref<2x128x384xbf16, #tpu.memory_space<vmem>>, vector<1x128x384xbf16>
    %328 = vector.shape_cast %327 : vector<1x128x384xbf16> to vector<128x384xbf16>
    %cst_142 = arith.constant dense<0.000000e+00> : vector<16x384xf32>
    %329 = tpu.matmul %326, %328, %cst_142 {dimension_numbers = #tpu.dot_dimension_numbers<[1], [0], [0], [1], [0, 0, 1, 1], [], []>} : vector<16x128xbf16>, vector<128x384xbf16>, vector<16x384xf32> -> vector<16x384xf32>
    %c0_143 = arith.constant 0 : index
    %c0_144 = arith.constant 0 : index
    %c0_145 = arith.constant 0 : index
    %330 = vector.load %arg4[%c0_143, %c0_144, %c0_145] : memref<2x1x384xf32, #tpu.memory_space<vmem>>, vector<1x1x384xf32>
    %331 = vector.shape_cast %330 : vector<1x1x384xf32> to vector<1x384xf32>
    %332 = vector.broadcast %331 : vector<1x384xf32> to vector<16x384xf32>
    %333 = arith.addf %329, %332 : vector<16x384xf32>
    %334 = arith.truncf %298 : vector<16x128xf32> to vector<16x128xbf16>
    %c1_146 = arith.constant 1 : index
    %c0_147 = arith.constant 0 : index
    %c0_148 = arith.constant 0 : index
    %335 = vector.load %arg3[%c1_146, %c0_147, %c0_148] : memref<2x128x384xbf16, #tpu.memory_space<vmem>>, vector<1x128x384xbf16>
    %336 = vector.shape_cast %335 : vector<1x128x384xbf16> to vector<128x384xbf16>
    %cst_149 = arith.constant dense<0.000000e+00> : vector<16x384xf32>
    %337 = tpu.matmul %334, %336, %cst_149 {dimension_numbers = #tpu.dot_dimension_numbers<[1], [0], [0], [1], [0, 0, 1, 1], [], []>} : vector<16x128xbf16>, vector<128x384xbf16>, vector<16x384xf32> -> vector<16x384xf32>
    %c1_150 = arith.constant 1 : index
    %c0_151 = arith.constant 0 : index
    %c0_152 = arith.constant 0 : index
    %338 = vector.load %arg4[%c1_150, %c0_151, %c0_152] : memref<2x1x384xf32, #tpu.memory_space<vmem>>, vector<1x1x384xf32>
    %339 = vector.shape_cast %338 : vector<1x1x384xf32> to vector<1x384xf32>
    %340 = vector.broadcast %339 : vector<1x384xf32> to vector<16x384xf32>
    %341 = arith.addf %337, %340 : vector<16x384xf32>
    %342 = vector.extract_strided_slice %322 {offsets = [0, 0], sizes = [16, 128], strides = [1, 1]} : vector<16x384xf32> to vector<16x128xf32>
    %343 = vector.extract_strided_slice %333 {offsets = [0, 0], sizes = [16, 128], strides = [1, 1]} : vector<16x384xf32> to vector<16x128xf32>
    %344 = arith.addf %342, %343 : vector<16x128xf32>
    %345 = arith.negf %344 : vector<16x128xf32>
    %346 = math.exp %345 : vector<16x128xf32>
    %cst_153 = arith.constant 1.000000e+00 : f32
    %347 = vector.broadcast %cst_153 : f32 to vector<16x128xf32>
    %348 = arith.addf %347, %346 : vector<16x128xf32>
    %349 = arith.divf %347, %348 : vector<16x128xf32>
    %350 = vector.extract_strided_slice %322 {offsets = [0, 128], sizes = [16, 128], strides = [1, 1]} : vector<16x384xf32> to vector<16x128xf32>
    %351 = vector.extract_strided_slice %333 {offsets = [0, 128], sizes = [16, 128], strides = [1, 1]} : vector<16x384xf32> to vector<16x128xf32>
    %352 = arith.addf %350, %351 : vector<16x128xf32>
    %353 = arith.negf %352 : vector<16x128xf32>
    %354 = math.exp %353 : vector<16x128xf32>
    %cst_154 = arith.constant 1.000000e+00 : f32
    %355 = vector.broadcast %cst_154 : f32 to vector<16x128xf32>
    %356 = arith.addf %355, %354 : vector<16x128xf32>
    %357 = arith.divf %355, %356 : vector<16x128xf32>
    %358 = vector.extract_strided_slice %322 {offsets = [0, 256], sizes = [16, 128], strides = [1, 1]} : vector<16x384xf32> to vector<16x128xf32>
    %359 = vector.extract_strided_slice %333 {offsets = [0, 256], sizes = [16, 128], strides = [1, 1]} : vector<16x384xf32> to vector<16x128xf32>
    %360 = arith.mulf %349, %359 : vector<16x128xf32>
    %361 = arith.addf %358, %360 : vector<16x128xf32>
    %362 = math.tanh %361 : vector<16x128xf32>
    %cst_155 = arith.constant 1.000000e+00 : f32
    %363 = vector.broadcast %cst_155 : f32 to vector<16x128xf32>
    %364 = arith.subf %363, %357 : vector<16x128xf32>
    %365 = arith.mulf %364, %362 : vector<16x128xf32>
    %366 = arith.mulf %357, %272 : vector<16x128xf32>
    %367 = arith.addf %365, %366 : vector<16x128xf32>
    %368 = vector.extract_strided_slice %325 {offsets = [0, 0], sizes = [16, 128], strides = [1, 1]} : vector<16x384xf32> to vector<16x128xf32>
    %369 = vector.extract_strided_slice %341 {offsets = [0, 0], sizes = [16, 128], strides = [1, 1]} : vector<16x384xf32> to vector<16x128xf32>
    %370 = arith.addf %368, %369 : vector<16x128xf32>
    %371 = arith.negf %370 : vector<16x128xf32>
    %372 = math.exp %371 : vector<16x128xf32>
    %cst_156 = arith.constant 1.000000e+00 : f32
    %373 = vector.broadcast %cst_156 : f32 to vector<16x128xf32>
    %374 = arith.addf %373, %372 : vector<16x128xf32>
    %375 = arith.divf %373, %374 : vector<16x128xf32>
    %376 = vector.extract_strided_slice %325 {offsets = [0, 128], sizes = [16, 128], strides = [1, 1]} : vector<16x384xf32> to vector<16x128xf32>
    %377 = vector.extract_strided_slice %341 {offsets = [0, 128], sizes = [16, 128], strides = [1, 1]} : vector<16x384xf32> to vector<16x128xf32>
    %378 = arith.addf %376, %377 : vector<16x128xf32>
    %379 = arith.negf %378 : vector<16x128xf32>
    %380 = math.exp %379 : vector<16x128xf32>
    %cst_157 = arith.constant 1.000000e+00 : f32
    %381 = vector.broadcast %cst_157 : f32 to vector<16x128xf32>
    %382 = arith.addf %381, %380 : vector<16x128xf32>
    %383 = arith.divf %381, %382 : vector<16x128xf32>
    %384 = vector.extract_strided_slice %325 {offsets = [0, 256], sizes = [16, 128], strides = [1, 1]} : vector<16x384xf32> to vector<16x128xf32>
    %385 = vector.extract_strided_slice %341 {offsets = [0, 256], sizes = [16, 128], strides = [1, 1]} : vector<16x384xf32> to vector<16x128xf32>
    %386 = arith.mulf %375, %385 : vector<16x128xf32>
    %387 = arith.addf %384, %386 : vector<16x128xf32>
    %388 = math.tanh %387 : vector<16x128xf32>
    %cst_158 = arith.constant 1.000000e+00 : f32
    %389 = vector.broadcast %cst_158 : f32 to vector<16x128xf32>
    %390 = arith.subf %389, %383 : vector<16x128xf32>
    %391 = arith.mulf %390, %388 : vector<16x128xf32>
    %392 = arith.mulf %383, %298 : vector<16x128xf32>
    %393 = arith.addf %391, %392 : vector<16x128xf32>
    %394 = arith.index_cast %316 : i32 to index
    %c0_159 = arith.constant 0 : index
    %395 = vector.load %arg6[%394, %c0_159] : memref<128x128xf32, #tpu.memory_space<vmem>>, vector<16x128xf32>
    %396 = arith.addf %395, %367 : vector<16x128xf32>
    %397 = arith.index_cast %316 : i32 to index
    %c0_160 = arith.constant 0 : index
    %398 = vector.load %arg6[%397, %c0_160] : memref<128x128xf32, #tpu.memory_space<vmem>>, vector<16x128xf32>
    tpu.vector_store %arg6[%397, %c0_160], %396 {strides = array<i32>} : memref<128x128xf32, #tpu.memory_space<vmem>>, vector<16x128xf32>,
    %399 = arith.index_cast %319 : i32 to index
    %c0_161 = arith.constant 0 : index
    %400 = vector.load %arg6[%399, %c0_161] : memref<128x128xf32, #tpu.memory_space<vmem>>, vector<16x128xf32>
    %401 = arith.addf %400, %393 : vector<16x128xf32>
    %402 = arith.index_cast %319 : i32 to index
    %c0_162 = arith.constant 0 : index
    %403 = vector.load %arg6[%402, %c0_162] : memref<128x128xf32, #tpu.memory_space<vmem>>, vector<16x128xf32>
    tpu.vector_store %arg6[%402, %c0_162], %401 {strides = array<i32>} : memref<128x128xf32, #tpu.memory_space<vmem>>, vector<16x128xf32>,
    %c4_i32 = arith.constant 4 : i32
    %c16_i32_163 = arith.constant 16 : i32
    %404 = arith.muli %c4_i32, %c16_i32_163 : i32
    %405 = tpu.assume_multiple %404, 16 : i32
    %c7_i32_164 = arith.constant 7 : i32
    %406 = arith.subi %c7_i32_164, %c4_i32 : i32
    %c16_i32_165 = arith.constant 16 : i32
    %407 = arith.muli %406, %c16_i32_165 : i32
    %408 = tpu.assume_multiple %407, 16 : i32
    %c0_i32_166 = arith.constant 0 : i32
    %409 = arith.addi %c0_i32_166, %c4_i32 : i32
    %c16_i32_167 = arith.constant 16 : i32
    %410 = arith.muli %409, %c16_i32_167 : i32
    %411 = tpu.assume_multiple %410, 16 : i32
    %c7_i32_168 = arith.constant 7 : i32
    %412 = arith.subi %c7_i32_168, %c4_i32 : i32
    %c16_i32_169 = arith.constant 16 : i32
    %413 = arith.muli %412, %c16_i32_169 : i32
    %414 = tpu.assume_multiple %413, 16 : i32
    %c0_170 = arith.constant 0 : index
    %415 = arith.index_cast %405 : i32 to index
    %c0_171 = arith.constant 0 : index
    %416 = vector.load %arg8[%c0_170, %415, %c0_171] : memref<2x128x384xf32, #tpu.memory_space<vmem>>, vector<1x16x384xf32>
    %417 = vector.shape_cast %416 : vector<1x16x384xf32> to vector<16x384xf32>
    %c0_172 = arith.constant 0 : index
    %418 = arith.index_cast %408 : i32 to index
    %c0_173 = arith.constant 0 : index
    %419 = vector.load %arg9[%c0_172, %418, %c0_173] : memref<2x128x384xf32, #tpu.memory_space<vmem>>, vector<1x16x384xf32>
    %420 = vector.shape_cast %419 : vector<1x16x384xf32> to vector<16x384xf32>
    %421 = arith.truncf %367 : vector<16x128xf32> to vector<16x128xbf16>
    %c0_174 = arith.constant 0 : index
    %c0_175 = arith.constant 0 : index
    %c0_176 = arith.constant 0 : index
    %422 = vector.load %arg3[%c0_174, %c0_175, %c0_176] : memref<2x128x384xbf16, #tpu.memory_space<vmem>>, vector<1x128x384xbf16>
    %423 = vector.shape_cast %422 : vector<1x128x384xbf16> to vector<128x384xbf16>
    %cst_177 = arith.constant dense<0.000000e+00> : vector<16x384xf32>
    %424 = tpu.matmul %421, %423, %cst_177 {dimension_numbers = #tpu.dot_dimension_numbers<[1], [0], [0], [1], [0, 0, 1, 1], [], []>} : vector<16x128xbf16>, vector<128x384xbf16>, vector<16x384xf32> -> vector<16x384xf32>
    %c0_178 = arith.constant 0 : index
    %c0_179 = arith.constant 0 : index
    %c0_180 = arith.constant 0 : index
    %425 = vector.load %arg4[%c0_178, %c0_179, %c0_180] : memref<2x1x384xf32, #tpu.memory_space<vmem>>, vector<1x1x384xf32>
    %426 = vector.shape_cast %425 : vector<1x1x384xf32> to vector<1x384xf32>
    %427 = vector.broadcast %426 : vector<1x384xf32> to vector<16x384xf32>
    %428 = arith.addf %424, %427 : vector<16x384xf32>
    %429 = arith.truncf %393 : vector<16x128xf32> to vector<16x128xbf16>
    %c1_181 = arith.constant 1 : index
    %c0_182 = arith.constant 0 : index
    %c0_183 = arith.constant 0 : index
    %430 = vector.load %arg3[%c1_181, %c0_182, %c0_183] : memref<2x128x384xbf16, #tpu.memory_space<vmem>>, vector<1x128x384xbf16>
    %431 = vector.shape_cast %430 : vector<1x128x384xbf16> to vector<128x384xbf16>
    %cst_184 = arith.constant dense<0.000000e+00> : vector<16x384xf32>
    %432 = tpu.matmul %429, %431, %cst_184 {dimension_numbers = #tpu.dot_dimension_numbers<[1], [0], [0], [1], [0, 0, 1, 1], [], []>} : vector<16x128xbf16>, vector<128x384xbf16>, vector<16x384xf32> -> vector<16x384xf32>
    %c1_185 = arith.constant 1 : index
    %c0_186 = arith.constant 0 : index
    %c0_187 = arith.constant 0 : index
    %433 = vector.load %arg4[%c1_185, %c0_186, %c0_187] : memref<2x1x384xf32, #tpu.memory_space<vmem>>, vector<1x1x384xf32>
    %434 = vector.shape_cast %433 : vector<1x1x384xf32> to vector<1x384xf32>
    %435 = vector.broadcast %434 : vector<1x384xf32> to vector<16x384xf32>
    %436 = arith.addf %432, %435 : vector<16x384xf32>
    %437 = vector.extract_strided_slice %417 {offsets = [0, 0], sizes = [16, 128], strides = [1, 1]} : vector<16x384xf32> to vector<16x128xf32>
    %438 = vector.extract_strided_slice %428 {offsets = [0, 0], sizes = [16, 128], strides = [1, 1]} : vector<16x384xf32> to vector<16x128xf32>
    %439 = arith.addf %437, %438 : vector<16x128xf32>
    %440 = arith.negf %439 : vector<16x128xf32>
    %441 = math.exp %440 : vector<16x128xf32>
    %cst_188 = arith.constant 1.000000e+00 : f32
    %442 = vector.broadcast %cst_188 : f32 to vector<16x128xf32>
    %443 = arith.addf %442, %441 : vector<16x128xf32>
    %444 = arith.divf %442, %443 : vector<16x128xf32>
    %445 = vector.extract_strided_slice %417 {offsets = [0, 128], sizes = [16, 128], strides = [1, 1]} : vector<16x384xf32> to vector<16x128xf32>
    %446 = vector.extract_strided_slice %428 {offsets = [0, 128], sizes = [16, 128], strides = [1, 1]} : vector<16x384xf32> to vector<16x128xf32>
    %447 = arith.addf %445, %446 : vector<16x128xf32>
    %448 = arith.negf %447 : vector<16x128xf32>
    %449 = math.exp %448 : vector<16x128xf32>
    %cst_189 = arith.constant 1.000000e+00 : f32
    %450 = vector.broadcast %cst_189 : f32 to vector<16x128xf32>
    %451 = arith.addf %450, %449 : vector<16x128xf32>
    %452 = arith.divf %450, %451 : vector<16x128xf32>
    %453 = vector.extract_strided_slice %417 {offsets = [0, 256], sizes = [16, 128], strides = [1, 1]} : vector<16x384xf32> to vector<16x128xf32>
    %454 = vector.extract_strided_slice %428 {offsets = [0, 256], sizes = [16, 128], strides = [1, 1]} : vector<16x384xf32> to vector<16x128xf32>
    %455 = arith.mulf %444, %454 : vector<16x128xf32>
    %456 = arith.addf %453, %455 : vector<16x128xf32>
    %457 = math.tanh %456 : vector<16x128xf32>
    %cst_190 = arith.constant 1.000000e+00 : f32
    %458 = vector.broadcast %cst_190 : f32 to vector<16x128xf32>
    %459 = arith.subf %458, %452 : vector<16x128xf32>
    %460 = arith.mulf %459, %457 : vector<16x128xf32>
    %461 = arith.mulf %452, %367 : vector<16x128xf32>
    %462 = arith.addf %460, %461 : vector<16x128xf32>
    %463 = vector.extract_strided_slice %420 {offsets = [0, 0], sizes = [16, 128], strides = [1, 1]} : vector<16x384xf32> to vector<16x128xf32>
    %464 = vector.extract_strided_slice %436 {offsets = [0, 0], sizes = [16, 128], strides = [1, 1]} : vector<16x384xf32> to vector<16x128xf32>
    %465 = arith.addf %463, %464 : vector<16x128xf32>
    %466 = arith.negf %465 : vector<16x128xf32>
    %467 = math.exp %466 : vector<16x128xf32>
    %cst_191 = arith.constant 1.000000e+00 : f32
    %468 = vector.broadcast %cst_191 : f32 to vector<16x128xf32>
    %469 = arith.addf %468, %467 : vector<16x128xf32>
    %470 = arith.divf %468, %469 : vector<16x128xf32>
    %471 = vector.extract_strided_slice %420 {offsets = [0, 128], sizes = [16, 128], strides = [1, 1]} : vector<16x384xf32> to vector<16x128xf32>
    %472 = vector.extract_strided_slice %436 {offsets = [0, 128], sizes = [16, 128], strides = [1, 1]} : vector<16x384xf32> to vector<16x128xf32>
    %473 = arith.addf %471, %472 : vector<16x128xf32>
    %474 = arith.negf %473 : vector<16x128xf32>
    %475 = math.exp %474 : vector<16x128xf32>
    %cst_192 = arith.constant 1.000000e+00 : f32
    %476 = vector.broadcast %cst_192 : f32 to vector<16x128xf32>
    %477 = arith.addf %476, %475 : vector<16x128xf32>
    %478 = arith.divf %476, %477 : vector<16x128xf32>
    %479 = vector.extract_strided_slice %420 {offsets = [0, 256], sizes = [16, 128], strides = [1, 1]} : vector<16x384xf32> to vector<16x128xf32>
    %480 = vector.extract_strided_slice %436 {offsets = [0, 256], sizes = [16, 128], strides = [1, 1]} : vector<16x384xf32> to vector<16x128xf32>
    %481 = arith.mulf %470, %480 : vector<16x128xf32>
    %482 = arith.addf %479, %481 : vector<16x128xf32>
    %483 = math.tanh %482 : vector<16x128xf32>
    %cst_193 = arith.constant 1.000000e+00 : f32
    %484 = vector.broadcast %cst_193 : f32 to vector<16x128xf32>
    %485 = arith.subf %484, %478 : vector<16x128xf32>
    %486 = arith.mulf %485, %483 : vector<16x128xf32>
    %487 = arith.mulf %478, %393 : vector<16x128xf32>
    %488 = arith.addf %486, %487 : vector<16x128xf32>
    %489 = arith.index_cast %411 : i32 to index
    %c0_194 = arith.constant 0 : index
    %490 = vector.load %arg6[%489, %c0_194] : memref<128x128xf32, #tpu.memory_space<vmem>>, vector<16x128xf32>
    %491 = arith.addf %490, %462 : vector<16x128xf32>
    %492 = arith.index_cast %411 : i32 to index
    %c0_195 = arith.constant 0 : index
    %493 = vector.load %arg6[%492, %c0_195] : memref<128x128xf32, #tpu.memory_space<vmem>>, vector<16x128xf32>
    tpu.vector_store %arg6[%492, %c0_195], %491 {strides = array<i32>} : memref<128x128xf32, #tpu.memory_space<vmem>>, vector<16x128xf32>,
    %494 = arith.index_cast %414 : i32 to index
    %c0_196 = arith.constant 0 : index
    %495 = vector.load %arg6[%494, %c0_196] : memref<128x128xf32, #tpu.memory_space<vmem>>, vector<16x128xf32>
    %496 = arith.addf %495, %488 : vector<16x128xf32>
    %497 = arith.index_cast %414 : i32 to index
    %c0_197 = arith.constant 0 : index
    %498 = vector.load %arg6[%497, %c0_197] : memref<128x128xf32, #tpu.memory_space<vmem>>, vector<16x128xf32>
    tpu.vector_store %arg6[%497, %c0_197], %496 {strides = array<i32>} : memref<128x128xf32, #tpu.memory_space<vmem>>, vector<16x128xf32>,
    %c5_i32 = arith.constant 5 : i32
    %c16_i32_198 = arith.constant 16 : i32
    %499 = arith.muli %c5_i32, %c16_i32_198 : i32
    %500 = tpu.assume_multiple %499, 16 : i32
    %c7_i32_199 = arith.constant 7 : i32
    %501 = arith.subi %c7_i32_199, %c5_i32 : i32
    %c16_i32_200 = arith.constant 16 : i32
    %502 = arith.muli %501, %c16_i32_200 : i32
    %503 = tpu.assume_multiple %502, 16 : i32
    %c0_i32_201 = arith.constant 0 : i32
    %504 = arith.addi %c0_i32_201, %c5_i32 : i32
    %c16_i32_202 = arith.constant 16 : i32
    %505 = arith.muli %504, %c16_i32_202 : i32
    %506 = tpu.assume_multiple %505, 16 : i32
    %c7_i32_203 = arith.constant 7 : i32
    %507 = arith.subi %c7_i32_203, %c5_i32 : i32
    %c16_i32_204 = arith.constant 16 : i32
    %508 = arith.muli %507, %c16_i32_204 : i32
    %509 = tpu.assume_multiple %508, 16 : i32
    %c0_205 = arith.constant 0 : index
    %510 = arith.index_cast %500 : i32 to index
    %c0_206 = arith.constant 0 : index
    %511 = vector.load %arg8[%c0_205, %510, %c0_206] : memref<2x128x384xf32, #tpu.memory_space<vmem>>, vector<1x16x384xf32>
    %512 = vector.shape_cast %511 : vector<1x16x384xf32> to vector<16x384xf32>
    %c0_207 = arith.constant 0 : index
    %513 = arith.index_cast %503 : i32 to index
    %c0_208 = arith.constant 0 : index
    %514 = vector.load %arg9[%c0_207, %513, %c0_208] : memref<2x128x384xf32, #tpu.memory_space<vmem>>, vector<1x16x384xf32>
    %515 = vector.shape_cast %514 : vector<1x16x384xf32> to vector<16x384xf32>
    %516 = arith.truncf %462 : vector<16x128xf32> to vector<16x128xbf16>
    %c0_209 = arith.constant 0 : index
    %c0_210 = arith.constant 0 : index
    %c0_211 = arith.constant 0 : index
    %517 = vector.load %arg3[%c0_209, %c0_210, %c0_211] : memref<2x128x384xbf16, #tpu.memory_space<vmem>>, vector<1x128x384xbf16>
    %518 = vector.shape_cast %517 : vector<1x128x384xbf16> to vector<128x384xbf16>
    %cst_212 = arith.constant dense<0.000000e+00> : vector<16x384xf32>
    %519 = tpu.matmul %516, %518, %cst_212 {dimension_numbers = #tpu.dot_dimension_numbers<[1], [0], [0], [1], [0, 0, 1, 1], [], []>} : vector<16x128xbf16>, vector<128x384xbf16>, vector<16x384xf32> -> vector<16x384xf32>
    %c0_213 = arith.constant 0 : index
    %c0_214 = arith.constant 0 : index
    %c0_215 = arith.constant 0 : index
    %520 = vector.load %arg4[%c0_213, %c0_214, %c0_215] : memref<2x1x384xf32, #tpu.memory_space<vmem>>, vector<1x1x384xf32>
    %521 = vector.shape_cast %520 : vector<1x1x384xf32> to vector<1x384xf32>
    %522 = vector.broadcast %521 : vector<1x384xf32> to vector<16x384xf32>
    %523 = arith.addf %519, %522 : vector<16x384xf32>
    %524 = arith.truncf %488 : vector<16x128xf32> to vector<16x128xbf16>
    %c1_216 = arith.constant 1 : index
    %c0_217 = arith.constant 0 : index
    %c0_218 = arith.constant 0 : index
    %525 = vector.load %arg3[%c1_216, %c0_217, %c0_218] : memref<2x128x384xbf16, #tpu.memory_space<vmem>>, vector<1x128x384xbf16>
    %526 = vector.shape_cast %525 : vector<1x128x384xbf16> to vector<128x384xbf16>
    %cst_219 = arith.constant dense<0.000000e+00> : vector<16x384xf32>
    %527 = tpu.matmul %524, %526, %cst_219 {dimension_numbers = #tpu.dot_dimension_numbers<[1], [0], [0], [1], [0, 0, 1, 1], [], []>} : vector<16x128xbf16>, vector<128x384xbf16>, vector<16x384xf32> -> vector<16x384xf32>
    %c1_220 = arith.constant 1 : index
    %c0_221 = arith.constant 0 : index
    %c0_222 = arith.constant 0 : index
    %528 = vector.load %arg4[%c1_220, %c0_221, %c0_222] : memref<2x1x384xf32, #tpu.memory_space<vmem>>, vector<1x1x384xf32>
    %529 = vector.shape_cast %528 : vector<1x1x384xf32> to vector<1x384xf32>
    %530 = vector.broadcast %529 : vector<1x384xf32> to vector<16x384xf32>
    %531 = arith.addf %527, %530 : vector<16x384xf32>
    %532 = vector.extract_strided_slice %512 {offsets = [0, 0], sizes = [16, 128], strides = [1, 1]} : vector<16x384xf32> to vector<16x128xf32>
    %533 = vector.extract_strided_slice %523 {offsets = [0, 0], sizes = [16, 128], strides = [1, 1]} : vector<16x384xf32> to vector<16x128xf32>
    %534 = arith.addf %532, %533 : vector<16x128xf32>
    %535 = arith.negf %534 : vector<16x128xf32>
    %536 = math.exp %535 : vector<16x128xf32>
    %cst_223 = arith.constant 1.000000e+00 : f32
    %537 = vector.broadcast %cst_223 : f32 to vector<16x128xf32>
    %538 = arith.addf %537, %536 : vector<16x128xf32>
    %539 = arith.divf %537, %538 : vector<16x128xf32>
    %540 = vector.extract_strided_slice %512 {offsets = [0, 128], sizes = [16, 128], strides = [1, 1]} : vector<16x384xf32> to vector<16x128xf32>
    %541 = vector.extract_strided_slice %523 {offsets = [0, 128], sizes = [16, 128], strides = [1, 1]} : vector<16x384xf32> to vector<16x128xf32>
    %542 = arith.addf %540, %541 : vector<16x128xf32>
    %543 = arith.negf %542 : vector<16x128xf32>
    %544 = math.exp %543 : vector<16x128xf32>
    %cst_224 = arith.constant 1.000000e+00 : f32
    %545 = vector.broadcast %cst_224 : f32 to vector<16x128xf32>
    %546 = arith.addf %545, %544 : vector<16x128xf32>
    %547 = arith.divf %545, %546 : vector<16x128xf32>
    %548 = vector.extract_strided_slice %512 {offsets = [0, 256], sizes = [16, 128], strides = [1, 1]} : vector<16x384xf32> to vector<16x128xf32>
    %549 = vector.extract_strided_slice %523 {offsets = [0, 256], sizes = [16, 128], strides = [1, 1]} : vector<16x384xf32> to vector<16x128xf32>
    %550 = arith.mulf %539, %549 : vector<16x128xf32>
    %551 = arith.addf %548, %550 : vector<16x128xf32>
    %552 = math.tanh %551 : vector<16x128xf32>
    %cst_225 = arith.constant 1.000000e+00 : f32
    %553 = vector.broadcast %cst_225 : f32 to vector<16x128xf32>
    %554 = arith.subf %553, %547 : vector<16x128xf32>
    %555 = arith.mulf %554, %552 : vector<16x128xf32>
    %556 = arith.mulf %547, %462 : vector<16x128xf32>
    %557 = arith.addf %555, %556 : vector<16x128xf32>
    %558 = vector.extract_strided_slice %515 {offsets = [0, 0], sizes = [16, 128], strides = [1, 1]} : vector<16x384xf32> to vector<16x128xf32>
    %559 = vector.extract_strided_slice %531 {offsets = [0, 0], sizes = [16, 128], strides = [1, 1]} : vector<16x384xf32> to vector<16x128xf32>
    %560 = arith.addf %558, %559 : vector<16x128xf32>
    %561 = arith.negf %560 : vector<16x128xf32>
    %562 = math.exp %561 : vector<16x128xf32>
    %cst_226 = arith.constant 1.000000e+00 : f32
    %563 = vector.broadcast %cst_226 : f32 to vector<16x128xf32>
    %564 = arith.addf %563, %562 : vector<16x128xf32>
    %565 = arith.divf %563, %564 : vector<16x128xf32>
    %566 = vector.extract_strided_slice %515 {offsets = [0, 128], sizes = [16, 128], strides = [1, 1]} : vector<16x384xf32> to vector<16x128xf32>
    %567 = vector.extract_strided_slice %531 {offsets = [0, 128], sizes = [16, 128], strides = [1, 1]} : vector<16x384xf32> to vector<16x128xf32>
    %568 = arith.addf %566, %567 : vector<16x128xf32>
    %569 = arith.negf %568 : vector<16x128xf32>
    %570 = math.exp %569 : vector<16x128xf32>
    %cst_227 = arith.constant 1.000000e+00 : f32
    %571 = vector.broadcast %cst_227 : f32 to vector<16x128xf32>
    %572 = arith.addf %571, %570 : vector<16x128xf32>
    %573 = arith.divf %571, %572 : vector<16x128xf32>
    %574 = vector.extract_strided_slice %515 {offsets = [0, 256], sizes = [16, 128], strides = [1, 1]} : vector<16x384xf32> to vector<16x128xf32>
    %575 = vector.extract_strided_slice %531 {offsets = [0, 256], sizes = [16, 128], strides = [1, 1]} : vector<16x384xf32> to vector<16x128xf32>
    %576 = arith.mulf %565, %575 : vector<16x128xf32>
    %577 = arith.addf %574, %576 : vector<16x128xf32>
    %578 = math.tanh %577 : vector<16x128xf32>
    %cst_228 = arith.constant 1.000000e+00 : f32
    %579 = vector.broadcast %cst_228 : f32 to vector<16x128xf32>
    %580 = arith.subf %579, %573 : vector<16x128xf32>
    %581 = arith.mulf %580, %578 : vector<16x128xf32>
    %582 = arith.mulf %573, %488 : vector<16x128xf32>
    %583 = arith.addf %581, %582 : vector<16x128xf32>
    %584 = arith.index_cast %506 : i32 to index
    %c0_229 = arith.constant 0 : index
    %585 = vector.load %arg6[%584, %c0_229] : memref<128x128xf32, #tpu.memory_space<vmem>>, vector<16x128xf32>
    %586 = arith.addf %585, %557 : vector<16x128xf32>
    %587 = arith.index_cast %506 : i32 to index
    %c0_230 = arith.constant 0 : index
    %588 = vector.load %arg6[%587, %c0_230] : memref<128x128xf32, #tpu.memory_space<vmem>>, vector<16x128xf32>
    tpu.vector_store %arg6[%587, %c0_230], %586 {strides = array<i32>} : memref<128x128xf32, #tpu.memory_space<vmem>>, vector<16x128xf32>,
    %589 = arith.index_cast %509 : i32 to index
    %c0_231 = arith.constant 0 : index
    %590 = vector.load %arg6[%589, %c0_231] : memref<128x128xf32, #tpu.memory_space<vmem>>, vector<16x128xf32>
    %591 = arith.addf %590, %583 : vector<16x128xf32>
    %592 = arith.index_cast %509 : i32 to index
    %c0_232 = arith.constant 0 : index
    %593 = vector.load %arg6[%592, %c0_232] : memref<128x128xf32, #tpu.memory_space<vmem>>, vector<16x128xf32>
    tpu.vector_store %arg6[%592, %c0_232], %591 {strides = array<i32>} : memref<128x128xf32, #tpu.memory_space<vmem>>, vector<16x128xf32>,
    %c6_i32 = arith.constant 6 : i32
    %c16_i32_233 = arith.constant 16 : i32
    %594 = arith.muli %c6_i32, %c16_i32_233 : i32
    %595 = tpu.assume_multiple %594, 16 : i32
    %c7_i32_234 = arith.constant 7 : i32
    %596 = arith.subi %c7_i32_234, %c6_i32 : i32
    %c16_i32_235 = arith.constant 16 : i32
    %597 = arith.muli %596, %c16_i32_235 : i32
    %598 = tpu.assume_multiple %597, 16 : i32
    %c0_i32_236 = arith.constant 0 : i32
    %599 = arith.addi %c0_i32_236, %c6_i32 : i32
    %c16_i32_237 = arith.constant 16 : i32
    %600 = arith.muli %599, %c16_i32_237 : i32
    %601 = tpu.assume_multiple %600, 16 : i32
    %c7_i32_238 = arith.constant 7 : i32
    %602 = arith.subi %c7_i32_238, %c6_i32 : i32
    %c16_i32_239 = arith.constant 16 : i32
    %603 = arith.muli %602, %c16_i32_239 : i32
    %604 = tpu.assume_multiple %603, 16 : i32
    %c0_240 = arith.constant 0 : index
    %605 = arith.index_cast %595 : i32 to index
    %c0_241 = arith.constant 0 : index
    %606 = vector.load %arg8[%c0_240, %605, %c0_241] : memref<2x128x384xf32, #tpu.memory_space<vmem>>, vector<1x16x384xf32>
    %607 = vector.shape_cast %606 : vector<1x16x384xf32> to vector<16x384xf32>
    %c0_242 = arith.constant 0 : index
    %608 = arith.index_cast %598 : i32 to index
    %c0_243 = arith.constant 0 : index
    %609 = vector.load %arg9[%c0_242, %608, %c0_243] : memref<2x128x384xf32, #tpu.memory_space<vmem>>, vector<1x16x384xf32>
    %610 = vector.shape_cast %609 : vector<1x16x384xf32> to vector<16x384xf32>
    %611 = arith.truncf %557 : vector<16x128xf32> to vector<16x128xbf16>
    %c0_244 = arith.constant 0 : index
    %c0_245 = arith.constant 0 : index
    %c0_246 = arith.constant 0 : index
    %612 = vector.load %arg3[%c0_244, %c0_245, %c0_246] : memref<2x128x384xbf16, #tpu.memory_space<vmem>>, vector<1x128x384xbf16>
    %613 = vector.shape_cast %612 : vector<1x128x384xbf16> to vector<128x384xbf16>
    %cst_247 = arith.constant dense<0.000000e+00> : vector<16x384xf32>
    %614 = tpu.matmul %611, %613, %cst_247 {dimension_numbers = #tpu.dot_dimension_numbers<[1], [0], [0], [1], [0, 0, 1, 1], [], []>} : vector<16x128xbf16>, vector<128x384xbf16>, vector<16x384xf32> -> vector<16x384xf32>
    %c0_248 = arith.constant 0 : index
    %c0_249 = arith.constant 0 : index
    %c0_250 = arith.constant 0 : index
    %615 = vector.load %arg4[%c0_248, %c0_249, %c0_250] : memref<2x1x384xf32, #tpu.memory_space<vmem>>, vector<1x1x384xf32>
    %616 = vector.shape_cast %615 : vector<1x1x384xf32> to vector<1x384xf32>
    %617 = vector.broadcast %616 : vector<1x384xf32> to vector<16x384xf32>
    %618 = arith.addf %614, %617 : vector<16x384xf32>
    %619 = arith.truncf %583 : vector<16x128xf32> to vector<16x128xbf16>
    %c1_251 = arith.constant 1 : index
    %c0_252 = arith.constant 0 : index
    %c0_253 = arith.constant 0 : index
    %620 = vector.load %arg3[%c1_251, %c0_252, %c0_253] : memref<2x128x384xbf16, #tpu.memory_space<vmem>>, vector<1x128x384xbf16>
    %621 = vector.shape_cast %620 : vector<1x128x384xbf16> to vector<128x384xbf16>
    %cst_254 = arith.constant dense<0.000000e+00> : vector<16x384xf32>
    %622 = tpu.matmul %619, %621, %cst_254 {dimension_numbers = #tpu.dot_dimension_numbers<[1], [0], [0], [1], [0, 0, 1, 1], [], []>} : vector<16x128xbf16>, vector<128x384xbf16>, vector<16x384xf32> -> vector<16x384xf32>
    %c1_255 = arith.constant 1 : index
    %c0_256 = arith.constant 0 : index
    %c0_257 = arith.constant 0 : index
    %623 = vector.load %arg4[%c1_255, %c0_256, %c0_257] : memref<2x1x384xf32, #tpu.memory_space<vmem>>, vector<1x1x384xf32>
    %624 = vector.shape_cast %623 : vector<1x1x384xf32> to vector<1x384xf32>
    %625 = vector.broadcast %624 : vector<1x384xf32> to vector<16x384xf32>
    %626 = arith.addf %622, %625 : vector<16x384xf32>
    %627 = vector.extract_strided_slice %607 {offsets = [0, 0], sizes = [16, 128], strides = [1, 1]} : vector<16x384xf32> to vector<16x128xf32>
    %628 = vector.extract_strided_slice %618 {offsets = [0, 0], sizes = [16, 128], strides = [1, 1]} : vector<16x384xf32> to vector<16x128xf32>
    %629 = arith.addf %627, %628 : vector<16x128xf32>
    %630 = arith.negf %629 : vector<16x128xf32>
    %631 = math.exp %630 : vector<16x128xf32>
    %cst_258 = arith.constant 1.000000e+00 : f32
    %632 = vector.broadcast %cst_258 : f32 to vector<16x128xf32>
    %633 = arith.addf %632, %631 : vector<16x128xf32>
    %634 = arith.divf %632, %633 : vector<16x128xf32>
    %635 = vector.extract_strided_slice %607 {offsets = [0, 128], sizes = [16, 128], strides = [1, 1]} : vector<16x384xf32> to vector<16x128xf32>
    %636 = vector.extract_strided_slice %618 {offsets = [0, 128], sizes = [16, 128], strides = [1, 1]} : vector<16x384xf32> to vector<16x128xf32>
    %637 = arith.addf %635, %636 : vector<16x128xf32>
    %638 = arith.negf %637 : vector<16x128xf32>
    %639 = math.exp %638 : vector<16x128xf32>
    %cst_259 = arith.constant 1.000000e+00 : f32
    %640 = vector.broadcast %cst_259 : f32 to vector<16x128xf32>
    %641 = arith.addf %640, %639 : vector<16x128xf32>
    %642 = arith.divf %640, %641 : vector<16x128xf32>
    %643 = vector.extract_strided_slice %607 {offsets = [0, 256], sizes = [16, 128], strides = [1, 1]} : vector<16x384xf32> to vector<16x128xf32>
    %644 = vector.extract_strided_slice %618 {offsets = [0, 256], sizes = [16, 128], strides = [1, 1]} : vector<16x384xf32> to vector<16x128xf32>
    %645 = arith.mulf %634, %644 : vector<16x128xf32>
    %646 = arith.addf %643, %645 : vector<16x128xf32>
    %647 = math.tanh %646 : vector<16x128xf32>
    %cst_260 = arith.constant 1.000000e+00 : f32
    %648 = vector.broadcast %cst_260 : f32 to vector<16x128xf32>
    %649 = arith.subf %648, %642 : vector<16x128xf32>
    %650 = arith.mulf %649, %647 : vector<16x128xf32>
    %651 = arith.mulf %642, %557 : vector<16x128xf32>
    %652 = arith.addf %650, %651 : vector<16x128xf32>
    %653 = vector.extract_strided_slice %610 {offsets = [0, 0], sizes = [16, 128], strides = [1, 1]} : vector<16x384xf32> to vector<16x128xf32>
    %654 = vector.extract_strided_slice %626 {offsets = [0, 0], sizes = [16, 128], strides = [1, 1]} : vector<16x384xf32> to vector<16x128xf32>
    %655 = arith.addf %653, %654 : vector<16x128xf32>
    %656 = arith.negf %655 : vector<16x128xf32>
    %657 = math.exp %656 : vector<16x128xf32>
    %cst_261 = arith.constant 1.000000e+00 : f32
    %658 = vector.broadcast %cst_261 : f32 to vector<16x128xf32>
    %659 = arith.addf %658, %657 : vector<16x128xf32>
    %660 = arith.divf %658, %659 : vector<16x128xf32>
    %661 = vector.extract_strided_slice %610 {offsets = [0, 128], sizes = [16, 128], strides = [1, 1]} : vector<16x384xf32> to vector<16x128xf32>
    %662 = vector.extract_strided_slice %626 {offsets = [0, 128], sizes = [16, 128], strides = [1, 1]} : vector<16x384xf32> to vector<16x128xf32>
    %663 = arith.addf %661, %662 : vector<16x128xf32>
    %664 = arith.negf %663 : vector<16x128xf32>
    %665 = math.exp %664 : vector<16x128xf32>
    %cst_262 = arith.constant 1.000000e+00 : f32
    %666 = vector.broadcast %cst_262 : f32 to vector<16x128xf32>
    %667 = arith.addf %666, %665 : vector<16x128xf32>
    %668 = arith.divf %666, %667 : vector<16x128xf32>
    %669 = vector.extract_strided_slice %610 {offsets = [0, 256], sizes = [16, 128], strides = [1, 1]} : vector<16x384xf32> to vector<16x128xf32>
    %670 = vector.extract_strided_slice %626 {offsets = [0, 256], sizes = [16, 128], strides = [1, 1]} : vector<16x384xf32> to vector<16x128xf32>
    %671 = arith.mulf %660, %670 : vector<16x128xf32>
    %672 = arith.addf %669, %671 : vector<16x128xf32>
    %673 = math.tanh %672 : vector<16x128xf32>
    %cst_263 = arith.constant 1.000000e+00 : f32
    %674 = vector.broadcast %cst_263 : f32 to vector<16x128xf32>
    %675 = arith.subf %674, %668 : vector<16x128xf32>
    %676 = arith.mulf %675, %673 : vector<16x128xf32>
    %677 = arith.mulf %668, %583 : vector<16x128xf32>
    %678 = arith.addf %676, %677 : vector<16x128xf32>
    %679 = arith.index_cast %601 : i32 to index
    %c0_264 = arith.constant 0 : index
    %680 = vector.load %arg6[%679, %c0_264] : memref<128x128xf32, #tpu.memory_space<vmem>>, vector<16x128xf32>
    %681 = arith.addf %680, %652 : vector<16x128xf32>
    %682 = arith.index_cast %601 : i32 to index
    %c0_265 = arith.constant 0 : index
    %683 = vector.load %arg6[%682, %c0_265] : memref<128x128xf32, #tpu.memory_space<vmem>>, vector<16x128xf32>
    tpu.vector_store %arg6[%682, %c0_265], %681 {strides = array<i32>} : memref<128x128xf32, #tpu.memory_space<vmem>>, vector<16x128xf32>,
    %684 = arith.index_cast %604 : i32 to index
    %c0_266 = arith.constant 0 : index
    %685 = vector.load %arg6[%684, %c0_266] : memref<128x128xf32, #tpu.memory_space<vmem>>, vector<16x128xf32>
    %686 = arith.addf %685, %678 : vector<16x128xf32>
    %687 = arith.index_cast %604 : i32 to index
    %c0_267 = arith.constant 0 : index
    %688 = vector.load %arg6[%687, %c0_267] : memref<128x128xf32, #tpu.memory_space<vmem>>, vector<16x128xf32>
    tpu.vector_store %arg6[%687, %c0_267], %686 {strides = array<i32>} : memref<128x128xf32, #tpu.memory_space<vmem>>, vector<16x128xf32>,
    %c7_i32_268 = arith.constant 7 : i32
    %c16_i32_269 = arith.constant 16 : i32
    %689 = arith.muli %c7_i32_268, %c16_i32_269 : i32
    %690 = tpu.assume_multiple %689, 16 : i32
    %c7_i32_270 = arith.constant 7 : i32
    %691 = arith.subi %c7_i32_270, %c7_i32_268 : i32
    %c16_i32_271 = arith.constant 16 : i32
    %692 = arith.muli %691, %c16_i32_271 : i32
    %693 = tpu.assume_multiple %692, 16 : i32
    %c0_i32_272 = arith.constant 0 : i32
    %694 = arith.addi %c0_i32_272, %c7_i32_268 : i32
    %c16_i32_273 = arith.constant 16 : i32
    %695 = arith.muli %694, %c16_i32_273 : i32
    %696 = tpu.assume_multiple %695, 16 : i32
    %c7_i32_274 = arith.constant 7 : i32
    %697 = arith.subi %c7_i32_274, %c7_i32_268 : i32
    %c16_i32_275 = arith.constant 16 : i32
    %698 = arith.muli %697, %c16_i32_275 : i32
    %699 = tpu.assume_multiple %698, 16 : i32
    %c0_276 = arith.constant 0 : index
    %700 = arith.index_cast %690 : i32 to index
    %c0_277 = arith.constant 0 : index
    %701 = vector.load %arg8[%c0_276, %700, %c0_277] : memref<2x128x384xf32, #tpu.memory_space<vmem>>, vector<1x16x384xf32>
    %702 = vector.shape_cast %701 : vector<1x16x384xf32> to vector<16x384xf32>
    %c0_278 = arith.constant 0 : index
    %703 = arith.index_cast %693 : i32 to index
    %c0_279 = arith.constant 0 : index
    %704 = vector.load %arg9[%c0_278, %703, %c0_279] : memref<2x128x384xf32, #tpu.memory_space<vmem>>, vector<1x16x384xf32>
    %705 = vector.shape_cast %704 : vector<1x16x384xf32> to vector<16x384xf32>
    %706 = arith.truncf %652 : vector<16x128xf32> to vector<16x128xbf16>
    %c0_280 = arith.constant 0 : index
    %c0_281 = arith.constant 0 : index
    %c0_282 = arith.constant 0 : index
    %707 = vector.load %arg3[%c0_280, %c0_281, %c0_282] : memref<2x128x384xbf16, #tpu.memory_space<vmem>>, vector<1x128x384xbf16>
    %708 = vector.shape_cast %707 : vector<1x128x384xbf16> to vector<128x384xbf16>
    %cst_283 = arith.constant dense<0.000000e+00> : vector<16x384xf32>
    %709 = tpu.matmul %706, %708, %cst_283 {dimension_numbers = #tpu.dot_dimension_numbers<[1], [0], [0], [1], [0, 0, 1, 1], [], []>} : vector<16x128xbf16>, vector<128x384xbf16>, vector<16x384xf32> -> vector<16x384xf32>
    %c0_284 = arith.constant 0 : index
    %c0_285 = arith.constant 0 : index
    %c0_286 = arith.constant 0 : index
    %710 = vector.load %arg4[%c0_284, %c0_285, %c0_286] : memref<2x1x384xf32, #tpu.memory_space<vmem>>, vector<1x1x384xf32>
    %711 = vector.shape_cast %710 : vector<1x1x384xf32> to vector<1x384xf32>
    %712 = vector.broadcast %711 : vector<1x384xf32> to vector<16x384xf32>
    %713 = arith.addf %709, %712 : vector<16x384xf32>
    %714 = arith.truncf %678 : vector<16x128xf32> to vector<16x128xbf16>
    %c1_287 = arith.constant 1 : index
    %c0_288 = arith.constant 0 : index
    %c0_289 = arith.constant 0 : index
    %715 = vector.load %arg3[%c1_287, %c0_288, %c0_289] : memref<2x128x384xbf16, #tpu.memory_space<vmem>>, vector<1x128x384xbf16>
    %716 = vector.shape_cast %715 : vector<1x128x384xbf16> to vector<128x384xbf16>
    %cst_290 = arith.constant dense<0.000000e+00> : vector<16x384xf32>
    %717 = tpu.matmul %714, %716, %cst_290 {dimension_numbers = #tpu.dot_dimension_numbers<[1], [0], [0], [1], [0, 0, 1, 1], [], []>} : vector<16x128xbf16>, vector<128x384xbf16>, vector<16x384xf32> -> vector<16x384xf32>
    %c1_291 = arith.constant 1 : index
    %c0_292 = arith.constant 0 : index
    %c0_293 = arith.constant 0 : index
    %718 = vector.load %arg4[%c1_291, %c0_292, %c0_293] : memref<2x1x384xf32, #tpu.memory_space<vmem>>, vector<1x1x384xf32>
    %719 = vector.shape_cast %718 : vector<1x1x384xf32> to vector<1x384xf32>
    %720 = vector.broadcast %719 : vector<1x384xf32> to vector<16x384xf32>
    %721 = arith.addf %717, %720 : vector<16x384xf32>
    %722 = vector.extract_strided_slice %702 {offsets = [0, 0], sizes = [16, 128], strides = [1, 1]} : vector<16x384xf32> to vector<16x128xf32>
    %723 = vector.extract_strided_slice %713 {offsets = [0, 0], sizes = [16, 128], strides = [1, 1]} : vector<16x384xf32> to vector<16x128xf32>
    %724 = arith.addf %722, %723 : vector<16x128xf32>
    %725 = arith.negf %724 : vector<16x128xf32>
    %726 = math.exp %725 : vector<16x128xf32>
    %cst_294 = arith.constant 1.000000e+00 : f32
    %727 = vector.broadcast %cst_294 : f32 to vector<16x128xf32>
    %728 = arith.addf %727, %726 : vector<16x128xf32>
    %729 = arith.divf %727, %728 : vector<16x128xf32>
    %730 = vector.extract_strided_slice %702 {offsets = [0, 128], sizes = [16, 128], strides = [1, 1]} : vector<16x384xf32> to vector<16x128xf32>
    %731 = vector.extract_strided_slice %713 {offsets = [0, 128], sizes = [16, 128], strides = [1, 1]} : vector<16x384xf32> to vector<16x128xf32>
    %732 = arith.addf %730, %731 : vector<16x128xf32>
    %733 = arith.negf %732 : vector<16x128xf32>
    %734 = math.exp %733 : vector<16x128xf32>
    %cst_295 = arith.constant 1.000000e+00 : f32
    %735 = vector.broadcast %cst_295 : f32 to vector<16x128xf32>
    %736 = arith.addf %735, %734 : vector<16x128xf32>
    %737 = arith.divf %735, %736 : vector<16x128xf32>
    %738 = vector.extract_strided_slice %702 {offsets = [0, 256], sizes = [16, 128], strides = [1, 1]} : vector<16x384xf32> to vector<16x128xf32>
    %739 = vector.extract_strided_slice %713 {offsets = [0, 256], sizes = [16, 128], strides = [1, 1]} : vector<16x384xf32> to vector<16x128xf32>
    %740 = arith.mulf %729, %739 : vector<16x128xf32>
    %741 = arith.addf %738, %740 : vector<16x128xf32>
    %742 = math.tanh %741 : vector<16x128xf32>
    %cst_296 = arith.constant 1.000000e+00 : f32
    %743 = vector.broadcast %cst_296 : f32 to vector<16x128xf32>
    %744 = arith.subf %743, %737 : vector<16x128xf32>
    %745 = arith.mulf %744, %742 : vector<16x128xf32>
    %746 = arith.mulf %737, %652 : vector<16x128xf32>
    %747 = arith.addf %745, %746 : vector<16x128xf32>
    %748 = vector.extract_strided_slice %705 {offsets = [0, 0], sizes = [16, 128], strides = [1, 1]} : vector<16x384xf32> to vector<16x128xf32>
    %749 = vector.extract_strided_slice %721 {offsets = [0, 0], sizes = [16, 128], strides = [1, 1]} : vector<16x384xf32> to vector<16x128xf32>
    %750 = arith.addf %748, %749 : vector<16x128xf32>
    %751 = arith.negf %750 : vector<16x128xf32>
    %752 = math.exp %751 : vector<16x128xf32>
    %cst_297 = arith.constant 1.000000e+00 : f32
    %753 = vector.broadcast %cst_297 : f32 to vector<16x128xf32>
    %754 = arith.addf %753, %752 : vector<16x128xf32>
    %755 = arith.divf %753, %754 : vector<16x128xf32>
    %756 = vector.extract_strided_slice %705 {offsets = [0, 128], sizes = [16, 128], strides = [1, 1]} : vector<16x384xf32> to vector<16x128xf32>
    %757 = vector.extract_strided_slice %721 {offsets = [0, 128], sizes = [16, 128], strides = [1, 1]} : vector<16x384xf32> to vector<16x128xf32>
    %758 = arith.addf %756, %757 : vector<16x128xf32>
    %759 = arith.negf %758 : vector<16x128xf32>
    %760 = math.exp %759 : vector<16x128xf32>
    %cst_298 = arith.constant 1.000000e+00 : f32
    %761 = vector.broadcast %cst_298 : f32 to vector<16x128xf32>
    %762 = arith.addf %761, %760 : vector<16x128xf32>
    %763 = arith.divf %761, %762 : vector<16x128xf32>
    %764 = vector.extract_strided_slice %705 {offsets = [0, 256], sizes = [16, 128], strides = [1, 1]} : vector<16x384xf32> to vector<16x128xf32>
    %765 = vector.extract_strided_slice %721 {offsets = [0, 256], sizes = [16, 128], strides = [1, 1]} : vector<16x384xf32> to vector<16x128xf32>
    %766 = arith.mulf %755, %765 : vector<16x128xf32>
    %767 = arith.addf %764, %766 : vector<16x128xf32>
    %768 = math.tanh %767 : vector<16x128xf32>
    %cst_299 = arith.constant 1.000000e+00 : f32
    %769 = vector.broadcast %cst_299 : f32 to vector<16x128xf32>
    %770 = arith.subf %769, %763 : vector<16x128xf32>
    %771 = arith.mulf %770, %768 : vector<16x128xf32>
    %772 = arith.mulf %763, %678 : vector<16x128xf32>
    %773 = arith.addf %771, %772 : vector<16x128xf32>
    %774 = arith.index_cast %696 : i32 to index
    %c0_300 = arith.constant 0 : index
    %775 = vector.load %arg6[%774, %c0_300] : memref<128x128xf32, #tpu.memory_space<vmem>>, vector<16x128xf32>
    %776 = arith.addf %775, %747 : vector<16x128xf32>
    %777 = arith.index_cast %696 : i32 to index
    %c0_301 = arith.constant 0 : index
    %778 = vector.load %arg6[%777, %c0_301] : memref<128x128xf32, #tpu.memory_space<vmem>>, vector<16x128xf32>
    tpu.vector_store %arg6[%777, %c0_301], %776 {strides = array<i32>} : memref<128x128xf32, #tpu.memory_space<vmem>>, vector<16x128xf32>,
    %779 = arith.index_cast %699 : i32 to index
    %c0_302 = arith.constant 0 : index
    %780 = vector.load %arg6[%779, %c0_302] : memref<128x128xf32, #tpu.memory_space<vmem>>, vector<16x128xf32>
    %781 = arith.addf %780, %773 : vector<16x128xf32>
    %782 = arith.index_cast %699 : i32 to index
    %c0_303 = arith.constant 0 : index
    %783 = vector.load %arg6[%782, %c0_303] : memref<128x128xf32, #tpu.memory_space<vmem>>, vector<16x128xf32>
    tpu.vector_store %arg6[%782, %c0_303], %781 {strides = array<i32>} : memref<128x128xf32, #tpu.memory_space<vmem>>, vector<16x128xf32>,
    %c8_i32 = arith.constant 8 : i32
    %c0_304 = arith.constant 0 : index
    %c0_305 = arith.constant 0 : index
    %c0_306 = arith.constant 0 : index
    %784 = vector.load %arg7[%c0_304, %c0_305, %c0_306] : memref<2x16x128xf32, #tpu.memory_space<vmem>>, vector<1x16x128xf32>
    %785 = vector.shape_cast %784 : vector<1x16x128xf32> to vector<16x128xf32>
    %786 = vector.shape_cast %747 : vector<16x128xf32> to vector<1x16x128xf32>
    tpu.vector_store %arg7[%c0_304, %c0_305, %c0_306], %786 {strides = array<i32>} : memref<2x16x128xf32, #tpu.memory_space<vmem>>, vector<1x16x128xf32>,
    %c1_307 = arith.constant 1 : index
    %c0_308 = arith.constant 0 : index
    %c0_309 = arith.constant 0 : index
    %787 = vector.load %arg7[%c1_307, %c0_308, %c0_309] : memref<2x16x128xf32, #tpu.memory_space<vmem>>, vector<1x16x128xf32>
    %788 = vector.shape_cast %787 : vector<1x16x128xf32> to vector<16x128xf32>
    %789 = vector.shape_cast %773 : vector<16x128xf32> to vector<1x16x128xf32>
    tpu.vector_store %arg7[%c1_307, %c0_308, %c0_309], %789 {strides = array<i32>} : memref<2x16x128xf32, #tpu.memory_space<vmem>>, vector<1x16x128xf32>,
    return
  }
}

</mosaic_0001>

<llo_original>
// kernel: encoder_forward.1
$region0: #{encoder_forward.1}
  #allocation0 [shape = 'u32[]', space=smem, size = 0x4, offset = 0x4, fixed_abs, tag = 'smem constant byte address 0x4 - core index']
  #allocation1 [shape = 'u32[72,128]{1,0:T(1,128)}', space=vmem, size = 0x9000, scoped, tag = 'internal scratch']
  #allocation2 [shape = 'f32[2,128,384]{2,1,0:T(8,128)}', space=vmem, size = 0x60000, scoped, tag = 'scratch operand']
  #allocation3 [shape = 'f32[2,128,384]{2,1,0:T(8,128)}', space=vmem, size = 0x60000, scoped, tag = 'scratch operand']
  %s0 = inlined_call_operand.vmem [shape: bf16[128,128], index: 0, kind: input, shape index: {}]
  %s1 = inlined_call_operand.vmem [shape: bf16[128,768], index: 1, kind: input, shape index: {}]
  %s2 = inlined_call_operand.vmem [shape: f32[1,768], index: 2, kind: input, shape index: {}]
  %s3 = inlined_call_operand.vmem [shape: bf16[2,128,384], index: 3, kind: input, shape index: {}]
  %s4 = inlined_call_operand.vmem [shape: f32[2,1,384], index: 4, kind: input, shape index: {}]
  %s5 = inlined_call_operand.vmem [shape: f32[2,16,128], index: 5, kind: input, shape index: {}]
  %s6 = inlined_call_operand.vmem [shape: f32[128,128], index: 6, kind: output, shape index: {0}]
  %s7 = inlined_call_operand.vmem [shape: f32[2,16,128], index: 7, kind: output, shape index: {1}]
  %8 = xla_tuple %s6, %s7
  %s9 = sld [smem:[#allocation0]]
  $region42: #{encoder_forward.1} parent=0
    _
  %s11 = ssub.s32 1, %s9
  %s12 = scalar_select 0, %s11, %s9
  // Predicated region
  $region2: #{encoder_forward.1} parent=0 // pred_check
    _
  $region3: #{encoder_forward.1} parent=0 // pred_check_branch
    %14 = sbr.rel (0) target = $region5
  $region4: #{encoder_forward.1} parent=0 // pred_region
    _
  $region5: #{encoder_forward.1} parent=0 // pred_fallthru
    _
  // Predicated region
  $region6: #{encoder_forward.1} parent=0 // pred_check
    _
  $region7: #{encoder_forward.1} parent=0 // pred_check_branch
    %16 = sbr.rel (0) target = $region9
  $region8: #{encoder_forward.1} parent=0 // pred_region
    _
  $region9: #{encoder_forward.1} parent=0 // pred_fallthru
    _
  // Predicated region
  $region10: #{encoder_forward.1} parent=0 // pred_check
    _
  $region11: #{encoder_forward.1} parent=0 // pred_check_branch
    %18 = sbr.rel (0) target = $region13
  $region12: #{encoder_forward.1} parent=0 // pred_region
    _
  $region13: #{encoder_forward.1} parent=0 // pred_fallthru
    _
  // Predicated region
  $region14: #{encoder_forward.1} parent=0 // pred_check
    _
  $region15: #{encoder_forward.1} parent=0 // pred_check_branch
    %20 = sbr.rel (0) target = $region17
  $region16: #{encoder_forward.1} parent=0 // pred_region
    _
  $region17: #{encoder_forward.1} parent=0 // pred_fallthru
    _
  // Predicated region
  $region18: #{encoder_forward.1} parent=0 // pred_check
    _
  $region19: #{encoder_forward.1} parent=0 // pred_check_branch
    %22 = sbr.rel (0) target = $region21
  $region20: #{encoder_forward.1} parent=0 // pred_region
    _
  $region21: #{encoder_forward.1} parent=0 // pred_fallthru
    _
  // Predicated region
  $region22: #{encoder_forward.1} parent=0 // pred_check
    _
  $region23: #{encoder_forward.1} parent=0 // pred_check_branch
    %24 = sbr.rel (0) target = $region25
  $region24: #{encoder_forward.1} parent=0 // pred_region
    _
  $region25: #{encoder_forward.1} parent=0 // pred_fallthru
    _
  %25 = vst [vmem:[%s6] sm:$0xff] 0.0
  %26 = vst [vmem:[%s6 + $0x8] sm:$0xff] 0.0
  %27 = vst [vmem:[%s6 + $0x10] sm:$0xff] 0.0
  %28 = vst [vmem:[%s6 + $0x18] sm:$0xff] 0.0
  %29 = vst [vmem:[%s6 + $0x20] sm:$0xff] 0.0
  %30 = vst [vmem:[%s6 + $0x28] sm:$0xff] 0.0
  %31 = vst [vmem:[%s6 + $0x30] sm:$0xff] 0.0
  %32 = vst [vmem:[%s6 + $0x38] sm:$0xff] 0.0
  %33 = vst [vmem:[%s6 + $0x40] sm:$0xff] 0.0
  %34 = vst [vmem:[%s6 + $0x48] sm:$0xff] 0.0
  %35 = vst [vmem:[%s6 + $0x50] sm:$0xff] 0.0
  %36 = vst [vmem:[%s6 + $0x58] sm:$0xff] 0.0
  %37 = vst [vmem:[%s6 + $0x60] sm:$0xff] 0.0
  %38 = vst [vmem:[%s6 + $0x68] sm:$0xff] 0.0
  %39 = vst [vmem:[%s6 + $0x70] sm:$0xff] 0.0
  %40 = vst [vmem:[%s6 + $0x78] sm:$0xff] 0.0
  %v41 = vld [vmem:[%s0] sm:$0xf]
  %v42 = vld [vmem:[%s0 + $0x4] sm:$0xf]
  %v43 = vld [vmem:[%s0 + $0x8] sm:$0xf]
  %v44 = vld [vmem:[%s0 + $0xc] sm:$0xf]
  %v45 = vld [vmem:[%s0 + $0x10] sm:$0xf]
  %v46 = vld [vmem:[%s0 + $0x14] sm:$0xf]
  %v47 = vld [vmem:[%s0 + $0x18] sm:$0xf]
  %v48 = vld [vmem:[%s0 + $0x1c] sm:$0xf]
  %v49 = vld [vmem:[%s0 + $0x20] sm:$0xf]
  %v50 = vld [vmem:[%s0 + $0x24] sm:$0xf]
  %v51 = vld [vmem:[%s0 + $0x28] sm:$0xf]
  %v52 = vld [vmem:[%s0 + $0x2c] sm:$0xf]
  %v53 = vld [vmem:[%s0 + $0x30] sm:$0xf]
  %v54 = vld [vmem:[%s0 + $0x34] sm:$0xf]
  %v55 = vld [vmem:[%s0 + $0x38] sm:$0xf]
  %v56 = vld [vmem:[%s0 + $0x3c] sm:$0xf]
  %v57 = vld [vmem:[%s1] sm:$0xff]
  %v58 = vld [vmem:[%s1 + $0x8] sm:$0xf]
  %v59 = vld [vmem:[%s1 + $0x18] sm:$0xff]
  %v60 = vld [vmem:[%s1 + $0x20] sm:$0xf]
  %v61 = vld [vmem:[%s1 + $0x30] sm:$0xff]
  %v62 = vld [vmem:[%s1 + $0x38] sm:$0xf]
  %v63 = vld [vmem:[%s1 + $0x48] sm:$0xff]
  %v64 = vld [vmem:[%s1 + $0x50] sm:$0xf]
  %v65 = vld [vmem:[%s1 + $0x60] sm:$0xff]
  %v66 = vld [vmem:[%s1 + $0x68] sm:$0xf]
  %v67 = vld [vmem:[%s1 + $0x78] sm:$0xff]
  %v68 = vld [vmem:[%s1 + $0x80] sm:$0xf]
  %v69 = vld [vmem:[%s1 + $0x90] sm:$0xff]
  %v70 = vld [vmem:[%s1 + $0x98] sm:$0xf]
  %v71 = vld [vmem:[%s1 + $0xa8] sm:$0xff]
  %v72 = vld [vmem:[%s1 + $0xb0] sm:$0xf]
  %v73 = vld [vmem:[%s1 + $0xc0] sm:$0xff]
  %v74 = vld [vmem:[%s1 + $0xc8] sm:$0xf]
  %v75 = vld [vmem:[%s1 + $0xd8] sm:$0xff]
  %v76 = vld [vmem:[%s1 + $0xe0] sm:$0xf]
  %v77 = vld [vmem:[%s1 + $0xf0] sm:$0xff]
  %v78 = vld [vmem:[%s1 + $0xf8] sm:$0xf]
  %v79 = vld [vmem:[%s1 + $0x108] sm:$0xff]
  %v80 = vld [vmem:[%s1 + $0x110] sm:$0xf]
  %v81 = vld [vmem:[%s1 + $0x120] sm:$0xff]
  %v82 = vld [vmem:[%s1 + $0x128] sm:$0xf]
  %v83 = vld [vmem:[%s1 + $0x138] sm:$0xff]
  %v84 = vld [vmem:[%s1 + $0x140] sm:$0xf]
  %v85 = vld [vmem:[%s1 + $0x150] sm:$0xff]
  %v86 = vld [vmem:[%s1 + $0x158] sm:$0xf]
  %v87 = vld [vmem:[%s1 + $0x168] sm:$0xff]
  %v88 = vld [vmem:[%s1 + $0x170] sm:$0xf]
  %v89 = vld [vmem:[%s2] sm:$0x7]
  %v91 = vperm.slane %v89, 0
  %v92 = vperm.slane %v89, 1
  %v93 = vperm.slane %v89, 2
  %v113 = vunpack.c.l.b16 %v41
  %v114 = vunpack.c.l.b16 %v42
  %v115 = vunpack.c.l.b16 %v43
  %v116 = vunpack.c.l.b16 %v44
  %v117 = vunpack.c.l.b16 %v45
  %v118 = vunpack.c.l.b16 %v46
  %v119 = vunpack.c.l.b16 %v47
  %v120 = vunpack.c.l.b16 %v48
  %v121 = vunpack.c.l.b16 %v49
  %v122 = vunpack.c.l.b16 %v50
  %v123 = vunpack.c.l.b16 %v51
  %v124 = vunpack.c.l.b16 %v52
  %v125 = vunpack.c.l.b16 %v53
  %v126 = vunpack.c.l.b16 %v54
  %v127 = vunpack.c.l.b16 %v55
  %v128 = vunpack.c.l.b16 %v56
  %v129 = vpack.c.b16 %v114, %v113
  %v130 = vpack.c.b16 %v116, %v115
  %v131 = vpack.c.b16 %v118, %v117
  %v132 = vpack.c.b16 %v120, %v119
  %v133 = vpack.c.b16 %v122, %v121
  %v134 = vpack.c.b16 %v124, %v123
  %v135 = vpack.c.b16 %v126, %v125
  %v136 = vpack.c.b16 %v128, %v127
  %v177 = vunpack.c.l.b16 %v57
  %v178 = vunpack.c.h.b16 %v57
  %v179 = vunpack.c.l.b16 %v58
  %v180 = vunpack.c.l.b16 %v59
  %v181 = vunpack.c.h.b16 %v59
  %v182 = vunpack.c.l.b16 %v60
  %v183 = vunpack.c.l.b16 %v61
  %v184 = vunpack.c.h.b16 %v61
  %v185 = vunpack.c.l.b16 %v62
  %v186 = vunpack.c.l.b16 %v63
  %v187 = vunpack.c.h.b16 %v63
  %v188 = vunpack.c.l.b16 %v64
  %v189 = vunpack.c.l.b16 %v65
  %v190 = vunpack.c.h.b16 %v65
  %v191 = vunpack.c.l.b16 %v66
  %v192 = vunpack.c.l.b16 %v67
  %v193 = vunpack.c.h.b16 %v67
  %v194 = vunpack.c.l.b16 %v68
  %v195 = vunpack.c.l.b16 %v69
  %v196 = vunpack.c.h.b16 %v69
  %v197 = vunpack.c.l.b16 %v70
  %v198 = vunpack.c.l.b16 %v71
  %v199 = vunpack.c.h.b16 %v71
  %v200 = vunpack.c.l.b16 %v72
  %v201 = vunpack.c.l.b16 %v73
  %v202 = vunpack.c.h.b16 %v73
  %v203 = vunpack.c.l.b16 %v74
  %v204 = vunpack.c.l.b16 %v75
  %v205 = vunpack.c.h.b16 %v75
  %v206 = vunpack.c.l.b16 %v76
  %v207 = vunpack.c.l.b16 %v77
  %v208 = vunpack.c.h.b16 %v77
  %v209 = vunpack.c.l.b16 %v78
  %v210 = vunpack.c.l.b16 %v79
  %v211 = vunpack.c.h.b16 %v79
  %v212 = vunpack.c.l.b16 %v80
  %v213 = vunpack.c.l.b16 %v81
  %v214 = vunpack.c.h.b16 %v81
  %v215 = vunpack.c.l.b16 %v82
  %v216 = vunpack.c.l.b16 %v83
  %v217 = vunpack.c.h.b16 %v83
  %v218 = vunpack.c.l.b16 %v84
  %v219 = vunpack.c.l.b16 %v85
  %v220 = vunpack.c.h.b16 %v85
  %v221 = vunpack.c.l.b16 %v86
  %v222 = vunpack.c.l.b16 %v87
  %v223 = vunpack.c.h.b16 %v87
  %v224 = vunpack.c.l.b16 %v88
  %v225 = vpack.c.b16 %v180, %v177
  %v226 = vpack.c.b16 %v181, %v178
  %v227 = vpack.c.b16 %v182, %v179
  %v228 = vpack.c.b16 %v186, %v183
  %v229 = vpack.c.b16 %v187, %v184
  %v230 = vpack.c.b16 %v188, %v185
  %v231 = vpack.c.b16 %v192, %v189
  %v232 = vpack.c.b16 %v193, %v190
  %v233 = vpack.c.b16 %v194, %v191
  %v234 = vpack.c.b16 %v198, %v195
  %v235 = vpack.c.b16 %v199, %v196
  %v236 = vpack.c.b16 %v200, %v197
  %v237 = vpack.c.b16 %v204, %v201
  %v238 = vpack.c.b16 %v205, %v202
  %v239 = vpack.c.b16 %v206, %v203
  %v240 = vpack.c.b16 %v210, %v207
  %v241 = vpack.c.b16 %v211, %v208
  %v242 = vpack.c.b16 %v212, %v209
  %v243 = vpack.c.b16 %v216, %v213
  %v244 = vpack.c.b16 %v217, %v214
  %v245 = vpack.c.b16 %v218, %v215
  %v246 = vpack.c.b16 %v222, %v219
  %v247 = vpack.c.b16 %v223, %v220
  %v248 = vpack.c.b16 %v224, %v221
  %273 = vmatpush.bf16.msra.mxu0 %v246
  %274 = vmatpush.bf16.msra.mxu0 %v243
  %275 = vmatpush.bf16.msra.mxu0 %v240
  %276 = vmatpush.bf16.msra.mxu0 %v237
  %277 = vmatpush.bf16.msra.mxu0 %v234
  %278 = vmatpush.bf16.msra.mxu0 %v231
  %279 = vmatpush.bf16.msra.mxu0 %v228
  %280 = vmatpush.bf16.msra.mxu0 %v225
  %281 = vmatmul.bf16.gmra.mxu0 %v129
  %v282 = vpop.f32.mrf.mxu0
  %v283 = vadd.f32 %v91, %v282
  %v284 = vpop.f32.mrf.mxu0
  %v285 = vadd.f32 %v91, %v284
  %286 = vmatmul.bf16.gmra.mxu0 %v130
  %v287 = vpop.f32.mrf.mxu0
  %v288 = vadd.f32 %v91, %v287
  %v289 = vpop.f32.mrf.mxu0
  %v290 = vadd.f32 %v91, %v289
  %291 = vmatmul.bf16.gmra.mxu0 %v131
  %v292 = vpop.f32.mrf.mxu0
  %v293 = vadd.f32 %v91, %v292
  %v294 = vpop.f32.mrf.mxu0
  %v295 = vadd.f32 %v91, %v294
  %296 = vmatmul.bf16.gmra.mxu0 %v132
  %v297 = vpop.f32.mrf.mxu0
  %v298 = vadd.f32 %v91, %v297
  %v299 = vpop.f32.mrf.mxu0
  %v300 = vadd.f32 %v91, %v299
  %301 = vmatmul.bf16.gmra.mxu0 %v133
  %v302 = vpop.f32.mrf.mxu0
  %v303 = vadd.f32 %v91, %v302
  %v304 = vpop.f32.mrf.mxu0
  %v305 = vadd.f32 %v91, %v304
  %306 = vmatmul.bf16.gmra.mxu0 %v134
  %v307 = vpop.f32.mrf.mxu0
  %v308 = vadd.f32 %v91, %v307
  %v309 = vpop.f32.mrf.mxu0
  %v310 = vadd.f32 %v91, %v309
  %311 = vmatmul.bf16.gmra.mxu0 %v135
  %v312 = vpop.f32.mrf.mxu0
  %v313 = vadd.f32 %v91, %v312
  %v314 = vpop.f32.mrf.mxu0
  %v315 = vadd.f32 %v91, %v314
  %316 = vmatmul.bf16.gmra.mxu0 %v136
  %v317 = vpop.f32.mrf.mxu0
  %v318 = vadd.f32 %v91, %v317
  %v319 = vpop.f32.mrf.mxu0
  %v320 = vadd.f32 %v91, %v319
  %321 = vdwg.mxu0
  %322 = vmatpush.bf16.msra.mxu0 %v247
  %323 = vmatpush.bf16.msra.mxu0 %v244
  %324 = vmatpush.bf16.msra.mxu0 %v241
  %325 = vmatpush.bf16.msra.mxu0 %v238
  %326 = vmatpush.bf16.msra.mxu0 %v235
  %327 = vmatpush.bf16.msra.mxu0 %v232
  %328 = vmatpush.bf16.msra.mxu0 %v229
  %329 = vmatpush.bf16.msra.mxu0 %v226
  %330 = vmatmul.bf16.gmra.mxu0 %v129
  %v331 = vpop.f32.mrf.mxu0
  %v332 = vadd.f32 %v92, %v331
  %v333 = vpop.f32.mrf.mxu0
  %v334 = vadd.f32 %v92, %v333
  %335 = vmatmul.bf16.gmra.mxu0 %v130
  %v336 = vpop.f32.mrf.mxu0
  %v337 = vadd.f32 %v92, %v336
  %v338 = vpop.f32.mrf.mxu0
  %v339 = vadd.f32 %v92, %v338
  %340 = vmatmul.bf16.gmra.mxu0 %v131
  %v341 = vpop.f32.mrf.mxu0
  %v342 = vadd.f32 %v92, %v341
  %v343 = vpop.f32.mrf.mxu0
  %v344 = vadd.f32 %v92, %v343
  %345 = vmatmul.bf16.gmra.mxu0 %v132
  %v346 = vpop.f32.mrf.mxu0
  %v347 = vadd.f32 %v92, %v346
  %v348 = vpop.f32.mrf.mxu0
  %v349 = vadd.f32 %v92, %v348
  %350 = vmatmul.bf16.gmra.mxu0 %v133
  %v351 = vpop.f32.mrf.mxu0
  %v352 = vadd.f32 %v92, %v351
  %v353 = vpop.f32.mrf.mxu0
  %v354 = vadd.f32 %v92, %v353
  %355 = vmatmul.bf16.gmra.mxu0 %v134
  %v356 = vpop.f32.mrf.mxu0
  %v357 = vadd.f32 %v92, %v356
  %v358 = vpop.f32.mrf.mxu0
  %v359 = vadd.f32 %v92, %v358
  %360 = vmatmul.bf16.gmra.mxu0 %v135
  %v361 = vpop.f32.mrf.mxu0
  %v362 = vadd.f32 %v92, %v361
  %v363 = vpop.f32.mrf.mxu0
  %v364 = vadd.f32 %v92, %v363
  %365 = vmatmul.bf16.gmra.mxu0 %v136
  %v366 = vpop.f32.mrf.mxu0
  %v367 = vadd.f32 %v92, %v366
  %v368 = vpop.f32.mrf.mxu0
  %v369 = vadd.f32 %v92, %v368
  %370 = vdwg.mxu0
  %371 = vmatpush.bf16.msra.mxu0 %v248
  %372 = vmatpush.bf16.msra.mxu0 %v245
  %373 = vmatpush.bf16.msra.mxu0 %v242
  %374 = vmatpush.bf16.msra.mxu0 %v239
  %375 = vmatpush.bf16.msra.mxu0 %v236
  %376 = vmatpush.bf16.msra.mxu0 %v233
  %377 = vmatpush.bf16.msra.mxu0 %v230
  %378 = vmatpush.bf16.msra.mxu0 %v227
  %379 = vmatmul.bf16.gmra.mxu0 %v129
  %v380 = vpop.f32.mrf.mxu0
  %v381 = vadd.f32 %v93, %v380
  %v382 = vpop.f32.mrf.mxu0
  %v383 = vadd.f32 %v93, %v382
  %384 = vmatmul.bf16.gmra.mxu0 %v130
  %v385 = vpop.f32.mrf.mxu0
  %v386 = vadd.f32 %v93, %v385
  %v387 = vpop.f32.mrf.mxu0
  %v388 = vadd.f32 %v93, %v387
  %389 = vmatmul.bf16.gmra.mxu0 %v131
  %v390 = vpop.f32.mrf.mxu0
  %v391 = vadd.f32 %v93, %v390
  %v392 = vpop.f32.mrf.mxu0
  %v393 = vadd.f32 %v93, %v392
  %394 = vmatmul.bf16.gmra.mxu0 %v132
  %v395 = vpop.f32.mrf.mxu0
  %v396 = vadd.f32 %v93, %v395
  %v397 = vpop.f32.mrf.mxu0
  %v398 = vadd.f32 %v93, %v397
  %399 = vmatmul.bf16.gmra.mxu0 %v133
  %v400 = vpop.f32.mrf.mxu0
  %v401 = vadd.f32 %v93, %v400
  %v402 = vpop.f32.mrf.mxu0
  %v403 = vadd.f32 %v93, %v402
  %404 = vmatmul.bf16.gmra.mxu0 %v134
  %v405 = vpop.f32.mrf.mxu0
  %v406 = vadd.f32 %v93, %v405
  %v407 = vpop.f32.mrf.mxu0
  %v408 = vadd.f32 %v93, %v407
  %409 = vmatmul.bf16.gmra.mxu0 %v135
  %v410 = vpop.f32.mrf.mxu0
  %v411 = vadd.f32 %v93, %v410
  %v412 = vpop.f32.mrf.mxu0
  %v413 = vadd.f32 %v93, %v412
  %414 = vmatmul.bf16.gmra.mxu0 %v136
  %v415 = vpop.f32.mrf.mxu0
  %v416 = vadd.f32 %v93, %v415
  %v417 = vpop.f32.mrf.mxu0
  %v418 = vadd.f32 %v93, %v417
  %419 = vdwg.mxu0
  %420 = vst [vmem:[#allocation2] sm:$0xff] %v283
  %421 = vst [vmem:[#allocation2 + $0x8] sm:$0xff] %v332
  %422 = vst [vmem:[#allocation2 + $0x10] sm:$0xff] %v381
  %423 = vst [vmem:[#allocation2 + $0x18] sm:$0xff] %v285
  %424 = vst [vmem:[#allocation2 + $0x20] sm:$0xff] %v334
  %425 = vst [vmem:[#allocation2 + $0x28] sm:$0xff] %v383
  %426 = vst [vmem:[#allocation2 + $0x30] sm:$0xff] %v288
  %427 = vst [vmem:[#allocation2 + $0x38] sm:$0xff] %v337
  %428 = vst [vmem:[#allocation2 + $0x40] sm:$0xff] %v386
  %429 = vst [vmem:[#allocation2 + $0x48] sm:$0xff] %v290
  %430 = vst [vmem:[#allocation2 + $0x50] sm:$0xff] %v339
  %431 = vst [vmem:[#allocation2 + $0x58] sm:$0xff] %v388
  %432 = vst [vmem:[#allocation2 + $0x60] sm:$0xff] %v293
  %433 = vst [vmem:[#allocation2 + $0x68] sm:$0xff] %v342
  %434 = vst [vmem:[#allocation2 + $0x70] sm:$0xff] %v391
  %435 = vst [vmem:[#allocation2 + $0x78] sm:$0xff] %v295
  %436 = vst [vmem:[#allocation2 + $0x80] sm:$0xff] %v344
  %437 = vst [vmem:[#allocation2 + $0x88] sm:$0xff] %v393
  %438 = vst [vmem:[#allocation2 + $0x90] sm:$0xff] %v298
  %439 = vst [vmem:[#allocation2 + $0x98] sm:$0xff] %v347
  %440 = vst [vmem:[#allocation2 + $0xa0] sm:$0xff] %v396
  %441 = vst [vmem:[#allocation2 + $0xa8] sm:$0xff] %v300
  %442 = vst [vmem:[#allocation2 + $0xb0] sm:$0xff] %v349
  %443 = vst [vmem:[#allocation2 + $0xb8] sm:$0xff] %v398
  %444 = vst [vmem:[#allocation2 + $0xc0] sm:$0xff] %v303
  %445 = vst [vmem:[#allocation2 + $0xc8] sm:$0xff] %v352
  %446 = vst [vmem:[#allocation2 + $0xd0] sm:$0xff] %v401
  %447 = vst [vmem:[#allocation2 + $0xd8] sm:$0xff] %v305
  %448 = vst [vmem:[#allocation2 + $0xe0] sm:$0xff] %v354
  %449 = vst [vmem:[#allocation2 + $0xe8] sm:$0xff] %v403
  %450 = vst [vmem:[#allocation2 + $0xf0] sm:$0xff] %v308
  %451 = vst [vmem:[#allocation2 + $0xf8] sm:$0xff] %v357
  %452 = vst [vmem:[#allocation2 + $0x100] sm:$0xff] %v406
  %453 = vst [vmem:[#allocation2 + $0x108] sm:$0xff] %v310
  %454 = vst [vmem:[#allocation2 + $0x110] sm:$0xff] %v359
  %455 = vst [vmem:[#allocation2 + $0x118] sm:$0xff] %v408
  %456 = vst [vmem:[#allocation2 + $0x120] sm:$0xff] %v313
  %457 = vst [vmem:[#allocation2 + $0x128] sm:$0xff] %v362
  %458 = vst [vmem:[#allocation2 + $0x130] sm:$0xff] %v411
  %459 = vst [vmem:[#allocation2 + $0x138] sm:$0xff] %v315
  %460 = vst [vmem:[#allocation2 + $0x140] sm:$0xff] %v364
  %461 = vst [vmem:[#allocation2 + $0x148] sm:$0xff] %v413
  %462 = vst [vmem:[#allocation2 + $0x150] sm:$0xff] %v318
  %463 = vst [vmem:[#allocation2 + $0x158] sm:$0xff] %v367
  %464 = vst [vmem:[#allocation2 + $0x160] sm:$0xff] %v416
  %465 = vst [vmem:[#allocation2 + $0x168] sm:$0xff] %v320
  %466 = vst [vmem:[#allocation2 + $0x170] sm:$0xff] %v369
  %467 = vst [vmem:[#allocation2 + $0x178] sm:$0xff] %v418
  %v468 = vld [vmem:[%s0] sm:$0xf]
  %v469 = vld [vmem:[%s0 + $0x4] sm:$0xf]
  %v470 = vld [vmem:[%s0 + $0x8] sm:$0xf]
  %v471 = vld [vmem:[%s0 + $0xc] sm:$0xf]
  %v472 = vld [vmem:[%s0 + $0x10] sm:$0xf]
  %v473 = vld [vmem:[%s0 + $0x14] sm:$0xf]
  %v474 = vld [vmem:[%s0 + $0x18] sm:$0xf]
  %v475 = vld [vmem:[%s0 + $0x1c] sm:$0xf]
  %v476 = vld [vmem:[%s0 + $0x20] sm:$0xf]
  %v477 = vld [vmem:[%s0 + $0x24] sm:$0xf]
  %v478 = vld [vmem:[%s0 + $0x28] sm:$0xf]
  %v479 = vld [vmem:[%s0 + $0x2c] sm:$0xf]
  %v480 = vld [vmem:[%s0 + $0x30] sm:$0xf]
  %v481 = vld [vmem:[%s0 + $0x34] sm:$0xf]
  %v482 = vld [vmem:[%s0 + $0x38] sm:$0xf]
  %v483 = vld [vmem:[%s0 + $0x3c] sm:$0xf]
  %v484 = vld [vmem:[%s1 + $0xc] sm:$0xff]
  %v485 = vld [vmem:[%s1 + $0x14] sm:$0xf]
  %v486 = vld [vmem:[%s1 + $0x24] sm:$0xff]
  %v487 = vld [vmem:[%s1 + $0x2c] sm:$0xf]
  %v488 = vld [vmem:[%s1 + $0x3c] sm:$0xff]
  %v489 = vld [vmem:[%s1 + $0x44] sm:$0xf]
  %v490 = vld [vmem:[%s1 + $0x54] sm:$0xff]
  %v491 = vld [vmem:[%s1 + $0x5c] sm:$0xf]
  %v492 = vld [vmem:[%s1 + $0x6c] sm:$0xff]
  %v493 = vld [vmem:[%s1 + $0x74] sm:$0xf]
  %v494 = vld [vmem:[%s1 + $0x84] sm:$0xff]
  %v495 = vld [vmem:[%s1 + $0x8c] sm:$0xf]
  %v496 = vld [vmem:[%s1 + $0x9c] sm:$0xff]
  %v497 = vld [vmem:[%s1 + $0xa4] sm:$0xf]
  %v498 = vld [vmem:[%s1 + $0xb4] sm:$0xff]
  %v499 = vld [vmem:[%s1 + $0xbc] sm:$0xf]
  %v500 = vld [vmem:[%s1 + $0xcc] sm:$0xff]
  %v501 = vld [vmem:[%s1 + $0xd4] sm:$0xf]
  %v502 = vld [vmem:[%s1 + $0xe4] sm:$0xff]
  %v503 = vld [vmem:[%s1 + $0xec] sm:$0xf]
  %v504 = vld [vmem:[%s1 + $0xfc] sm:$0xff]
  %v505 = vld [vmem:[%s1 + $0x104] sm:$0xf]
  %v506 = vld [vmem:[%s1 + $0x114] sm:$0xff]
  %v507 = vld [vmem:[%s1 + $0x11c] sm:$0xf]
  %v508 = vld [vmem:[%s1 + $0x12c] sm:$0xff]
  %v509 = vld [vmem:[%s1 + $0x134] sm:$0xf]
  %v510 = vld [vmem:[%s1 + $0x144] sm:$0xff]
  %v511 = vld [vmem:[%s1 + $0x14c] sm:$0xf]
  %v512 = vld [vmem:[%s1 + $0x15c] sm:$0xff]
  %v513 = vld [vmem:[%s1 + $0x164] sm:$0xf]
  %v514 = vld [vmem:[%s1 + $0x174] sm:$0xff]
  %v515 = vld [vmem:[%s1 + $0x17c] sm:$0xf]
  %v516 = vld [vmem:[%s2 + $0x3] sm:$0x7]
  %v518 = vperm.slane %v516, 0
  %v519 = vperm.slane %v516, 1
  %v520 = vperm.slane %v516, 2
  %v540 = vunpack.c.l.b16 %v468
  %v541 = vunpack.c.l.b16 %v469
  %v542 = vunpack.c.l.b16 %v470
  %v543 = vunpack.c.l.b16 %v471
  %v544 = vunpack.c.l.b16 %v472
  %v545 = vunpack.c.l.b16 %v473
  %v546 = vunpack.c.l.b16 %v474
  %v547 = vunpack.c.l.b16 %v475
  %v548 = vunpack.c.l.b16 %v476
  %v549 = vunpack.c.l.b16 %v477
  %v550 = vunpack.c.l.b16 %v478
  %v551 = vunpack.c.l.b16 %v479
  %v552 = vunpack.c.l.b16 %v480
  %v553 = vunpack.c.l.b16 %v481
  %v554 = vunpack.c.l.b16 %v482
  %v555 = vunpack.c.l.b16 %v483
  %v556 = vpack.c.b16 %v541, %v540
  %v557 = vpack.c.b16 %v543, %v542
  %v558 = vpack.c.b16 %v545, %v544
  %v559 = vpack.c.b16 %v547, %v546
  %v560 = vpack.c.b16 %v549, %v548
  %v561 = vpack.c.b16 %v551, %v550
  %v562 = vpack.c.b16 %v553, %v552
  %v563 = vpack.c.b16 %v555, %v554
  %v604 = vunpack.c.l.b16 %v484
  %v605 = vunpack.c.h.b16 %v484
  %v606 = vunpack.c.l.b16 %v485
  %v607 = vunpack.c.l.b16 %v486
  %v608 = vunpack.c.h.b16 %v486
  %v609 = vunpack.c.l.b16 %v487
  %v610 = vunpack.c.l.b16 %v488
  %v611 = vunpack.c.h.b16 %v488
  %v612 = vunpack.c.l.b16 %v489
  %v613 = vunpack.c.l.b16 %v490
  %v614 = vunpack.c.h.b16 %v490
  %v615 = vunpack.c.l.b16 %v491
  %v616 = vunpack.c.l.b16 %v492
  %v617 = vunpack.c.h.b16 %v492
  %v618 = vunpack.c.l.b16 %v493
  %v619 = vunpack.c.l.b16 %v494
  %v620 = vunpack.c.h.b16 %v494
  %v621 = vunpack.c.l.b16 %v495
  %v622 = vunpack.c.l.b16 %v496
  %v623 = vunpack.c.h.b16 %v496
  %v624 = vunpack.c.l.b16 %v497
  %v625 = vunpack.c.l.b16 %v498
  %v626 = vunpack.c.h.b16 %v498
  %v627 = vunpack.c.l.b16 %v499
  %v628 = vunpack.c.l.b16 %v500
  %v629 = vunpack.c.h.b16 %v500
  %v630 = vunpack.c.l.b16 %v501
  %v631 = vunpack.c.l.b16 %v502
  %v632 = vunpack.c.h.b16 %v502
  %v633 = vunpack.c.l.b16 %v503
  %v634 = vunpack.c.l.b16 %v504
  %v635 = vunpack.c.h.b16 %v504
  %v636 = vunpack.c.l.b16 %v505
  %v637 = vunpack.c.l.b16 %v506
  %v638 = vunpack.c.h.b16 %v506
  %v639 = vunpack.c.l.b16 %v507
  %v640 = vunpack.c.l.b16 %v508
  %v641 = vunpack.c.h.b16 %v508
  %v642 = vunpack.c.l.b16 %v509
  %v643 = vunpack.c.l.b16 %v510
  %v644 = vunpack.c.h.b16 %v510
  %v645 = vunpack.c.l.b16 %v511
  %v646 = vunpack.c.l.b16 %v512
  %v647 = vunpack.c.h.b16 %v512
  %v648 = vunpack.c.l.b16 %v513
  %v649 = vunpack.c.l.b16 %v514
  %v650 = vunpack.c.h.b16 %v514
  %v651 = vunpack.c.l.b16 %v515
  %v652 = vpack.c.b16 %v607, %v604
  %v653 = vpack.c.b16 %v608, %v605
  %v654 = vpack.c.b16 %v609, %v606
  %v655 = vpack.c.b16 %v613, %v610
  %v656 = vpack.c.b16 %v614, %v611
  %v657 = vpack.c.b16 %v615, %v612
  %v658 = vpack.c.b16 %v619, %v616
  %v659 = vpack.c.b16 %v620, %v617
  %v660 = vpack.c.b16 %v621, %v618
  %v661 = vpack.c.b16 %v625, %v622
  %v662 = vpack.c.b16 %v626, %v623
  %v663 = vpack.c.b16 %v627, %v624
  %v664 = vpack.c.b16 %v631, %v628
  %v665 = vpack.c.b16 %v632, %v629
  %v666 = vpack.c.b16 %v633, %v630
  %v667 = vpack.c.b16 %v637, %v634
  %v668 = vpack.c.b16 %v638, %v635
  %v669 = vpack.c.b16 %v639, %v636
  %v670 = vpack.c.b16 %v643, %v640
  %v671 = vpack.c.b16 %v644, %v641
  %v672 = vpack.c.b16 %v645, %v642
  %v673 = vpack.c.b16 %v649, %v646
  %v674 = vpack.c.b16 %v650, %v647
  %v675 = vpack.c.b16 %v651, %v648
  %700 = vmatpush.bf16.msra.mxu0 %v673
  %701 = vmatpush.bf16.msra.mxu0 %v670
  %702 = vmatpush.bf16.msra.mxu0 %v667
  %703 = vmatpush.bf16.msra.mxu0 %v664
  %704 = vmatpush.bf16.msra.mxu0 %v661
  %705 = vmatpush.bf16.msra.mxu0 %v658
  %706 = vmatpush.bf16.msra.mxu0 %v655
  %707 = vmatpush.bf16.msra.mxu0 %v652
  %708 = vmatmul.bf16.gmra.mxu0 %v556
  %v709 = vpop.f32.mrf.mxu0
  %v710 = vadd.f32 %v518, %v709
  %v711 = vpop.f32.mrf.mxu0
  %v712 = vadd.f32 %v518, %v711
  %713 = vmatmul.bf16.gmra.mxu0 %v557
  %v714 = vpop.f32.mrf.mxu0
  %v715 = vadd.f32 %v518, %v714
  %v716 = vpop.f32.mrf.mxu0
  %v717 = vadd.f32 %v518, %v716
  %718 = vmatmul.bf16.gmra.mxu0 %v558
  %v719 = vpop.f32.mrf.mxu0
  %v720 = vadd.f32 %v518, %v719
  %v721 = vpop.f32.mrf.mxu0
  %v722 = vadd.f32 %v518, %v721
  %723 = vmatmul.bf16.gmra.mxu0 %v559
  %v724 = vpop.f32.mrf.mxu0
  %v725 = vadd.f32 %v518, %v724
  %v726 = vpop.f32.mrf.mxu0
  %v727 = vadd.f32 %v518, %v726
  %728 = vmatmul.bf16.gmra.mxu0 %v560
  %v729 = vpop.f32.mrf.mxu0
  %v730 = vadd.f32 %v518, %v729
  %v731 = vpop.f32.mrf.mxu0
  %v732 = vadd.f32 %v518, %v731
  %733 = vmatmul.bf16.gmra.mxu0 %v561
  %v734 = vpop.f32.mrf.mxu0
  %v735 = vadd.f32 %v518, %v734
  %v736 = vpop.f32.mrf.mxu0
  %v737 = vadd.f32 %v518, %v736
  %738 = vmatmul.bf16.gmra.mxu0 %v562
  %v739 = vpop.f32.mrf.mxu0
  %v740 = vadd.f32 %v518, %v739
  %v741 = vpop.f32.mrf.mxu0
  %v742 = vadd.f32 %v518, %v741
  %743 = vmatmul.bf16.gmra.mxu0 %v563
  %v744 = vpop.f32.mrf.mxu0
  %v745 = vadd.f32 %v518, %v744
  %v746 = vpop.f32.mrf.mxu0
  %v747 = vadd.f32 %v518, %v746
  %748 = vdwg.mxu0
  %749 = vmatpush.bf16.msra.mxu0 %v674
  %750 = vmatpush.bf16.msra.mxu0 %v671
  %751 = vmatpush.bf16.msra.mxu0 %v668
  %752 = vmatpush.bf16.msra.mxu0 %v665
  %753 = vmatpush.bf16.msra.mxu0 %v662
  %754 = vmatpush.bf16.msra.mxu0 %v659
  %755 = vmatpush.bf16.msra.mxu0 %v656
  %756 = vmatpush.bf16.msra.mxu0 %v653
  %757 = vmatmul.bf16.gmra.mxu0 %v556
  %v758 = vpop.f32.mrf.mxu0
  %v759 = vadd.f32 %v519, %v758
  %v760 = vpop.f32.mrf.mxu0
  %v761 = vadd.f32 %v519, %v760
  %762 = vmatmul.bf16.gmra.mxu0 %v557
  %v763 = vpop.f32.mrf.mxu0
  %v764 = vadd.f32 %v519, %v763
  %v765 = vpop.f32.mrf.mxu0
  %v766 = vadd.f32 %v519, %v765
  %767 = vmatmul.bf16.gmra.mxu0 %v558
  %v768 = vpop.f32.mrf.mxu0
  %v769 = vadd.f32 %v519, %v768
  %v770 = vpop.f32.mrf.mxu0
  %v771 = vadd.f32 %v519, %v770
  %772 = vmatmul.bf16.gmra.mxu0 %v559
  %v773 = vpop.f32.mrf.mxu0
  %v774 = vadd.f32 %v519, %v773
  %v775 = vpop.f32.mrf.mxu0
  %v776 = vadd.f32 %v519, %v775
  %777 = vmatmul.bf16.gmra.mxu0 %v560
  %v778 = vpop.f32.mrf.mxu0
  %v779 = vadd.f32 %v519, %v778
  %v780 = vpop.f32.mrf.mxu0
  %v781 = vadd.f32 %v519, %v780
  %782 = vmatmul.bf16.gmra.mxu0 %v561
  %v783 = vpop.f32.mrf.mxu0
  %v784 = vadd.f32 %v519, %v783
  %v785 = vpop.f32.mrf.mxu0
  %v786 = vadd.f32 %v519, %v785
  %787 = vmatmul.bf16.gmra.mxu0 %v562
  %v788 = vpop.f32.mrf.mxu0
  %v789 = vadd.f32 %v519, %v788
  %v790 = vpop.f32.mrf.mxu0
  %v791 = vadd.f32 %v519, %v790
  %792 = vmatmul.bf16.gmra.mxu0 %v563
  %v793 = vpop.f32.mrf.mxu0
  %v794 = vadd.f32 %v519, %v793
  %v795 = vpop.f32.mrf.mxu0
  %v796 = vadd.f32 %v519, %v795
  %797 = vdwg.mxu0
  %798 = vmatpush.bf16.msra.mxu0 %v675
  %799 = vmatpush.bf16.msra.mxu0 %v672
  %800 = vmatpush.bf16.msra.mxu0 %v669
  %801 = vmatpush.bf16.msra.mxu0 %v666
  %802 = vmatpush.bf16.msra.mxu0 %v663
  %803 = vmatpush.bf16.msra.mxu0 %v660
  %804 = vmatpush.bf16.msra.mxu0 %v657
  %805 = vmatpush.bf16.msra.mxu0 %v654
  %806 = vmatmul.bf16.gmra.mxu0 %v556
  %v807 = vpop.f32.mrf.mxu0
  %v808 = vadd.f32 %v520, %v807
  %v809 = vpop.f32.mrf.mxu0
  %v810 = vadd.f32 %v520, %v809
  %811 = vmatmul.bf16.gmra.mxu0 %v557
  %v812 = vpop.f32.mrf.mxu0
  %v813 = vadd.f32 %v520, %v812
  %v814 = vpop.f32.mrf.mxu0
  %v815 = vadd.f32 %v520, %v814
  %816 = vmatmul.bf16.gmra.mxu0 %v558
  %v817 = vpop.f32.mrf.mxu0
  %v818 = vadd.f32 %v520, %v817
  %v819 = vpop.f32.mrf.mxu0
  %v820 = vadd.f32 %v520, %v819
  %821 = vmatmul.bf16.gmra.mxu0 %v559
  %v822 = vpop.f32.mrf.mxu0
  %v823 = vadd.f32 %v520, %v822
  %v824 = vpop.f32.mrf.mxu0
  %v825 = vadd.f32 %v520, %v824
  %826 = vmatmul.bf16.gmra.mxu0 %v560
  %v827 = vpop.f32.mrf.mxu0
  %v828 = vadd.f32 %v520, %v827
  %v829 = vpop.f32.mrf.mxu0
  %v830 = vadd.f32 %v520, %v829
  %831 = vmatmul.bf16.gmra.mxu0 %v561
  %v832 = vpop.f32.mrf.mxu0
  %v833 = vadd.f32 %v520, %v832
  %v834 = vpop.f32.mrf.mxu0
  %v835 = vadd.f32 %v520, %v834
  %836 = vmatmul.bf16.gmra.mxu0 %v562
  %v837 = vpop.f32.mrf.mxu0
  %v838 = vadd.f32 %v520, %v837
  %v839 = vpop.f32.mrf.mxu0
  %v840 = vadd.f32 %v520, %v839
  %841 = vmatmul.bf16.gmra.mxu0 %v563
  %v842 = vpop.f32.mrf.mxu0
  %v843 = vadd.f32 %v520, %v842
  %v844 = vpop.f32.mrf.mxu0
  %v845 = vadd.f32 %v520, %v844
  %846 = vdwg.mxu0
  %847 = vst [vmem:[#allocation3] sm:$0xff] %v710
  %848 = vst [vmem:[#allocation3 + $0x8] sm:$0xff] %v759
  %849 = vst [vmem:[#allocation3 + $0x10] sm:$0xff] %v808
  %850 = vst [vmem:[#allocation3 + $0x18] sm:$0xff] %v712
  %851 = vst [vmem:[#allocation3 + $0x20] sm:$0xff] %v761
  %852 = vst [vmem:[#allocation3 + $0x28] sm:$0xff] %v810
  %853 = vst [vmem:[#allocation3 + $0x30] sm:$0xff] %v715
  %854 = vst [vmem:[#allocation3 + $0x38] sm:$0xff] %v764
  %855 = vst [vmem:[#allocation3 + $0x40] sm:$0xff] %v813
  %856 = vst [vmem:[#allocation3 + $0x48] sm:$0xff] %v717
  %857 = vst [vmem:[#allocation3 + $0x50] sm:$0xff] %v766
  %858 = vst [vmem:[#allocation3 + $0x58] sm:$0xff] %v815
  %859 = vst [vmem:[#allocation3 + $0x60] sm:$0xff] %v720
  %860 = vst [vmem:[#allocation3 + $0x68] sm:$0xff] %v769
  %861 = vst [vmem:[#allocation3 + $0x70] sm:$0xff] %v818
  %862 = vst [vmem:[#allocation3 + $0x78] sm:$0xff] %v722
  %863 = vst [vmem:[#allocation3 + $0x80] sm:$0xff] %v771
  %864 = vst [vmem:[#allocation3 + $0x88] sm:$0xff] %v820
  %865 = vst [vmem:[#allocation3 + $0x90] sm:$0xff] %v725
  %866 = vst [vmem:[#allocation3 + $0x98] sm:$0xff] %v774
  %867 = vst [vmem:[#allocation3 + $0xa0] sm:$0xff] %v823
  %868 = vst [vmem:[#allocation3 + $0xa8] sm:$0xff] %v727
  %869 = vst [vmem:[#allocation3 + $0xb0] sm:$0xff] %v776
  %870 = vst [vmem:[#allocation3 + $0xb8] sm:$0xff] %v825
  %871 = vst [vmem:[#allocation3 + $0xc0] sm:$0xff] %v730
  %872 = vst [vmem:[#allocation3 + $0xc8] sm:$0xff] %v779
  %873 = vst [vmem:[#allocation3 + $0xd0] sm:$0xff] %v828
  %874 = vst [vmem:[#allocation3 + $0xd8] sm:$0xff] %v732
  %875 = vst [vmem:[#allocation3 + $0xe0] sm:$0xff] %v781
  %876 = vst [vmem:[#allocation3 + $0xe8] sm:$0xff] %v830
  %877 = vst [vmem:[#allocation3 + $0xf0] sm:$0xff] %v735
  %878 = vst [vmem:[#allocation3 + $0xf8] sm:$0xff] %v784
  %879 = vst [vmem:[#allocation3 + $0x100] sm:$0xff] %v833
  %880 = vst [vmem:[#allocation3 + $0x108] sm:$0xff] %v737
  %881 = vst [vmem:[#allocation3 + $0x110] sm:$0xff] %v786
  %882 = vst [vmem:[#allocation3 + $0x118] sm:$0xff] %v835
  %883 = vst [vmem:[#allocation3 + $0x120] sm:$0xff] %v740
  %884 = vst [vmem:[#allocation3 + $0x128] sm:$0xff] %v789
  %885 = vst [vmem:[#allocation3 + $0x130] sm:$0xff] %v838
  %886 = vst [vmem:[#allocation3 + $0x138] sm:$0xff] %v742
  %887 = vst [vmem:[#allocation3 + $0x140] sm:$0xff] %v791
  %888 = vst [vmem:[#allocation3 + $0x148] sm:$0xff] %v840
  %889 = vst [vmem:[#allocation3 + $0x150] sm:$0xff] %v745
  %890 = vst [vmem:[#allocation3 + $0x158] sm:$0xff] %v794
  %891 = vst [vmem:[#allocation3 + $0x160] sm:$0xff] %v843
  %892 = vst [vmem:[#allocation3 + $0x168] sm:$0xff] %v747
  %893 = vst [vmem:[#allocation3 + $0x170] sm:$0xff] %v796
  %894 = vst [vmem:[#allocation3 + $0x178] sm:$0xff] %v845
  %v895 = vld [vmem:[%s5] sm:$0xff]
  %v896 = vld [vmem:[%s5 + $0x8] sm:$0xff]
  %s897 = scalar_lea.vmem %s5, 16
  %v898 = vld [vmem:[%s897] sm:$0xff]
  %v899 = vld [vmem:[%s897 + $0x8] sm:$0xff]
  %s900 = smul.u32 0, 3
  %s901 = smul.addr %s900, 8
  %s902 = scalar_lea.vmem [#allocation2], %s901
  %v903 = vld [vmem:[%s902] sm:$0xff]
  %v904 = vld [vmem:[%s902 + $0x8] sm:$0xff]
  %v905 = vld [vmem:[%s902 + $0x10] sm:$0xff]
  %v906 = vld [vmem:[%s902 + $0x18] sm:$0xff]
  %v907 = vld [vmem:[%s902 + $0x20] sm:$0xff]
  %v908 = vld [vmem:[%s902 + $0x28] sm:$0xff]
  %s909 = smul.u32 14, 3
  %s910 = smul.addr %s909, 8
  %s911 = scalar_lea.vmem [#allocation3], %s910
  %v912 = vld [vmem:[%s911] sm:$0xff]
  %v913 = vld [vmem:[%s911 + $0x8] sm:$0xff]
  %v914 = vld [vmem:[%s911 + $0x10] sm:$0xff]
  %v915 = vld [vmem:[%s911 + $0x18] sm:$0xff]
  %v916 = vld [vmem:[%s911 + $0x20] sm:$0xff]
  %v917 = vld [vmem:[%s911 + $0x28] sm:$0xff]
  %v918 = vpack.c.bf16 %v896, %v895
  %v919 = vld [vmem:[%s3] sm:$0xff]
  %v920 = vld [vmem:[%s3 + $0x8] sm:$0xf]
  %v921 = vld [vmem:[%s3 + $0xc] sm:$0xff]
  %v922 = vld [vmem:[%s3 + $0x14] sm:$0xf]
  %v923 = vld [vmem:[%s3 + $0x18] sm:$0xff]
  %v924 = vld [vmem:[%s3 + $0x20] sm:$0xf]
  %v925 = vld [vmem:[%s3 + $0x24] sm:$0xff]
  %v926 = vld [vmem:[%s3 + $0x2c] sm:$0xf]
  %v927 = vld [vmem:[%s3 + $0x30] sm:$0xff]
  %v928 = vld [vmem:[%s3 + $0x38] sm:$0xf]
  %v929 = vld [vmem:[%s3 + $0x3c] sm:$0xff]
  %v930 = vld [vmem:[%s3 + $0x44] sm:$0xf]
  %v931 = vld [vmem:[%s3 + $0x48] sm:$0xff]
  %v932 = vld [vmem:[%s3 + $0x50] sm:$0xf]
  %v933 = vld [vmem:[%s3 + $0x54] sm:$0xff]
  %v934 = vld [vmem:[%s3 + $0x5c] sm:$0xf]
  %v935 = vld [vmem:[%s3 + $0x60] sm:$0xff]
  %v936 = vld [vmem:[%s3 + $0x68] sm:$0xf]
  %v937 = vld [vmem:[%s3 + $0x6c] sm:$0xff]
  %v938 = vld [vmem:[%s3 + $0x74] sm:$0xf]
  %v939 = vld [vmem:[%s3 + $0x78] sm:$0xff]
  %v940 = vld [vmem:[%s3 + $0x80] sm:$0xf]
  %v941 = vld [vmem:[%s3 + $0x84] sm:$0xff]
  %v942 = vld [vmem:[%s3 + $0x8c] sm:$0xf]
  %v943 = vld [vmem:[%s3 + $0x90] sm:$0xff]
  %v944 = vld [vmem:[%s3 + $0x98] sm:$0xf]
  %v945 = vld [vmem:[%s3 + $0x9c] sm:$0xff]
  %v946 = vld [vmem:[%s3 + $0xa4] sm:$0xf]
  %v947 = vld [vmem:[%s3 + $0xa8] sm:$0xff]
  %v948 = vld [vmem:[%s3 + $0xb0] sm:$0xf]
  %v949 = vld [vmem:[%s3 + $0xb4] sm:$0xff]
  %v950 = vld [vmem:[%s3 + $0xbc] sm:$0xf]
  %v951 = vld [vmem:[%s4] sm:$0x7]
  %v953 = vperm.slane %v951, 0
  %v954 = vperm.slane %v951, 1
  %v955 = vperm.slane %v951, 2
  %v991 = vunpack.c.l.b16 %v919
  %v992 = vunpack.c.h.b16 %v919
  %v993 = vunpack.c.l.b16 %v920
  %v994 = vunpack.c.l.b16 %v921
  %v995 = vunpack.c.h.b16 %v921
  %v996 = vunpack.c.l.b16 %v922
  %v997 = vunpack.c.l.b16 %v923
  %v998 = vunpack.c.h.b16 %v923
  %v999 = vunpack.c.l.b16 %v924
  %v1000 = vunpack.c.l.b16 %v925
  %v1001 = vunpack.c.h.b16 %v925
  %v1002 = vunpack.c.l.b16 %v926
  %v1003 = vunpack.c.l.b16 %v927
  %v1004 = vunpack.c.h.b16 %v927
  %v1005 = vunpack.c.l.b16 %v928
  %v1006 = vunpack.c.l.b16 %v929
  %v1007 = vunpack.c.h.b16 %v929
  %v1008 = vunpack.c.l.b16 %v930
  %v1009 = vunpack.c.l.b16 %v931
  %v1010 = vunpack.c.h.b16 %v931
  %v1011 = vunpack.c.l.b16 %v932
  %v1012 = vunpack.c.l.b16 %v933
  %v1013 = vunpack.c.h.b16 %v933
  %v1014 = vunpack.c.l.b16 %v934
  %v1015 = vunpack.c.l.b16 %v935
  %v1016 = vunpack.c.h.b16 %v935
  %v1017 = vunpack.c.l.b16 %v936
  %v1018 = vunpack.c.l.b16 %v937
  %v1019 = vunpack.c.h.b16 %v937
  %v1020 = vunpack.c.l.b16 %v938
  %v1021 = vunpack.c.l.b16 %v939
  %v1022 = vunpack.c.h.b16 %v939
  %v1023 = vunpack.c.l.b16 %v940
  %v1024 = vunpack.c.l.b16 %v941
  %v1025 = vunpack.c.h.b16 %v941
  %v1026 = vunpack.c.l.b16 %v942
  %v1027 = vunpack.c.l.b16 %v943
  %v1028 = vunpack.c.h.b16 %v943
  %v1029 = vunpack.c.l.b16 %v944
  %v1030 = vunpack.c.l.b16 %v945
  %v1031 = vunpack.c.h.b16 %v945
  %v1032 = vunpack.c.l.b16 %v946
  %v1033 = vunpack.c.l.b16 %v947
  %v1034 = vunpack.c.h.b16 %v947
  %v1035 = vunpack.c.l.b16 %v948
  %v1036 = vunpack.c.l.b16 %v949
  %v1037 = vunpack.c.h.b16 %v949
  %v1038 = vunpack.c.l.b16 %v950
  %v1039 = vpack.c.b16 %v994, %v991
  %v1040 = vpack.c.b16 %v995, %v992
  %v1041 = vpack.c.b16 %v996, %v993
  %v1042 = vpack.c.b16 %v1000, %v997
  %v1043 = vpack.c.b16 %v1001, %v998
  %v1044 = vpack.c.b16 %v1002, %v999
  %v1045 = vpack.c.b16 %v1006, %v1003
  %v1046 = vpack.c.b16 %v1007, %v1004
  %v1047 = vpack.c.b16 %v1008, %v1005
  %v1048 = vpack.c.b16 %v1012, %v1009
  %v1049 = vpack.c.b16 %v1013, %v1010
  %v1050 = vpack.c.b16 %v1014, %v1011
  %v1051 = vpack.c.b16 %v1018, %v1015
  %v1052 = vpack.c.b16 %v1019, %v1016
  %v1053 = vpack.c.b16 %v1020, %v1017
  %v1054 = vpack.c.b16 %v1024, %v1021
  %v1055 = vpack.c.b16 %v1025, %v1022
  %v1056 = vpack.c.b16 %v1026, %v1023
  %v1057 = vpack.c.b16 %v1030, %v1027
  %v1058 = vpack.c.b16 %v1031, %v1028
  %v1059 = vpack.c.b16 %v1032, %v1029
  %v1060 = vpack.c.b16 %v1036, %v1033
  %v1061 = vpack.c.b16 %v1037, %v1034
  %v1062 = vpack.c.b16 %v1038, %v1035
  %1087 = vmatpush.bf16.msra.mxu0 %v1060
  %1088 = vmatpush.bf16.msra.mxu0 %v1057
  %1089 = vmatpush.bf16.msra.mxu0 %v1054
  %1090 = vmatpush.bf16.msra.mxu0 %v1051
  %1091 = vmatpush.bf16.msra.mxu0 %v1048
  %1092 = vmatpush.bf16.msra.mxu0 %v1045
  %1093 = vmatpush.bf16.msra.mxu0 %v1042
  %1094 = vmatpush.bf16.msra.mxu0 %v1039
  %1095 = vmatmul.bf16.gmra.mxu0 %v918
  %v1096 = vpop.f32.mrf.mxu0
  %v1097 = vadd.f32 %v953, %v1096
  %v1098 = vpop.f32.mrf.mxu0
  %v1099 = vadd.f32 %v953, %v1098
  %1100 = vdwg.mxu0
  %1101 = vmatpush.bf16.msra.mxu0 %v1061
  %1102 = vmatpush.bf16.msra.mxu0 %v1058
  %1103 = vmatpush.bf16.msra.mxu0 %v1055
  %1104 = vmatpush.bf16.msra.mxu0 %v1052
  %1105 = vmatpush.bf16.msra.mxu0 %v1049
  %1106 = vmatpush.bf16.msra.mxu0 %v1046
  %1107 = vmatpush.bf16.msra.mxu0 %v1043
  %1108 = vmatpush.bf16.msra.mxu0 %v1040
  %1109 = vmatmul.bf16.gmra.mxu0 %v918
  %v1110 = vpop.f32.mrf.mxu0
  %v1111 = vadd.f32 %v954, %v1110
  %v1112 = vpop.f32.mrf.mxu0
  %v1113 = vadd.f32 %v954, %v1112
  %1114 = vdwg.mxu0
  %1115 = vmatpush.bf16.msra.mxu0 %v1062
  %1116 = vmatpush.bf16.msra.mxu0 %v1059
  %1117 = vmatpush.bf16.msra.mxu0 %v1056
  %1118 = vmatpush.bf16.msra.mxu0 %v1053
  %1119 = vmatpush.bf16.msra.mxu0 %v1050
  %1120 = vmatpush.bf16.msra.mxu0 %v1047
  %1121 = vmatpush.bf16.msra.mxu0 %v1044
  %1122 = vmatpush.bf16.msra.mxu0 %v1041
  %1123 = vmatmul.bf16.gmra.mxu0 %v918
  %v1124 = vpop.f32.mrf.mxu0
  %v1125 = vadd.f32 %v955, %v1124
  %v1126 = vpop.f32.mrf.mxu0
  %v1127 = vadd.f32 %v955, %v1126
  %1128 = vdwg.mxu0
  %v1129 = vpack.c.bf16 %v899, %v898
  %s1130 = scalar_lea.vmem %s3, 192
  %v1131 = vld [vmem:[%s1130] sm:$0xff]
  %v1132 = vld [vmem:[%s1130 + $0x8] sm:$0xf]
  %v1133 = vld [vmem:[%s1130 + $0xc] sm:$0xff]
  %v1134 = vld [vmem:[%s1130 + $0x14] sm:$0xf]
  %v1135 = vld [vmem:[%s1130 + $0x18] sm:$0xff]
  %v1136 = vld [vmem:[%s1130 + $0x20] sm:$0xf]
  %v1137 = vld [vmem:[%s1130 + $0x24] sm:$0xff]
  %v1138 = vld [vmem:[%s1130 + $0x2c] sm:$0xf]
  %v1139 = vld [vmem:[%s1130 + $0x30] sm:$0xff]
  %v1140 = vld [vmem:[%s1130 + $0x38] sm:$0xf]
  %v1141 = vld [vmem:[%s1130 + $0x3c] sm:$0xff]
  %v1142 = vld [vmem:[%s1130 + $0x44] sm:$0xf]
  %v1143 = vld [vmem:[%s1130 + $0x48] sm:$0xff]
  %v1144 = vld [vmem:[%s1130 + $0x50] sm:$0xf]
  %v1145 = vld [vmem:[%s1130 + $0x54] sm:$0xff]
  %v1146 = vld [vmem:[%s1130 + $0x5c] sm:$0xf]
  %v1147 = vld [vmem:[%s1130 + $0x60] sm:$0xff]
  %v1148 = vld [vmem:[%s1130 + $0x68] sm:$0xf]
  %v1149 = vld [vmem:[%s1130 + $0x6c] sm:$0xff]
  %v1150 = vld [vmem:[%s1130 + $0x74] sm:$0xf]
  %v1151 = vld [vmem:[%s1130 + $0x78] sm:$0xff]
  %v1152 = vld [vmem:[%s1130 + $0x80] sm:$0xf]
  %v1153 = vld [vmem:[%s1130 + $0x84] sm:$0xff]
  %v1154 = vld [vmem:[%s1130 + $0x8c] sm:$0xf]
  %v1155 = vld [vmem:[%s1130 + $0x90] sm:$0xff]
  %v1156 = vld [vmem:[%s1130 + $0x98] sm:$0xf]
  %v1157 = vld [vmem:[%s1130 + $0x9c] sm:$0xff]
  %v1158 = vld [vmem:[%s1130 + $0xa4] sm:$0xf]
  %v1159 = vld [vmem:[%s1130 + $0xa8] sm:$0xff]
  %v1160 = vld [vmem:[%s1130 + $0xb0] sm:$0xf]
  %v1161 = vld [vmem:[%s1130 + $0xb4] sm:$0xff]
  %v1162 = vld [vmem:[%s1130 + $0xbc] sm:$0xf]
  %s1163 = scalar_lea.vmem %s4, 3
  %v1164 = vld [vmem:[%s1163] sm:$0x7]
  %v1166 = vperm.slane %v1164, 0
  %v1167 = vperm.slane %v1164, 1
  %v1168 = vperm.slane %v1164, 2
  %v1204 = vunpack.c.l.b16 %v1131
  %v1205 = vunpack.c.h.b16 %v1131
  %v1206 = vunpack.c.l.b16 %v1132
  %v1207 = vunpack.c.l.b16 %v1133
  %v1208 = vunpack.c.h.b16 %v1133
  %v1209 = vunpack.c.l.b16 %v1134
  %v1210 = vunpack.c.l.b16 %v1135
  %v1211 = vunpack.c.h.b16 %v1135
  %v1212 = vunpack.c.l.b16 %v1136
  %v1213 = vunpack.c.l.b16 %v1137
  %v1214 = vunpack.c.h.b16 %v1137
  %v1215 = vunpack.c.l.b16 %v1138
  %v1216 = vunpack.c.l.b16 %v1139
  %v1217 = vunpack.c.h.b16 %v1139
  %v1218 = vunpack.c.l.b16 %v1140
  %v1219 = vunpack.c.l.b16 %v1141
  %v1220 = vunpack.c.h.b16 %v1141
  %v1221 = vunpack.c.l.b16 %v1142
  %v1222 = vunpack.c.l.b16 %v1143
  %v1223 = vunpack.c.h.b16 %v1143
  %v1224 = vunpack.c.l.b16 %v1144
  %v1225 = vunpack.c.l.b16 %v1145
  %v1226 = vunpack.c.h.b16 %v1145
  %v1227 = vunpack.c.l.b16 %v1146
  %v1228 = vunpack.c.l.b16 %v1147
  %v1229 = vunpack.c.h.b16 %v1147
  %v1230 = vunpack.c.l.b16 %v1148
  %v1231 = vunpack.c.l.b16 %v1149
  %v1232 = vunpack.c.h.b16 %v1149
  %v1233 = vunpack.c.l.b16 %v1150
  %v1234 = vunpack.c.l.b16 %v1151
  %v1235 = vunpack.c.h.b16 %v1151
  %v1236 = vunpack.c.l.b16 %v1152
  %v1237 = vunpack.c.l.b16 %v1153
  %v1238 = vunpack.c.h.b16 %v1153
  %v1239 = vunpack.c.l.b16 %v1154
  %v1240 = vunpack.c.l.b16 %v1155
  %v1241 = vunpack.c.h.b16 %v1155
  %v1242 = vunpack.c.l.b16 %v1156
  %v1243 = vunpack.c.l.b16 %v1157
  %v1244 = vunpack.c.h.b16 %v1157
  %v1245 = vunpack.c.l.b16 %v1158
  %v1246 = vunpack.c.l.b16 %v1159
  %v1247 = vunpack.c.h.b16 %v1159
  %v1248 = vunpack.c.l.b16 %v1160
  %v1249 = vunpack.c.l.b16 %v1161
  %v1250 = vunpack.c.h.b16 %v1161
  %v1251 = vunpack.c.l.b16 %v1162
  %v1252 = vpack.c.b16 %v1207, %v1204
  %v1253 = vpack.c.b16 %v1208, %v1205
  %v1254 = vpack.c.b16 %v1209, %v1206
  %v1255 = vpack.c.b16 %v1213, %v1210
  %v1256 = vpack.c.b16 %v1214, %v1211
  %v1257 = vpack.c.b16 %v1215, %v1212
  %v1258 = vpack.c.b16 %v1219, %v1216
  %v1259 = vpack.c.b16 %v1220, %v1217
  %v1260 = vpack.c.b16 %v1221, %v1218
  %v1261 = vpack.c.b16 %v1225, %v1222
  %v1262 = vpack.c.b16 %v1226, %v1223
  %v1263 = vpack.c.b16 %v1227, %v1224
  %v1264 = vpack.c.b16 %v1231, %v1228
  %v1265 = vpack.c.b16 %v1232, %v1229
  %v1266 = vpack.c.b16 %v1233, %v1230
  %v1267 = vpack.c.b16 %v1237, %v1234
  %v1268 = vpack.c.b16 %v1238, %v1235
  %v1269 = vpack.c.b16 %v1239, %v1236
  %v1270 = vpack.c.b16 %v1243, %v1240
  %v1271 = vpack.c.b16 %v1244, %v1241
  %v1272 = vpack.c.b16 %v1245, %v1242
  %v1273 = vpack.c.b16 %v1249, %v1246
  %v1274 = vpack.c.b16 %v1250, %v1247
  %v1275 = vpack.c.b16 %v1251, %v1248
  %1300 = vmatpush.bf16.msra.mxu0 %v1273
  %1301 = vmatpush.bf16.msra.mxu0 %v1270
  %1302 = vmatpush.bf16.msra.mxu0 %v1267
  %1303 = vmatpush.bf16.msra.mxu0 %v1264
  %1304 = vmatpush.bf16.msra.mxu0 %v1261
  %1305 = vmatpush.bf16.msra.mxu0 %v1258
  %1306 = vmatpush.bf16.msra.mxu0 %v1255
  %1307 = vmatpush.bf16.msra.mxu0 %v1252
  %1308 = vmatmul.bf16.gmra.mxu0 %v1129
  %v1309 = vpop.f32.mrf.mxu0
  %v1310 = vadd.f32 %v1166, %v1309
  %v1311 = vpop.f32.mrf.mxu0
  %v1312 = vadd.f32 %v1166, %v1311
  %1313 = vdwg.mxu0
  %1314 = vmatpush.bf16.msra.mxu0 %v1274
  %1315 = vmatpush.bf16.msra.mxu0 %v1271
  %1316 = vmatpush.bf16.msra.mxu0 %v1268
  %1317 = vmatpush.bf16.msra.mxu0 %v1265
  %1318 = vmatpush.bf16.msra.mxu0 %v1262
  %1319 = vmatpush.bf16.msra.mxu0 %v1259
  %1320 = vmatpush.bf16.msra.mxu0 %v1256
  %1321 = vmatpush.bf16.msra.mxu0 %v1253
  %1322 = vmatmul.bf16.gmra.mxu0 %v1129
  %v1323 = vpop.f32.mrf.mxu0
  %v1324 = vadd.f32 %v1167, %v1323
  %v1325 = vpop.f32.mrf.mxu0
  %v1326 = vadd.f32 %v1167, %v1325
  %1327 = vdwg.mxu0
  %1328 = vmatpush.bf16.msra.mxu0 %v1275
  %1329 = vmatpush.bf16.msra.mxu0 %v1272
  %1330 = vmatpush.bf16.msra.mxu0 %v1269
  %1331 = vmatpush.bf16.msra.mxu0 %v1266
  %1332 = vmatpush.bf16.msra.mxu0 %v1263
  %1333 = vmatpush.bf16.msra.mxu0 %v1260
  %1334 = vmatpush.bf16.msra.mxu0 %v1257
  %1335 = vmatpush.bf16.msra.mxu0 %v1254
  %1336 = vmatmul.bf16.gmra.mxu0 %v1129
  %v1337 = vpop.f32.mrf.mxu0
  %v1338 = vadd.f32 %v1168, %v1337
  %v1339 = vpop.f32.mrf.mxu0
  %v1340 = vadd.f32 %v1168, %v1339
  %1341 = vdwg.mxu0
  %v1342 = vadd.f32 %v903, %v1097
  %v1343 = vadd.f32 %v906, %v1099
  %v1344 = vxor.u32 %v1342, 2147483648
  %v1345 = vxor.u32 %v1343, 2147483648
  %v1346 = vmul.f32 %v1344, 1.442695
  %v1347 = vpow.pop %v1346
  %v1348 = vmul.f32 %v1345, 1.442695
  %v1349 = vpow.pop %v1348
  %v1350 = vadd.f32 %v1347, 1.0
  %v1351 = vadd.f32 %v1349, 1.0
  %v1352 = vrcp.pop %v1350
  %v1353 = vmul.f32 %v1350, %v1352
  %v1354 = vsub.f32 1.0, %v1353
  %v1355 = vmul.f32 %v1352, %v1354
  %v1356 = vadd.f32 %v1352, %v1355
  %vm1357 = vweird.f32 %v1350
  %vm1358 = vweird.f32 %v1352
  %vm1359 = vmor %vm1357, %vm1358
  %v1360 = vsel %vm1359, %v1352, %v1356
  %v1361 = vand.u32 2147483647, %v1350
  %vm1362 = vcmp.eq.f32.partialorder %v1361, 8.507059e+37
  %v1363 = vand.u32 %v1350, 2147483648
  %v1364 = vor.u32 1.1754944e-38, %v1363
  %v1365 = vsel %vm1362, %v1364, %v1360
  %v1366 = vmul.f32 1.0, %v1365
  %v1367 = vrcp.pop %v1351
  %v1368 = vmul.f32 %v1351, %v1367
  %v1369 = vsub.f32 1.0, %v1368
  %v1370 = vmul.f32 %v1367, %v1369
  %v1371 = vadd.f32 %v1367, %v1370
  %vm1372 = vweird.f32 %v1351
  %vm1373 = vweird.f32 %v1367
  %vm1374 = vmor %vm1372, %vm1373
  %v1375 = vsel %vm1374, %v1367, %v1371
  %v1376 = vand.u32 2147483647, %v1351
  %vm1377 = vcmp.eq.f32.partialorder %v1376, 8.507059e+37
  %v1378 = vand.u32 %v1351, 2147483648
  %v1379 = vor.u32 1.1754944e-38, %v1378
  %v1380 = vsel %vm1377, %v1379, %v1375
  %v1381 = vmul.f32 1.0, %v1380
  %v1382 = vadd.f32 %v904, %v1111
  %v1383 = vadd.f32 %v907, %v1113
  %v1384 = vxor.u32 %v1382, 2147483648
  %v1385 = vxor.u32 %v1383, 2147483648
  %v1386 = vmul.f32 %v1384, 1.442695
  %v1387 = vpow.pop %v1386
  %v1388 = vmul.f32 %v1385, 1.442695
  %v1389 = vpow.pop %v1388
  %v1390 = vadd.f32 %v1387, 1.0
  %v1391 = vadd.f32 %v1389, 1.0
  %v1392 = vrcp.pop %v1390
  %v1393 = vmul.f32 %v1390, %v1392
  %v1394 = vsub.f32 1.0, %v1393
  %v1395 = vmul.f32 %v1392, %v1394
  %v1396 = vadd.f32 %v1392, %v1395
  %vm1397 = vweird.f32 %v1390
  %vm1398 = vweird.f32 %v1392
  %vm1399 = vmor %vm1397, %vm1398
  %v1400 = vsel %vm1399, %v1392, %v1396
  %v1401 = vand.u32 2147483647, %v1390
  %vm1402 = vcmp.eq.f32.partialorder %v1401, 8.507059e+37
  %v1403 = vand.u32 %v1390, 2147483648
  %v1404 = vor.u32 1.1754944e-38, %v1403
  %v1405 = vsel %vm1402, %v1404, %v1400
  %v1406 = vmul.f32 1.0, %v1405
  %v1407 = vrcp.pop %v1391
  %v1408 = vmul.f32 %v1391, %v1407
  %v1409 = vsub.f32 1.0, %v1408
  %v1410 = vmul.f32 %v1407, %v1409
  %v1411 = vadd.f32 %v1407, %v1410
  %vm1412 = vweird.f32 %v1391
  %vm1413 = vweird.f32 %v1407
  %vm1414 = vmor %vm1412, %vm1413
  %v1415 = vsel %vm1414, %v1407, %v1411
  %v1416 = vand.u32 2147483647, %v1391
  %vm1417 = vcmp.eq.f32.partialorder %v1416, 8.507059e+37
  %v1418 = vand.u32 %v1391, 2147483648
  %v1419 = vor.u32 1.1754944e-38, %v1418
  %v1420 = vsel %vm1417, %v1419, %v1415
  %v1421 = vmul.f32 1.0, %v1420
  %v1422 = vmul.f32 %v1366, %v1125
  %v1423 = vmul.f32 %v1381, %v1127
  %v1424 = vadd.f32 %v905, %v1422
  %v1425 = vadd.f32 %v908, %v1423
  %v1426 = vtanh.pop %v1424
  %v1427 = vtanh.pop %v1425
  %v1428 = vsub.f32 1.0, %v1406
  %v1429 = vsub.f32 1.0, %v1421
  %v1430 = vmul.f32 %v1428, %v1426
  %v1431 = vmul.f32 %v1429, %v1427
  %v1432 = vmul.f32 %v1406, %v895
  %v1433 = vmul.f32 %v1421, %v896
  %v1434 = vadd.f32 %v1430, %v1432
  %v1435 = vadd.f32 %v1431, %v1433
  %v1436 = vadd.f32 %v912, %v1310
  %v1437 = vadd.f32 %v915, %v1312
  %v1438 = vxor.u32 %v1436, 2147483648
  %v1439 = vxor.u32 %v1437, 2147483648
  %v1440 = vmul.f32 %v1438, 1.442695
  %v1441 = vpow.pop %v1440
  %v1442 = vmul.f32 %v1439, 1.442695
  %v1443 = vpow.pop %v1442
  %v1444 = vadd.f32 %v1441, 1.0
  %v1445 = vadd.f32 %v1443, 1.0
  %v1446 = vrcp.pop %v1444
  %v1447 = vmul.f32 %v1444, %v1446
  %v1448 = vsub.f32 1.0, %v1447
  %v1449 = vmul.f32 %v1446, %v1448
  %v1450 = vadd.f32 %v1446, %v1449
  %vm1451 = vweird.f32 %v1444
  %vm1452 = vweird.f32 %v1446
  %vm1453 = vmor %vm1451, %vm1452
  %v1454 = vsel %vm1453, %v1446, %v1450
  %v1455 = vand.u32 2147483647, %v1444
  %vm1456 = vcmp.eq.f32.partialorder %v1455, 8.507059e+37
  %v1457 = vand.u32 %v1444, 2147483648
  %v1458 = vor.u32 1.1754944e-38, %v1457
  %v1459 = vsel %vm1456, %v1458, %v1454
  %v1460 = vmul.f32 1.0, %v1459
  %v1461 = vrcp.pop %v1445
  %v1462 = vmul.f32 %v1445, %v1461
  %v1463 = vsub.f32 1.0, %v1462
  %v1464 = vmul.f32 %v1461, %v1463
  %v1465 = vadd.f32 %v1461, %v1464
  %vm1466 = vweird.f32 %v1445
  %vm1467 = vweird.f32 %v1461
  %vm1468 = vmor %vm1466, %vm1467
  %v1469 = vsel %vm1468, %v1461, %v1465
  %v1470 = vand.u32 2147483647, %v1445
  %vm1471 = vcmp.eq.f32.partialorder %v1470, 8.507059e+37
  %v1472 = vand.u32 %v1445, 2147483648
  %v1473 = vor.u32 1.1754944e-38, %v1472
  %v1474 = vsel %vm1471, %v1473, %v1469
  %v1475 = vmul.f32 1.0, %v1474
  %v1476 = vadd.f32 %v913, %v1324
  %v1477 = vadd.f32 %v916, %v1326
  %v1478 = vxor.u32 %v1476, 2147483648
  %v1479 = vxor.u32 %v1477, 2147483648
  %v1480 = vmul.f32 %v1478, 1.442695
  %v1481 = vpow.pop %v1480
  %v1482 = vmul.f32 %v1479, 1.442695
  %v1483 = vpow.pop %v1482
  %v1484 = vadd.f32 %v1481, 1.0
  %v1485 = vadd.f32 %v1483, 1.0
  %v1486 = vrcp.pop %v1484
  %v1487 = vmul.f32 %v1484, %v1486
  %v1488 = vsub.f32 1.0, %v1487
  %v1489 = vmul.f32 %v1486, %v1488
  %v1490 = vadd.f32 %v1486, %v1489
  %vm1491 = vweird.f32 %v1484
  %vm1492 = vweird.f32 %v1486
  %vm1493 = vmor %vm1491, %vm1492
  %v1494 = vsel %vm1493, %v1486, %v1490
  %v1495 = vand.u32 2147483647, %v1484
  %vm1496 = vcmp.eq.f32.partialorder %v1495, 8.507059e+37
  %v1497 = vand.u32 %v1484, 2147483648
  %v1498 = vor.u32 1.1754944e-38, %v1497
  %v1499 = vsel %vm1496, %v1498, %v1494
  %v1500 = vmul.f32 1.0, %v1499
  %v1501 = vrcp.pop %v1485
  %v1502 = vmul.f32 %v1485, %v1501
  %v1503 = vsub.f32 1.0, %v1502
  %v1504 = vmul.f32 %v1501, %v1503
  %v1505 = vadd.f32 %v1501, %v1504
  %vm1506 = vweird.f32 %v1485
  %vm1507 = vweird.f32 %v1501
  %vm1508 = vmor %vm1506, %vm1507
  %v1509 = vsel %vm1508, %v1501, %v1505
  %v1510 = vand.u32 2147483647, %v1485
  %vm1511 = vcmp.eq.f32.partialorder %v1510, 8.507059e+37
  %v1512 = vand.u32 %v1485, 2147483648
  %v1513 = vor.u32 1.1754944e-38, %v1512
  %v1514 = vsel %vm1511, %v1513, %v1509
  %v1515 = vmul.f32 1.0, %v1514
  %v1516 = vmul.f32 %v1460, %v1338
  %v1517 = vmul.f32 %v1475, %v1340
  %v1518 = vadd.f32 %v914, %v1516
  %v1519 = vadd.f32 %v917, %v1517
  %v1520 = vtanh.pop %v1518
  %v1521 = vtanh.pop %v1519
  %v1522 = vsub.f32 1.0, %v1500
  %v1523 = vsub.f32 1.0, %v1515
  %v1524 = vmul.f32 %v1522, %v1520
  %v1525 = vmul.f32 %v1523, %v1521
  %v1526 = vmul.f32 %v1500, %v898
  %v1527 = vmul.f32 %v1515, %v899
  %v1528 = vadd.f32 %v1524, %v1526
  %v1529 = vadd.f32 %v1525, %v1527
  %v1530 = vld [vmem:[%s6] sm:$0xff]
  %v1531 = vld [vmem:[%s6 + $0x8] sm:$0xff]
  %v1532 = vadd.f32 %v1530, %v1434
  %v1533 = vadd.f32 %v1531, %v1435
  %1534 = vst [vmem:[%s6] sm:$0xff] %v1532
  %1535 = vst [vmem:[%s6 + $0x8] sm:$0xff] %v1533
  %s1536 = scalar_lea.vmem %s6, 112
  %v1537 = vld [vmem:[%s1536] sm:$0xff]
  %v1538 = vld [vmem:[%s1536 + $0x8] sm:$0xff]
  %v1539 = vadd.f32 %v1537, %v1528
  %v1540 = vadd.f32 %v1538, %v1529
  %1541 = vst [vmem:[%s1536] sm:$0xff] %v1539
  %1542 = vst [vmem:[%s1536 + $0x8] sm:$0xff] %v1540
  %s1543 = smul.u32 2, 3
  %s1544 = smul.addr %s1543, 8
  %s1545 = scalar_lea.vmem [#allocation2], %s1544
  %v1546 = vld [vmem:[%s1545] sm:$0xff]
  %v1547 = vld [vmem:[%s1545 + $0x8] sm:$0xff]
  %v1548 = vld [vmem:[%s1545 + $0x10] sm:$0xff]
  %v1549 = vld [vmem:[%s1545 + $0x18] sm:$0xff]
  %v1550 = vld [vmem:[%s1545 + $0x20] sm:$0xff]
  %v1551 = vld [vmem:[%s1545 + $0x28] sm:$0xff]
  %s1552 = smul.u32 12, 3
  %s1553 = smul.addr %s1552, 8
  %s1554 = scalar_lea.vmem [#allocation3], %s1553
  %v1555 = vld [vmem:[%s1554] sm:$0xff]
  %v1556 = vld [vmem:[%s1554 + $0x8] sm:$0xff]
  %v1557 = vld [vmem:[%s1554 + $0x10] sm:$0xff]
  %v1558 = vld [vmem:[%s1554 + $0x18] sm:$0xff]
  %v1559 = vld [vmem:[%s1554 + $0x20] sm:$0xff]
  %v1560 = vld [vmem:[%s1554 + $0x28] sm:$0xff]
  %v1561 = vpack.c.bf16 %v1435, %v1434
  %v1562 = vld [vmem:[%s3] sm:$0xff]
  %v1563 = vld [vmem:[%s3 + $0x8] sm:$0xf]
  %v1564 = vld [vmem:[%s3 + $0xc] sm:$0xff]
  %v1565 = vld [vmem:[%s3 + $0x14] sm:$0xf]
  %v1566 = vld [vmem:[%s3 + $0x18] sm:$0xff]
  %v1567 = vld [vmem:[%s3 + $0x20] sm:$0xf]
  %v1568 = vld [vmem:[%s3 + $0x24] sm:$0xff]
  %v1569 = vld [vmem:[%s3 + $0x2c] sm:$0xf]
  %v1570 = vld [vmem:[%s3 + $0x30] sm:$0xff]
  %v1571 = vld [vmem:[%s3 + $0x38] sm:$0xf]
  %v1572 = vld [vmem:[%s3 + $0x3c] sm:$0xff]
  %v1573 = vld [vmem:[%s3 + $0x44] sm:$0xf]
  %v1574 = vld [vmem:[%s3 + $0x48] sm:$0xff]
  %v1575 = vld [vmem:[%s3 + $0x50] sm:$0xf]
  %v1576 = vld [vmem:[%s3 + $0x54] sm:$0xff]
  %v1577 = vld [vmem:[%s3 + $0x5c] sm:$0xf]
  %v1578 = vld [vmem:[%s3 + $0x60] sm:$0xff]
  %v1579 = vld [vmem:[%s3 + $0x68] sm:$0xf]
  %v1580 = vld [vmem:[%s3 + $0x6c] sm:$0xff]
  %v1581 = vld [vmem:[%s3 + $0x74] sm:$0xf]
  %v1582 = vld [vmem:[%s3 + $0x78] sm:$0xff]
  %v1583 = vld [vmem:[%s3 + $0x80] sm:$0xf]
  %v1584 = vld [vmem:[%s3 + $0x84] sm:$0xff]
  %v1585 = vld [vmem:[%s3 + $0x8c] sm:$0xf]
  %v1586 = vld [vmem:[%s3 + $0x90] sm:$0xff]
  %v1587 = vld [vmem:[%s3 + $0x98] sm:$0xf]
  %v1588 = vld [vmem:[%s3 + $0x9c] sm:$0xff]
  %v1589 = vld [vmem:[%s3 + $0xa4] sm:$0xf]
  %v1590 = vld [vmem:[%s3 + $0xa8] sm:$0xff]
  %v1591 = vld [vmem:[%s3 + $0xb0] sm:$0xf]
  %v1592 = vld [vmem:[%s3 + $0xb4] sm:$0xff]
  %v1593 = vld [vmem:[%s3 + $0xbc] sm:$0xf]
  %v1594 = vld [vmem:[%s4] sm:$0x7]
  %v1596 = vperm.slane %v1594, 0
  %v1597 = vperm.slane %v1594, 1
  %v1598 = vperm.slane %v1594, 2
  %v1634 = vunpack.c.l.b16 %v1562
  %v1635 = vunpack.c.h.b16 %v1562
  %v1636 = vunpack.c.l.b16 %v1563
  %v1637 = vunpack.c.l.b16 %v1564
  %v1638 = vunpack.c.h.b16 %v1564
  %v1639 = vunpack.c.l.b16 %v1565
  %v1640 = vunpack.c.l.b16 %v1566
  %v1641 = vunpack.c.h.b16 %v1566
  %v1642 = vunpack.c.l.b16 %v1567
  %v1643 = vunpack.c.l.b16 %v1568
  %v1644 = vunpack.c.h.b16 %v1568
  %v1645 = vunpack.c.l.b16 %v1569
  %v1646 = vunpack.c.l.b16 %v1570
  %v1647 = vunpack.c.h.b16 %v1570
  %v1648 = vunpack.c.l.b16 %v1571
  %v1649 = vunpack.c.l.b16 %v1572
  %v1650 = vunpack.c.h.b16 %v1572
  %v1651 = vunpack.c.l.b16 %v1573
  %v1652 = vunpack.c.l.b16 %v1574
  %v1653 = vunpack.c.h.b16 %v1574
  %v1654 = vunpack.c.l.b16 %v1575
  %v1655 = vunpack.c.l.b16 %v1576
  %v1656 = vunpack.c.h.b16 %v1576
  %v1657 = vunpack.c.l.b16 %v1577
  %v1658 = vunpack.c.l.b16 %v1578
  %v1659 = vunpack.c.h.b16 %v1578
  %v1660 = vunpack.c.l.b16 %v1579
  %v1661 = vunpack.c.l.b16 %v1580
  %v1662 = vunpack.c.h.b16 %v1580
  %v1663 = vunpack.c.l.b16 %v1581
  %v1664 = vunpack.c.l.b16 %v1582
  %v1665 = vunpack.c.h.b16 %v1582
  %v1666 = vunpack.c.l.b16 %v1583
  %v1667 = vunpack.c.l.b16 %v1584
  %v1668 = vunpack.c.h.b16 %v1584
  %v1669 = vunpack.c.l.b16 %v1585
  %v1670 = vunpack.c.l.b16 %v1586
  %v1671 = vunpack.c.h.b16 %v1586
  %v1672 = vunpack.c.l.b16 %v1587
  %v1673 = vunpack.c.l.b16 %v1588
  %v1674 = vunpack.c.h.b16 %v1588
  %v1675 = vunpack.c.l.b16 %v1589
  %v1676 = vunpack.c.l.b16 %v1590
  %v1677 = vunpack.c.h.b16 %v1590
  %v1678 = vunpack.c.l.b16 %v1591
  %v1679 = vunpack.c.l.b16 %v1592
  %v1680 = vunpack.c.h.b16 %v1592
  %v1681 = vunpack.c.l.b16 %v1593
  %v1682 = vpack.c.b16 %v1637, %v1634
  %v1683 = vpack.c.b16 %v1638, %v1635
  %v1684 = vpack.c.b16 %v1639, %v1636
  %v1685 = vpack.c.b16 %v1643, %v1640
  %v1686 = vpack.c.b16 %v1644, %v1641
  %v1687 = vpack.c.b16 %v1645, %v1642
  %v1688 = vpack.c.b16 %v1649, %v1646
  %v1689 = vpack.c.b16 %v1650, %v1647
  %v1690 = vpack.c.b16 %v1651, %v1648
  %v1691 = vpack.c.b16 %v1655, %v1652
  %v1692 = vpack.c.b16 %v1656, %v1653
  %v1693 = vpack.c.b16 %v1657, %v1654
  %v1694 = vpack.c.b16 %v1661, %v1658
  %v1695 = vpack.c.b16 %v1662, %v1659
  %v1696 = vpack.c.b16 %v1663, %v1660
  %v1697 = vpack.c.b16 %v1667, %v1664
  %v1698 = vpack.c.b16 %v1668, %v1665
  %v1699 = vpack.c.b16 %v1669, %v1666
  %v1700 = vpack.c.b16 %v1673, %v1670
  %v1701 = vpack.c.b16 %v1674, %v1671
  %v1702 = vpack.c.b16 %v1675, %v1672
  %v1703 = vpack.c.b16 %v1679, %v1676
  %v1704 = vpack.c.b16 %v1680, %v1677
  %v1705 = vpack.c.b16 %v1681, %v1678
  %1730 = vmatpush.bf16.msra.mxu0 %v1703
  %1731 = vmatpush.bf16.msra.mxu0 %v1700
  %1732 = vmatpush.bf16.msra.mxu0 %v1697
  %1733 = vmatpush.bf16.msra.mxu0 %v1694
  %1734 = vmatpush.bf16.msra.mxu0 %v1691
  %1735 = vmatpush.bf16.msra.mxu0 %v1688
  %1736 = vmatpush.bf16.msra.mxu0 %v1685
  %1737 = vmatpush.bf16.msra.mxu0 %v1682
  %1738 = vmatmul.bf16.gmra.mxu0 %v1561
  %v1739 = vpop.f32.mrf.mxu0
  %v1740 = vadd.f32 %v1596, %v1739
  %v1741 = vpop.f32.mrf.mxu0
  %v1742 = vadd.f32 %v1596, %v1741
  %1743 = vdwg.mxu0
  %1744 = vmatpush.bf16.msra.mxu0 %v1704
  %1745 = vmatpush.bf16.msra.mxu0 %v1701
  %1746 = vmatpush.bf16.msra.mxu0 %v1698
  %1747 = vmatpush.bf16.msra.mxu0 %v1695
  %1748 = vmatpush.bf16.msra.mxu0 %v1692
  %1749 = vmatpush.bf16.msra.mxu0 %v1689
  %1750 = vmatpush.bf16.msra.mxu0 %v1686
  %1751 = vmatpush.bf16.msra.mxu0 %v1683
  %1752 = vmatmul.bf16.gmra.mxu0 %v1561
  %v1753 = vpop.f32.mrf.mxu0
  %v1754 = vadd.f32 %v1597, %v1753
  %v1755 = vpop.f32.mrf.mxu0
  %v1756 = vadd.f32 %v1597, %v1755
  %1757 = vdwg.mxu0
  %1758 = vmatpush.bf16.msra.mxu0 %v1705
  %1759 = vmatpush.bf16.msra.mxu0 %v1702
  %1760 = vmatpush.bf16.msra.mxu0 %v1699
  %1761 = vmatpush.bf16.msra.mxu0 %v1696
  %1762 = vmatpush.bf16.msra.mxu0 %v1693
  %1763 = vmatpush.bf16.msra.mxu0 %v1690
  %1764 = vmatpush.bf16.msra.mxu0 %v1687
  %1765 = vmatpush.bf16.msra.mxu0 %v1684
  %1766 = vmatmul.bf16.gmra.mxu0 %v1561
  %v1767 = vpop.f32.mrf.mxu0
  %v1768 = vadd.f32 %v1598, %v1767
  %v1769 = vpop.f32.mrf.mxu0
  %v1770 = vadd.f32 %v1598, %v1769
  %1771 = vdwg.mxu0
  %v1772 = vpack.c.bf16 %v1529, %v1528
  %v1773 = vld [vmem:[%s1130] sm:$0xff]
  %v1774 = vld [vmem:[%s1130 + $0x8] sm:$0xf]
  %v1775 = vld [vmem:[%s1130 + $0xc] sm:$0xff]
  %v1776 = vld [vmem:[%s1130 + $0x14] sm:$0xf]
  %v1777 = vld [vmem:[%s1130 + $0x18] sm:$0xff]
  %v1778 = vld [vmem:[%s1130 + $0x20] sm:$0xf]
  %v1779 = vld [vmem:[%s1130 + $0x24] sm:$0xff]
  %v1780 = vld [vmem:[%s1130 + $0x2c] sm:$0xf]
  %v1781 = vld [vmem:[%s1130 + $0x30] sm:$0xff]
  %v1782 = vld [vmem:[%s1130 + $0x38] sm:$0xf]
  %v1783 = vld [vmem:[%s1130 + $0x3c] sm:$0xff]
  %v1784 = vld [vmem:[%s1130 + $0x44] sm:$0xf]
  %v1785 = vld [vmem:[%s1130 + $0x48] sm:$0xff]
  %v1786 = vld [vmem:[%s1130 + $0x50] sm:$0xf]
  %v1787 = vld [vmem:[%s1130 + $0x54] sm:$0xff]
  %v1788 = vld [vmem:[%s1130 + $0x5c] sm:$0xf]
  %v1789 = vld [vmem:[%s1130 + $0x60] sm:$0xff]
  %v1790 = vld [vmem:[%s1130 + $0x68] sm:$0xf]
  %v1791 = vld [vmem:[%s1130 + $0x6c] sm:$0xff]
  %v1792 = vld [vmem:[%s1130 + $0x74] sm:$0xf]
  %v1793 = vld [vmem:[%s1130 + $0x78] sm:$0xff]
  %v1794 = vld [vmem:[%s1130 + $0x80] sm:$0xf]
  %v1795 = vld [vmem:[%s1130 + $0x84] sm:$0xff]
  %v1796 = vld [vmem:[%s1130 + $0x8c] sm:$0xf]
  %v1797 = vld [vmem:[%s1130 + $0x90] sm:$0xff]
  %v1798 = vld [vmem:[%s1130 + $0x98] sm:$0xf]
  %v1799 = vld [vmem:[%s1130 + $0x9c] sm:$0xff]
  %v1800 = vld [vmem:[%s1130 + $0xa4] sm:$0xf]
  %v1801 = vld [vmem:[%s1130 + $0xa8] sm:$0xff]
  %v1802 = vld [vmem:[%s1130 + $0xb0] sm:$0xf]
  %v1803 = vld [vmem:[%s1130 + $0xb4] sm:$0xff]
  %v1804 = vld [vmem:[%s1130 + $0xbc] sm:$0xf]
  %v1805 = vld [vmem:[%s1163] sm:$0x7]
  %v1807 = vperm.slane %v1805, 0
  %v1808 = vperm.slane %v1805, 1
  %v1809 = vperm.slane %v1805, 2
  %v1845 = vunpack.c.l.b16 %v1773
  %v1846 = vunpack.c.h.b16 %v1773
  %v1847 = vunpack.c.l.b16 %v1774
  %v1848 = vunpack.c.l.b16 %v1775
  %v1849 = vunpack.c.h.b16 %v1775
  %v1850 = vunpack.c.l.b16 %v1776
  %v1851 = vunpack.c.l.b16 %v1777
  %v1852 = vunpack.c.h.b16 %v1777
  %v1853 = vunpack.c.l.b16 %v1778
  %v1854 = vunpack.c.l.b16 %v1779
  %v1855 = vunpack.c.h.b16 %v1779
  %v1856 = vunpack.c.l.b16 %v1780
  %v1857 = vunpack.c.l.b16 %v1781
  %v1858 = vunpack.c.h.b16 %v1781
  %v1859 = vunpack.c.l.b16 %v1782
  %v1860 = vunpack.c.l.b16 %v1783
  %v1861 = vunpack.c.h.b16 %v1783
  %v1862 = vunpack.c.l.b16 %v1784
  %v1863 = vunpack.c.l.b16 %v1785
  %v1864 = vunpack.c.h.b16 %v1785
  %v1865 = vunpack.c.l.b16 %v1786
  %v1866 = vunpack.c.l.b16 %v1787
  %v1867 = vunpack.c.h.b16 %v1787
  %v1868 = vunpack.c.l.b16 %v1788
  %v1869 = vunpack.c.l.b16 %v1789
  %v1870 = vunpack.c.h.b16 %v1789
  %v1871 = vunpack.c.l.b16 %v1790
  %v1872 = vunpack.c.l.b16 %v1791
  %v1873 = vunpack.c.h.b16 %v1791
  %v1874 = vunpack.c.l.b16 %v1792
  %v1875 = vunpack.c.l.b16 %v1793
  %v1876 = vunpack.c.h.b16 %v1793
  %v1877 = vunpack.c.l.b16 %v1794
  %v1878 = vunpack.c.l.b16 %v1795
  %v1879 = vunpack.c.h.b16 %v1795
  %v1880 = vunpack.c.l.b16 %v1796
  %v1881 = vunpack.c.l.b16 %v1797
  %v1882 = vunpack.c.h.b16 %v1797
  %v1883 = vunpack.c.l.b16 %v1798
  %v1884 = vunpack.c.l.b16 %v1799
  %v1885 = vunpack.c.h.b16 %v1799
  %v1886 = vunpack.c.l.b16 %v1800
  %v1887 = vunpack.c.l.b16 %v1801
  %v1888 = vunpack.c.h.b16 %v1801
  %v1889 = vunpack.c.l.b16 %v1802
  %v1890 = vunpack.c.l.b16 %v1803
  %v1891 = vunpack.c.h.b16 %v1803
  %v1892 = vunpack.c.l.b16 %v1804
  %v1893 = vpack.c.b16 %v1848, %v1845
  %v1894 = vpack.c.b16 %v1849, %v1846
  %v1895 = vpack.c.b16 %v1850, %v1847
  %v1896 = vpack.c.b16 %v1854, %v1851
  %v1897 = vpack.c.b16 %v1855, %v1852
  %v1898 = vpack.c.b16 %v1856, %v1853
  %v1899 = vpack.c.b16 %v1860, %v1857
  %v1900 = vpack.c.b16 %v1861, %v1858
  %v1901 = vpack.c.b16 %v1862, %v1859
  %v1902 = vpack.c.b16 %v1866, %v1863
  %v1903 = vpack.c.b16 %v1867, %v1864
  %v1904 = vpack.c.b16 %v1868, %v1865
  %v1905 = vpack.c.b16 %v1872, %v1869
  %v1906 = vpack.c.b16 %v1873, %v1870
  %v1907 = vpack.c.b16 %v1874, %v1871
  %v1908 = vpack.c.b16 %v1878, %v1875
  %v1909 = vpack.c.b16 %v1879, %v1876
  %v1910 = vpack.c.b16 %v1880, %v1877
  %v1911 = vpack.c.b16 %v1884, %v1881
  %v1912 = vpack.c.b16 %v1885, %v1882
  %v1913 = vpack.c.b16 %v1886, %v1883
  %v1914 = vpack.c.b16 %v1890, %v1887
  %v1915 = vpack.c.b16 %v1891, %v1888
  %v1916 = vpack.c.b16 %v1892, %v1889
  %1941 = vmatpush.bf16.msra.mxu0 %v1914
  %1942 = vmatpush.bf16.msra.mxu0 %v1911
  %1943 = vmatpush.bf16.msra.mxu0 %v1908
  %1944 = vmatpush.bf16.msra.mxu0 %v1905
  %1945 = vmatpush.bf16.msra.mxu0 %v1902
  %1946 = vmatpush.bf16.msra.mxu0 %v1899
  %1947 = vmatpush.bf16.msra.mxu0 %v1896
  %1948 = vmatpush.bf16.msra.mxu0 %v1893
  %1949 = vmatmul.bf16.gmra.mxu0 %v1772
  %v1950 = vpop.f32.mrf.mxu0
  %v1951 = vadd.f32 %v1807, %v1950
  %v1952 = vpop.f32.mrf.mxu0
  %v1953 = vadd.f32 %v1807, %v1952
  %1954 = vdwg.mxu0
  %1955 = vmatpush.bf16.msra.mxu0 %v1915
  %1956 = vmatpush.bf16.msra.mxu0 %v1912
  %1957 = vmatpush.bf16.msra.mxu0 %v1909
  %1958 = vmatpush.bf16.msra.mxu0 %v1906
  %1959 = vmatpush.bf16.msra.mxu0 %v1903
  %1960 = vmatpush.bf16.msra.mxu0 %v1900
  %1961 = vmatpush.bf16.msra.mxu0 %v1897
  %1962 = vmatpush.bf16.msra.mxu0 %v1894
  %1963 = vmatmul.bf16.gmra.mxu0 %v1772
  %v1964 = vpop.f32.mrf.mxu0
  %v1965 = vadd.f32 %v1808, %v1964
  %v1966 = vpop.f32.mrf.mxu0
  %v1967 = vadd.f32 %v1808, %v1966
  %1968 = vdwg.mxu0
  %1969 = vmatpush.bf16.msra.mxu0 %v1916
  %1970 = vmatpush.bf16.msra.mxu0 %v1913
  %1971 = vmatpush.bf16.msra.mxu0 %v1910
  %1972 = vmatpush.bf16.msra.mxu0 %v1907
  %1973 = vmatpush.bf16.msra.mxu0 %v1904
  %1974 = vmatpush.bf16.msra.mxu0 %v1901
  %1975 = vmatpush.bf16.msra.mxu0 %v1898
  %1976 = vmatpush.bf16.msra.mxu0 %v1895
  %1977 = vmatmul.bf16.gmra.mxu0 %v1772
  %v1978 = vpop.f32.mrf.mxu0
  %v1979 = vadd.f32 %v1809, %v1978
  %v1980 = vpop.f32.mrf.mxu0
  %v1981 = vadd.f32 %v1809, %v1980
  %1982 = vdwg.mxu0
  %v1983 = vadd.f32 %v1546, %v1740
  %v1984 = vadd.f32 %v1549, %v1742
  %v1985 = vxor.u32 %v1983, 2147483648
  %v1986 = vxor.u32 %v1984, 2147483648
  %v1987 = vmul.f32 %v1985, 1.442695
  %v1988 = vpow.pop %v1987
  %v1989 = vmul.f32 %v1986, 1.442695
  %v1990 = vpow.pop %v1989
  %v1991 = vadd.f32 %v1988, 1.0
  %v1992 = vadd.f32 %v1990, 1.0
  %v1993 = vrcp.pop %v1991
  %v1994 = vmul.f32 %v1991, %v1993
  %v1995 = vsub.f32 1.0, %v1994
  %v1996 = vmul.f32 %v1993, %v1995
  %v1997 = vadd.f32 %v1993, %v1996
  %vm1998 = vweird.f32 %v1991
  %vm1999 = vweird.f32 %v1993
  %vm2000 = vmor %vm1998, %vm1999
  %v2001 = vsel %vm2000, %v1993, %v1997
  %v2002 = vand.u32 2147483647, %v1991
  %vm2003 = vcmp.eq.f32.partialorder %v2002, 8.507059e+37
  %v2004 = vand.u32 %v1991, 2147483648
  %v2005 = vor.u32 1.1754944e-38, %v2004
  %v2006 = vsel %vm2003, %v2005, %v2001
  %v2007 = vmul.f32 1.0, %v2006
  %v2008 = vrcp.pop %v1992
  %v2009 = vmul.f32 %v1992, %v2008
  %v2010 = vsub.f32 1.0, %v2009
  %v2011 = vmul.f32 %v2008, %v2010
  %v2012 = vadd.f32 %v2008, %v2011
  %vm2013 = vweird.f32 %v1992
  %vm2014 = vweird.f32 %v2008
  %vm2015 = vmor %vm2013, %vm2014
  %v2016 = vsel %vm2015, %v2008, %v2012
  %v2017 = vand.u32 2147483647, %v1992
  %vm2018 = vcmp.eq.f32.partialorder %v2017, 8.507059e+37
  %v2019 = vand.u32 %v1992, 2147483648
  %v2020 = vor.u32 1.1754944e-38, %v2019
  %v2021 = vsel %vm2018, %v2020, %v2016
  %v2022 = vmul.f32 1.0, %v2021
  %v2023 = vadd.f32 %v1547, %v1754
  %v2024 = vadd.f32 %v1550, %v1756
  %v2025 = vxor.u32 %v2023, 2147483648
  %v2026 = vxor.u32 %v2024, 2147483648
  %v2027 = vmul.f32 %v2025, 1.442695
  %v2028 = vpow.pop %v2027
  %v2029 = vmul.f32 %v2026, 1.442695
  %v2030 = vpow.pop %v2029
  %v2031 = vadd.f32 %v2028, 1.0
  %v2032 = vadd.f32 %v2030, 1.0
  %v2033 = vrcp.pop %v2031
  %v2034 = vmul.f32 %v2031, %v2033
  %v2035 = vsub.f32 1.0, %v2034
  %v2036 = vmul.f32 %v2033, %v2035
  %v2037 = vadd.f32 %v2033, %v2036
  %vm2038 = vweird.f32 %v2031
  %vm2039 = vweird.f32 %v2033
  %vm2040 = vmor %vm2038, %vm2039
  %v2041 = vsel %vm2040, %v2033, %v2037
  %v2042 = vand.u32 2147483647, %v2031
  %vm2043 = vcmp.eq.f32.partialorder %v2042, 8.507059e+37
  %v2044 = vand.u32 %v2031, 2147483648
  %v2045 = vor.u32 1.1754944e-38, %v2044
  %v2046 = vsel %vm2043, %v2045, %v2041
  %v2047 = vmul.f32 1.0, %v2046
  %v2048 = vrcp.pop %v2032
  %v2049 = vmul.f32 %v2032, %v2048
  %v2050 = vsub.f32 1.0, %v2049
  %v2051 = vmul.f32 %v2048, %v2050
  %v2052 = vadd.f32 %v2048, %v2051
  %vm2053 = vweird.f32 %v2032
  %vm2054 = vweird.f32 %v2048
  %vm2055 = vmor %vm2053, %vm2054
  %v2056 = vsel %vm2055, %v2048, %v2052
  %v2057 = vand.u32 2147483647, %v2032
  %vm2058 = vcmp.eq.f32.partialorder %v2057, 8.507059e+37
  %v2059 = vand.u32 %v2032, 2147483648
  %v2060 = vor.u32 1.1754944e-38, %v2059
  %v2061 = vsel %vm2058, %v2060, %v2056
  %v2062 = vmul.f32 1.0, %v2061
  %v2063 = vmul.f32 %v2007, %v1768
  %v2064 = vmul.f32 %v2022, %v1770
  %v2065 = vadd.f32 %v1548, %v2063
  %v2066 = vadd.f32 %v1551, %v2064
  %v2067 = vtanh.pop %v2065
  %v2068 = vtanh.pop %v2066
  %v2069 = vsub.f32 1.0, %v2047
  %v2070 = vsub.f32 1.0, %v2062
  %v2071 = vmul.f32 %v2069, %v2067
  %v2072 = vmul.f32 %v2070, %v2068
  %v2073 = vmul.f32 %v2047, %v1434
  %v2074 = vmul.f32 %v2062, %v1435
  %v2075 = vadd.f32 %v2071, %v2073
  %v2076 = vadd.f32 %v2072, %v2074
  %v2077 = vadd.f32 %v1555, %v1951
  %v2078 = vadd.f32 %v1558, %v1953
  %v2079 = vxor.u32 %v2077, 2147483648
  %v2080 = vxor.u32 %v2078, 2147483648
  %v2081 = vmul.f32 %v2079, 1.442695
  %v2082 = vpow.pop %v2081
  %v2083 = vmul.f32 %v2080, 1.442695
  %v2084 = vpow.pop %v2083
  %v2085 = vadd.f32 %v2082, 1.0
  %v2086 = vadd.f32 %v2084, 1.0
  %v2087 = vrcp.pop %v2085
  %v2088 = vmul.f32 %v2085, %v2087
  %v2089 = vsub.f32 1.0, %v2088
  %v2090 = vmul.f32 %v2087, %v2089
  %v2091 = vadd.f32 %v2087, %v2090
  %vm2092 = vweird.f32 %v2085
  %vm2093 = vweird.f32 %v2087
  %vm2094 = vmor %vm2092, %vm2093
  %v2095 = vsel %vm2094, %v2087, %v2091
  %v2096 = vand.u32 2147483647, %v2085
  %vm2097 = vcmp.eq.f32.partialorder %v2096, 8.507059e+37
  %v2098 = vand.u32 %v2085, 2147483648
  %v2099 = vor.u32 1.1754944e-38, %v2098
  %v2100 = vsel %vm2097, %v2099, %v2095
  %v2101 = vmul.f32 1.0, %v2100
  %v2102 = vrcp.pop %v2086
  %v2103 = vmul.f32 %v2086, %v2102
  %v2104 = vsub.f32 1.0, %v2103
  %v2105 = vmul.f32 %v2102, %v2104
  %v2106 = vadd.f32 %v2102, %v2105
  %vm2107 = vweird.f32 %v2086
  %vm2108 = vweird.f32 %v2102
  %vm2109 = vmor %vm2107, %vm2108
  %v2110 = vsel %vm2109, %v2102, %v2106
  %v2111 = vand.u32 2147483647, %v2086
  %vm2112 = vcmp.eq.f32.partialorder %v2111, 8.507059e+37
  %v2113 = vand.u32 %v2086, 2147483648
  %v2114 = vor.u32 1.1754944e-38, %v2113
  %v2115 = vsel %vm2112, %v2114, %v2110
  %v2116 = vmul.f32 1.0, %v2115
  %v2117 = vadd.f32 %v1556, %v1965
  %v2118 = vadd.f32 %v1559, %v1967
  %v2119 = vxor.u32 %v2117, 2147483648
  %v2120 = vxor.u32 %v2118, 2147483648
  %v2121 = vmul.f32 %v2119, 1.442695
  %v2122 = vpow.pop %v2121
  %v2123 = vmul.f32 %v2120, 1.442695
  %v2124 = vpow.pop %v2123
  %v2125 = vadd.f32 %v2122, 1.0
  %v2126 = vadd.f32 %v2124, 1.0
  %v2127 = vrcp.pop %v2125
  %v2128 = vmul.f32 %v2125, %v2127
  %v2129 = vsub.f32 1.0, %v2128
  %v2130 = vmul.f32 %v2127, %v2129
  %v2131 = vadd.f32 %v2127, %v2130
  %vm2132 = vweird.f32 %v2125
  %vm2133 = vweird.f32 %v2127
  %vm2134 = vmor %vm2132, %vm2133
  %v2135 = vsel %vm2134, %v2127, %v2131
  %v2136 = vand.u32 2147483647, %v2125
  %vm2137 = vcmp.eq.f32.partialorder %v2136, 8.507059e+37
  %v2138 = vand.u32 %v2125, 2147483648
  %v2139 = vor.u32 1.1754944e-38, %v2138
  %v2140 = vsel %vm2137, %v2139, %v2135
  %v2141 = vmul.f32 1.0, %v2140
  %v2142 = vrcp.pop %v2126
  %v2143 = vmul.f32 %v2126, %v2142
  %v2144 = vsub.f32 1.0, %v2143
  %v2145 = vmul.f32 %v2142, %v2144
  %v2146 = vadd.f32 %v2142, %v2145
  %vm2147 = vweird.f32 %v2126
  %vm2148 = vweird.f32 %v2142
  %vm2149 = vmor %vm2147, %vm2148
  %v2150 = vsel %vm2149, %v2142, %v2146
  %v2151 = vand.u32 2147483647, %v2126
  %vm2152 = vcmp.eq.f32.partialorder %v2151, 8.507059e+37
  %v2153 = vand.u32 %v2126, 2147483648
  %v2154 = vor.u32 1.1754944e-38, %v2153
  %v2155 = vsel %vm2152, %v2154, %v2150
  %v2156 = vmul.f32 1.0, %v2155
  %v2157 = vmul.f32 %v2101, %v1979
  %v2158 = vmul.f32 %v2116, %v1981
  %v2159 = vadd.f32 %v1557, %v2157
  %v2160 = vadd.f32 %v1560, %v2158
  %v2161 = vtanh.pop %v2159
  %v2162 = vtanh.pop %v2160
  %v2163 = vsub.f32 1.0, %v2141
  %v2164 = vsub.f32 1.0, %v2156
  %v2165 = vmul.f32 %v2163, %v2161
  %v2166 = vmul.f32 %v2164, %v2162
  %v2167 = vmul.f32 %v2141, %v1528
  %v2168 = vmul.f32 %v2156, %v1529
  %v2169 = vadd.f32 %v2165, %v2167
  %v2170 = vadd.f32 %v2166, %v2168
  %s2171 = scalar_lea.vmem %s6, 16
  %v2172 = vld [vmem:[%s2171] sm:$0xff]
  %v2173 = vld [vmem:[%s2171 + $0x8] sm:$0xff]
  %v2174 = vadd.f32 %v2172, %v2075
  %v2175 = vadd.f32 %v2173, %v2076
  %2176 = vst [vmem:[%s2171] sm:$0xff] %v2174
  %2177 = vst [vmem:[%s2171 + $0x8] sm:$0xff] %v2175
  %s2178 = scalar_lea.vmem %s6, 96
  %v2179 = vld [vmem:[%s2178] sm:$0xff]
  %v2180 = vld [vmem:[%s2178 + $0x8] sm:$0xff]
  %v2181 = vadd.f32 %v2179, %v2169
  %v2182 = vadd.f32 %v2180, %v2170
  %2183 = vst [vmem:[%s2178] sm:$0xff] %v2181
  %2184 = vst [vmem:[%s2178 + $0x8] sm:$0xff] %v2182
  %s2185 = smul.u32 4, 3
  %s2186 = smul.addr %s2185, 8
  %s2187 = scalar_lea.vmem [#allocation2], %s2186
  %v2188 = vld [vmem:[%s2187] sm:$0xff]
  %v2189 = vld [vmem:[%s2187 + $0x8] sm:$0xff]
  %v2190 = vld [vmem:[%s2187 + $0x10] sm:$0xff]
  %v2191 = vld [vmem:[%s2187 + $0x18] sm:$0xff]
  %v2192 = vld [vmem:[%s2187 + $0x20] sm:$0xff]
  %v2193 = vld [vmem:[%s2187 + $0x28] sm:$0xff]
  %s2194 = smul.u32 10, 3
  %s2195 = smul.addr %s2194, 8
  %s2196 = scalar_lea.vmem [#allocation3], %s2195
  %v2197 = vld [vmem:[%s2196] sm:$0xff]
  %v2198 = vld [vmem:[%s2196 + $0x8] sm:$0xff]
  %v2199 = vld [vmem:[%s2196 + $0x10] sm:$0xff]
  %v2200 = vld [vmem:[%s2196 + $0x18] sm:$0xff]
  %v2201 = vld [vmem:[%s2196 + $0x20] sm:$0xff]
  %v2202 = vld [vmem:[%s2196 + $0x28] sm:$0xff]
  %v2203 = vpack.c.bf16 %v2076, %v2075
  %v2204 = vld [vmem:[%s3] sm:$0xff]
  %v2205 = vld [vmem:[%s3 + $0x8] sm:$0xf]
  %v2206 = vld [vmem:[%s3 + $0xc] sm:$0xff]
  %v2207 = vld [vmem:[%s3 + $0x14] sm:$0xf]
  %v2208 = vld [vmem:[%s3 + $0x18] sm:$0xff]
  %v2209 = vld [vmem:[%s3 + $0x20] sm:$0xf]
  %v2210 = vld [vmem:[%s3 + $0x24] sm:$0xff]
  %v2211 = vld [vmem:[%s3 + $0x2c] sm:$0xf]
  %v2212 = vld [vmem:[%s3 + $0x30] sm:$0xff]
  %v2213 = vld [vmem:[%s3 + $0x38] sm:$0xf]
  %v2214 = vld [vmem:[%s3 + $0x3c] sm:$0xff]
  %v2215 = vld [vmem:[%s3 + $0x44] sm:$0xf]
  %v2216 = vld [vmem:[%s3 + $0x48] sm:$0xff]
  %v2217 = vld [vmem:[%s3 + $0x50] sm:$0xf]
  %v2218 = vld [vmem:[%s3 + $0x54] sm:$0xff]
  %v2219 = vld [vmem:[%s3 + $0x5c] sm:$0xf]
  %v2220 = vld [vmem:[%s3 + $0x60] sm:$0xff]
  %v2221 = vld [vmem:[%s3 + $0x68] sm:$0xf]
  %v2222 = vld [vmem:[%s3 + $0x6c] sm:$0xff]
  %v2223 = vld [vmem:[%s3 + $0x74] sm:$0xf]
  %v2224 = vld [vmem:[%s3 + $0x78] sm:$0xff]
  %v2225 = vld [vmem:[%s3 + $0x80] sm:$0xf]
  %v2226 = vld [vmem:[%s3 + $0x84] sm:$0xff]
  %v2227 = vld [vmem:[%s3 + $0x8c] sm:$0xf]
  %v2228 = vld [vmem:[%s3 + $0x90] sm:$0xff]
  %v2229 = vld [vmem:[%s3 + $0x98] sm:$0xf]
  %v2230 = vld [vmem:[%s3 + $0x9c] sm:$0xff]
  %v2231 = vld [vmem:[%s3 + $0xa4] sm:$0xf]
  %v2232 = vld [vmem:[%s3 + $0xa8] sm:$0xff]
  %v2233 = vld [vmem:[%s3 + $0xb0] sm:$0xf]
  %v2234 = vld [vmem:[%s3 + $0xb4] sm:$0xff]
  %v2235 = vld [vmem:[%s3 + $0xbc] sm:$0xf]
  %v2236 = vld [vmem:[%s4] sm:$0x7]
  %v2238 = vperm.slane %v2236, 0
  %v2239 = vperm.slane %v2236, 1
  %v2240 = vperm.slane %v2236, 2
  %v2276 = vunpack.c.l.b16 %v2204
  %v2277 = vunpack.c.h.b16 %v2204
  %v2278 = vunpack.c.l.b16 %v2205
  %v2279 = vunpack.c.l.b16 %v2206
  %v2280 = vunpack.c.h.b16 %v2206
  %v2281 = vunpack.c.l.b16 %v2207
  %v2282 = vunpack.c.l.b16 %v2208
  %v2283 = vunpack.c.h.b16 %v2208
  %v2284 = vunpack.c.l.b16 %v2209
  %v2285 = vunpack.c.l.b16 %v2210
  %v2286 = vunpack.c.h.b16 %v2210
  %v2287 = vunpack.c.l.b16 %v2211
  %v2288 = vunpack.c.l.b16 %v2212
  %v2289 = vunpack.c.h.b16 %v2212
  %v2290 = vunpack.c.l.b16 %v2213
  %v2291 = vunpack.c.l.b16 %v2214
  %v2292 = vunpack.c.h.b16 %v2214
  %v2293 = vunpack.c.l.b16 %v2215
  %v2294 = vunpack.c.l.b16 %v2216
  %v2295 = vunpack.c.h.b16 %v2216
  %v2296 = vunpack.c.l.b16 %v2217
  %v2297 = vunpack.c.l.b16 %v2218
  %v2298 = vunpack.c.h.b16 %v2218
  %v2299 = vunpack.c.l.b16 %v2219
  %v2300 = vunpack.c.l.b16 %v2220
  %v2301 = vunpack.c.h.b16 %v2220
  %v2302 = vunpack.c.l.b16 %v2221
  %v2303 = vunpack.c.l.b16 %v2222
  %v2304 = vunpack.c.h.b16 %v2222
  %v2305 = vunpack.c.l.b16 %v2223
  %v2306 = vunpack.c.l.b16 %v2224
  %v2307 = vunpack.c.h.b16 %v2224
  %v2308 = vunpack.c.l.b16 %v2225
  %v2309 = vunpack.c.l.b16 %v2226
  %v2310 = vunpack.c.h.b16 %v2226
  %v2311 = vunpack.c.l.b16 %v2227
  %v2312 = vunpack.c.l.b16 %v2228
  %v2313 = vunpack.c.h.b16 %v2228
  %v2314 = vunpack.c.l.b16 %v2229
  %v2315 = vunpack.c.l.b16 %v2230
  %v2316 = vunpack.c.h.b16 %v2230
  %v2317 = vunpack.c.l.b16 %v2231
  %v2318 = vunpack.c.l.b16 %v2232
  %v2319 = vunpack.c.h.b16 %v2232
  %v2320 = vunpack.c.l.b16 %v2233
  %v2321 = vunpack.c.l.b16 %v2234
  %v2322 = vunpack.c.h.b16 %v2234
  %v2323 = vunpack.c.l.b16 %v2235
  %v2324 = vpack.c.b16 %v2279, %v2276
  %v2325 = vpack.c.b16 %v2280, %v2277
  %v2326 = vpack.c.b16 %v2281, %v2278
  %v2327 = vpack.c.b16 %v2285, %v2282
  %v2328 = vpack.c.b16 %v2286, %v2283
  %v2329 = vpack.c.b16 %v2287, %v2284
  %v2330 = vpack.c.b16 %v2291, %v2288
  %v2331 = vpack.c.b16 %v2292, %v2289
  %v2332 = vpack.c.b16 %v2293, %v2290
  %v2333 = vpack.c.b16 %v2297, %v2294
  %v2334 = vpack.c.b16 %v2298, %v2295
  %v2335 = vpack.c.b16 %v2299, %v2296
  %v2336 = vpack.c.b16 %v2303, %v2300
  %v2337 = vpack.c.b16 %v2304, %v2301
  %v2338 = vpack.c.b16 %v2305, %v2302
  %v2339 = vpack.c.b16 %v2309, %v2306
  %v2340 = vpack.c.b16 %v2310, %v2307
  %v2341 = vpack.c.b16 %v2311, %v2308
  %v2342 = vpack.c.b16 %v2315, %v2312
  %v2343 = vpack.c.b16 %v2316, %v2313
  %v2344 = vpack.c.b16 %v2317, %v2314
  %v2345 = vpack.c.b16 %v2321, %v2318
  %v2346 = vpack.c.b16 %v2322, %v2319
  %v2347 = vpack.c.b16 %v2323, %v2320
  %2372 = vmatpush.bf16.msra.mxu0 %v2345
  %2373 = vmatpush.bf16.msra.mxu0 %v2342
  %2374 = vmatpush.bf16.msra.mxu0 %v2339
  %2375 = vmatpush.bf16.msra.mxu0 %v2336
  %2376 = vmatpush.bf16.msra.mxu0 %v2333
  %2377 = vmatpush.bf16.msra.mxu0 %v2330
  %2378 = vmatpush.bf16.msra.mxu0 %v2327
  %2379 = vmatpush.bf16.msra.mxu0 %v2324
  %2380 = vmatmul.bf16.gmra.mxu0 %v2203
  %v2381 = vpop.f32.mrf.mxu0
  %v2382 = vadd.f32 %v2238, %v2381
  %v2383 = vpop.f32.mrf.mxu0
  %v2384 = vadd.f32 %v2238, %v2383
  %2385 = vdwg.mxu0
  %2386 = vmatpush.bf16.msra.mxu0 %v2346
  %2387 = vmatpush.bf16.msra.mxu0 %v2343
  %2388 = vmatpush.bf16.msra.mxu0 %v2340
  %2389 = vmatpush.bf16.msra.mxu0 %v2337
  %2390 = vmatpush.bf16.msra.mxu0 %v2334
  %2391 = vmatpush.bf16.msra.mxu0 %v2331
  %2392 = vmatpush.bf16.msra.mxu0 %v2328
  %2393 = vmatpush.bf16.msra.mxu0 %v2325
  %2394 = vmatmul.bf16.gmra.mxu0 %v2203
  %v2395 = vpop.f32.mrf.mxu0
  %v2396 = vadd.f32 %v2239, %v2395
  %v2397 = vpop.f32.mrf.mxu0
  %v2398 = vadd.f32 %v2239, %v2397
  %2399 = vdwg.mxu0
  %2400 = vmatpush.bf16.msra.mxu0 %v2347
  %2401 = vmatpush.bf16.msra.mxu0 %v2344
  %2402 = vmatpush.bf16.msra.mxu0 %v2341
  %2403 = vmatpush.bf16.msra.mxu0 %v2338
  %2404 = vmatpush.bf16.msra.mxu0 %v2335
  %2405 = vmatpush.bf16.msra.mxu0 %v2332
  %2406 = vmatpush.bf16.msra.mxu0 %v2329
  %2407 = vmatpush.bf16.msra.mxu0 %v2326
  %2408 = vmatmul.bf16.gmra.mxu0 %v2203
  %v2409 = vpop.f32.mrf.mxu0
  %v2410 = vadd.f32 %v2240, %v2409
  %v2411 = vpop.f32.mrf.mxu0
  %v2412 = vadd.f32 %v2240, %v2411
  %2413 = vdwg.mxu0
  %v2414 = vpack.c.bf16 %v2170, %v2169
  %v2415 = vld [vmem:[%s1130] sm:$0xff]
  %v2416 = vld [vmem:[%s1130 + $0x8] sm:$0xf]
  %v2417 = vld [vmem:[%s1130 + $0xc] sm:$0xff]
  %v2418 = vld [vmem:[%s1130 + $0x14] sm:$0xf]
  %v2419 = vld [vmem:[%s1130 + $0x18] sm:$0xff]
  %v2420 = vld [vmem:[%s1130 + $0x20] sm:$0xf]
  %v2421 = vld [vmem:[%s1130 + $0x24] sm:$0xff]
  %v2422 = vld [vmem:[%s1130 + $0x2c] sm:$0xf]
  %v2423 = vld [vmem:[%s1130 + $0x30] sm:$0xff]
  %v2424 = vld [vmem:[%s1130 + $0x38] sm:$0xf]
  %v2425 = vld [vmem:[%s1130 + $0x3c] sm:$0xff]
  %v2426 = vld [vmem:[%s1130 + $0x44] sm:$0xf]
  %v2427 = vld [vmem:[%s1130 + $0x48] sm:$0xff]
  %v2428 = vld [vmem:[%s1130 + $0x50] sm:$0xf]
  %v2429 = vld [vmem:[%s1130 + $0x54] sm:$0xff]
  %v2430 = vld [vmem:[%s1130 + $0x5c] sm:$0xf]
  %v2431 = vld [vmem:[%s1130 + $0x60] sm:$0xff]
  %v2432 = vld [vmem:[%s1130 + $0x68] sm:$0xf]
  %v2433 = vld [vmem:[%s1130 + $0x6c] sm:$0xff]
  %v2434 = vld [vmem:[%s1130 + $0x74] sm:$0xf]
  %v2435 = vld [vmem:[%s1130 + $0x78] sm:$0xff]
  %v2436 = vld [vmem:[%s1130 + $0x80] sm:$0xf]
  %v2437 = vld [vmem:[%s1130 + $0x84] sm:$0xff]
  %v2438 = vld [vmem:[%s1130 + $0x8c] sm:$0xf]
  %v2439 = vld [vmem:[%s1130 + $0x90] sm:$0xff]
  %v2440 = vld [vmem:[%s1130 + $0x98] sm:$0xf]
  %v2441 = vld [vmem:[%s1130 + $0x9c] sm:$0xff]
  %v2442 = vld [vmem:[%s1130 + $0xa4] sm:$0xf]
  %v2443 = vld [vmem:[%s1130 + $0xa8] sm:$0xff]
  %v2444 = vld [vmem:[%s1130 + $0xb0] sm:$0xf]
  %v2445 = vld [vmem:[%s1130 + $0xb4] sm:$0xff]
  %v2446 = vld [vmem:[%s1130 + $0xbc] sm:$0xf]
  %v2447 = vld [vmem:[%s1163] sm:$0x7]
  %v2449 = vperm.slane %v2447, 0
  %v2450 = vperm.slane %v2447, 1
  %v2451 = vperm.slane %v2447, 2
  %v2487 = vunpack.c.l.b16 %v2415
  %v2488 = vunpack.c.h.b16 %v2415
  %v2489 = vunpack.c.l.b16 %v2416
  %v2490 = vunpack.c.l.b16 %v2417
  %v2491 = vunpack.c.h.b16 %v2417
  %v2492 = vunpack.c.l.b16 %v2418
  %v2493 = vunpack.c.l.b16 %v2419
  %v2494 = vunpack.c.h.b16 %v2419
  %v2495 = vunpack.c.l.b16 %v2420
  %v2496 = vunpack.c.l.b16 %v2421
  %v2497 = vunpack.c.h.b16 %v2421
  %v2498 = vunpack.c.l.b16 %v2422
  %v2499 = vunpack.c.l.b16 %v2423
  %v2500 = vunpack.c.h.b16 %v2423
  %v2501 = vunpack.c.l.b16 %v2424
  %v2502 = vunpack.c.l.b16 %v2425
  %v2503 = vunpack.c.h.b16 %v2425
  %v2504 = vunpack.c.l.b16 %v2426
  %v2505 = vunpack.c.l.b16 %v2427
  %v2506 = vunpack.c.h.b16 %v2427
  %v2507 = vunpack.c.l.b16 %v2428
  %v2508 = vunpack.c.l.b16 %v2429
  %v2509 = vunpack.c.h.b16 %v2429
  %v2510 = vunpack.c.l.b16 %v2430
  %v2511 = vunpack.c.l.b16 %v2431
  %v2512 = vunpack.c.h.b16 %v2431
  %v2513 = vunpack.c.l.b16 %v2432
  %v2514 = vunpack.c.l.b16 %v2433
  %v2515 = vunpack.c.h.b16 %v2433
  %v2516 = vunpack.c.l.b16 %v2434
  %v2517 = vunpack.c.l.b16 %v2435
  %v2518 = vunpack.c.h.b16 %v2435
  %v2519 = vunpack.c.l.b16 %v2436
  %v2520 = vunpack.c.l.b16 %v2437
  %v2521 = vunpack.c.h.b16 %v2437
  %v2522 = vunpack.c.l.b16 %v2438
  %v2523 = vunpack.c.l.b16 %v2439
  %v2524 = vunpack.c.h.b16 %v2439
  %v2525 = vunpack.c.l.b16 %v2440
  %v2526 = vunpack.c.l.b16 %v2441
  %v2527 = vunpack.c.h.b16 %v2441
  %v2528 = vunpack.c.l.b16 %v2442
  %v2529 = vunpack.c.l.b16 %v2443
  %v2530 = vunpack.c.h.b16 %v2443
  %v2531 = vunpack.c.l.b16 %v2444
  %v2532 = vunpack.c.l.b16 %v2445
  %v2533 = vunpack.c.h.b16 %v2445
  %v2534 = vunpack.c.l.b16 %v2446
  %v2535 = vpack.c.b16 %v2490, %v2487
  %v2536 = vpack.c.b16 %v2491, %v2488
  %v2537 = vpack.c.b16 %v2492, %v2489
  %v2538 = vpack.c.b16 %v2496, %v2493
  %v2539 = vpack.c.b16 %v2497, %v2494
  %v2540 = vpack.c.b16 %v2498, %v2495
  %v2541 = vpack.c.b16 %v2502, %v2499
  %v2542 = vpack.c.b16 %v2503, %v2500
  %v2543 = vpack.c.b16 %v2504, %v2501
  %v2544 = vpack.c.b16 %v2508, %v2505
  %v2545 = vpack.c.b16 %v2509, %v2506
  %v2546 = vpack.c.b16 %v2510, %v2507
  %v2547 = vpack.c.b16 %v2514, %v2511
  %v2548 = vpack.c.b16 %v2515, %v2512
  %v2549 = vpack.c.b16 %v2516, %v2513
  %v2550 = vpack.c.b16 %v2520, %v2517
  %v2551 = vpack.c.b16 %v2521, %v2518
  %v2552 = vpack.c.b16 %v2522, %v2519
  %v2553 = vpack.c.b16 %v2526, %v2523
  %v2554 = vpack.c.b16 %v2527, %v2524
  %v2555 = vpack.c.b16 %v2528, %v2525
  %v2556 = vpack.c.b16 %v2532, %v2529
  %v2557 = vpack.c.b16 %v2533, %v2530
  %v2558 = vpack.c.b16 %v2534, %v2531
  %2583 = vmatpush.bf16.msra.mxu0 %v2556
  %2584 = vmatpush.bf16.msra.mxu0 %v2553
  %2585 = vmatpush.bf16.msra.mxu0 %v2550
  %2586 = vmatpush.bf16.msra.mxu0 %v2547
  %2587 = vmatpush.bf16.msra.mxu0 %v2544
  %2588 = vmatpush.bf16.msra.mxu0 %v2541
  %2589 = vmatpush.bf16.msra.mxu0 %v2538
  %2590 = vmatpush.bf16.msra.mxu0 %v2535
  %2591 = vmatmul.bf16.gmra.mxu0 %v2414
  %v2592 = vpop.f32.mrf.mxu0
  %v2593 = vadd.f32 %v2449, %v2592
  %v2594 = vpop.f32.mrf.mxu0
  %v2595 = vadd.f32 %v2449, %v2594
  %2596 = vdwg.mxu0
  %2597 = vmatpush.bf16.msra.mxu0 %v2557
  %2598 = vmatpush.bf16.msra.mxu0 %v2554
  %2599 = vmatpush.bf16.msra.mxu0 %v2551
  %2600 = vmatpush.bf16.msra.mxu0 %v2548
  %2601 = vmatpush.bf16.msra.mxu0 %v2545
  %2602 = vmatpush.bf16.msra.mxu0 %v2542
  %2603 = vmatpush.bf16.msra.mxu0 %v2539
  %2604 = vmatpush.bf16.msra.mxu0 %v2536
  %2605 = vmatmul.bf16.gmra.mxu0 %v2414
  %v2606 = vpop.f32.mrf.mxu0
  %v2607 = vadd.f32 %v2450, %v2606
  %v2608 = vpop.f32.mrf.mxu0
  %v2609 = vadd.f32 %v2450, %v2608
  %2610 = vdwg.mxu0
  %2611 = vmatpush.bf16.msra.mxu0 %v2558
  %2612 = vmatpush.bf16.msra.mxu0 %v2555
  %2613 = vmatpush.bf16.msra.mxu0 %v2552
  %2614 = vmatpush.bf16.msra.mxu0 %v2549
  %2615 = vmatpush.bf16.msra.mxu0 %v2546
  %2616 = vmatpush.bf16.msra.mxu0 %v2543
  %2617 = vmatpush.bf16.msra.mxu0 %v2540
  %2618 = vmatpush.bf16.msra.mxu0 %v2537
  %2619 = vmatmul.bf16.gmra.mxu0 %v2414
  %v2620 = vpop.f32.mrf.mxu0
  %v2621 = vadd.f32 %v2451, %v2620
  %v2622 = vpop.f32.mrf.mxu0
  %v2623 = vadd.f32 %v2451, %v2622
  %2624 = vdwg.mxu0
  %v2625 = vadd.f32 %v2188, %v2382
  %v2626 = vadd.f32 %v2191, %v2384
  %v2627 = vxor.u32 %v2625, 2147483648
  %v2628 = vxor.u32 %v2626, 2147483648
  %v2629 = vmul.f32 %v2627, 1.442695
  %v2630 = vpow.pop %v2629
  %v2631 = vmul.f32 %v2628, 1.442695
  %v2632 = vpow.pop %v2631
  %v2633 = vadd.f32 %v2630, 1.0
  %v2634 = vadd.f32 %v2632, 1.0
  %v2635 = vrcp.pop %v2633
  %v2636 = vmul.f32 %v2633, %v2635
  %v2637 = vsub.f32 1.0, %v2636
  %v2638 = vmul.f32 %v2635, %v2637
  %v2639 = vadd.f32 %v2635, %v2638
  %vm2640 = vweird.f32 %v2633
  %vm2641 = vweird.f32 %v2635
  %vm2642 = vmor %vm2640, %vm2641
  %v2643 = vsel %vm2642, %v2635, %v2639
  %v2644 = vand.u32 2147483647, %v2633
  %vm2645 = vcmp.eq.f32.partialorder %v2644, 8.507059e+37
  %v2646 = vand.u32 %v2633, 2147483648
  %v2647 = vor.u32 1.1754944e-38, %v2646
  %v2648 = vsel %vm2645, %v2647, %v2643
  %v2649 = vmul.f32 1.0, %v2648
  %v2650 = vrcp.pop %v2634
  %v2651 = vmul.f32 %v2634, %v2650
  %v2652 = vsub.f32 1.0, %v2651
  %v2653 = vmul.f32 %v2650, %v2652
  %v2654 = vadd.f32 %v2650, %v2653
  %vm2655 = vweird.f32 %v2634
  %vm2656 = vweird.f32 %v2650
  %vm2657 = vmor %vm2655, %vm2656
  %v2658 = vsel %vm2657, %v2650, %v2654
  %v2659 = vand.u32 2147483647, %v2634
  %vm2660 = vcmp.eq.f32.partialorder %v2659, 8.507059e+37
  %v2661 = vand.u32 %v2634, 2147483648
  %v2662 = vor.u32 1.1754944e-38, %v2661
  %v2663 = vsel %vm2660, %v2662, %v2658
  %v2664 = vmul.f32 1.0, %v2663
  %v2665 = vadd.f32 %v2189, %v2396
  %v2666 = vadd.f32 %v2192, %v2398
  %v2667 = vxor.u32 %v2665, 2147483648
  %v2668 = vxor.u32 %v2666, 2147483648
  %v2669 = vmul.f32 %v2667, 1.442695
  %v2670 = vpow.pop %v2669
  %v2671 = vmul.f32 %v2668, 1.442695
  %v2672 = vpow.pop %v2671
  %v2673 = vadd.f32 %v2670, 1.0
  %v2674 = vadd.f32 %v2672, 1.0
  %v2675 = vrcp.pop %v2673
  %v2676 = vmul.f32 %v2673, %v2675
  %v2677 = vsub.f32 1.0, %v2676
  %v2678 = vmul.f32 %v2675, %v2677
  %v2679 = vadd.f32 %v2675, %v2678
  %vm2680 = vweird.f32 %v2673
  %vm2681 = vweird.f32 %v2675
  %vm2682 = vmor %vm2680, %vm2681
  %v2683 = vsel %vm2682, %v2675, %v2679
  %v2684 = vand.u32 2147483647, %v2673
  %vm2685 = vcmp.eq.f32.partialorder %v2684, 8.507059e+37
  %v2686 = vand.u32 %v2673, 2147483648
  %v2687 = vor.u32 1.1754944e-38, %v2686
  %v2688 = vsel %vm2685, %v2687, %v2683
  %v2689 = vmul.f32 1.0, %v2688
  %v2690 = vrcp.pop %v2674
  %v2691 = vmul.f32 %v2674, %v2690
  %v2692 = vsub.f32 1.0, %v2691
  %v2693 = vmul.f32 %v2690, %v2692
  %v2694 = vadd.f32 %v2690, %v2693
  %vm2695 = vweird.f32 %v2674
  %vm2696 = vweird.f32 %v2690
  %vm2697 = vmor %vm2695, %vm2696
  %v2698 = vsel %vm2697, %v2690, %v2694
  %v2699 = vand.u32 2147483647, %v2674
  %vm2700 = vcmp.eq.f32.partialorder %v2699, 8.507059e+37
  %v2701 = vand.u32 %v2674, 2147483648
  %v2702 = vor.u32 1.1754944e-38, %v2701
  %v2703 = vsel %vm2700, %v2702, %v2698
  %v2704 = vmul.f32 1.0, %v2703
  %v2705 = vmul.f32 %v2649, %v2410
  %v2706 = vmul.f32 %v2664, %v2412
  %v2707 = vadd.f32 %v2190, %v2705
  %v2708 = vadd.f32 %v2193, %v2706
  %v2709 = vtanh.pop %v2707
  %v2710 = vtanh.pop %v2708
  %v2711 = vsub.f32 1.0, %v2689
  %v2712 = vsub.f32 1.0, %v2704
  %v2713 = vmul.f32 %v2711, %v2709
  %v2714 = vmul.f32 %v2712, %v2710
  %v2715 = vmul.f32 %v2689, %v2075
  %v2716 = vmul.f32 %v2704, %v2076
  %v2717 = vadd.f32 %v2713, %v2715
  %v2718 = vadd.f32 %v2714, %v2716
  %v2719 = vadd.f32 %v2197, %v2593
  %v2720 = vadd.f32 %v2200, %v2595
  %v2721 = vxor.u32 %v2719, 2147483648
  %v2722 = vxor.u32 %v2720, 2147483648
  %v2723 = vmul.f32 %v2721, 1.442695
  %v2724 = vpow.pop %v2723
  %v2725 = vmul.f32 %v2722, 1.442695
  %v2726 = vpow.pop %v2725
  %v2727 = vadd.f32 %v2724, 1.0
  %v2728 = vadd.f32 %v2726, 1.0
  %v2729 = vrcp.pop %v2727
  %v2730 = vmul.f32 %v2727, %v2729
  %v2731 = vsub.f32 1.0, %v2730
  %v2732 = vmul.f32 %v2729, %v2731
  %v2733 = vadd.f32 %v2729, %v2732
  %vm2734 = vweird.f32 %v2727
  %vm2735 = vweird.f32 %v2729
  %vm2736 = vmor %vm2734, %vm2735
  %v2737 = vsel %vm2736, %v2729, %v2733
  %v2738 = vand.u32 2147483647, %v2727
  %vm2739 = vcmp.eq.f32.partialorder %v2738, 8.507059e+37
  %v2740 = vand.u32 %v2727, 2147483648
  %v2741 = vor.u32 1.1754944e-38, %v2740
  %v2742 = vsel %vm2739, %v2741, %v2737
  %v2743 = vmul.f32 1.0, %v2742
  %v2744 = vrcp.pop %v2728
  %v2745 = vmul.f32 %v2728, %v2744
  %v2746 = vsub.f32 1.0, %v2745
  %v2747 = vmul.f32 %v2744, %v2746
  %v2748 = vadd.f32 %v2744, %v2747
  %vm2749 = vweird.f32 %v2728
  %vm2750 = vweird.f32 %v2744
  %vm2751 = vmor %vm2749, %vm2750
  %v2752 = vsel %vm2751, %v2744, %v2748
  %v2753 = vand.u32 2147483647, %v2728
  %vm2754 = vcmp.eq.f32.partialorder %v2753, 8.507059e+37
  %v2755 = vand.u32 %v2728, 2147483648
  %v2756 = vor.u32 1.1754944e-38, %v2755
  %v2757 = vsel %vm2754, %v2756, %v2752
  %v2758 = vmul.f32 1.0, %v2757
  %v2759 = vadd.f32 %v2198, %v2607
  %v2760 = vadd.f32 %v2201, %v2609
  %v2761 = vxor.u32 %v2759, 2147483648
  %v2762 = vxor.u32 %v2760, 2147483648
  %v2763 = vmul.f32 %v2761, 1.442695
  %v2764 = vpow.pop %v2763
  %v2765 = vmul.f32 %v2762, 1.442695
  %v2766 = vpow.pop %v2765
  %v2767 = vadd.f32 %v2764, 1.0
  %v2768 = vadd.f32 %v2766, 1.0
  %v2769 = vrcp.pop %v2767
  %v2770 = vmul.f32 %v2767, %v2769
  %v2771 = vsub.f32 1.0, %v2770
  %v2772 = vmul.f32 %v2769, %v2771
  %v2773 = vadd.f32 %v2769, %v2772
  %vm2774 = vweird.f32 %v2767
  %vm2775 = vweird.f32 %v2769
  %vm2776 = vmor %vm2774, %vm2775
  %v2777 = vsel %vm2776, %v2769, %v2773
  %v2778 = vand.u32 2147483647, %v2767
  %vm2779 = vcmp.eq.f32.partialorder %v2778, 8.507059e+37
  %v2780 = vand.u32 %v2767, 2147483648
  %v2781 = vor.u32 1.1754944e-38, %v2780
  %v2782 = vsel %vm2779, %v2781, %v2777
  %v2783 = vmul.f32 1.0, %v2782
  %v2784 = vrcp.pop %v2768
  %v2785 = vmul.f32 %v2768, %v2784
  %v2786 = vsub.f32 1.0, %v2785
  %v2787 = vmul.f32 %v2784, %v2786
  %v2788 = vadd.f32 %v2784, %v2787
  %vm2789 = vweird.f32 %v2768
  %vm2790 = vweird.f32 %v2784
  %vm2791 = vmor %vm2789, %vm2790
  %v2792 = vsel %vm2791, %v2784, %v2788
  %v2793 = vand.u32 2147483647, %v2768
  %vm2794 = vcmp.eq.f32.partialorder %v2793, 8.507059e+37
  %v2795 = vand.u32 %v2768, 2147483648
  %v2796 = vor.u32 1.1754944e-38, %v2795
  %v2797 = vsel %vm2794, %v2796, %v2792
  %v2798 = vmul.f32 1.0, %v2797
  %v2799 = vmul.f32 %v2743, %v2621
  %v2800 = vmul.f32 %v2758, %v2623
  %v2801 = vadd.f32 %v2199, %v2799
  %v2802 = vadd.f32 %v2202, %v2800
  %v2803 = vtanh.pop %v2801
  %v2804 = vtanh.pop %v2802
  %v2805 = vsub.f32 1.0, %v2783
  %v2806 = vsub.f32 1.0, %v2798
  %v2807 = vmul.f32 %v2805, %v2803
  %v2808 = vmul.f32 %v2806, %v2804
  %v2809 = vmul.f32 %v2783, %v2169
  %v2810 = vmul.f32 %v2798, %v2170
  %v2811 = vadd.f32 %v2807, %v2809
  %v2812 = vadd.f32 %v2808, %v2810
  %s2813 = scalar_lea.vmem %s6, 32
  %v2814 = vld [vmem:[%s2813] sm:$0xff]
  %v2815 = vld [vmem:[%s2813 + $0x8] sm:$0xff]
  %v2816 = vadd.f32 %v2814, %v2717
  %v2817 = vadd.f32 %v2815, %v2718
  %2818 = vst [vmem:[%s2813] sm:$0xff] %v2816
  %2819 = vst [vmem:[%s2813 + $0x8] sm:$0xff] %v2817
  %s2820 = scalar_lea.vmem %s6, 80
  %v2821 = vld [vmem:[%s2820] sm:$0xff]
  %v2822 = vld [vmem:[%s2820 + $0x8] sm:$0xff]
  %v2823 = vadd.f32 %v2821, %v2811
  %v2824 = vadd.f32 %v2822, %v2812
  %2825 = vst [vmem:[%s2820] sm:$0xff] %v2823
  %2826 = vst [vmem:[%s2820 + $0x8] sm:$0xff] %v2824
  %s2827 = smul.u32 6, 3
  %s2828 = smul.addr %s2827, 8
  %s2829 = scalar_lea.vmem [#allocation2], %s2828
  %v2830 = vld [vmem:[%s2829] sm:$0xff]
  %v2831 = vld [vmem:[%s2829 + $0x8] sm:$0xff]
  %v2832 = vld [vmem:[%s2829 + $0x10] sm:$0xff]
  %v2833 = vld [vmem:[%s2829 + $0x18] sm:$0xff]
  %v2834 = vld [vmem:[%s2829 + $0x20] sm:$0xff]
  %v2835 = vld [vmem:[%s2829 + $0x28] sm:$0xff]
  %s2836 = smul.u32 8, 3
  %s2837 = smul.addr %s2836, 8
  %s2838 = scalar_lea.vmem [#allocation3], %s2837
  %v2839 = vld [vmem:[%s2838] sm:$0xff]
  %v2840 = vld [vmem:[%s2838 + $0x8] sm:$0xff]
  %v2841 = vld [vmem:[%s2838 + $0x10] sm:$0xff]
  %v2842 = vld [vmem:[%s2838 + $0x18] sm:$0xff]
  %v2843 = vld [vmem:[%s2838 + $0x20] sm:$0xff]
  %v2844 = vld [vmem:[%s2838 + $0x28] sm:$0xff]
  %v2845 = vpack.c.bf16 %v2718, %v2717
  %v2846 = vld [vmem:[%s3] sm:$0xff]
  %v2847 = vld [vmem:[%s3 + $0x8] sm:$0xf]
  %v2848 = vld [vmem:[%s3 + $0xc] sm:$0xff]
  %v2849 = vld [vmem:[%s3 + $0x14] sm:$0xf]
  %v2850 = vld [vmem:[%s3 + $0x18] sm:$0xff]
  %v2851 = vld [vmem:[%s3 + $0x20] sm:$0xf]
  %v2852 = vld [vmem:[%s3 + $0x24] sm:$0xff]
  %v2853 = vld [vmem:[%s3 + $0x2c] sm:$0xf]
  %v2854 = vld [vmem:[%s3 + $0x30] sm:$0xff]
  %v2855 = vld [vmem:[%s3 + $0x38] sm:$0xf]
  %v2856 = vld [vmem:[%s3 + $0x3c] sm:$0xff]
  %v2857 = vld [vmem:[%s3 + $0x44] sm:$0xf]
  %v2858 = vld [vmem:[%s3 + $0x48] sm:$0xff]
  %v2859 = vld [vmem:[%s3 + $0x50] sm:$0xf]
  %v2860 = vld [vmem:[%s3 + $0x54] sm:$0xff]
  %v2861 = vld [vmem:[%s3 + $0x5c] sm:$0xf]
  %v2862 = vld [vmem:[%s3 + $0x60] sm:$0xff]
  %v2863 = vld [vmem:[%s3 + $0x68] sm:$0xf]
  %v2864 = vld [vmem:[%s3 + $0x6c] sm:$0xff]
  %v2865 = vld [vmem:[%s3 + $0x74] sm:$0xf]
  %v2866 = vld [vmem:[%s3 + $0x78] sm:$0xff]
  %v2867 = vld [vmem:[%s3 + $0x80] sm:$0xf]
  %v2868 = vld [vmem:[%s3 + $0x84] sm:$0xff]
  %v2869 = vld [vmem:[%s3 + $0x8c] sm:$0xf]
  %v2870 = vld [vmem:[%s3 + $0x90] sm:$0xff]
  %v2871 = vld [vmem:[%s3 + $0x98] sm:$0xf]
  %v2872 = vld [vmem:[%s3 + $0x9c] sm:$0xff]
  %v2873 = vld [vmem:[%s3 + $0xa4] sm:$0xf]
  %v2874 = vld [vmem:[%s3 + $0xa8] sm:$0xff]
  %v2875 = vld [vmem:[%s3 + $0xb0] sm:$0xf]
  %v2876 = vld [vmem:[%s3 + $0xb4] sm:$0xff]
  %v2877 = vld [vmem:[%s3 + $0xbc] sm:$0xf]
  %v2878 = vld [vmem:[%s4] sm:$0x7]
  %v2880 = vperm.slane %v2878, 0
  %v2881 = vperm.slane %v2878, 1
  %v2882 = vperm.slane %v2878, 2
  %v2918 = vunpack.c.l.b16 %v2846
  %v2919 = vunpack.c.h.b16 %v2846
  %v2920 = vunpack.c.l.b16 %v2847
  %v2921 = vunpack.c.l.b16 %v2848
  %v2922 = vunpack.c.h.b16 %v2848
  %v2923 = vunpack.c.l.b16 %v2849
  %v2924 = vunpack.c.l.b16 %v2850
  %v2925 = vunpack.c.h.b16 %v2850
  %v2926 = vunpack.c.l.b16 %v2851
  %v2927 = vunpack.c.l.b16 %v2852
  %v2928 = vunpack.c.h.b16 %v2852
  %v2929 = vunpack.c.l.b16 %v2853
  %v2930 = vunpack.c.l.b16 %v2854
  %v2931 = vunpack.c.h.b16 %v2854
  %v2932 = vunpack.c.l.b16 %v2855
  %v2933 = vunpack.c.l.b16 %v2856
  %v2934 = vunpack.c.h.b16 %v2856
  %v2935 = vunpack.c.l.b16 %v2857
  %v2936 = vunpack.c.l.b16 %v2858
  %v2937 = vunpack.c.h.b16 %v2858
  %v2938 = vunpack.c.l.b16 %v2859
  %v2939 = vunpack.c.l.b16 %v2860
  %v2940 = vunpack.c.h.b16 %v2860
  %v2941 = vunpack.c.l.b16 %v2861
  %v2942 = vunpack.c.l.b16 %v2862
  %v2943 = vunpack.c.h.b16 %v2862
  %v2944 = vunpack.c.l.b16 %v2863
  %v2945 = vunpack.c.l.b16 %v2864
  %v2946 = vunpack.c.h.b16 %v2864
  %v2947 = vunpack.c.l.b16 %v2865
  %v2948 = vunpack.c.l.b16 %v2866
  %v2949 = vunpack.c.h.b16 %v2866
  %v2950 = vunpack.c.l.b16 %v2867
  %v2951 = vunpack.c.l.b16 %v2868
  %v2952 = vunpack.c.h.b16 %v2868
  %v2953 = vunpack.c.l.b16 %v2869
  %v2954 = vunpack.c.l.b16 %v2870
  %v2955 = vunpack.c.h.b16 %v2870
  %v2956 = vunpack.c.l.b16 %v2871
  %v2957 = vunpack.c.l.b16 %v2872
  %v2958 = vunpack.c.h.b16 %v2872
  %v2959 = vunpack.c.l.b16 %v2873
  %v2960 = vunpack.c.l.b16 %v2874
  %v2961 = vunpack.c.h.b16 %v2874
  %v2962 = vunpack.c.l.b16 %v2875
  %v2963 = vunpack.c.l.b16 %v2876
  %v2964 = vunpack.c.h.b16 %v2876
  %v2965 = vunpack.c.l.b16 %v2877
  %v2966 = vpack.c.b16 %v2921, %v2918
  %v2967 = vpack.c.b16 %v2922, %v2919
  %v2968 = vpack.c.b16 %v2923, %v2920
  %v2969 = vpack.c.b16 %v2927, %v2924
  %v2970 = vpack.c.b16 %v2928, %v2925
  %v2971 = vpack.c.b16 %v2929, %v2926
  %v2972 = vpack.c.b16 %v2933, %v2930
  %v2973 = vpack.c.b16 %v2934, %v2931
  %v2974 = vpack.c.b16 %v2935, %v2932
  %v2975 = vpack.c.b16 %v2939, %v2936
  %v2976 = vpack.c.b16 %v2940, %v2937
  %v2977 = vpack.c.b16 %v2941, %v2938
  %v2978 = vpack.c.b16 %v2945, %v2942
  %v2979 = vpack.c.b16 %v2946, %v2943
  %v2980 = vpack.c.b16 %v2947, %v2944
  %v2981 = vpack.c.b16 %v2951, %v2948
  %v2982 = vpack.c.b16 %v2952, %v2949
  %v2983 = vpack.c.b16 %v2953, %v2950
  %v2984 = vpack.c.b16 %v2957, %v2954
  %v2985 = vpack.c.b16 %v2958, %v2955
  %v2986 = vpack.c.b16 %v2959, %v2956
  %v2987 = vpack.c.b16 %v2963, %v2960
  %v2988 = vpack.c.b16 %v2964, %v2961
  %v2989 = vpack.c.b16 %v2965, %v2962
  %3014 = vmatpush.bf16.msra.mxu0 %v2987
  %3015 = vmatpush.bf16.msra.mxu0 %v2984
  %3016 = vmatpush.bf16.msra.mxu0 %v2981
  %3017 = vmatpush.bf16.msra.mxu0 %v2978
  %3018 = vmatpush.bf16.msra.mxu0 %v2975
  %3019 = vmatpush.bf16.msra.mxu0 %v2972
  %3020 = vmatpush.bf16.msra.mxu0 %v2969
  %3021 = vmatpush.bf16.msra.mxu0 %v2966
  %3022 = vmatmul.bf16.gmra.mxu0 %v2845
  %v3023 = vpop.f32.mrf.mxu0
  %v3024 = vadd.f32 %v2880, %v3023
  %v3025 = vpop.f32.mrf.mxu0
  %v3026 = vadd.f32 %v2880, %v3025
  %3027 = vdwg.mxu0
  %3028 = vmatpush.bf16.msra.mxu0 %v2988
  %3029 = vmatpush.bf16.msra.mxu0 %v2985
  %3030 = vmatpush.bf16.msra.mxu0 %v2982
  %3031 = vmatpush.bf16.msra.mxu0 %v2979
  %3032 = vmatpush.bf16.msra.mxu0 %v2976
  %3033 = vmatpush.bf16.msra.mxu0 %v2973
  %3034 = vmatpush.bf16.msra.mxu0 %v2970
  %3035 = vmatpush.bf16.msra.mxu0 %v2967
  %3036 = vmatmul.bf16.gmra.mxu0 %v2845
  %v3037 = vpop.f32.mrf.mxu0
  %v3038 = vadd.f32 %v2881, %v3037
  %v3039 = vpop.f32.mrf.mxu0
  %v3040 = vadd.f32 %v2881, %v3039
  %3041 = vdwg.mxu0
  %3042 = vmatpush.bf16.msra.mxu0 %v2989
  %3043 = vmatpush.bf16.msra.mxu0 %v2986
  %3044 = vmatpush.bf16.msra.mxu0 %v2983
  %3045 = vmatpush.bf16.msra.mxu0 %v2980
  %3046 = vmatpush.bf16.msra.mxu0 %v2977
  %3047 = vmatpush.bf16.msra.mxu0 %v2974
  %3048 = vmatpush.bf16.msra.mxu0 %v2971
  %3049 = vmatpush.bf16.msra.mxu0 %v2968
  %3050 = vmatmul.bf16.gmra.mxu0 %v2845
  %v3051 = vpop.f32.mrf.mxu0
  %v3052 = vadd.f32 %v2882, %v3051
  %v3053 = vpop.f32.mrf.mxu0
  %v3054 = vadd.f32 %v2882, %v3053
  %3055 = vdwg.mxu0
  %v3056 = vpack.c.bf16 %v2812, %v2811
  %v3057 = vld [vmem:[%s1130] sm:$0xff]
  %v3058 = vld [vmem:[%s1130 + $0x8] sm:$0xf]
  %v3059 = vld [vmem:[%s1130 + $0xc] sm:$0xff]
  %v3060 = vld [vmem:[%s1130 + $0x14] sm:$0xf]
  %v3061 = vld [vmem:[%s1130 + $0x18] sm:$0xff]
  %v3062 = vld [vmem:[%s1130 + $0x20] sm:$0xf]
  %v3063 = vld [vmem:[%s1130 + $0x24] sm:$0xff]
  %v3064 = vld [vmem:[%s1130 + $0x2c] sm:$0xf]
  %v3065 = vld [vmem:[%s1130 + $0x30] sm:$0xff]
  %v3066 = vld [vmem:[%s1130 + $0x38] sm:$0xf]
  %v3067 = vld [vmem:[%s1130 + $0x3c] sm:$0xff]
  %v3068 = vld [vmem:[%s1130 + $0x44] sm:$0xf]
  %v3069 = vld [vmem:[%s1130 + $0x48] sm:$0xff]
  %v3070 = vld [vmem:[%s1130 + $0x50] sm:$0xf]
  %v3071 = vld [vmem:[%s1130 + $0x54] sm:$0xff]
  %v3072 = vld [vmem:[%s1130 + $0x5c] sm:$0xf]
  %v3073 = vld [vmem:[%s1130 + $0x60] sm:$0xff]
  %v3074 = vld [vmem:[%s1130 + $0x68] sm:$0xf]
  %v3075 = vld [vmem:[%s1130 + $0x6c] sm:$0xff]
  %v3076 = vld [vmem:[%s1130 + $0x74] sm:$0xf]
  %v3077 = vld [vmem:[%s1130 + $0x78] sm:$0xff]
  %v3078 = vld [vmem:[%s1130 + $0x80] sm:$0xf]
  %v3079 = vld [vmem:[%s1130 + $0x84] sm:$0xff]
  %v3080 = vld [vmem:[%s1130 + $0x8c] sm:$0xf]
  %v3081 = vld [vmem:[%s1130 + $0x90] sm:$0xff]
  %v3082 = vld [vmem:[%s1130 + $0x98] sm:$0xf]
  %v3083 = vld [vmem:[%s1130 + $0x9c] sm:$0xff]
  %v3084 = vld [vmem:[%s1130 + $0xa4] sm:$0xf]
  %v3085 = vld [vmem:[%s1130 + $0xa8] sm:$0xff]
  %v3086 = vld [vmem:[%s1130 + $0xb0] sm:$0xf]
  %v3087 = vld [vmem:[%s1130 + $0xb4] sm:$0xff]
  %v3088 = vld [vmem:[%s1130 + $0xbc] sm:$0xf]
  %v3089 = vld [vmem:[%s1163] sm:$0x7]
  %v3091 = vperm.slane %v3089, 0
  %v3092 = vperm.slane %v3089, 1
  %v3093 = vperm.slane %v3089, 2
  %v3129 = vunpack.c.l.b16 %v3057
  %v3130 = vunpack.c.h.b16 %v3057
  %v3131 = vunpack.c.l.b16 %v3058
  %v3132 = vunpack.c.l.b16 %v3059
  %v3133 = vunpack.c.h.b16 %v3059
  %v3134 = vunpack.c.l.b16 %v3060
  %v3135 = vunpack.c.l.b16 %v3061
  %v3136 = vunpack.c.h.b16 %v3061
  %v3137 = vunpack.c.l.b16 %v3062
  %v3138 = vunpack.c.l.b16 %v3063
  %v3139 = vunpack.c.h.b16 %v3063
  %v3140 = vunpack.c.l.b16 %v3064
  %v3141 = vunpack.c.l.b16 %v3065
  %v3142 = vunpack.c.h.b16 %v3065
  %v3143 = vunpack.c.l.b16 %v3066
  %v3144 = vunpack.c.l.b16 %v3067
  %v3145 = vunpack.c.h.b16 %v3067
  %v3146 = vunpack.c.l.b16 %v3068
  %v3147 = vunpack.c.l.b16 %v3069
  %v3148 = vunpack.c.h.b16 %v3069
  %v3149 = vunpack.c.l.b16 %v3070
  %v3150 = vunpack.c.l.b16 %v3071
  %v3151 = vunpack.c.h.b16 %v3071
  %v3152 = vunpack.c.l.b16 %v3072
  %v3153 = vunpack.c.l.b16 %v3073
  %v3154 = vunpack.c.h.b16 %v3073
  %v3155 = vunpack.c.l.b16 %v3074
  %v3156 = vunpack.c.l.b16 %v3075
  %v3157 = vunpack.c.h.b16 %v3075
  %v3158 = vunpack.c.l.b16 %v3076
  %v3159 = vunpack.c.l.b16 %v3077
  %v3160 = vunpack.c.h.b16 %v3077
  %v3161 = vunpack.c.l.b16 %v3078
  %v3162 = vunpack.c.l.b16 %v3079
  %v3163 = vunpack.c.h.b16 %v3079
  %v3164 = vunpack.c.l.b16 %v3080
  %v3165 = vunpack.c.l.b16 %v3081
  %v3166 = vunpack.c.h.b16 %v3081
  %v3167 = vunpack.c.l.b16 %v3082
  %v3168 = vunpack.c.l.b16 %v3083
  %v3169 = vunpack.c.h.b16 %v3083
  %v3170 = vunpack.c.l.b16 %v3084
  %v3171 = vunpack.c.l.b16 %v3085
  %v3172 = vunpack.c.h.b16 %v3085
  %v3173 = vunpack.c.l.b16 %v3086
  %v3174 = vunpack.c.l.b16 %v3087
  %v3175 = vunpack.c.h.b16 %v3087
  %v3176 = vunpack.c.l.b16 %v3088
  %v3177 = vpack.c.b16 %v3132, %v3129
  %v3178 = vpack.c.b16 %v3133, %v3130
  %v3179 = vpack.c.b16 %v3134, %v3131
  %v3180 = vpack.c.b16 %v3138, %v3135
  %v3181 = vpack.c.b16 %v3139, %v3136
  %v3182 = vpack.c.b16 %v3140, %v3137
  %v3183 = vpack.c.b16 %v3144, %v3141
  %v3184 = vpack.c.b16 %v3145, %v3142
  %v3185 = vpack.c.b16 %v3146, %v3143
  %v3186 = vpack.c.b16 %v3150, %v3147
  %v3187 = vpack.c.b16 %v3151, %v3148
  %v3188 = vpack.c.b16 %v3152, %v3149
  %v3189 = vpack.c.b16 %v3156, %v3153
  %v3190 = vpack.c.b16 %v3157, %v3154
  %v3191 = vpack.c.b16 %v3158, %v3155
  %v3192 = vpack.c.b16 %v3162, %v3159
  %v3193 = vpack.c.b16 %v3163, %v3160
  %v3194 = vpack.c.b16 %v3164, %v3161
  %v3195 = vpack.c.b16 %v3168, %v3165
  %v3196 = vpack.c.b16 %v3169, %v3166
  %v3197 = vpack.c.b16 %v3170, %v3167
  %v3198 = vpack.c.b16 %v3174, %v3171
  %v3199 = vpack.c.b16 %v3175, %v3172
  %v3200 = vpack.c.b16 %v3176, %v3173
  %3225 = vmatpush.bf16.msra.mxu0 %v3198
  %3226 = vmatpush.bf16.msra.mxu0 %v3195
  %3227 = vmatpush.bf16.msra.mxu0 %v3192
  %3228 = vmatpush.bf16.msra.mxu0 %v3189
  %3229 = vmatpush.bf16.msra.mxu0 %v3186
  %3230 = vmatpush.bf16.msra.mxu0 %v3183
  %3231 = vmatpush.bf16.msra.mxu0 %v3180
  %3232 = vmatpush.bf16.msra.mxu0 %v3177
  %3233 = vmatmul.bf16.gmra.mxu0 %v3056
  %v3234 = vpop.f32.mrf.mxu0
  %v3235 = vadd.f32 %v3091, %v3234
  %v3236 = vpop.f32.mrf.mxu0
  %v3237 = vadd.f32 %v3091, %v3236
  %3238 = vdwg.mxu0
  %3239 = vmatpush.bf16.msra.mxu0 %v3199
  %3240 = vmatpush.bf16.msra.mxu0 %v3196
  %3241 = vmatpush.bf16.msra.mxu0 %v3193
  %3242 = vmatpush.bf16.msra.mxu0 %v3190
  %3243 = vmatpush.bf16.msra.mxu0 %v3187
  %3244 = vmatpush.bf16.msra.mxu0 %v3184
  %3245 = vmatpush.bf16.msra.mxu0 %v3181
  %3246 = vmatpush.bf16.msra.mxu0 %v3178
  %3247 = vmatmul.bf16.gmra.mxu0 %v3056
  %v3248 = vpop.f32.mrf.mxu0
  %v3249 = vadd.f32 %v3092, %v3248
  %v3250 = vpop.f32.mrf.mxu0
  %v3251 = vadd.f32 %v3092, %v3250
  %3252 = vdwg.mxu0
  %3253 = vmatpush.bf16.msra.mxu0 %v3200
  %3254 = vmatpush.bf16.msra.mxu0 %v3197
  %3255 = vmatpush.bf16.msra.mxu0 %v3194
  %3256 = vmatpush.bf16.msra.mxu0 %v3191
  %3257 = vmatpush.bf16.msra.mxu0 %v3188
  %3258 = vmatpush.bf16.msra.mxu0 %v3185
  %3259 = vmatpush.bf16.msra.mxu0 %v3182
  %3260 = vmatpush.bf16.msra.mxu0 %v3179
  %3261 = vmatmul.bf16.gmra.mxu0 %v3056
  %v3262 = vpop.f32.mrf.mxu0
  %v3263 = vadd.f32 %v3093, %v3262
  %v3264 = vpop.f32.mrf.mxu0
  %v3265 = vadd.f32 %v3093, %v3264
  %3266 = vdwg.mxu0
  %v3267 = vadd.f32 %v2830, %v3024
  %v3268 = vadd.f32 %v2833, %v3026
  %v3269 = vxor.u32 %v3267, 2147483648
  %v3270 = vxor.u32 %v3268, 2147483648
  %v3271 = vmul.f32 %v3269, 1.442695
  %v3272 = vpow.pop %v3271
  %v3273 = vmul.f32 %v3270, 1.442695
  %v3274 = vpow.pop %v3273
  %v3275 = vadd.f32 %v3272, 1.0
  %v3276 = vadd.f32 %v3274, 1.0
  %v3277 = vrcp.pop %v3275
  %v3278 = vmul.f32 %v3275, %v3277
  %v3279 = vsub.f32 1.0, %v3278
  %v3280 = vmul.f32 %v3277, %v3279
  %v3281 = vadd.f32 %v3277, %v3280
  %vm3282 = vweird.f32 %v3275
  %vm3283 = vweird.f32 %v3277
  %vm3284 = vmor %vm3282, %vm3283
  %v3285 = vsel %vm3284, %v3277, %v3281
  %v3286 = vand.u32 2147483647, %v3275
  %vm3287 = vcmp.eq.f32.partialorder %v3286, 8.507059e+37
  %v3288 = vand.u32 %v3275, 2147483648
  %v3289 = vor.u32 1.1754944e-38, %v3288
  %v3290 = vsel %vm3287, %v3289, %v3285
  %v3291 = vmul.f32 1.0, %v3290
  %v3292 = vrcp.pop %v3276
  %v3293 = vmul.f32 %v3276, %v3292
  %v3294 = vsub.f32 1.0, %v3293
  %v3295 = vmul.f32 %v3292, %v3294
  %v3296 = vadd.f32 %v3292, %v3295
  %vm3297 = vweird.f32 %v3276
  %vm3298 = vweird.f32 %v3292
  %vm3299 = vmor %vm3297, %vm3298
  %v3300 = vsel %vm3299, %v3292, %v3296
  %v3301 = vand.u32 2147483647, %v3276
  %vm3302 = vcmp.eq.f32.partialorder %v3301, 8.507059e+37
  %v3303 = vand.u32 %v3276, 2147483648
  %v3304 = vor.u32 1.1754944e-38, %v3303
  %v3305 = vsel %vm3302, %v3304, %v3300
  %v3306 = vmul.f32 1.0, %v3305
  %v3307 = vadd.f32 %v2831, %v3038
  %v3308 = vadd.f32 %v2834, %v3040
  %v3309 = vxor.u32 %v3307, 2147483648
  %v3310 = vxor.u32 %v3308, 2147483648
  %v3311 = vmul.f32 %v3309, 1.442695
  %v3312 = vpow.pop %v3311
  %v3313 = vmul.f32 %v3310, 1.442695
  %v3314 = vpow.pop %v3313
  %v3315 = vadd.f32 %v3312, 1.0
  %v3316 = vadd.f32 %v3314, 1.0
  %v3317 = vrcp.pop %v3315
  %v3318 = vmul.f32 %v3315, %v3317
  %v3319 = vsub.f32 1.0, %v3318
  %v3320 = vmul.f32 %v3317, %v3319
  %v3321 = vadd.f32 %v3317, %v3320
  %vm3322 = vweird.f32 %v3315
  %vm3323 = vweird.f32 %v3317
  %vm3324 = vmor %vm3322, %vm3323
  %v3325 = vsel %vm3324, %v3317, %v3321
  %v3326 = vand.u32 2147483647, %v3315
  %vm3327 = vcmp.eq.f32.partialorder %v3326, 8.507059e+37
  %v3328 = vand.u32 %v3315, 2147483648
  %v3329 = vor.u32 1.1754944e-38, %v3328
  %v3330 = vsel %vm3327, %v3329, %v3325
  %v3331 = vmul.f32 1.0, %v3330
  %v3332 = vrcp.pop %v3316
  %v3333 = vmul.f32 %v3316, %v3332
  %v3334 = vsub.f32 1.0, %v3333
  %v3335 = vmul.f32 %v3332, %v3334
  %v3336 = vadd.f32 %v3332, %v3335
  %vm3337 = vweird.f32 %v3316
  %vm3338 = vweird.f32 %v3332
  %vm3339 = vmor %vm3337, %vm3338
  %v3340 = vsel %vm3339, %v3332, %v3336
  %v3341 = vand.u32 2147483647, %v3316
  %vm3342 = vcmp.eq.f32.partialorder %v3341, 8.507059e+37
  %v3343 = vand.u32 %v3316, 2147483648
  %v3344 = vor.u32 1.1754944e-38, %v3343
  %v3345 = vsel %vm3342, %v3344, %v3340
  %v3346 = vmul.f32 1.0, %v3345
  %v3347 = vmul.f32 %v3291, %v3052
  %v3348 = vmul.f32 %v3306, %v3054
  %v3349 = vadd.f32 %v2832, %v3347
  %v3350 = vadd.f32 %v2835, %v3348
  %v3351 = vtanh.pop %v3349
  %v3352 = vtanh.pop %v3350
  %v3353 = vsub.f32 1.0, %v3331
  %v3354 = vsub.f32 1.0, %v3346
  %v3355 = vmul.f32 %v3353, %v3351
  %v3356 = vmul.f32 %v3354, %v3352
  %v3357 = vmul.f32 %v3331, %v2717
  %v3358 = vmul.f32 %v3346, %v2718
  %v3359 = vadd.f32 %v3355, %v3357
  %v3360 = vadd.f32 %v3356, %v3358
  %v3361 = vadd.f32 %v2839, %v3235
  %v3362 = vadd.f32 %v2842, %v3237
  %v3363 = vxor.u32 %v3361, 2147483648
  %v3364 = vxor.u32 %v3362, 2147483648
  %v3365 = vmul.f32 %v3363, 1.442695
  %v3366 = vpow.pop %v3365
  %v3367 = vmul.f32 %v3364, 1.442695
  %v3368 = vpow.pop %v3367
  %v3369 = vadd.f32 %v3366, 1.0
  %v3370 = vadd.f32 %v3368, 1.0
  %v3371 = vrcp.pop %v3369
  %v3372 = vmul.f32 %v3369, %v3371
  %v3373 = vsub.f32 1.0, %v3372
  %v3374 = vmul.f32 %v3371, %v3373
  %v3375 = vadd.f32 %v3371, %v3374
  %vm3376 = vweird.f32 %v3369
  %vm3377 = vweird.f32 %v3371
  %vm3378 = vmor %vm3376, %vm3377
  %v3379 = vsel %vm3378, %v3371, %v3375
  %v3380 = vand.u32 2147483647, %v3369
  %vm3381 = vcmp.eq.f32.partialorder %v3380, 8.507059e+37
  %v3382 = vand.u32 %v3369, 2147483648
  %v3383 = vor.u32 1.1754944e-38, %v3382
  %v3384 = vsel %vm3381, %v3383, %v3379
  %v3385 = vmul.f32 1.0, %v3384
  %v3386 = vrcp.pop %v3370
  %v3387 = vmul.f32 %v3370, %v3386
  %v3388 = vsub.f32 1.0, %v3387
  %v3389 = vmul.f32 %v3386, %v3388
  %v3390 = vadd.f32 %v3386, %v3389
  %vm3391 = vweird.f32 %v3370
  %vm3392 = vweird.f32 %v3386
  %vm3393 = vmor %vm3391, %vm3392
  %v3394 = vsel %vm3393, %v3386, %v3390
  %v3395 = vand.u32 2147483647, %v3370
  %vm3396 = vcmp.eq.f32.partialorder %v3395, 8.507059e+37
  %v3397 = vand.u32 %v3370, 2147483648
  %v3398 = vor.u32 1.1754944e-38, %v3397
  %v3399 = vsel %vm3396, %v3398, %v3394
  %v3400 = vmul.f32 1.0, %v3399
  %v3401 = vadd.f32 %v2840, %v3249
  %v3402 = vadd.f32 %v2843, %v3251
  %v3403 = vxor.u32 %v3401, 2147483648
  %v3404 = vxor.u32 %v3402, 2147483648
  %v3405 = vmul.f32 %v3403, 1.442695
  %v3406 = vpow.pop %v3405
  %v3407 = vmul.f32 %v3404, 1.442695
  %v3408 = vpow.pop %v3407
  %v3409 = vadd.f32 %v3406, 1.0
  %v3410 = vadd.f32 %v3408, 1.0
  %v3411 = vrcp.pop %v3409
  %v3412 = vmul.f32 %v3409, %v3411
  %v3413 = vsub.f32 1.0, %v3412
  %v3414 = vmul.f32 %v3411, %v3413
  %v3415 = vadd.f32 %v3411, %v3414
  %vm3416 = vweird.f32 %v3409
  %vm3417 = vweird.f32 %v3411
  %vm3418 = vmor %vm3416, %vm3417
  %v3419 = vsel %vm3418, %v3411, %v3415
  %v3420 = vand.u32 2147483647, %v3409
  %vm3421 = vcmp.eq.f32.partialorder %v3420, 8.507059e+37
  %v3422 = vand.u32 %v3409, 2147483648
  %v3423 = vor.u32 1.1754944e-38, %v3422
  %v3424 = vsel %vm3421, %v3423, %v3419
  %v3425 = vmul.f32 1.0, %v3424
  %v3426 = vrcp.pop %v3410
  %v3427 = vmul.f32 %v3410, %v3426
  %v3428 = vsub.f32 1.0, %v3427
  %v3429 = vmul.f32 %v3426, %v3428
  %v3430 = vadd.f32 %v3426, %v3429
  %vm3431 = vweird.f32 %v3410
  %vm3432 = vweird.f32 %v3426
  %vm3433 = vmor %vm3431, %vm3432
  %v3434 = vsel %vm3433, %v3426, %v3430
  %v3435 = vand.u32 2147483647, %v3410
  %vm3436 = vcmp.eq.f32.partialorder %v3435, 8.507059e+37
  %v3437 = vand.u32 %v3410, 2147483648
  %v3438 = vor.u32 1.1754944e-38, %v3437
  %v3439 = vsel %vm3436, %v3438, %v3434
  %v3440 = vmul.f32 1.0, %v3439
  %v3441 = vmul.f32 %v3385, %v3263
  %v3442 = vmul.f32 %v3400, %v3265
  %v3443 = vadd.f32 %v2841, %v3441
  %v3444 = vadd.f32 %v2844, %v3442
  %v3445 = vtanh.pop %v3443
  %v3446 = vtanh.pop %v3444
  %v3447 = vsub.f32 1.0, %v3425
  %v3448 = vsub.f32 1.0, %v3440
  %v3449 = vmul.f32 %v3447, %v3445
  %v3450 = vmul.f32 %v3448, %v3446
  %v3451 = vmul.f32 %v3425, %v2811
  %v3452 = vmul.f32 %v3440, %v2812
  %v3453 = vadd.f32 %v3449, %v3451
  %v3454 = vadd.f32 %v3450, %v3452
  %s3455 = scalar_lea.vmem %s6, 48
  %v3456 = vld [vmem:[%s3455] sm:$0xff]
  %v3457 = vld [vmem:[%s3455 + $0x8] sm:$0xff]
  %v3458 = vadd.f32 %v3456, %v3359
  %v3459 = vadd.f32 %v3457, %v3360
  %3460 = vst [vmem:[%s3455] sm:$0xff] %v3458
  %3461 = vst [vmem:[%s3455 + $0x8] sm:$0xff] %v3459
  %s3462 = scalar_lea.vmem %s6, 64
  %v3463 = vld [vmem:[%s3462] sm:$0xff]
  %v3464 = vld [vmem:[%s3462 + $0x8] sm:$0xff]
  %v3465 = vadd.f32 %v3463, %v3453
  %v3466 = vadd.f32 %v3464, %v3454
  %3467 = vst [vmem:[%s3462] sm:$0xff] %v3465
  %3468 = vst [vmem:[%s3462 + $0x8] sm:$0xff] %v3466
  %s3469 = smul.addr %s2836, 8
  %s3470 = scalar_lea.vmem [#allocation2], %s3469
  %v3471 = vld [vmem:[%s3470] sm:$0xff]
  %v3472 = vld [vmem:[%s3470 + $0x8] sm:$0xff]
  %v3473 = vld [vmem:[%s3470 + $0x10] sm:$0xff]
  %v3474 = vld [vmem:[%s3470 + $0x18] sm:$0xff]
  %v3475 = vld [vmem:[%s3470 + $0x20] sm:$0xff]
  %v3476 = vld [vmem:[%s3470 + $0x28] sm:$0xff]
  %s3477 = smul.addr %s2827, 8
  %s3478 = scalar_lea.vmem [#allocation3], %s3477
  %v3479 = vld [vmem:[%s3478] sm:$0xff]
  %v3480 = vld [vmem:[%s3478 + $0x8] sm:$0xff]
  %v3481 = vld [vmem:[%s3478 + $0x10] sm:$0xff]
  %v3482 = vld [vmem:[%s3478 + $0x18] sm:$0xff]
  %v3483 = vld [vmem:[%s3478 + $0x20] sm:$0xff]
  %v3484 = vld [vmem:[%s3478 + $0x28] sm:$0xff]
  %v3485 = vpack.c.bf16 %v3360, %v3359
  %v3486 = vld [vmem:[%s3] sm:$0xff]
  %v3487 = vld [vmem:[%s3 + $0x8] sm:$0xf]
  %v3488 = vld [vmem:[%s3 + $0xc] sm:$0xff]
  %v3489 = vld [vmem:[%s3 + $0x14] sm:$0xf]
  %v3490 = vld [vmem:[%s3 + $0x18] sm:$0xff]
  %v3491 = vld [vmem:[%s3 + $0x20] sm:$0xf]
  %v3492 = vld [vmem:[%s3 + $0x24] sm:$0xff]
  %v3493 = vld [vmem:[%s3 + $0x2c] sm:$0xf]
  %v3494 = vld [vmem:[%s3 + $0x30] sm:$0xff]
  %v3495 = vld [vmem:[%s3 + $0x38] sm:$0xf]
  %v3496 = vld [vmem:[%s3 + $0x3c] sm:$0xff]
  %v3497 = vld [vmem:[%s3 + $0x44] sm:$0xf]
  %v3498 = vld [vmem:[%s3 + $0x48] sm:$0xff]
  %v3499 = vld [vmem:[%s3 + $0x50] sm:$0xf]
  %v3500 = vld [vmem:[%s3 + $0x54] sm:$0xff]
  %v3501 = vld [vmem:[%s3 + $0x5c] sm:$0xf]
  %v3502 = vld [vmem:[%s3 + $0x60] sm:$0xff]
  %v3503 = vld [vmem:[%s3 + $0x68] sm:$0xf]
  %v3504 = vld [vmem:[%s3 + $0x6c] sm:$0xff]
  %v3505 = vld [vmem:[%s3 + $0x74] sm:$0xf]
  %v3506 = vld [vmem:[%s3 + $0x78] sm:$0xff]
  %v3507 = vld [vmem:[%s3 + $0x80] sm:$0xf]
  %v3508 = vld [vmem:[%s3 + $0x84] sm:$0xff]
  %v3509 = vld [vmem:[%s3 + $0x8c] sm:$0xf]
  %v3510 = vld [vmem:[%s3 + $0x90] sm:$0xff]
  %v3511 = vld [vmem:[%s3 + $0x98] sm:$0xf]
  %v3512 = vld [vmem:[%s3 + $0x9c] sm:$0xff]
  %v3513 = vld [vmem:[%s3 + $0xa4] sm:$0xf]
  %v3514 = vld [vmem:[%s3 + $0xa8] sm:$0xff]
  %v3515 = vld [vmem:[%s3 + $0xb0] sm:$0xf]
  %v3516 = vld [vmem:[%s3 + $0xb4] sm:$0xff]
  %v3517 = vld [vmem:[%s3 + $0xbc] sm:$0xf]
  %v3518 = vld [vmem:[%s4] sm:$0x7]
  %v3520 = vperm.slane %v3518, 0
  %v3521 = vperm.slane %v3518, 1
  %v3522 = vperm.slane %v3518, 2
  %v3558 = vunpack.c.l.b16 %v3486
  %v3559 = vunpack.c.h.b16 %v3486
  %v3560 = vunpack.c.l.b16 %v3487
  %v3561 = vunpack.c.l.b16 %v3488
  %v3562 = vunpack.c.h.b16 %v3488
  %v3563 = vunpack.c.l.b16 %v3489
  %v3564 = vunpack.c.l.b16 %v3490
  %v3565 = vunpack.c.h.b16 %v3490
  %v3566 = vunpack.c.l.b16 %v3491
  %v3567 = vunpack.c.l.b16 %v3492
  %v3568 = vunpack.c.h.b16 %v3492
  %v3569 = vunpack.c.l.b16 %v3493
  %v3570 = vunpack.c.l.b16 %v3494
  %v3571 = vunpack.c.h.b16 %v3494
  %v3572 = vunpack.c.l.b16 %v3495
  %v3573 = vunpack.c.l.b16 %v3496
  %v3574 = vunpack.c.h.b16 %v3496
  %v3575 = vunpack.c.l.b16 %v3497
  %v3576 = vunpack.c.l.b16 %v3498
  %v3577 = vunpack.c.h.b16 %v3498
  %v3578 = vunpack.c.l.b16 %v3499
  %v3579 = vunpack.c.l.b16 %v3500
  %v3580 = vunpack.c.h.b16 %v3500
  %v3581 = vunpack.c.l.b16 %v3501
  %v3582 = vunpack.c.l.b16 %v3502
  %v3583 = vunpack.c.h.b16 %v3502
  %v3584 = vunpack.c.l.b16 %v3503
  %v3585 = vunpack.c.l.b16 %v3504
  %v3586 = vunpack.c.h.b16 %v3504
  %v3587 = vunpack.c.l.b16 %v3505
  %v3588 = vunpack.c.l.b16 %v3506
  %v3589 = vunpack.c.h.b16 %v3506
  %v3590 = vunpack.c.l.b16 %v3507
  %v3591 = vunpack.c.l.b16 %v3508
  %v3592 = vunpack.c.h.b16 %v3508
  %v3593 = vunpack.c.l.b16 %v3509
  %v3594 = vunpack.c.l.b16 %v3510
  %v3595 = vunpack.c.h.b16 %v3510
  %v3596 = vunpack.c.l.b16 %v3511
  %v3597 = vunpack.c.l.b16 %v3512
  %v3598 = vunpack.c.h.b16 %v3512
  %v3599 = vunpack.c.l.b16 %v3513
  %v3600 = vunpack.c.l.b16 %v3514
  %v3601 = vunpack.c.h.b16 %v3514
  %v3602 = vunpack.c.l.b16 %v3515
  %v3603 = vunpack.c.l.b16 %v3516
  %v3604 = vunpack.c.h.b16 %v3516
  %v3605 = vunpack.c.l.b16 %v3517
  %v3606 = vpack.c.b16 %v3561, %v3558
  %v3607 = vpack.c.b16 %v3562, %v3559
  %v3608 = vpack.c.b16 %v3563, %v3560
  %v3609 = vpack.c.b16 %v3567, %v3564
  %v3610 = vpack.c.b16 %v3568, %v3565
  %v3611 = vpack.c.b16 %v3569, %v3566
  %v3612 = vpack.c.b16 %v3573, %v3570
  %v3613 = vpack.c.b16 %v3574, %v3571
  %v3614 = vpack.c.b16 %v3575, %v3572
  %v3615 = vpack.c.b16 %v3579, %v3576
  %v3616 = vpack.c.b16 %v3580, %v3577
  %v3617 = vpack.c.b16 %v3581, %v3578
  %v3618 = vpack.c.b16 %v3585, %v3582
  %v3619 = vpack.c.b16 %v3586, %v3583
  %v3620 = vpack.c.b16 %v3587, %v3584
  %v3621 = vpack.c.b16 %v3591, %v3588
  %v3622 = vpack.c.b16 %v3592, %v3589
  %v3623 = vpack.c.b16 %v3593, %v3590
  %v3624 = vpack.c.b16 %v3597, %v3594
  %v3625 = vpack.c.b16 %v3598, %v3595
  %v3626 = vpack.c.b16 %v3599, %v3596
  %v3627 = vpack.c.b16 %v3603, %v3600
  %v3628 = vpack.c.b16 %v3604, %v3601
  %v3629 = vpack.c.b16 %v3605, %v3602
  %3654 = vmatpush.bf16.msra.mxu0 %v3627
  %3655 = vmatpush.bf16.msra.mxu0 %v3624
  %3656 = vmatpush.bf16.msra.mxu0 %v3621
  %3657 = vmatpush.bf16.msra.mxu0 %v3618
  %3658 = vmatpush.bf16.msra.mxu0 %v3615
  %3659 = vmatpush.bf16.msra.mxu0 %v3612
  %3660 = vmatpush.bf16.msra.mxu0 %v3609
  %3661 = vmatpush.bf16.msra.mxu0 %v3606
  %3662 = vmatmul.bf16.gmra.mxu0 %v3485
  %v3663 = vpop.f32.mrf.mxu0
  %v3664 = vadd.f32 %v3520, %v3663
  %v3665 = vpop.f32.mrf.mxu0
  %v3666 = vadd.f32 %v3520, %v3665
  %3667 = vdwg.mxu0
  %3668 = vmatpush.bf16.msra.mxu0 %v3628
  %3669 = vmatpush.bf16.msra.mxu0 %v3625
  %3670 = vmatpush.bf16.msra.mxu0 %v3622
  %3671 = vmatpush.bf16.msra.mxu0 %v3619
  %3672 = vmatpush.bf16.msra.mxu0 %v3616
  %3673 = vmatpush.bf16.msra.mxu0 %v3613
  %3674 = vmatpush.bf16.msra.mxu0 %v3610
  %3675 = vmatpush.bf16.msra.mxu0 %v3607
  %3676 = vmatmul.bf16.gmra.mxu0 %v3485
  %v3677 = vpop.f32.mrf.mxu0
  %v3678 = vadd.f32 %v3521, %v3677
  %v3679 = vpop.f32.mrf.mxu0
  %v3680 = vadd.f32 %v3521, %v3679
  %3681 = vdwg.mxu0
  %3682 = vmatpush.bf16.msra.mxu0 %v3629
  %3683 = vmatpush.bf16.msra.mxu0 %v3626
  %3684 = vmatpush.bf16.msra.mxu0 %v3623
  %3685 = vmatpush.bf16.msra.mxu0 %v3620
  %3686 = vmatpush.bf16.msra.mxu0 %v3617
  %3687 = vmatpush.bf16.msra.mxu0 %v3614
  %3688 = vmatpush.bf16.msra.mxu0 %v3611
  %3689 = vmatpush.bf16.msra.mxu0 %v3608
  %3690 = vmatmul.bf16.gmra.mxu0 %v3485
  %v3691 = vpop.f32.mrf.mxu0
  %v3692 = vadd.f32 %v3522, %v3691
  %v3693 = vpop.f32.mrf.mxu0
  %v3694 = vadd.f32 %v3522, %v3693
  %3695 = vdwg.mxu0
  %v3696 = vpack.c.bf16 %v3454, %v3453
  %v3697 = vld [vmem:[%s1130] sm:$0xff]
  %v3698 = vld [vmem:[%s1130 + $0x8] sm:$0xf]
  %v3699 = vld [vmem:[%s1130 + $0xc] sm:$0xff]
  %v3700 = vld [vmem:[%s1130 + $0x14] sm:$0xf]
  %v3701 = vld [vmem:[%s1130 + $0x18] sm:$0xff]
  %v3702 = vld [vmem:[%s1130 + $0x20] sm:$0xf]
  %v3703 = vld [vmem:[%s1130 + $0x24] sm:$0xff]
  %v3704 = vld [vmem:[%s1130 + $0x2c] sm:$0xf]
  %v3705 = vld [vmem:[%s1130 + $0x30] sm:$0xff]
  %v3706 = vld [vmem:[%s1130 + $0x38] sm:$0xf]
  %v3707 = vld [vmem:[%s1130 + $0x3c] sm:$0xff]
  %v3708 = vld [vmem:[%s1130 + $0x44] sm:$0xf]
  %v3709 = vld [vmem:[%s1130 + $0x48] sm:$0xff]
  %v3710 = vld [vmem:[%s1130 + $0x50] sm:$0xf]
  %v3711 = vld [vmem:[%s1130 + $0x54] sm:$0xff]
  %v3712 = vld [vmem:[%s1130 + $0x5c] sm:$0xf]
  %v3713 = vld [vmem:[%s1130 + $0x60] sm:$0xff]
  %v3714 = vld [vmem:[%s1130 + $0x68] sm:$0xf]
  %v3715 = vld [vmem:[%s1130 + $0x6c] sm:$0xff]
  %v3716 = vld [vmem:[%s1130 + $0x74] sm:$0xf]
  %v3717 = vld [vmem:[%s1130 + $0x78] sm:$0xff]
  %v3718 = vld [vmem:[%s1130 + $0x80] sm:$0xf]
  %v3719 = vld [vmem:[%s1130 + $0x84] sm:$0xff]
  %v3720 = vld [vmem:[%s1130 + $0x8c] sm:$0xf]
  %v3721 = vld [vmem:[%s1130 + $0x90] sm:$0xff]
  %v3722 = vld [vmem:[%s1130 + $0x98] sm:$0xf]
  %v3723 = vld [vmem:[%s1130 + $0x9c] sm:$0xff]
  %v3724 = vld [vmem:[%s1130 + $0xa4] sm:$0xf]
  %v3725 = vld [vmem:[%s1130 + $0xa8] sm:$0xff]
  %v3726 = vld [vmem:[%s1130 + $0xb0] sm:$0xf]
  %v3727 = vld [vmem:[%s1130 + $0xb4] sm:$0xff]
  %v3728 = vld [vmem:[%s1130 + $0xbc] sm:$0xf]
  %v3729 = vld [vmem:[%s1163] sm:$0x7]
  %v3731 = vperm.slane %v3729, 0
  %v3732 = vperm.slane %v3729, 1
  %v3733 = vperm.slane %v3729, 2
  %v3769 = vunpack.c.l.b16 %v3697
  %v3770 = vunpack.c.h.b16 %v3697
  %v3771 = vunpack.c.l.b16 %v3698
  %v3772 = vunpack.c.l.b16 %v3699
  %v3773 = vunpack.c.h.b16 %v3699
  %v3774 = vunpack.c.l.b16 %v3700
  %v3775 = vunpack.c.l.b16 %v3701
  %v3776 = vunpack.c.h.b16 %v3701
  %v3777 = vunpack.c.l.b16 %v3702
  %v3778 = vunpack.c.l.b16 %v3703
  %v3779 = vunpack.c.h.b16 %v3703
  %v3780 = vunpack.c.l.b16 %v3704
  %v3781 = vunpack.c.l.b16 %v3705
  %v3782 = vunpack.c.h.b16 %v3705
  %v3783 = vunpack.c.l.b16 %v3706
  %v3784 = vunpack.c.l.b16 %v3707
  %v3785 = vunpack.c.h.b16 %v3707
  %v3786 = vunpack.c.l.b16 %v3708
  %v3787 = vunpack.c.l.b16 %v3709
  %v3788 = vunpack.c.h.b16 %v3709
  %v3789 = vunpack.c.l.b16 %v3710
  %v3790 = vunpack.c.l.b16 %v3711
  %v3791 = vunpack.c.h.b16 %v3711
  %v3792 = vunpack.c.l.b16 %v3712
  %v3793 = vunpack.c.l.b16 %v3713
  %v3794 = vunpack.c.h.b16 %v3713
  %v3795 = vunpack.c.l.b16 %v3714
  %v3796 = vunpack.c.l.b16 %v3715
  %v3797 = vunpack.c.h.b16 %v3715
  %v3798 = vunpack.c.l.b16 %v3716
  %v3799 = vunpack.c.l.b16 %v3717
  %v3800 = vunpack.c.h.b16 %v3717
  %v3801 = vunpack.c.l.b16 %v3718
  %v3802 = vunpack.c.l.b16 %v3719
  %v3803 = vunpack.c.h.b16 %v3719
  %v3804 = vunpack.c.l.b16 %v3720
  %v3805 = vunpack.c.l.b16 %v3721
  %v3806 = vunpack.c.h.b16 %v3721
  %v3807 = vunpack.c.l.b16 %v3722
  %v3808 = vunpack.c.l.b16 %v3723
  %v3809 = vunpack.c.h.b16 %v3723
  %v3810 = vunpack.c.l.b16 %v3724
  %v3811 = vunpack.c.l.b16 %v3725
  %v3812 = vunpack.c.h.b16 %v3725
  %v3813 = vunpack.c.l.b16 %v3726
  %v3814 = vunpack.c.l.b16 %v3727
  %v3815 = vunpack.c.h.b16 %v3727
  %v3816 = vunpack.c.l.b16 %v3728
  %v3817 = vpack.c.b16 %v3772, %v3769
  %v3818 = vpack.c.b16 %v3773, %v3770
  %v3819 = vpack.c.b16 %v3774, %v3771
  %v3820 = vpack.c.b16 %v3778, %v3775
  %v3821 = vpack.c.b16 %v3779, %v3776
  %v3822 = vpack.c.b16 %v3780, %v3777
  %v3823 = vpack.c.b16 %v3784, %v3781
  %v3824 = vpack.c.b16 %v3785, %v3782
  %v3825 = vpack.c.b16 %v3786, %v3783
  %v3826 = vpack.c.b16 %v3790, %v3787
  %v3827 = vpack.c.b16 %v3791, %v3788
  %v3828 = vpack.c.b16 %v3792, %v3789
  %v3829 = vpack.c.b16 %v3796, %v3793
  %v3830 = vpack.c.b16 %v3797, %v3794
  %v3831 = vpack.c.b16 %v3798, %v3795
  %v3832 = vpack.c.b16 %v3802, %v3799
  %v3833 = vpack.c.b16 %v3803, %v3800
  %v3834 = vpack.c.b16 %v3804, %v3801
  %v3835 = vpack.c.b16 %v3808, %v3805
  %v3836 = vpack.c.b16 %v3809, %v3806
  %v3837 = vpack.c.b16 %v3810, %v3807
  %v3838 = vpack.c.b16 %v3814, %v3811
  %v3839 = vpack.c.b16 %v3815, %v3812
  %v3840 = vpack.c.b16 %v3816, %v3813
  %3865 = vmatpush.bf16.msra.mxu0 %v3838
  %3866 = vmatpush.bf16.msra.mxu0 %v3835
  %3867 = vmatpush.bf16.msra.mxu0 %v3832
  %3868 = vmatpush.bf16.msra.mxu0 %v3829
  %3869 = vmatpush.bf16.msra.mxu0 %v3826
  %3870 = vmatpush.bf16.msra.mxu0 %v3823
  %3871 = vmatpush.bf16.msra.mxu0 %v3820
  %3872 = vmatpush.bf16.msra.mxu0 %v3817
  %3873 = vmatmul.bf16.gmra.mxu0 %v3696
  %v3874 = vpop.f32.mrf.mxu0
  %v3875 = vadd.f32 %v3731, %v3874
  %v3876 = vpop.f32.mrf.mxu0
  %v3877 = vadd.f32 %v3731, %v3876
  %3878 = vdwg.mxu0
  %3879 = vmatpush.bf16.msra.mxu0 %v3839
  %3880 = vmatpush.bf16.msra.mxu0 %v3836
  %3881 = vmatpush.bf16.msra.mxu0 %v3833
  %3882 = vmatpush.bf16.msra.mxu0 %v3830
  %3883 = vmatpush.bf16.msra.mxu0 %v3827
  %3884 = vmatpush.bf16.msra.mxu0 %v3824
  %3885 = vmatpush.bf16.msra.mxu0 %v3821
  %3886 = vmatpush.bf16.msra.mxu0 %v3818
  %3887 = vmatmul.bf16.gmra.mxu0 %v3696
  %v3888 = vpop.f32.mrf.mxu0
  %v3889 = vadd.f32 %v3732, %v3888
  %v3890 = vpop.f32.mrf.mxu0
  %v3891 = vadd.f32 %v3732, %v3890
  %3892 = vdwg.mxu0
  %3893 = vmatpush.bf16.msra.mxu0 %v3840
  %3894 = vmatpush.bf16.msra.mxu0 %v3837
  %3895 = vmatpush.bf16.msra.mxu0 %v3834
  %3896 = vmatpush.bf16.msra.mxu0 %v3831
  %3897 = vmatpush.bf16.msra.mxu0 %v3828
  %3898 = vmatpush.bf16.msra.mxu0 %v3825
  %3899 = vmatpush.bf16.msra.mxu0 %v3822
  %3900 = vmatpush.bf16.msra.mxu0 %v3819
  %3901 = vmatmul.bf16.gmra.mxu0 %v3696
  %v3902 = vpop.f32.mrf.mxu0
  %v3903 = vadd.f32 %v3733, %v3902
  %v3904 = vpop.f32.mrf.mxu0
  %v3905 = vadd.f32 %v3733, %v3904
  %3906 = vdwg.mxu0
  %v3907 = vadd.f32 %v3471, %v3664
  %v3908 = vadd.f32 %v3474, %v3666
  %v3909 = vxor.u32 %v3907, 2147483648
  %v3910 = vxor.u32 %v3908, 2147483648
  %v3911 = vmul.f32 %v3909, 1.442695
  %v3912 = vpow.pop %v3911
  %v3913 = vmul.f32 %v3910, 1.442695
  %v3914 = vpow.pop %v3913
  %v3915 = vadd.f32 %v3912, 1.0
  %v3916 = vadd.f32 %v3914, 1.0
  %v3917 = vrcp.pop %v3915
  %v3918 = vmul.f32 %v3915, %v3917
  %v3919 = vsub.f32 1.0, %v3918
  %v3920 = vmul.f32 %v3917, %v3919
  %v3921 = vadd.f32 %v3917, %v3920
  %vm3922 = vweird.f32 %v3915
  %vm3923 = vweird.f32 %v3917
  %vm3924 = vmor %vm3922, %vm3923
  %v3925 = vsel %vm3924, %v3917, %v3921
  %v3926 = vand.u32 2147483647, %v3915
  %vm3927 = vcmp.eq.f32.partialorder %v3926, 8.507059e+37
  %v3928 = vand.u32 %v3915, 2147483648
  %v3929 = vor.u32 1.1754944e-38, %v3928
  %v3930 = vsel %vm3927, %v3929, %v3925
  %v3931 = vmul.f32 1.0, %v3930
  %v3932 = vrcp.pop %v3916
  %v3933 = vmul.f32 %v3916, %v3932
  %v3934 = vsub.f32 1.0, %v3933
  %v3935 = vmul.f32 %v3932, %v3934
  %v3936 = vadd.f32 %v3932, %v3935
  %vm3937 = vweird.f32 %v3916
  %vm3938 = vweird.f32 %v3932
  %vm3939 = vmor %vm3937, %vm3938
  %v3940 = vsel %vm3939, %v3932, %v3936
  %v3941 = vand.u32 2147483647, %v3916
  %vm3942 = vcmp.eq.f32.partialorder %v3941, 8.507059e+37
  %v3943 = vand.u32 %v3916, 2147483648
  %v3944 = vor.u32 1.1754944e-38, %v3943
  %v3945 = vsel %vm3942, %v3944, %v3940
  %v3946 = vmul.f32 1.0, %v3945
  %v3947 = vadd.f32 %v3472, %v3678
  %v3948 = vadd.f32 %v3475, %v3680
  %v3949 = vxor.u32 %v3947, 2147483648
  %v3950 = vxor.u32 %v3948, 2147483648
  %v3951 = vmul.f32 %v3949, 1.442695
  %v3952 = vpow.pop %v3951
  %v3953 = vmul.f32 %v3950, 1.442695
  %v3954 = vpow.pop %v3953
  %v3955 = vadd.f32 %v3952, 1.0
  %v3956 = vadd.f32 %v3954, 1.0
  %v3957 = vrcp.pop %v3955
  %v3958 = vmul.f32 %v3955, %v3957
  %v3959 = vsub.f32 1.0, %v3958
  %v3960 = vmul.f32 %v3957, %v3959
  %v3961 = vadd.f32 %v3957, %v3960
  %vm3962 = vweird.f32 %v3955
  %vm3963 = vweird.f32 %v3957
  %vm3964 = vmor %vm3962, %vm3963
  %v3965 = vsel %vm3964, %v3957, %v3961
  %v3966 = vand.u32 2147483647, %v3955
  %vm3967 = vcmp.eq.f32.partialorder %v3966, 8.507059e+37
  %v3968 = vand.u32 %v3955, 2147483648
  %v3969 = vor.u32 1.1754944e-38, %v3968
  %v3970 = vsel %vm3967, %v3969, %v3965
  %v3971 = vmul.f32 1.0, %v3970
  %v3972 = vrcp.pop %v3956
  %v3973 = vmul.f32 %v3956, %v3972
  %v3974 = vsub.f32 1.0, %v3973
  %v3975 = vmul.f32 %v3972, %v3974
  %v3976 = vadd.f32 %v3972, %v3975
  %vm3977 = vweird.f32 %v3956
  %vm3978 = vweird.f32 %v3972
  %vm3979 = vmor %vm3977, %vm3978
  %v3980 = vsel %vm3979, %v3972, %v3976
  %v3981 = vand.u32 2147483647, %v3956
  %vm3982 = vcmp.eq.f32.partialorder %v3981, 8.507059e+37
  %v3983 = vand.u32 %v3956, 2147483648
  %v3984 = vor.u32 1.1754944e-38, %v3983
  %v3985 = vsel %vm3982, %v3984, %v3980
  %v3986 = vmul.f32 1.0, %v3985
  %v3987 = vmul.f32 %v3931, %v3692
  %v3988 = vmul.f32 %v3946, %v3694
  %v3989 = vadd.f32 %v3473, %v3987
  %v3990 = vadd.f32 %v3476, %v3988
  %v3991 = vtanh.pop %v3989
  %v3992 = vtanh.pop %v3990
  %v3993 = vsub.f32 1.0, %v3971
  %v3994 = vsub.f32 1.0, %v3986
  %v3995 = vmul.f32 %v3993, %v3991
  %v3996 = vmul.f32 %v3994, %v3992
  %v3997 = vmul.f32 %v3971, %v3359
  %v3998 = vmul.f32 %v3986, %v3360
  %v3999 = vadd.f32 %v3995, %v3997
  %v4000 = vadd.f32 %v3996, %v3998
  %v4001 = vadd.f32 %v3479, %v3875
  %v4002 = vadd.f32 %v3482, %v3877
  %v4003 = vxor.u32 %v4001, 2147483648
  %v4004 = vxor.u32 %v4002, 2147483648
  %v4005 = vmul.f32 %v4003, 1.442695
  %v4006 = vpow.pop %v4005
  %v4007 = vmul.f32 %v4004, 1.442695
  %v4008 = vpow.pop %v4007
  %v4009 = vadd.f32 %v4006, 1.0
  %v4010 = vadd.f32 %v4008, 1.0
  %v4011 = vrcp.pop %v4009
  %v4012 = vmul.f32 %v4009, %v4011
  %v4013 = vsub.f32 1.0, %v4012
  %v4014 = vmul.f32 %v4011, %v4013
  %v4015 = vadd.f32 %v4011, %v4014
  %vm4016 = vweird.f32 %v4009
  %vm4017 = vweird.f32 %v4011
  %vm4018 = vmor %vm4016, %vm4017
  %v4019 = vsel %vm4018, %v4011, %v4015
  %v4020 = vand.u32 2147483647, %v4009
  %vm4021 = vcmp.eq.f32.partialorder %v4020, 8.507059e+37
  %v4022 = vand.u32 %v4009, 2147483648
  %v4023 = vor.u32 1.1754944e-38, %v4022
  %v4024 = vsel %vm4021, %v4023, %v4019
  %v4025 = vmul.f32 1.0, %v4024
  %v4026 = vrcp.pop %v4010
  %v4027 = vmul.f32 %v4010, %v4026
  %v4028 = vsub.f32 1.0, %v4027
  %v4029 = vmul.f32 %v4026, %v4028
  %v4030 = vadd.f32 %v4026, %v4029
  %vm4031 = vweird.f32 %v4010
  %vm4032 = vweird.f32 %v4026
  %vm4033 = vmor %vm4031, %vm4032
  %v4034 = vsel %vm4033, %v4026, %v4030
  %v4035 = vand.u32 2147483647, %v4010
  %vm4036 = vcmp.eq.f32.partialorder %v4035, 8.507059e+37
  %v4037 = vand.u32 %v4010, 2147483648
  %v4038 = vor.u32 1.1754944e-38, %v4037
  %v4039 = vsel %vm4036, %v4038, %v4034
  %v4040 = vmul.f32 1.0, %v4039
  %v4041 = vadd.f32 %v3480, %v3889
  %v4042 = vadd.f32 %v3483, %v3891
  %v4043 = vxor.u32 %v4041, 2147483648
  %v4044 = vxor.u32 %v4042, 2147483648
  %v4045 = vmul.f32 %v4043, 1.442695
  %v4046 = vpow.pop %v4045
  %v4047 = vmul.f32 %v4044, 1.442695
  %v4048 = vpow.pop %v4047
  %v4049 = vadd.f32 %v4046, 1.0
  %v4050 = vadd.f32 %v4048, 1.0
  %v4051 = vrcp.pop %v4049
  %v4052 = vmul.f32 %v4049, %v4051
  %v4053 = vsub.f32 1.0, %v4052
  %v4054 = vmul.f32 %v4051, %v4053
  %v4055 = vadd.f32 %v4051, %v4054
  %vm4056 = vweird.f32 %v4049
  %vm4057 = vweird.f32 %v4051
  %vm4058 = vmor %vm4056, %vm4057
  %v4059 = vsel %vm4058, %v4051, %v4055
  %v4060 = vand.u32 2147483647, %v4049
  %vm4061 = vcmp.eq.f32.partialorder %v4060, 8.507059e+37
  %v4062 = vand.u32 %v4049, 2147483648
  %v4063 = vor.u32 1.1754944e-38, %v4062
  %v4064 = vsel %vm4061, %v4063, %v4059
  %v4065 = vmul.f32 1.0, %v4064
  %v4066 = vrcp.pop %v4050
  %v4067 = vmul.f32 %v4050, %v4066
  %v4068 = vsub.f32 1.0, %v4067
  %v4069 = vmul.f32 %v4066, %v4068
  %v4070 = vadd.f32 %v4066, %v4069
  %vm4071 = vweird.f32 %v4050
  %vm4072 = vweird.f32 %v4066
  %vm4073 = vmor %vm4071, %vm4072
  %v4074 = vsel %vm4073, %v4066, %v4070
  %v4075 = vand.u32 2147483647, %v4050
  %vm4076 = vcmp.eq.f32.partialorder %v4075, 8.507059e+37
  %v4077 = vand.u32 %v4050, 2147483648
  %v4078 = vor.u32 1.1754944e-38, %v4077
  %v4079 = vsel %vm4076, %v4078, %v4074
  %v4080 = vmul.f32 1.0, %v4079
  %v4081 = vmul.f32 %v4025, %v3903
  %v4082 = vmul.f32 %v4040, %v3905
  %v4083 = vadd.f32 %v3481, %v4081
  %v4084 = vadd.f32 %v3484, %v4082
  %v4085 = vtanh.pop %v4083
  %v4086 = vtanh.pop %v4084
  %v4087 = vsub.f32 1.0, %v4065
  %v4088 = vsub.f32 1.0, %v4080
  %v4089 = vmul.f32 %v4087, %v4085
  %v4090 = vmul.f32 %v4088, %v4086
  %v4091 = vmul.f32 %v4065, %v3453
  %v4092 = vmul.f32 %v4080, %v3454
  %v4093 = vadd.f32 %v4089, %v4091
  %v4094 = vadd.f32 %v4090, %v4092
  %v4095 = vld [vmem:[%s3462] sm:$0xff]
  %v4096 = vld [vmem:[%s3462 + $0x8] sm:$0xff]
  %v4097 = vadd.f32 %v4095, %v3999
  %v4098 = vadd.f32 %v4096, %v4000
  %4099 = vst [vmem:[%s3462] sm:$0xff] %v4097
  %4100 = vst [vmem:[%s3462 + $0x8] sm:$0xff] %v4098
  %v4101 = vld [vmem:[%s3455] sm:$0xff]
  %v4102 = vld [vmem:[%s3455 + $0x8] sm:$0xff]
  %v4103 = vadd.f32 %v4101, %v4093
  %v4104 = vadd.f32 %v4102, %v4094
  %4105 = vst [vmem:[%s3455] sm:$0xff] %v4103
  %4106 = vst [vmem:[%s3455 + $0x8] sm:$0xff] %v4104
  %s4107 = smul.addr %s2194, 8
  %s4108 = scalar_lea.vmem [#allocation2], %s4107
  %v4109 = vld [vmem:[%s4108] sm:$0xff]
  %v4110 = vld [vmem:[%s4108 + $0x8] sm:$0xff]
  %v4111 = vld [vmem:[%s4108 + $0x10] sm:$0xff]
  %v4112 = vld [vmem:[%s4108 + $0x18] sm:$0xff]
  %v4113 = vld [vmem:[%s4108 + $0x20] sm:$0xff]
  %v4114 = vld [vmem:[%s4108 + $0x28] sm:$0xff]
  %s4115 = smul.addr %s2185, 8
  %s4116 = scalar_lea.vmem [#allocation3], %s4115
  %v4117 = vld [vmem:[%s4116] sm:$0xff]
  %v4118 = vld [vmem:[%s4116 + $0x8] sm:$0xff]
  %v4119 = vld [vmem:[%s4116 + $0x10] sm:$0xff]
  %v4120 = vld [vmem:[%s4116 + $0x18] sm:$0xff]
  %v4121 = vld [vmem:[%s4116 + $0x20] sm:$0xff]
  %v4122 = vld [vmem:[%s4116 + $0x28] sm:$0xff]
  %v4123 = vpack.c.bf16 %v4000, %v3999
  %v4124 = vld [vmem:[%s3] sm:$0xff]
  %v4125 = vld [vmem:[%s3 + $0x8] sm:$0xf]
  %v4126 = vld [vmem:[%s3 + $0xc] sm:$0xff]
  %v4127 = vld [vmem:[%s3 + $0x14] sm:$0xf]
  %v4128 = vld [vmem:[%s3 + $0x18] sm:$0xff]
  %v4129 = vld [vmem:[%s3 + $0x20] sm:$0xf]
  %v4130 = vld [vmem:[%s3 + $0x24] sm:$0xff]
  %v4131 = vld [vmem:[%s3 + $0x2c] sm:$0xf]
  %v4132 = vld [vmem:[%s3 + $0x30] sm:$0xff]
  %v4133 = vld [vmem:[%s3 + $0x38] sm:$0xf]
  %v4134 = vld [vmem:[%s3 + $0x3c] sm:$0xff]
  %v4135 = vld [vmem:[%s3 + $0x44] sm:$0xf]
  %v4136 = vld [vmem:[%s3 + $0x48] sm:$0xff]
  %v4137 = vld [vmem:[%s3 + $0x50] sm:$0xf]
  %v4138 = vld [vmem:[%s3 + $0x54] sm:$0xff]
  %v4139 = vld [vmem:[%s3 + $0x5c] sm:$0xf]
  %v4140 = vld [vmem:[%s3 + $0x60] sm:$0xff]
  %v4141 = vld [vmem:[%s3 + $0x68] sm:$0xf]
  %v4142 = vld [vmem:[%s3 + $0x6c] sm:$0xff]
  %v4143 = vld [vmem:[%s3 + $0x74] sm:$0xf]
  %v4144 = vld [vmem:[%s3 + $0x78] sm:$0xff]
  %v4145 = vld [vmem:[%s3 + $0x80] sm:$0xf]
  %v4146 = vld [vmem:[%s3 + $0x84] sm:$0xff]
  %v4147 = vld [vmem:[%s3 + $0x8c] sm:$0xf]
  %v4148 = vld [vmem:[%s3 + $0x90] sm:$0xff]
  %v4149 = vld [vmem:[%s3 + $0x98] sm:$0xf]
  %v4150 = vld [vmem:[%s3 + $0x9c] sm:$0xff]
  %v4151 = vld [vmem:[%s3 + $0xa4] sm:$0xf]
  %v4152 = vld [vmem:[%s3 + $0xa8] sm:$0xff]
  %v4153 = vld [vmem:[%s3 + $0xb0] sm:$0xf]
  %v4154 = vld [vmem:[%s3 + $0xb4] sm:$0xff]
  %v4155 = vld [vmem:[%s3 + $0xbc] sm:$0xf]
  %v4156 = vld [vmem:[%s4] sm:$0x7]
  %v4158 = vperm.slane %v4156, 0
  %v4159 = vperm.slane %v4156, 1
  %v4160 = vperm.slane %v4156, 2
  %v4196 = vunpack.c.l.b16 %v4124
  %v4197 = vunpack.c.h.b16 %v4124
  %v4198 = vunpack.c.l.b16 %v4125
  %v4199 = vunpack.c.l.b16 %v4126
  %v4200 = vunpack.c.h.b16 %v4126
  %v4201 = vunpack.c.l.b16 %v4127
  %v4202 = vunpack.c.l.b16 %v4128
  %v4203 = vunpack.c.h.b16 %v4128
  %v4204 = vunpack.c.l.b16 %v4129
  %v4205 = vunpack.c.l.b16 %v4130
  %v4206 = vunpack.c.h.b16 %v4130
  %v4207 = vunpack.c.l.b16 %v4131
  %v4208 = vunpack.c.l.b16 %v4132
  %v4209 = vunpack.c.h.b16 %v4132
  %v4210 = vunpack.c.l.b16 %v4133
  %v4211 = vunpack.c.l.b16 %v4134
  %v4212 = vunpack.c.h.b16 %v4134
  %v4213 = vunpack.c.l.b16 %v4135
  %v4214 = vunpack.c.l.b16 %v4136
  %v4215 = vunpack.c.h.b16 %v4136
  %v4216 = vunpack.c.l.b16 %v4137
  %v4217 = vunpack.c.l.b16 %v4138
  %v4218 = vunpack.c.h.b16 %v4138
  %v4219 = vunpack.c.l.b16 %v4139
  %v4220 = vunpack.c.l.b16 %v4140
  %v4221 = vunpack.c.h.b16 %v4140
  %v4222 = vunpack.c.l.b16 %v4141
  %v4223 = vunpack.c.l.b16 %v4142
  %v4224 = vunpack.c.h.b16 %v4142
  %v4225 = vunpack.c.l.b16 %v4143
  %v4226 = vunpack.c.l.b16 %v4144
  %v4227 = vunpack.c.h.b16 %v4144
  %v4228 = vunpack.c.l.b16 %v4145
  %v4229 = vunpack.c.l.b16 %v4146
  %v4230 = vunpack.c.h.b16 %v4146
  %v4231 = vunpack.c.l.b16 %v4147
  %v4232 = vunpack.c.l.b16 %v4148
  %v4233 = vunpack.c.h.b16 %v4148
  %v4234 = vunpack.c.l.b16 %v4149
  %v4235 = vunpack.c.l.b16 %v4150
  %v4236 = vunpack.c.h.b16 %v4150
  %v4237 = vunpack.c.l.b16 %v4151
  %v4238 = vunpack.c.l.b16 %v4152
  %v4239 = vunpack.c.h.b16 %v4152
  %v4240 = vunpack.c.l.b16 %v4153
  %v4241 = vunpack.c.l.b16 %v4154
  %v4242 = vunpack.c.h.b16 %v4154
  %v4243 = vunpack.c.l.b16 %v4155
  %v4244 = vpack.c.b16 %v4199, %v4196
  %v4245 = vpack.c.b16 %v4200, %v4197
  %v4246 = vpack.c.b16 %v4201, %v4198
  %v4247 = vpack.c.b16 %v4205, %v4202
  %v4248 = vpack.c.b16 %v4206, %v4203
  %v4249 = vpack.c.b16 %v4207, %v4204
  %v4250 = vpack.c.b16 %v4211, %v4208
  %v4251 = vpack.c.b16 %v4212, %v4209
  %v4252 = vpack.c.b16 %v4213, %v4210
  %v4253 = vpack.c.b16 %v4217, %v4214
  %v4254 = vpack.c.b16 %v4218, %v4215
  %v4255 = vpack.c.b16 %v4219, %v4216
  %v4256 = vpack.c.b16 %v4223, %v4220
  %v4257 = vpack.c.b16 %v4224, %v4221
  %v4258 = vpack.c.b16 %v4225, %v4222
  %v4259 = vpack.c.b16 %v4229, %v4226
  %v4260 = vpack.c.b16 %v4230, %v4227
  %v4261 = vpack.c.b16 %v4231, %v4228
  %v4262 = vpack.c.b16 %v4235, %v4232
  %v4263 = vpack.c.b16 %v4236, %v4233
  %v4264 = vpack.c.b16 %v4237, %v4234
  %v4265 = vpack.c.b16 %v4241, %v4238
  %v4266 = vpack.c.b16 %v4242, %v4239
  %v4267 = vpack.c.b16 %v4243, %v4240
  %4292 = vmatpush.bf16.msra.mxu0 %v4265
  %4293 = vmatpush.bf16.msra.mxu0 %v4262
  %4294 = vmatpush.bf16.msra.mxu0 %v4259
  %4295 = vmatpush.bf16.msra.mxu0 %v4256
  %4296 = vmatpush.bf16.msra.mxu0 %v4253
  %4297 = vmatpush.bf16.msra.mxu0 %v4250
  %4298 = vmatpush.bf16.msra.mxu0 %v4247
  %4299 = vmatpush.bf16.msra.mxu0 %v4244
  %4300 = vmatmul.bf16.gmra.mxu0 %v4123
  %v4301 = vpop.f32.mrf.mxu0
  %v4302 = vadd.f32 %v4158, %v4301
  %v4303 = vpop.f32.mrf.mxu0
  %v4304 = vadd.f32 %v4158, %v4303
  %4305 = vdwg.mxu0
  %4306 = vmatpush.bf16.msra.mxu0 %v4266
  %4307 = vmatpush.bf16.msra.mxu0 %v4263
  %4308 = vmatpush.bf16.msra.mxu0 %v4260
  %4309 = vmatpush.bf16.msra.mxu0 %v4257
  %4310 = vmatpush.bf16.msra.mxu0 %v4254
  %4311 = vmatpush.bf16.msra.mxu0 %v4251
  %4312 = vmatpush.bf16.msra.mxu0 %v4248
  %4313 = vmatpush.bf16.msra.mxu0 %v4245
  %4314 = vmatmul.bf16.gmra.mxu0 %v4123
  %v4315 = vpop.f32.mrf.mxu0
  %v4316 = vadd.f32 %v4159, %v4315
  %v4317 = vpop.f32.mrf.mxu0
  %v4318 = vadd.f32 %v4159, %v4317
  %4319 = vdwg.mxu0
  %4320 = vmatpush.bf16.msra.mxu0 %v4267
  %4321 = vmatpush.bf16.msra.mxu0 %v4264
  %4322 = vmatpush.bf16.msra.mxu0 %v4261
  %4323 = vmatpush.bf16.msra.mxu0 %v4258
  %4324 = vmatpush.bf16.msra.mxu0 %v4255
  %4325 = vmatpush.bf16.msra.mxu0 %v4252
  %4326 = vmatpush.bf16.msra.mxu0 %v4249
  %4327 = vmatpush.bf16.msra.mxu0 %v4246
  %4328 = vmatmul.bf16.gmra.mxu0 %v4123
  %v4329 = vpop.f32.mrf.mxu0
  %v4330 = vadd.f32 %v4160, %v4329
  %v4331 = vpop.f32.mrf.mxu0
  %v4332 = vadd.f32 %v4160, %v4331
  %4333 = vdwg.mxu0
  %v4334 = vpack.c.bf16 %v4094, %v4093
  %v4335 = vld [vmem:[%s1130] sm:$0xff]
  %v4336 = vld [vmem:[%s1130 + $0x8] sm:$0xf]
  %v4337 = vld [vmem:[%s1130 + $0xc] sm:$0xff]
  %v4338 = vld [vmem:[%s1130 + $0x14] sm:$0xf]
  %v4339 = vld [vmem:[%s1130 + $0x18] sm:$0xff]
  %v4340 = vld [vmem:[%s1130 + $0x20] sm:$0xf]
  %v4341 = vld [vmem:[%s1130 + $0x24] sm:$0xff]
  %v4342 = vld [vmem:[%s1130 + $0x2c] sm:$0xf]
  %v4343 = vld [vmem:[%s1130 + $0x30] sm:$0xff]
  %v4344 = vld [vmem:[%s1130 + $0x38] sm:$0xf]
  %v4345 = vld [vmem:[%s1130 + $0x3c] sm:$0xff]
  %v4346 = vld [vmem:[%s1130 + $0x44] sm:$0xf]
  %v4347 = vld [vmem:[%s1130 + $0x48] sm:$0xff]
  %v4348 = vld [vmem:[%s1130 + $0x50] sm:$0xf]
  %v4349 = vld [vmem:[%s1130 + $0x54] sm:$0xff]
  %v4350 = vld [vmem:[%s1130 + $0x5c] sm:$0xf]
  %v4351 = vld [vmem:[%s1130 + $0x60] sm:$0xff]
  %v4352 = vld [vmem:[%s1130 + $0x68] sm:$0xf]
  %v4353 = vld [vmem:[%s1130 + $0x6c] sm:$0xff]
  %v4354 = vld [vmem:[%s1130 + $0x74] sm:$0xf]
  %v4355 = vld [vmem:[%s1130 + $0x78] sm:$0xff]
  %v4356 = vld [vmem:[%s1130 + $0x80] sm:$0xf]
  %v4357 = vld [vmem:[%s1130 + $0x84] sm:$0xff]
  %v4358 = vld [vmem:[%s1130 + $0x8c] sm:$0xf]
  %v4359 = vld [vmem:[%s1130 + $0x90] sm:$0xff]
  %v4360 = vld [vmem:[%s1130 + $0x98] sm:$0xf]
  %v4361 = vld [vmem:[%s1130 + $0x9c] sm:$0xff]
  %v4362 = vld [vmem:[%s1130 + $0xa4] sm:$0xf]
  %v4363 = vld [vmem:[%s1130 + $0xa8] sm:$0xff]
  %v4364 = vld [vmem:[%s1130 + $0xb0] sm:$0xf]
  %v4365 = vld [vmem:[%s1130 + $0xb4] sm:$0xff]
  %v4366 = vld [vmem:[%s1130 + $0xbc] sm:$0xf]
  %v4367 = vld [vmem:[%s1163] sm:$0x7]
  %v4369 = vperm.slane %v4367, 0
  %v4370 = vperm.slane %v4367, 1
  %v4371 = vperm.slane %v4367, 2
  %v4407 = vunpack.c.l.b16 %v4335
  %v4408 = vunpack.c.h.b16 %v4335
  %v4409 = vunpack.c.l.b16 %v4336
  %v4410 = vunpack.c.l.b16 %v4337
  %v4411 = vunpack.c.h.b16 %v4337
  %v4412 = vunpack.c.l.b16 %v4338
  %v4413 = vunpack.c.l.b16 %v4339
  %v4414 = vunpack.c.h.b16 %v4339
  %v4415 = vunpack.c.l.b16 %v4340
  %v4416 = vunpack.c.l.b16 %v4341
  %v4417 = vunpack.c.h.b16 %v4341
  %v4418 = vunpack.c.l.b16 %v4342
  %v4419 = vunpack.c.l.b16 %v4343
  %v4420 = vunpack.c.h.b16 %v4343
  %v4421 = vunpack.c.l.b16 %v4344
  %v4422 = vunpack.c.l.b16 %v4345
  %v4423 = vunpack.c.h.b16 %v4345
  %v4424 = vunpack.c.l.b16 %v4346
  %v4425 = vunpack.c.l.b16 %v4347
  %v4426 = vunpack.c.h.b16 %v4347
  %v4427 = vunpack.c.l.b16 %v4348
  %v4428 = vunpack.c.l.b16 %v4349
  %v4429 = vunpack.c.h.b16 %v4349
  %v4430 = vunpack.c.l.b16 %v4350
  %v4431 = vunpack.c.l.b16 %v4351
  %v4432 = vunpack.c.h.b16 %v4351
  %v4433 = vunpack.c.l.b16 %v4352
  %v4434 = vunpack.c.l.b16 %v4353
  %v4435 = vunpack.c.h.b16 %v4353
  %v4436 = vunpack.c.l.b16 %v4354
  %v4437 = vunpack.c.l.b16 %v4355
  %v4438 = vunpack.c.h.b16 %v4355
  %v4439 = vunpack.c.l.b16 %v4356
  %v4440 = vunpack.c.l.b16 %v4357
  %v4441 = vunpack.c.h.b16 %v4357
  %v4442 = vunpack.c.l.b16 %v4358
  %v4443 = vunpack.c.l.b16 %v4359
  %v4444 = vunpack.c.h.b16 %v4359
  %v4445 = vunpack.c.l.b16 %v4360
  %v4446 = vunpack.c.l.b16 %v4361
  %v4447 = vunpack.c.h.b16 %v4361
  %v4448 = vunpack.c.l.b16 %v4362
  %v4449 = vunpack.c.l.b16 %v4363
  %v4450 = vunpack.c.h.b16 %v4363
  %v4451 = vunpack.c.l.b16 %v4364
  %v4452 = vunpack.c.l.b16 %v4365
  %v4453 = vunpack.c.h.b16 %v4365
  %v4454 = vunpack.c.l.b16 %v4366
  %v4455 = vpack.c.b16 %v4410, %v4407
  %v4456 = vpack.c.b16 %v4411, %v4408
  %v4457 = vpack.c.b16 %v4412, %v4409
  %v4458 = vpack.c.b16 %v4416, %v4413
  %v4459 = vpack.c.b16 %v4417, %v4414
  %v4460 = vpack.c.b16 %v4418, %v4415
  %v4461 = vpack.c.b16 %v4422, %v4419
  %v4462 = vpack.c.b16 %v4423, %v4420
  %v4463 = vpack.c.b16 %v4424, %v4421
  %v4464 = vpack.c.b16 %v4428, %v4425
  %v4465 = vpack.c.b16 %v4429, %v4426
  %v4466 = vpack.c.b16 %v4430, %v4427
  %v4467 = vpack.c.b16 %v4434, %v4431
  %v4468 = vpack.c.b16 %v4435, %v4432
  %v4469 = vpack.c.b16 %v4436, %v4433
  %v4470 = vpack.c.b16 %v4440, %v4437
  %v4471 = vpack.c.b16 %v4441, %v4438
  %v4472 = vpack.c.b16 %v4442, %v4439
  %v4473 = vpack.c.b16 %v4446, %v4443
  %v4474 = vpack.c.b16 %v4447, %v4444
  %v4475 = vpack.c.b16 %v4448, %v4445
  %v4476 = vpack.c.b16 %v4452, %v4449
  %v4477 = vpack.c.b16 %v4453, %v4450
  %v4478 = vpack.c.b16 %v4454, %v4451
  %4503 = vmatpush.bf16.msra.mxu0 %v4476
  %4504 = vmatpush.bf16.msra.mxu0 %v4473
  %4505 = vmatpush.bf16.msra.mxu0 %v4470
  %4506 = vmatpush.bf16.msra.mxu0 %v4467
  %4507 = vmatpush.bf16.msra.mxu0 %v4464
  %4508 = vmatpush.bf16.msra.mxu0 %v4461
  %4509 = vmatpush.bf16.msra.mxu0 %v4458
  %4510 = vmatpush.bf16.msra.mxu0 %v4455
  %4511 = vmatmul.bf16.gmra.mxu0 %v4334
  %v4512 = vpop.f32.mrf.mxu0
  %v4513 = vadd.f32 %v4369, %v4512
  %v4514 = vpop.f32.mrf.mxu0
  %v4515 = vadd.f32 %v4369, %v4514
  %4516 = vdwg.mxu0
  %4517 = vmatpush.bf16.msra.mxu0 %v4477
  %4518 = vmatpush.bf16.msra.mxu0 %v4474
  %4519 = vmatpush.bf16.msra.mxu0 %v4471
  %4520 = vmatpush.bf16.msra.mxu0 %v4468
  %4521 = vmatpush.bf16.msra.mxu0 %v4465
  %4522 = vmatpush.bf16.msra.mxu0 %v4462
  %4523 = vmatpush.bf16.msra.mxu0 %v4459
  %4524 = vmatpush.bf16.msra.mxu0 %v4456
  %4525 = vmatmul.bf16.gmra.mxu0 %v4334
  %v4526 = vpop.f32.mrf.mxu0
  %v4527 = vadd.f32 %v4370, %v4526
  %v4528 = vpop.f32.mrf.mxu0
  %v4529 = vadd.f32 %v4370, %v4528
  %4530 = vdwg.mxu0
  %4531 = vmatpush.bf16.msra.mxu0 %v4478
  %4532 = vmatpush.bf16.msra.mxu0 %v4475
  %4533 = vmatpush.bf16.msra.mxu0 %v4472
  %4534 = vmatpush.bf16.msra.mxu0 %v4469
  %4535 = vmatpush.bf16.msra.mxu0 %v4466
  %4536 = vmatpush.bf16.msra.mxu0 %v4463
  %4537 = vmatpush.bf16.msra.mxu0 %v4460
  %4538 = vmatpush.bf16.msra.mxu0 %v4457
  %4539 = vmatmul.bf16.gmra.mxu0 %v4334
  %v4540 = vpop.f32.mrf.mxu0
  %v4541 = vadd.f32 %v4371, %v4540
  %v4542 = vpop.f32.mrf.mxu0
  %v4543 = vadd.f32 %v4371, %v4542
  %4544 = vdwg.mxu0
  %v4545 = vadd.f32 %v4109, %v4302
  %v4546 = vadd.f32 %v4112, %v4304
  %v4547 = vxor.u32 %v4545, 2147483648
  %v4548 = vxor.u32 %v4546, 2147483648
  %v4549 = vmul.f32 %v4547, 1.442695
  %v4550 = vpow.pop %v4549
  %v4551 = vmul.f32 %v4548, 1.442695
  %v4552 = vpow.pop %v4551
  %v4553 = vadd.f32 %v4550, 1.0
  %v4554 = vadd.f32 %v4552, 1.0
  %v4555 = vrcp.pop %v4553
  %v4556 = vmul.f32 %v4553, %v4555
  %v4557 = vsub.f32 1.0, %v4556
  %v4558 = vmul.f32 %v4555, %v4557
  %v4559 = vadd.f32 %v4555, %v4558
  %vm4560 = vweird.f32 %v4553
  %vm4561 = vweird.f32 %v4555
  %vm4562 = vmor %vm4560, %vm4561
  %v4563 = vsel %vm4562, %v4555, %v4559
  %v4564 = vand.u32 2147483647, %v4553
  %vm4565 = vcmp.eq.f32.partialorder %v4564, 8.507059e+37
  %v4566 = vand.u32 %v4553, 2147483648
  %v4567 = vor.u32 1.1754944e-38, %v4566
  %v4568 = vsel %vm4565, %v4567, %v4563
  %v4569 = vmul.f32 1.0, %v4568
  %v4570 = vrcp.pop %v4554
  %v4571 = vmul.f32 %v4554, %v4570
  %v4572 = vsub.f32 1.0, %v4571
  %v4573 = vmul.f32 %v4570, %v4572
  %v4574 = vadd.f32 %v4570, %v4573
  %vm4575 = vweird.f32 %v4554
  %vm4576 = vweird.f32 %v4570
  %vm4577 = vmor %vm4575, %vm4576
  %v4578 = vsel %vm4577, %v4570, %v4574
  %v4579 = vand.u32 2147483647, %v4554
  %vm4580 = vcmp.eq.f32.partialorder %v4579, 8.507059e+37
  %v4581 = vand.u32 %v4554, 2147483648
  %v4582 = vor.u32 1.1754944e-38, %v4581
  %v4583 = vsel %vm4580, %v4582, %v4578
  %v4584 = vmul.f32 1.0, %v4583
  %v4585 = vadd.f32 %v4110, %v4316
  %v4586 = vadd.f32 %v4113, %v4318
  %v4587 = vxor.u32 %v4585, 2147483648
  %v4588 = vxor.u32 %v4586, 2147483648
  %v4589 = vmul.f32 %v4587, 1.442695
  %v4590 = vpow.pop %v4589
  %v4591 = vmul.f32 %v4588, 1.442695
  %v4592 = vpow.pop %v4591
  %v4593 = vadd.f32 %v4590, 1.0
  %v4594 = vadd.f32 %v4592, 1.0
  %v4595 = vrcp.pop %v4593
  %v4596 = vmul.f32 %v4593, %v4595
  %v4597 = vsub.f32 1.0, %v4596
  %v4598 = vmul.f32 %v4595, %v4597
  %v4599 = vadd.f32 %v4595, %v4598
  %vm4600 = vweird.f32 %v4593
  %vm4601 = vweird.f32 %v4595
  %vm4602 = vmor %vm4600, %vm4601
  %v4603 = vsel %vm4602, %v4595, %v4599
  %v4604 = vand.u32 2147483647, %v4593
  %vm4605 = vcmp.eq.f32.partialorder %v4604, 8.507059e+37
  %v4606 = vand.u32 %v4593, 2147483648
  %v4607 = vor.u32 1.1754944e-38, %v4606
  %v4608 = vsel %vm4605, %v4607, %v4603
  %v4609 = vmul.f32 1.0, %v4608
  %v4610 = vrcp.pop %v4594
  %v4611 = vmul.f32 %v4594, %v4610
  %v4612 = vsub.f32 1.0, %v4611
  %v4613 = vmul.f32 %v4610, %v4612
  %v4614 = vadd.f32 %v4610, %v4613
  %vm4615 = vweird.f32 %v4594
  %vm4616 = vweird.f32 %v4610
  %vm4617 = vmor %vm4615, %vm4616
  %v4618 = vsel %vm4617, %v4610, %v4614
  %v4619 = vand.u32 2147483647, %v4594
  %vm4620 = vcmp.eq.f32.partialorder %v4619, 8.507059e+37
  %v4621 = vand.u32 %v4594, 2147483648
  %v4622 = vor.u32 1.1754944e-38, %v4621
  %v4623 = vsel %vm4620, %v4622, %v4618
  %v4624 = vmul.f32 1.0, %v4623
  %v4625 = vmul.f32 %v4569, %v4330
  %v4626 = vmul.f32 %v4584, %v4332
  %v4627 = vadd.f32 %v4111, %v4625
  %v4628 = vadd.f32 %v4114, %v4626
  %v4629 = vtanh.pop %v4627
  %v4630 = vtanh.pop %v4628
  %v4631 = vsub.f32 1.0, %v4609
  %v4632 = vsub.f32 1.0, %v4624
  %v4633 = vmul.f32 %v4631, %v4629
  %v4634 = vmul.f32 %v4632, %v4630
  %v4635 = vmul.f32 %v4609, %v3999
  %v4636 = vmul.f32 %v4624, %v4000
  %v4637 = vadd.f32 %v4633, %v4635
  %v4638 = vadd.f32 %v4634, %v4636
  %v4639 = vadd.f32 %v4117, %v4513
  %v4640 = vadd.f32 %v4120, %v4515
  %v4641 = vxor.u32 %v4639, 2147483648
  %v4642 = vxor.u32 %v4640, 2147483648
  %v4643 = vmul.f32 %v4641, 1.442695
  %v4644 = vpow.pop %v4643
  %v4645 = vmul.f32 %v4642, 1.442695
  %v4646 = vpow.pop %v4645
  %v4647 = vadd.f32 %v4644, 1.0
  %v4648 = vadd.f32 %v4646, 1.0
  %v4649 = vrcp.pop %v4647
  %v4650 = vmul.f32 %v4647, %v4649
  %v4651 = vsub.f32 1.0, %v4650
  %v4652 = vmul.f32 %v4649, %v4651
  %v4653 = vadd.f32 %v4649, %v4652
  %vm4654 = vweird.f32 %v4647
  %vm4655 = vweird.f32 %v4649
  %vm4656 = vmor %vm4654, %vm4655
  %v4657 = vsel %vm4656, %v4649, %v4653
  %v4658 = vand.u32 2147483647, %v4647
  %vm4659 = vcmp.eq.f32.partialorder %v4658, 8.507059e+37
  %v4660 = vand.u32 %v4647, 2147483648
  %v4661 = vor.u32 1.1754944e-38, %v4660
  %v4662 = vsel %vm4659, %v4661, %v4657
  %v4663 = vmul.f32 1.0, %v4662
  %v4664 = vrcp.pop %v4648
  %v4665 = vmul.f32 %v4648, %v4664
  %v4666 = vsub.f32 1.0, %v4665
  %v4667 = vmul.f32 %v4664, %v4666
  %v4668 = vadd.f32 %v4664, %v4667
  %vm4669 = vweird.f32 %v4648
  %vm4670 = vweird.f32 %v4664
  %vm4671 = vmor %vm4669, %vm4670
  %v4672 = vsel %vm4671, %v4664, %v4668
  %v4673 = vand.u32 2147483647, %v4648
  %vm4674 = vcmp.eq.f32.partialorder %v4673, 8.507059e+37
  %v4675 = vand.u32 %v4648, 2147483648
  %v4676 = vor.u32 1.1754944e-38, %v4675
  %v4677 = vsel %vm4674, %v4676, %v4672
  %v4678 = vmul.f32 1.0, %v4677
  %v4679 = vadd.f32 %v4118, %v4527
  %v4680 = vadd.f32 %v4121, %v4529
  %v4681 = vxor.u32 %v4679, 2147483648
  %v4682 = vxor.u32 %v4680, 2147483648
  %v4683 = vmul.f32 %v4681, 1.442695
  %v4684 = vpow.pop %v4683
  %v4685 = vmul.f32 %v4682, 1.442695
  %v4686 = vpow.pop %v4685
  %v4687 = vadd.f32 %v4684, 1.0
  %v4688 = vadd.f32 %v4686, 1.0
  %v4689 = vrcp.pop %v4687
  %v4690 = vmul.f32 %v4687, %v4689
  %v4691 = vsub.f32 1.0, %v4690
  %v4692 = vmul.f32 %v4689, %v4691
  %v4693 = vadd.f32 %v4689, %v4692
  %vm4694 = vweird.f32 %v4687
  %vm4695 = vweird.f32 %v4689
  %vm4696 = vmor %vm4694, %vm4695
  %v4697 = vsel %vm4696, %v4689, %v4693
  %v4698 = vand.u32 2147483647, %v4687
  %vm4699 = vcmp.eq.f32.partialorder %v4698, 8.507059e+37
  %v4700 = vand.u32 %v4687, 2147483648
  %v4701 = vor.u32 1.1754944e-38, %v4700
  %v4702 = vsel %vm4699, %v4701, %v4697
  %v4703 = vmul.f32 1.0, %v4702
  %v4704 = vrcp.pop %v4688
  %v4705 = vmul.f32 %v4688, %v4704
  %v4706 = vsub.f32 1.0, %v4705
  %v4707 = vmul.f32 %v4704, %v4706
  %v4708 = vadd.f32 %v4704, %v4707
  %vm4709 = vweird.f32 %v4688
  %vm4710 = vweird.f32 %v4704
  %vm4711 = vmor %vm4709, %vm4710
  %v4712 = vsel %vm4711, %v4704, %v4708
  %v4713 = vand.u32 2147483647, %v4688
  %vm4714 = vcmp.eq.f32.partialorder %v4713, 8.507059e+37
  %v4715 = vand.u32 %v4688, 2147483648
  %v4716 = vor.u32 1.1754944e-38, %v4715
  %v4717 = vsel %vm4714, %v4716, %v4712
  %v4718 = vmul.f32 1.0, %v4717
  %v4719 = vmul.f32 %v4663, %v4541
  %v4720 = vmul.f32 %v4678, %v4543
  %v4721 = vadd.f32 %v4119, %v4719
  %v4722 = vadd.f32 %v4122, %v4720
  %v4723 = vtanh.pop %v4721
  %v4724 = vtanh.pop %v4722
  %v4725 = vsub.f32 1.0, %v4703
  %v4726 = vsub.f32 1.0, %v4718
  %v4727 = vmul.f32 %v4725, %v4723
  %v4728 = vmul.f32 %v4726, %v4724
  %v4729 = vmul.f32 %v4703, %v4093
  %v4730 = vmul.f32 %v4718, %v4094
  %v4731 = vadd.f32 %v4727, %v4729
  %v4732 = vadd.f32 %v4728, %v4730
  %v4733 = vld [vmem:[%s2820] sm:$0xff]
  %v4734 = vld [vmem:[%s2820 + $0x8] sm:$0xff]
  %v4735 = vadd.f32 %v4733, %v4637
  %v4736 = vadd.f32 %v4734, %v4638
  %4737 = vst [vmem:[%s2820] sm:$0xff] %v4735
  %4738 = vst [vmem:[%s2820 + $0x8] sm:$0xff] %v4736
  %v4739 = vld [vmem:[%s2813] sm:$0xff]
  %v4740 = vld [vmem:[%s2813 + $0x8] sm:$0xff]
  %v4741 = vadd.f32 %v4739, %v4731
  %v4742 = vadd.f32 %v4740, %v4732
  %4743 = vst [vmem:[%s2813] sm:$0xff] %v4741
  %4744 = vst [vmem:[%s2813 + $0x8] sm:$0xff] %v4742
  %s4745 = smul.addr %s1552, 8
  %s4746 = scalar_lea.vmem [#allocation2], %s4745
  %v4747 = vld [vmem:[%s4746] sm:$0xff]
  %v4748 = vld [vmem:[%s4746 + $0x8] sm:$0xff]
  %v4749 = vld [vmem:[%s4746 + $0x10] sm:$0xff]
  %v4750 = vld [vmem:[%s4746 + $0x18] sm:$0xff]
  %v4751 = vld [vmem:[%s4746 + $0x20] sm:$0xff]
  %v4752 = vld [vmem:[%s4746 + $0x28] sm:$0xff]
  %s4753 = smul.addr %s1543, 8
  %s4754 = scalar_lea.vmem [#allocation3], %s4753
  %v4755 = vld [vmem:[%s4754] sm:$0xff]
  %v4756 = vld [vmem:[%s4754 + $0x8] sm:$0xff]
  %v4757 = vld [vmem:[%s4754 + $0x10] sm:$0xff]
  %v4758 = vld [vmem:[%s4754 + $0x18] sm:$0xff]
  %v4759 = vld [vmem:[%s4754 + $0x20] sm:$0xff]
  %v4760 = vld [vmem:[%s4754 + $0x28] sm:$0xff]
  %v4761 = vpack.c.bf16 %v4638, %v4637
  %v4762 = vld [vmem:[%s3] sm:$0xff]
  %v4763 = vld [vmem:[%s3 + $0x8] sm:$0xf]
  %v4764 = vld [vmem:[%s3 + $0xc] sm:$0xff]
  %v4765 = vld [vmem:[%s3 + $0x14] sm:$0xf]
  %v4766 = vld [vmem:[%s3 + $0x18] sm:$0xff]
  %v4767 = vld [vmem:[%s3 + $0x20] sm:$0xf]
  %v4768 = vld [vmem:[%s3 + $0x24] sm:$0xff]
  %v4769 = vld [vmem:[%s3 + $0x2c] sm:$0xf]
  %v4770 = vld [vmem:[%s3 + $0x30] sm:$0xff]
  %v4771 = vld [vmem:[%s3 + $0x38] sm:$0xf]
  %v4772 = vld [vmem:[%s3 + $0x3c] sm:$0xff]
  %v4773 = vld [vmem:[%s3 + $0x44] sm:$0xf]
  %v4774 = vld [vmem:[%s3 + $0x48] sm:$0xff]
  %v4775 = vld [vmem:[%s3 + $0x50] sm:$0xf]
  %v4776 = vld [vmem:[%s3 + $0x54] sm:$0xff]
  %v4777 = vld [vmem:[%s3 + $0x5c] sm:$0xf]
  %v4778 = vld [vmem:[%s3 + $0x60] sm:$0xff]
  %v4779 = vld [vmem:[%s3 + $0x68] sm:$0xf]
  %v4780 = vld [vmem:[%s3 + $0x6c] sm:$0xff]
  %v4781 = vld [vmem:[%s3 + $0x74] sm:$0xf]
  %v4782 = vld [vmem:[%s3 + $0x78] sm:$0xff]
  %v4783 = vld [vmem:[%s3 + $0x80] sm:$0xf]
  %v4784 = vld [vmem:[%s3 + $0x84] sm:$0xff]
  %v4785 = vld [vmem:[%s3 + $0x8c] sm:$0xf]
  %v4786 = vld [vmem:[%s3 + $0x90] sm:$0xff]
  %v4787 = vld [vmem:[%s3 + $0x98] sm:$0xf]
  %v4788 = vld [vmem:[%s3 + $0x9c] sm:$0xff]
  %v4789 = vld [vmem:[%s3 + $0xa4] sm:$0xf]
  %v4790 = vld [vmem:[%s3 + $0xa8] sm:$0xff]
  %v4791 = vld [vmem:[%s3 + $0xb0] sm:$0xf]
  %v4792 = vld [vmem:[%s3 + $0xb4] sm:$0xff]
  %v4793 = vld [vmem:[%s3 + $0xbc] sm:$0xf]
  %v4794 = vld [vmem:[%s4] sm:$0x7]
  %v4796 = vperm.slane %v4794, 0
  %v4797 = vperm.slane %v4794, 1
  %v4798 = vperm.slane %v4794, 2
  %v4834 = vunpack.c.l.b16 %v4762
  %v4835 = vunpack.c.h.b16 %v4762
  %v4836 = vunpack.c.l.b16 %v4763
  %v4837 = vunpack.c.l.b16 %v4764
  %v4838 = vunpack.c.h.b16 %v4764
  %v4839 = vunpack.c.l.b16 %v4765
  %v4840 = vunpack.c.l.b16 %v4766
  %v4841 = vunpack.c.h.b16 %v4766
  %v4842 = vunpack.c.l.b16 %v4767
  %v4843 = vunpack.c.l.b16 %v4768
  %v4844 = vunpack.c.h.b16 %v4768
  %v4845 = vunpack.c.l.b16 %v4769
  %v4846 = vunpack.c.l.b16 %v4770
  %v4847 = vunpack.c.h.b16 %v4770
  %v4848 = vunpack.c.l.b16 %v4771
  %v4849 = vunpack.c.l.b16 %v4772
  %v4850 = vunpack.c.h.b16 %v4772
  %v4851 = vunpack.c.l.b16 %v4773
  %v4852 = vunpack.c.l.b16 %v4774
  %v4853 = vunpack.c.h.b16 %v4774
  %v4854 = vunpack.c.l.b16 %v4775
  %v4855 = vunpack.c.l.b16 %v4776
  %v4856 = vunpack.c.h.b16 %v4776
  %v4857 = vunpack.c.l.b16 %v4777
  %v4858 = vunpack.c.l.b16 %v4778
  %v4859 = vunpack.c.h.b16 %v4778
  %v4860 = vunpack.c.l.b16 %v4779
  %v4861 = vunpack.c.l.b16 %v4780
  %v4862 = vunpack.c.h.b16 %v4780
  %v4863 = vunpack.c.l.b16 %v4781
  %v4864 = vunpack.c.l.b16 %v4782
  %v4865 = vunpack.c.h.b16 %v4782
  %v4866 = vunpack.c.l.b16 %v4783
  %v4867 = vunpack.c.l.b16 %v4784
  %v4868 = vunpack.c.h.b16 %v4784
  %v4869 = vunpack.c.l.b16 %v4785
  %v4870 = vunpack.c.l.b16 %v4786
  %v4871 = vunpack.c.h.b16 %v4786
  %v4872 = vunpack.c.l.b16 %v4787
  %v4873 = vunpack.c.l.b16 %v4788
  %v4874 = vunpack.c.h.b16 %v4788
  %v4875 = vunpack.c.l.b16 %v4789
  %v4876 = vunpack.c.l.b16 %v4790
  %v4877 = vunpack.c.h.b16 %v4790
  %v4878 = vunpack.c.l.b16 %v4791
  %v4879 = vunpack.c.l.b16 %v4792
  %v4880 = vunpack.c.h.b16 %v4792
  %v4881 = vunpack.c.l.b16 %v4793
  %v4882 = vpack.c.b16 %v4837, %v4834
  %v4883 = vpack.c.b16 %v4838, %v4835
  %v4884 = vpack.c.b16 %v4839, %v4836
  %v4885 = vpack.c.b16 %v4843, %v4840
  %v4886 = vpack.c.b16 %v4844, %v4841
  %v4887 = vpack.c.b16 %v4845, %v4842
  %v4888 = vpack.c.b16 %v4849, %v4846
  %v4889 = vpack.c.b16 %v4850, %v4847
  %v4890 = vpack.c.b16 %v4851, %v4848
  %v4891 = vpack.c.b16 %v4855, %v4852
  %v4892 = vpack.c.b16 %v4856, %v4853
  %v4893 = vpack.c.b16 %v4857, %v4854
  %v4894 = vpack.c.b16 %v4861, %v4858
  %v4895 = vpack.c.b16 %v4862, %v4859
  %v4896 = vpack.c.b16 %v4863, %v4860
  %v4897 = vpack.c.b16 %v4867, %v4864
  %v4898 = vpack.c.b16 %v4868, %v4865
  %v4899 = vpack.c.b16 %v4869, %v4866
  %v4900 = vpack.c.b16 %v4873, %v4870
  %v4901 = vpack.c.b16 %v4874, %v4871
  %v4902 = vpack.c.b16 %v4875, %v4872
  %v4903 = vpack.c.b16 %v4879, %v4876
  %v4904 = vpack.c.b16 %v4880, %v4877
  %v4905 = vpack.c.b16 %v4881, %v4878
  %4930 = vmatpush.bf16.msra.mxu0 %v4903
  %4931 = vmatpush.bf16.msra.mxu0 %v4900
  %4932 = vmatpush.bf16.msra.mxu0 %v4897
  %4933 = vmatpush.bf16.msra.mxu0 %v4894
  %4934 = vmatpush.bf16.msra.mxu0 %v4891
  %4935 = vmatpush.bf16.msra.mxu0 %v4888
  %4936 = vmatpush.bf16.msra.mxu0 %v4885
  %4937 = vmatpush.bf16.msra.mxu0 %v4882
  %4938 = vmatmul.bf16.gmra.mxu0 %v4761
  %v4939 = vpop.f32.mrf.mxu0
  %v4940 = vadd.f32 %v4796, %v4939
  %v4941 = vpop.f32.mrf.mxu0
  %v4942 = vadd.f32 %v4796, %v4941
  %4943 = vdwg.mxu0
  %4944 = vmatpush.bf16.msra.mxu0 %v4904
  %4945 = vmatpush.bf16.msra.mxu0 %v4901
  %4946 = vmatpush.bf16.msra.mxu0 %v4898
  %4947 = vmatpush.bf16.msra.mxu0 %v4895
  %4948 = vmatpush.bf16.msra.mxu0 %v4892
  %4949 = vmatpush.bf16.msra.mxu0 %v4889
  %4950 = vmatpush.bf16.msra.mxu0 %v4886
  %4951 = vmatpush.bf16.msra.mxu0 %v4883
  %4952 = vmatmul.bf16.gmra.mxu0 %v4761
  %v4953 = vpop.f32.mrf.mxu0
  %v4954 = vadd.f32 %v4797, %v4953
  %v4955 = vpop.f32.mrf.mxu0
  %v4956 = vadd.f32 %v4797, %v4955
  %4957 = vdwg.mxu0
  %4958 = vmatpush.bf16.msra.mxu0 %v4905
  %4959 = vmatpush.bf16.msra.mxu0 %v4902
  %4960 = vmatpush.bf16.msra.mxu0 %v4899
  %4961 = vmatpush.bf16.msra.mxu0 %v4896
  %4962 = vmatpush.bf16.msra.mxu0 %v4893
  %4963 = vmatpush.bf16.msra.mxu0 %v4890
  %4964 = vmatpush.bf16.msra.mxu0 %v4887
  %4965 = vmatpush.bf16.msra.mxu0 %v4884
  %4966 = vmatmul.bf16.gmra.mxu0 %v4761
  %v4967 = vpop.f32.mrf.mxu0
  %v4968 = vadd.f32 %v4798, %v4967
  %v4969 = vpop.f32.mrf.mxu0
  %v4970 = vadd.f32 %v4798, %v4969
  %4971 = vdwg.mxu0
  %v4972 = vpack.c.bf16 %v4732, %v4731
  %v4973 = vld [vmem:[%s1130] sm:$0xff]
  %v4974 = vld [vmem:[%s1130 + $0x8] sm:$0xf]
  %v4975 = vld [vmem:[%s1130 + $0xc] sm:$0xff]
  %v4976 = vld [vmem:[%s1130 + $0x14] sm:$0xf]
  %v4977 = vld [vmem:[%s1130 + $0x18] sm:$0xff]
  %v4978 = vld [vmem:[%s1130 + $0x20] sm:$0xf]
  %v4979 = vld [vmem:[%s1130 + $0x24] sm:$0xff]
  %v4980 = vld [vmem:[%s1130 + $0x2c] sm:$0xf]
  %v4981 = vld [vmem:[%s1130 + $0x30] sm:$0xff]
  %v4982 = vld [vmem:[%s1130 + $0x38] sm:$0xf]
  %v4983 = vld [vmem:[%s1130 + $0x3c] sm:$0xff]
  %v4984 = vld [vmem:[%s1130 + $0x44] sm:$0xf]
  %v4985 = vld [vmem:[%s1130 + $0x48] sm:$0xff]
  %v4986 = vld [vmem:[%s1130 + $0x50] sm:$0xf]
  %v4987 = vld [vmem:[%s1130 + $0x54] sm:$0xff]
  %v4988 = vld [vmem:[%s1130 + $0x5c] sm:$0xf]
  %v4989 = vld [vmem:[%s1130 + $0x60] sm:$0xff]
  %v4990 = vld [vmem:[%s1130 + $0x68] sm:$0xf]
  %v4991 = vld [vmem:[%s1130 + $0x6c] sm:$0xff]
  %v4992 = vld [vmem:[%s1130 + $0x74] sm:$0xf]
  %v4993 = vld [vmem:[%s1130 + $0x78] sm:$0xff]
  %v4994 = vld [vmem:[%s1130 + $0x80] sm:$0xf]
  %v4995 = vld [vmem:[%s1130 + $0x84] sm:$0xff]
  %v4996 = vld [vmem:[%s1130 + $0x8c] sm:$0xf]
  %v4997 = vld [vmem:[%s1130 + $0x90] sm:$0xff]
  %v4998 = vld [vmem:[%s1130 + $0x98] sm:$0xf]
  %v4999 = vld [vmem:[%s1130 + $0x9c] sm:$0xff]
  %v5000 = vld [vmem:[%s1130 + $0xa4] sm:$0xf]
  %v5001 = vld [vmem:[%s1130 + $0xa8] sm:$0xff]
  %v5002 = vld [vmem:[%s1130 + $0xb0] sm:$0xf]
  %v5003 = vld [vmem:[%s1130 + $0xb4] sm:$0xff]
  %v5004 = vld [vmem:[%s1130 + $0xbc] sm:$0xf]
  %v5005 = vld [vmem:[%s1163] sm:$0x7]
  %v5007 = vperm.slane %v5005, 0
  %v5008 = vperm.slane %v5005, 1
  %v5009 = vperm.slane %v5005, 2
  %v5045 = vunpack.c.l.b16 %v4973
  %v5046 = vunpack.c.h.b16 %v4973
  %v5047 = vunpack.c.l.b16 %v4974
  %v5048 = vunpack.c.l.b16 %v4975
  %v5049 = vunpack.c.h.b16 %v4975
  %v5050 = vunpack.c.l.b16 %v4976
  %v5051 = vunpack.c.l.b16 %v4977
  %v5052 = vunpack.c.h.b16 %v4977
  %v5053 = vunpack.c.l.b16 %v4978
  %v5054 = vunpack.c.l.b16 %v4979
  %v5055 = vunpack.c.h.b16 %v4979
  %v5056 = vunpack.c.l.b16 %v4980
  %v5057 = vunpack.c.l.b16 %v4981
  %v5058 = vunpack.c.h.b16 %v4981
  %v5059 = vunpack.c.l.b16 %v4982
  %v5060 = vunpack.c.l.b16 %v4983
  %v5061 = vunpack.c.h.b16 %v4983
  %v5062 = vunpack.c.l.b16 %v4984
  %v5063 = vunpack.c.l.b16 %v4985
  %v5064 = vunpack.c.h.b16 %v4985
  %v5065 = vunpack.c.l.b16 %v4986
  %v5066 = vunpack.c.l.b16 %v4987
  %v5067 = vunpack.c.h.b16 %v4987
  %v5068 = vunpack.c.l.b16 %v4988
  %v5069 = vunpack.c.l.b16 %v4989
  %v5070 = vunpack.c.h.b16 %v4989
  %v5071 = vunpack.c.l.b16 %v4990
  %v5072 = vunpack.c.l.b16 %v4991
  %v5073 = vunpack.c.h.b16 %v4991
  %v5074 = vunpack.c.l.b16 %v4992
  %v5075 = vunpack.c.l.b16 %v4993
  %v5076 = vunpack.c.h.b16 %v4993
  %v5077 = vunpack.c.l.b16 %v4994
  %v5078 = vunpack.c.l.b16 %v4995
  %v5079 = vunpack.c.h.b16 %v4995
  %v5080 = vunpack.c.l.b16 %v4996
  %v5081 = vunpack.c.l.b16 %v4997
  %v5082 = vunpack.c.h.b16 %v4997
  %v5083 = vunpack.c.l.b16 %v4998
  %v5084 = vunpack.c.l.b16 %v4999
  %v5085 = vunpack.c.h.b16 %v4999
  %v5086 = vunpack.c.l.b16 %v5000
  %v5087 = vunpack.c.l.b16 %v5001
  %v5088 = vunpack.c.h.b16 %v5001
  %v5089 = vunpack.c.l.b16 %v5002
  %v5090 = vunpack.c.l.b16 %v5003
  %v5091 = vunpack.c.h.b16 %v5003
  %v5092 = vunpack.c.l.b16 %v5004
  %v5093 = vpack.c.b16 %v5048, %v5045
  %v5094 = vpack.c.b16 %v5049, %v5046
  %v5095 = vpack.c.b16 %v5050, %v5047
  %v5096 = vpack.c.b16 %v5054, %v5051
  %v5097 = vpack.c.b16 %v5055, %v5052
  %v5098 = vpack.c.b16 %v5056, %v5053
  %v5099 = vpack.c.b16 %v5060, %v5057
  %v5100 = vpack.c.b16 %v5061, %v5058
  %v5101 = vpack.c.b16 %v5062, %v5059
  %v5102 = vpack.c.b16 %v5066, %v5063
  %v5103 = vpack.c.b16 %v5067, %v5064
  %v5104 = vpack.c.b16 %v5068, %v5065
  %v5105 = vpack.c.b16 %v5072, %v5069
  %v5106 = vpack.c.b16 %v5073, %v5070
  %v5107 = vpack.c.b16 %v5074, %v5071
  %v5108 = vpack.c.b16 %v5078, %v5075
  %v5109 = vpack.c.b16 %v5079, %v5076
  %v5110 = vpack.c.b16 %v5080, %v5077
  %v5111 = vpack.c.b16 %v5084, %v5081
  %v5112 = vpack.c.b16 %v5085, %v5082
  %v5113 = vpack.c.b16 %v5086, %v5083
  %v5114 = vpack.c.b16 %v5090, %v5087
  %v5115 = vpack.c.b16 %v5091, %v5088
  %v5116 = vpack.c.b16 %v5092, %v5089
  %5141 = vmatpush.bf16.msra.mxu0 %v5114
  %5142 = vmatpush.bf16.msra.mxu0 %v5111
  %5143 = vmatpush.bf16.msra.mxu0 %v5108
  %5144 = vmatpush.bf16.msra.mxu0 %v5105
  %5145 = vmatpush.bf16.msra.mxu0 %v5102
  %5146 = vmatpush.bf16.msra.mxu0 %v5099
  %5147 = vmatpush.bf16.msra.mxu0 %v5096
  %5148 = vmatpush.bf16.msra.mxu0 %v5093
  %5149 = vmatmul.bf16.gmra.mxu0 %v4972
  %v5150 = vpop.f32.mrf.mxu0
  %v5151 = vadd.f32 %v5007, %v5150
  %v5152 = vpop.f32.mrf.mxu0
  %v5153 = vadd.f32 %v5007, %v5152
  %5154 = vdwg.mxu0
  %5155 = vmatpush.bf16.msra.mxu0 %v5115
  %5156 = vmatpush.bf16.msra.mxu0 %v5112
  %5157 = vmatpush.bf16.msra.mxu0 %v5109
  %5158 = vmatpush.bf16.msra.mxu0 %v5106
  %5159 = vmatpush.bf16.msra.mxu0 %v5103
  %5160 = vmatpush.bf16.msra.mxu0 %v5100
  %5161 = vmatpush.bf16.msra.mxu0 %v5097
  %5162 = vmatpush.bf16.msra.mxu0 %v5094
  %5163 = vmatmul.bf16.gmra.mxu0 %v4972
  %v5164 = vpop.f32.mrf.mxu0
  %v5165 = vadd.f32 %v5008, %v5164
  %v5166 = vpop.f32.mrf.mxu0
  %v5167 = vadd.f32 %v5008, %v5166
  %5168 = vdwg.mxu0
  %5169 = vmatpush.bf16.msra.mxu0 %v5116
  %5170 = vmatpush.bf16.msra.mxu0 %v5113
  %5171 = vmatpush.bf16.msra.mxu0 %v5110
  %5172 = vmatpush.bf16.msra.mxu0 %v5107
  %5173 = vmatpush.bf16.msra.mxu0 %v5104
  %5174 = vmatpush.bf16.msra.mxu0 %v5101
  %5175 = vmatpush.bf16.msra.mxu0 %v5098
  %5176 = vmatpush.bf16.msra.mxu0 %v5095
  %5177 = vmatmul.bf16.gmra.mxu0 %v4972
  %v5178 = vpop.f32.mrf.mxu0
  %v5179 = vadd.f32 %v5009, %v5178
  %v5180 = vpop.f32.mrf.mxu0
  %v5181 = vadd.f32 %v5009, %v5180
  %5182 = vdwg.mxu0
  %v5183 = vadd.f32 %v4747, %v4940
  %v5184 = vadd.f32 %v4750, %v4942
  %v5185 = vxor.u32 %v5183, 2147483648
  %v5186 = vxor.u32 %v5184, 2147483648
  %v5187 = vmul.f32 %v5185, 1.442695
  %v5188 = vpow.pop %v5187
  %v5189 = vmul.f32 %v5186, 1.442695
  %v5190 = vpow.pop %v5189
  %v5191 = vadd.f32 %v5188, 1.0
  %v5192 = vadd.f32 %v5190, 1.0
  %v5193 = vrcp.pop %v5191
  %v5194 = vmul.f32 %v5191, %v5193
  %v5195 = vsub.f32 1.0, %v5194
  %v5196 = vmul.f32 %v5193, %v5195
  %v5197 = vadd.f32 %v5193, %v5196
  %vm5198 = vweird.f32 %v5191
  %vm5199 = vweird.f32 %v5193
  %vm5200 = vmor %vm5198, %vm5199
  %v5201 = vsel %vm5200, %v5193, %v5197
  %v5202 = vand.u32 2147483647, %v5191
  %vm5203 = vcmp.eq.f32.partialorder %v5202, 8.507059e+37
  %v5204 = vand.u32 %v5191, 2147483648
  %v5205 = vor.u32 1.1754944e-38, %v5204
  %v5206 = vsel %vm5203, %v5205, %v5201
  %v5207 = vmul.f32 1.0, %v5206
  %v5208 = vrcp.pop %v5192
  %v5209 = vmul.f32 %v5192, %v5208
  %v5210 = vsub.f32 1.0, %v5209
  %v5211 = vmul.f32 %v5208, %v5210
  %v5212 = vadd.f32 %v5208, %v5211
  %vm5213 = vweird.f32 %v5192
  %vm5214 = vweird.f32 %v5208
  %vm5215 = vmor %vm5213, %vm5214
  %v5216 = vsel %vm5215, %v5208, %v5212
  %v5217 = vand.u32 2147483647, %v5192
  %vm5218 = vcmp.eq.f32.partialorder %v5217, 8.507059e+37
  %v5219 = vand.u32 %v5192, 2147483648
  %v5220 = vor.u32 1.1754944e-38, %v5219
  %v5221 = vsel %vm5218, %v5220, %v5216
  %v5222 = vmul.f32 1.0, %v5221
  %v5223 = vadd.f32 %v4748, %v4954
  %v5224 = vadd.f32 %v4751, %v4956
  %v5225 = vxor.u32 %v5223, 2147483648
  %v5226 = vxor.u32 %v5224, 2147483648
  %v5227 = vmul.f32 %v5225, 1.442695
  %v5228 = vpow.pop %v5227
  %v5229 = vmul.f32 %v5226, 1.442695
  %v5230 = vpow.pop %v5229
  %v5231 = vadd.f32 %v5228, 1.0
  %v5232 = vadd.f32 %v5230, 1.0
  %v5233 = vrcp.pop %v5231
  %v5234 = vmul.f32 %v5231, %v5233
  %v5235 = vsub.f32 1.0, %v5234
  %v5236 = vmul.f32 %v5233, %v5235
  %v5237 = vadd.f32 %v5233, %v5236
  %vm5238 = vweird.f32 %v5231
  %vm5239 = vweird.f32 %v5233
  %vm5240 = vmor %vm5238, %vm5239
  %v5241 = vsel %vm5240, %v5233, %v5237
  %v5242 = vand.u32 2147483647, %v5231
  %vm5243 = vcmp.eq.f32.partialorder %v5242, 8.507059e+37
  %v5244 = vand.u32 %v5231, 2147483648
  %v5245 = vor.u32 1.1754944e-38, %v5244
  %v5246 = vsel %vm5243, %v5245, %v5241
  %v5247 = vmul.f32 1.0, %v5246
  %v5248 = vrcp.pop %v5232
  %v5249 = vmul.f32 %v5232, %v5248
  %v5250 = vsub.f32 1.0, %v5249
  %v5251 = vmul.f32 %v5248, %v5250
  %v5252 = vadd.f32 %v5248, %v5251
  %vm5253 = vweird.f32 %v5232
  %vm5254 = vweird.f32 %v5248
  %vm5255 = vmor %vm5253, %vm5254
  %v5256 = vsel %vm5255, %v5248, %v5252
  %v5257 = vand.u32 2147483647, %v5232
  %vm5258 = vcmp.eq.f32.partialorder %v5257, 8.507059e+37
  %v5259 = vand.u32 %v5232, 2147483648
  %v5260 = vor.u32 1.1754944e-38, %v5259
  %v5261 = vsel %vm5258, %v5260, %v5256
  %v5262 = vmul.f32 1.0, %v5261
  %v5263 = vmul.f32 %v5207, %v4968
  %v5264 = vmul.f32 %v5222, %v4970
  %v5265 = vadd.f32 %v4749, %v5263
  %v5266 = vadd.f32 %v4752, %v5264
  %v5267 = vtanh.pop %v5265
  %v5268 = vtanh.pop %v5266
  %v5269 = vsub.f32 1.0, %v5247
  %v5270 = vsub.f32 1.0, %v5262
  %v5271 = vmul.f32 %v5269, %v5267
  %v5272 = vmul.f32 %v5270, %v5268
  %v5273 = vmul.f32 %v5247, %v4637
  %v5274 = vmul.f32 %v5262, %v4638
  %v5275 = vadd.f32 %v5271, %v5273
  %v5276 = vadd.f32 %v5272, %v5274
  %v5277 = vadd.f32 %v4755, %v5151
  %v5278 = vadd.f32 %v4758, %v5153
  %v5279 = vxor.u32 %v5277, 2147483648
  %v5280 = vxor.u32 %v5278, 2147483648
  %v5281 = vmul.f32 %v5279, 1.442695
  %v5282 = vpow.pop %v5281
  %v5283 = vmul.f32 %v5280, 1.442695
  %v5284 = vpow.pop %v5283
  %v5285 = vadd.f32 %v5282, 1.0
  %v5286 = vadd.f32 %v5284, 1.0
  %v5287 = vrcp.pop %v5285
  %v5288 = vmul.f32 %v5285, %v5287
  %v5289 = vsub.f32 1.0, %v5288
  %v5290 = vmul.f32 %v5287, %v5289
  %v5291 = vadd.f32 %v5287, %v5290
  %vm5292 = vweird.f32 %v5285
  %vm5293 = vweird.f32 %v5287
  %vm5294 = vmor %vm5292, %vm5293
  %v5295 = vsel %vm5294, %v5287, %v5291
  %v5296 = vand.u32 2147483647, %v5285
  %vm5297 = vcmp.eq.f32.partialorder %v5296, 8.507059e+37
  %v5298 = vand.u32 %v5285, 2147483648
  %v5299 = vor.u32 1.1754944e-38, %v5298
  %v5300 = vsel %vm5297, %v5299, %v5295
  %v5301 = vmul.f32 1.0, %v5300
  %v5302 = vrcp.pop %v5286
  %v5303 = vmul.f32 %v5286, %v5302
  %v5304 = vsub.f32 1.0, %v5303
  %v5305 = vmul.f32 %v5302, %v5304
  %v5306 = vadd.f32 %v5302, %v5305
  %vm5307 = vweird.f32 %v5286
  %vm5308 = vweird.f32 %v5302
  %vm5309 = vmor %vm5307, %vm5308
  %v5310 = vsel %vm5309, %v5302, %v5306
  %v5311 = vand.u32 2147483647, %v5286
  %vm5312 = vcmp.eq.f32.partialorder %v5311, 8.507059e+37
  %v5313 = vand.u32 %v5286, 2147483648
  %v5314 = vor.u32 1.1754944e-38, %v5313
  %v5315 = vsel %vm5312, %v5314, %v5310
  %v5316 = vmul.f32 1.0, %v5315
  %v5317 = vadd.f32 %v4756, %v5165
  %v5318 = vadd.f32 %v4759, %v5167
  %v5319 = vxor.u32 %v5317, 2147483648
  %v5320 = vxor.u32 %v5318, 2147483648
  %v5321 = vmul.f32 %v5319, 1.442695
  %v5322 = vpow.pop %v5321
  %v5323 = vmul.f32 %v5320, 1.442695
  %v5324 = vpow.pop %v5323
  %v5325 = vadd.f32 %v5322, 1.0
  %v5326 = vadd.f32 %v5324, 1.0
  %v5327 = vrcp.pop %v5325
  %v5328 = vmul.f32 %v5325, %v5327
  %v5329 = vsub.f32 1.0, %v5328
  %v5330 = vmul.f32 %v5327, %v5329
  %v5331 = vadd.f32 %v5327, %v5330
  %vm5332 = vweird.f32 %v5325
  %vm5333 = vweird.f32 %v5327
  %vm5334 = vmor %vm5332, %vm5333
  %v5335 = vsel %vm5334, %v5327, %v5331
  %v5336 = vand.u32 2147483647, %v5325
  %vm5337 = vcmp.eq.f32.partialorder %v5336, 8.507059e+37
  %v5338 = vand.u32 %v5325, 2147483648
  %v5339 = vor.u32 1.1754944e-38, %v5338
  %v5340 = vsel %vm5337, %v5339, %v5335
  %v5341 = vmul.f32 1.0, %v5340
  %v5342 = vrcp.pop %v5326
  %v5343 = vmul.f32 %v5326, %v5342
  %v5344 = vsub.f32 1.0, %v5343
  %v5345 = vmul.f32 %v5342, %v5344
  %v5346 = vadd.f32 %v5342, %v5345
  %vm5347 = vweird.f32 %v5326
  %vm5348 = vweird.f32 %v5342
  %vm5349 = vmor %vm5347, %vm5348
  %v5350 = vsel %vm5349, %v5342, %v5346
  %v5351 = vand.u32 2147483647, %v5326
  %vm5352 = vcmp.eq.f32.partialorder %v5351, 8.507059e+37
  %v5353 = vand.u32 %v5326, 2147483648
  %v5354 = vor.u32 1.1754944e-38, %v5353
  %v5355 = vsel %vm5352, %v5354, %v5350
  %v5356 = vmul.f32 1.0, %v5355
  %v5357 = vmul.f32 %v5301, %v5179
  %v5358 = vmul.f32 %v5316, %v5181
  %v5359 = vadd.f32 %v4757, %v5357
  %v5360 = vadd.f32 %v4760, %v5358
  %v5361 = vtanh.pop %v5359
  %v5362 = vtanh.pop %v5360
  %v5363 = vsub.f32 1.0, %v5341
  %v5364 = vsub.f32 1.0, %v5356
  %v5365 = vmul.f32 %v5363, %v5361
  %v5366 = vmul.f32 %v5364, %v5362
  %v5367 = vmul.f32 %v5341, %v4731
  %v5368 = vmul.f32 %v5356, %v4732
  %v5369 = vadd.f32 %v5365, %v5367
  %v5370 = vadd.f32 %v5366, %v5368
  %v5371 = vld [vmem:[%s2178] sm:$0xff]
  %v5372 = vld [vmem:[%s2178 + $0x8] sm:$0xff]
  %v5373 = vadd.f32 %v5371, %v5275
  %v5374 = vadd.f32 %v5372, %v5276
  %5375 = vst [vmem:[%s2178] sm:$0xff] %v5373
  %5376 = vst [vmem:[%s2178 + $0x8] sm:$0xff] %v5374
  %v5377 = vld [vmem:[%s2171] sm:$0xff]
  %v5378 = vld [vmem:[%s2171 + $0x8] sm:$0xff]
  %v5379 = vadd.f32 %v5377, %v5369
  %v5380 = vadd.f32 %v5378, %v5370
  %5381 = vst [vmem:[%s2171] sm:$0xff] %v5379
  %5382 = vst [vmem:[%s2171 + $0x8] sm:$0xff] %v5380
  %s5383 = smul.addr %s909, 8
  %s5384 = scalar_lea.vmem [#allocation2], %s5383
  %v5385 = vld [vmem:[%s5384] sm:$0xff]
  %v5386 = vld [vmem:[%s5384 + $0x8] sm:$0xff]
  %v5387 = vld [vmem:[%s5384 + $0x10] sm:$0xff]
  %v5388 = vld [vmem:[%s5384 + $0x18] sm:$0xff]
  %v5389 = vld [vmem:[%s5384 + $0x20] sm:$0xff]
  %v5390 = vld [vmem:[%s5384 + $0x28] sm:$0xff]
  %s5391 = smul.addr %s900, 8
  %s5392 = scalar_lea.vmem [#allocation3], %s5391
  %v5393 = vld [vmem:[%s5392] sm:$0xff]
  %v5394 = vld [vmem:[%s5392 + $0x8] sm:$0xff]
  %v5395 = vld [vmem:[%s5392 + $0x10] sm:$0xff]
  %v5396 = vld [vmem:[%s5392 + $0x18] sm:$0xff]
  %v5397 = vld [vmem:[%s5392 + $0x20] sm:$0xff]
  %v5398 = vld [vmem:[%s5392 + $0x28] sm:$0xff]
  %v5399 = vpack.c.bf16 %v5276, %v5275
  %v5400 = vld [vmem:[%s3] sm:$0xff]
  %v5401 = vld [vmem:[%s3 + $0x8] sm:$0xf]
  %v5402 = vld [vmem:[%s3 + $0xc] sm:$0xff]
  %v5403 = vld [vmem:[%s3 + $0x14] sm:$0xf]
  %v5404 = vld [vmem:[%s3 + $0x18] sm:$0xff]
  %v5405 = vld [vmem:[%s3 + $0x20] sm:$0xf]
  %v5406 = vld [vmem:[%s3 + $0x24] sm:$0xff]
  %v5407 = vld [vmem:[%s3 + $0x2c] sm:$0xf]
  %v5408 = vld [vmem:[%s3 + $0x30] sm:$0xff]
  %v5409 = vld [vmem:[%s3 + $0x38] sm:$0xf]
  %v5410 = vld [vmem:[%s3 + $0x3c] sm:$0xff]
  %v5411 = vld [vmem:[%s3 + $0x44] sm:$0xf]
  %v5412 = vld [vmem:[%s3 + $0x48] sm:$0xff]
  %v5413 = vld [vmem:[%s3 + $0x50] sm:$0xf]
  %v5414 = vld [vmem:[%s3 + $0x54] sm:$0xff]
  %v5415 = vld [vmem:[%s3 + $0x5c] sm:$0xf]
  %v5416 = vld [vmem:[%s3 + $0x60] sm:$0xff]
  %v5417 = vld [vmem:[%s3 + $0x68] sm:$0xf]
  %v5418 = vld [vmem:[%s3 + $0x6c] sm:$0xff]
  %v5419 = vld [vmem:[%s3 + $0x74] sm:$0xf]
  %v5420 = vld [vmem:[%s3 + $0x78] sm:$0xff]
  %v5421 = vld [vmem:[%s3 + $0x80] sm:$0xf]
  %v5422 = vld [vmem:[%s3 + $0x84] sm:$0xff]
  %v5423 = vld [vmem:[%s3 + $0x8c] sm:$0xf]
  %v5424 = vld [vmem:[%s3 + $0x90] sm:$0xff]
  %v5425 = vld [vmem:[%s3 + $0x98] sm:$0xf]
  %v5426 = vld [vmem:[%s3 + $0x9c] sm:$0xff]
  %v5427 = vld [vmem:[%s3 + $0xa4] sm:$0xf]
  %v5428 = vld [vmem:[%s3 + $0xa8] sm:$0xff]
  %v5429 = vld [vmem:[%s3 + $0xb0] sm:$0xf]
  %v5430 = vld [vmem:[%s3 + $0xb4] sm:$0xff]
  %v5431 = vld [vmem:[%s3 + $0xbc] sm:$0xf]
  %v5432 = vld [vmem:[%s4] sm:$0x7]
  %v5434 = vperm.slane %v5432, 0
  %v5435 = vperm.slane %v5432, 1
  %v5436 = vperm.slane %v5432, 2
  %v5472 = vunpack.c.l.b16 %v5400
  %v5473 = vunpack.c.h.b16 %v5400
  %v5474 = vunpack.c.l.b16 %v5401
  %v5475 = vunpack.c.l.b16 %v5402
  %v5476 = vunpack.c.h.b16 %v5402
  %v5477 = vunpack.c.l.b16 %v5403
  %v5478 = vunpack.c.l.b16 %v5404
  %v5479 = vunpack.c.h.b16 %v5404
  %v5480 = vunpack.c.l.b16 %v5405
  %v5481 = vunpack.c.l.b16 %v5406
  %v5482 = vunpack.c.h.b16 %v5406
  %v5483 = vunpack.c.l.b16 %v5407
  %v5484 = vunpack.c.l.b16 %v5408
  %v5485 = vunpack.c.h.b16 %v5408
  %v5486 = vunpack.c.l.b16 %v5409
  %v5487 = vunpack.c.l.b16 %v5410
  %v5488 = vunpack.c.h.b16 %v5410
  %v5489 = vunpack.c.l.b16 %v5411
  %v5490 = vunpack.c.l.b16 %v5412
  %v5491 = vunpack.c.h.b16 %v5412
  %v5492 = vunpack.c.l.b16 %v5413
  %v5493 = vunpack.c.l.b16 %v5414
  %v5494 = vunpack.c.h.b16 %v5414
  %v5495 = vunpack.c.l.b16 %v5415
  %v5496 = vunpack.c.l.b16 %v5416
  %v5497 = vunpack.c.h.b16 %v5416
  %v5498 = vunpack.c.l.b16 %v5417
  %v5499 = vunpack.c.l.b16 %v5418
  %v5500 = vunpack.c.h.b16 %v5418
  %v5501 = vunpack.c.l.b16 %v5419
  %v5502 = vunpack.c.l.b16 %v5420
  %v5503 = vunpack.c.h.b16 %v5420
  %v5504 = vunpack.c.l.b16 %v5421
  %v5505 = vunpack.c.l.b16 %v5422
  %v5506 = vunpack.c.h.b16 %v5422
  %v5507 = vunpack.c.l.b16 %v5423
  %v5508 = vunpack.c.l.b16 %v5424
  %v5509 = vunpack.c.h.b16 %v5424
  %v5510 = vunpack.c.l.b16 %v5425
  %v5511 = vunpack.c.l.b16 %v5426
  %v5512 = vunpack.c.h.b16 %v5426
  %v5513 = vunpack.c.l.b16 %v5427
  %v5514 = vunpack.c.l.b16 %v5428
  %v5515 = vunpack.c.h.b16 %v5428
  %v5516 = vunpack.c.l.b16 %v5429
  %v5517 = vunpack.c.l.b16 %v5430
  %v5518 = vunpack.c.h.b16 %v5430
  %v5519 = vunpack.c.l.b16 %v5431
  %v5520 = vpack.c.b16 %v5475, %v5472
  %v5521 = vpack.c.b16 %v5476, %v5473
  %v5522 = vpack.c.b16 %v5477, %v5474
  %v5523 = vpack.c.b16 %v5481, %v5478
  %v5524 = vpack.c.b16 %v5482, %v5479
  %v5525 = vpack.c.b16 %v5483, %v5480
  %v5526 = vpack.c.b16 %v5487, %v5484
  %v5527 = vpack.c.b16 %v5488, %v5485
  %v5528 = vpack.c.b16 %v5489, %v5486
  %v5529 = vpack.c.b16 %v5493, %v5490
  %v5530 = vpack.c.b16 %v5494, %v5491
  %v5531 = vpack.c.b16 %v5495, %v5492
  %v5532 = vpack.c.b16 %v5499, %v5496
  %v5533 = vpack.c.b16 %v5500, %v5497
  %v5534 = vpack.c.b16 %v5501, %v5498
  %v5535 = vpack.c.b16 %v5505, %v5502
  %v5536 = vpack.c.b16 %v5506, %v5503
  %v5537 = vpack.c.b16 %v5507, %v5504
  %v5538 = vpack.c.b16 %v5511, %v5508
  %v5539 = vpack.c.b16 %v5512, %v5509
  %v5540 = vpack.c.b16 %v5513, %v5510
  %v5541 = vpack.c.b16 %v5517, %v5514
  %v5542 = vpack.c.b16 %v5518, %v5515
  %v5543 = vpack.c.b16 %v5519, %v5516
  %5568 = vmatpush.bf16.msra.mxu0 %v5541
  %5569 = vmatpush.bf16.msra.mxu0 %v5538
  %5570 = vmatpush.bf16.msra.mxu0 %v5535
  %5571 = vmatpush.bf16.msra.mxu0 %v5532
  %5572 = vmatpush.bf16.msra.mxu0 %v5529
  %5573 = vmatpush.bf16.msra.mxu0 %v5526
  %5574 = vmatpush.bf16.msra.mxu0 %v5523
  %5575 = vmatpush.bf16.msra.mxu0 %v5520
  %5576 = vmatmul.bf16.gmra.mxu0 %v5399
  %v5577 = vpop.f32.mrf.mxu0
  %v5578 = vadd.f32 %v5434, %v5577
  %v5579 = vpop.f32.mrf.mxu0
  %v5580 = vadd.f32 %v5434, %v5579
  %5581 = vdwg.mxu0
  %5582 = vmatpush.bf16.msra.mxu0 %v5542
  %5583 = vmatpush.bf16.msra.mxu0 %v5539
  %5584 = vmatpush.bf16.msra.mxu0 %v5536
  %5585 = vmatpush.bf16.msra.mxu0 %v5533
  %5586 = vmatpush.bf16.msra.mxu0 %v5530
  %5587 = vmatpush.bf16.msra.mxu0 %v5527
  %5588 = vmatpush.bf16.msra.mxu0 %v5524
  %5589 = vmatpush.bf16.msra.mxu0 %v5521
  %5590 = vmatmul.bf16.gmra.mxu0 %v5399
  %v5591 = vpop.f32.mrf.mxu0
  %v5592 = vadd.f32 %v5435, %v5591
  %v5593 = vpop.f32.mrf.mxu0
  %v5594 = vadd.f32 %v5435, %v5593
  %5595 = vdwg.mxu0
  %5596 = vmatpush.bf16.msra.mxu0 %v5543
  %5597 = vmatpush.bf16.msra.mxu0 %v5540
  %5598 = vmatpush.bf16.msra.mxu0 %v5537
  %5599 = vmatpush.bf16.msra.mxu0 %v5534
  %5600 = vmatpush.bf16.msra.mxu0 %v5531
  %5601 = vmatpush.bf16.msra.mxu0 %v5528
  %5602 = vmatpush.bf16.msra.mxu0 %v5525
  %5603 = vmatpush.bf16.msra.mxu0 %v5522
  %5604 = vmatmul.bf16.gmra.mxu0 %v5399
  %v5605 = vpop.f32.mrf.mxu0
  %v5606 = vadd.f32 %v5436, %v5605
  %v5607 = vpop.f32.mrf.mxu0
  %v5608 = vadd.f32 %v5436, %v5607
  %5609 = vdwg.mxu0
  %v5610 = vpack.c.bf16 %v5370, %v5369
  %v5611 = vld [vmem:[%s1130] sm:$0xff]
  %v5612 = vld [vmem:[%s1130 + $0x8] sm:$0xf]
  %v5613 = vld [vmem:[%s1130 + $0xc] sm:$0xff]
  %v5614 = vld [vmem:[%s1130 + $0x14] sm:$0xf]
  %v5615 = vld [vmem:[%s1130 + $0x18] sm:$0xff]
  %v5616 = vld [vmem:[%s1130 + $0x20] sm:$0xf]
  %v5617 = vld [vmem:[%s1130 + $0x24] sm:$0xff]
  %v5618 = vld [vmem:[%s1130 + $0x2c] sm:$0xf]
  %v5619 = vld [vmem:[%s1130 + $0x30] sm:$0xff]
  %v5620 = vld [vmem:[%s1130 + $0x38] sm:$0xf]
  %v5621 = vld [vmem:[%s1130 + $0x3c] sm:$0xff]
  %v5622 = vld [vmem:[%s1130 + $0x44] sm:$0xf]
  %v5623 = vld [vmem:[%s1130 + $0x48] sm:$0xff]
  %v5624 = vld [vmem:[%s1130 + $0x50] sm:$0xf]
  %v5625 = vld [vmem:[%s1130 + $0x54] sm:$0xff]
  %v5626 = vld [vmem:[%s1130 + $0x5c] sm:$0xf]
  %v5627 = vld [vmem:[%s1130 + $0x60] sm:$0xff]
  %v5628 = vld [vmem:[%s1130 + $0x68] sm:$0xf]
  %v5629 = vld [vmem:[%s1130 + $0x6c] sm:$0xff]
  %v5630 = vld [vmem:[%s1130 + $0x74] sm:$0xf]
  %v5631 = vld [vmem:[%s1130 + $0x78] sm:$0xff]
  %v5632 = vld [vmem:[%s1130 + $0x80] sm:$0xf]
  %v5633 = vld [vmem:[%s1130 + $0x84] sm:$0xff]
  %v5634 = vld [vmem:[%s1130 + $0x8c] sm:$0xf]
  %v5635 = vld [vmem:[%s1130 + $0x90] sm:$0xff]
  %v5636 = vld [vmem:[%s1130 + $0x98] sm:$0xf]
  %v5637 = vld [vmem:[%s1130 + $0x9c] sm:$0xff]
  %v5638 = vld [vmem:[%s1130 + $0xa4] sm:$0xf]
  %v5639 = vld [vmem:[%s1130 + $0xa8] sm:$0xff]
  %v5640 = vld [vmem:[%s1130 + $0xb0] sm:$0xf]
  %v5641 = vld [vmem:[%s1130 + $0xb4] sm:$0xff]
  %v5642 = vld [vmem:[%s1130 + $0xbc] sm:$0xf]
  %v5643 = vld [vmem:[%s1163] sm:$0x7]
  %v5645 = vperm.slane %v5643, 0
  %v5646 = vperm.slane %v5643, 1
  %v5647 = vperm.slane %v5643, 2
  %v5683 = vunpack.c.l.b16 %v5611
  %v5684 = vunpack.c.h.b16 %v5611
  %v5685 = vunpack.c.l.b16 %v5612
  %v5686 = vunpack.c.l.b16 %v5613
  %v5687 = vunpack.c.h.b16 %v5613
  %v5688 = vunpack.c.l.b16 %v5614
  %v5689 = vunpack.c.l.b16 %v5615
  %v5690 = vunpack.c.h.b16 %v5615
  %v5691 = vunpack.c.l.b16 %v5616
  %v5692 = vunpack.c.l.b16 %v5617
  %v5693 = vunpack.c.h.b16 %v5617
  %v5694 = vunpack.c.l.b16 %v5618
  %v5695 = vunpack.c.l.b16 %v5619
  %v5696 = vunpack.c.h.b16 %v5619
  %v5697 = vunpack.c.l.b16 %v5620
  %v5698 = vunpack.c.l.b16 %v5621
  %v5699 = vunpack.c.h.b16 %v5621
  %v5700 = vunpack.c.l.b16 %v5622
  %v5701 = vunpack.c.l.b16 %v5623
  %v5702 = vunpack.c.h.b16 %v5623
  %v5703 = vunpack.c.l.b16 %v5624
  %v5704 = vunpack.c.l.b16 %v5625
  %v5705 = vunpack.c.h.b16 %v5625
  %v5706 = vunpack.c.l.b16 %v5626
  %v5707 = vunpack.c.l.b16 %v5627
  %v5708 = vunpack.c.h.b16 %v5627
  %v5709 = vunpack.c.l.b16 %v5628
  %v5710 = vunpack.c.l.b16 %v5629
  %v5711 = vunpack.c.h.b16 %v5629
  %v5712 = vunpack.c.l.b16 %v5630
  %v5713 = vunpack.c.l.b16 %v5631
  %v5714 = vunpack.c.h.b16 %v5631
  %v5715 = vunpack.c.l.b16 %v5632
  %v5716 = vunpack.c.l.b16 %v5633
  %v5717 = vunpack.c.h.b16 %v5633
  %v5718 = vunpack.c.l.b16 %v5634
  %v5719 = vunpack.c.l.b16 %v5635
  %v5720 = vunpack.c.h.b16 %v5635
  %v5721 = vunpack.c.l.b16 %v5636
  %v5722 = vunpack.c.l.b16 %v5637
  %v5723 = vunpack.c.h.b16 %v5637
  %v5724 = vunpack.c.l.b16 %v5638
  %v5725 = vunpack.c.l.b16 %v5639
  %v5726 = vunpack.c.h.b16 %v5639
  %v5727 = vunpack.c.l.b16 %v5640
  %v5728 = vunpack.c.l.b16 %v5641
  %v5729 = vunpack.c.h.b16 %v5641
  %v5730 = vunpack.c.l.b16 %v5642
  %v5731 = vpack.c.b16 %v5686, %v5683
  %v5732 = vpack.c.b16 %v5687, %v5684
  %v5733 = vpack.c.b16 %v5688, %v5685
  %v5734 = vpack.c.b16 %v5692, %v5689
  %v5735 = vpack.c.b16 %v5693, %v5690
  %v5736 = vpack.c.b16 %v5694, %v5691
  %v5737 = vpack.c.b16 %v5698, %v5695
  %v5738 = vpack.c.b16 %v5699, %v5696
  %v5739 = vpack.c.b16 %v5700, %v5697
  %v5740 = vpack.c.b16 %v5704, %v5701
  %v5741 = vpack.c.b16 %v5705, %v5702
  %v5742 = vpack.c.b16 %v5706, %v5703
  %v5743 = vpack.c.b16 %v5710, %v5707
  %v5744 = vpack.c.b16 %v5711, %v5708
  %v5745 = vpack.c.b16 %v5712, %v5709
  %v5746 = vpack.c.b16 %v5716, %v5713
  %v5747 = vpack.c.b16 %v5717, %v5714
  %v5748 = vpack.c.b16 %v5718, %v5715
  %v5749 = vpack.c.b16 %v5722, %v5719
  %v5750 = vpack.c.b16 %v5723, %v5720
  %v5751 = vpack.c.b16 %v5724, %v5721
  %v5752 = vpack.c.b16 %v5728, %v5725
  %v5753 = vpack.c.b16 %v5729, %v5726
  %v5754 = vpack.c.b16 %v5730, %v5727
  %5779 = vmatpush.bf16.msra.mxu0 %v5752
  %5780 = vmatpush.bf16.msra.mxu0 %v5749
  %5781 = vmatpush.bf16.msra.mxu0 %v5746
  %5782 = vmatpush.bf16.msra.mxu0 %v5743
  %5783 = vmatpush.bf16.msra.mxu0 %v5740
  %5784 = vmatpush.bf16.msra.mxu0 %v5737
  %5785 = vmatpush.bf16.msra.mxu0 %v5734
  %5786 = vmatpush.bf16.msra.mxu0 %v5731
  %5787 = vmatmul.bf16.gmra.mxu0 %v5610
  %v5788 = vpop.f32.mrf.mxu0
  %v5789 = vadd.f32 %v5645, %v5788
  %v5790 = vpop.f32.mrf.mxu0
  %v5791 = vadd.f32 %v5645, %v5790
  %5792 = vdwg.mxu0
  %5793 = vmatpush.bf16.msra.mxu0 %v5753
  %5794 = vmatpush.bf16.msra.mxu0 %v5750
  %5795 = vmatpush.bf16.msra.mxu0 %v5747
  %5796 = vmatpush.bf16.msra.mxu0 %v5744
  %5797 = vmatpush.bf16.msra.mxu0 %v5741
  %5798 = vmatpush.bf16.msra.mxu0 %v5738
  %5799 = vmatpush.bf16.msra.mxu0 %v5735
  %5800 = vmatpush.bf16.msra.mxu0 %v5732
  %5801 = vmatmul.bf16.gmra.mxu0 %v5610
  %v5802 = vpop.f32.mrf.mxu0
  %v5803 = vadd.f32 %v5646, %v5802
  %v5804 = vpop.f32.mrf.mxu0
  %v5805 = vadd.f32 %v5646, %v5804
  %5806 = vdwg.mxu0
  %5807 = vmatpush.bf16.msra.mxu0 %v5754
  %5808 = vmatpush.bf16.msra.mxu0 %v5751
  %5809 = vmatpush.bf16.msra.mxu0 %v5748
  %5810 = vmatpush.bf16.msra.mxu0 %v5745
  %5811 = vmatpush.bf16.msra.mxu0 %v5742
  %5812 = vmatpush.bf16.msra.mxu0 %v5739
  %5813 = vmatpush.bf16.msra.mxu0 %v5736
  %5814 = vmatpush.bf16.msra.mxu0 %v5733
  %5815 = vmatmul.bf16.gmra.mxu0 %v5610
  %v5816 = vpop.f32.mrf.mxu0
  %v5817 = vadd.f32 %v5647, %v5816
  %v5818 = vpop.f32.mrf.mxu0
  %v5819 = vadd.f32 %v5647, %v5818
  %5820 = vdwg.mxu0
  %v5821 = vadd.f32 %v5385, %v5578
  %v5822 = vadd.f32 %v5388, %v5580
  %v5823 = vxor.u32 %v5821, 2147483648
  %v5824 = vxor.u32 %v5822, 2147483648
  %v5825 = vmul.f32 %v5823, 1.442695
  %v5826 = vpow.pop %v5825
  %v5827 = vmul.f32 %v5824, 1.442695
  %v5828 = vpow.pop %v5827
  %v5829 = vadd.f32 %v5826, 1.0
  %v5830 = vadd.f32 %v5828, 1.0
  %v5831 = vrcp.pop %v5829
  %v5832 = vmul.f32 %v5829, %v5831
  %v5833 = vsub.f32 1.0, %v5832
  %v5834 = vmul.f32 %v5831, %v5833
  %v5835 = vadd.f32 %v5831, %v5834
  %vm5836 = vweird.f32 %v5829
  %vm5837 = vweird.f32 %v5831
  %vm5838 = vmor %vm5836, %vm5837
  %v5839 = vsel %vm5838, %v5831, %v5835
  %v5840 = vand.u32 2147483647, %v5829
  %vm5841 = vcmp.eq.f32.partialorder %v5840, 8.507059e+37
  %v5842 = vand.u32 %v5829, 2147483648
  %v5843 = vor.u32 1.1754944e-38, %v5842
  %v5844 = vsel %vm5841, %v5843, %v5839
  %v5845 = vmul.f32 1.0, %v5844
  %v5846 = vrcp.pop %v5830
  %v5847 = vmul.f32 %v5830, %v5846
  %v5848 = vsub.f32 1.0, %v5847
  %v5849 = vmul.f32 %v5846, %v5848
  %v5850 = vadd.f32 %v5846, %v5849
  %vm5851 = vweird.f32 %v5830
  %vm5852 = vweird.f32 %v5846
  %vm5853 = vmor %vm5851, %vm5852
  %v5854 = vsel %vm5853, %v5846, %v5850
  %v5855 = vand.u32 2147483647, %v5830
  %vm5856 = vcmp.eq.f32.partialorder %v5855, 8.507059e+37
  %v5857 = vand.u32 %v5830, 2147483648
  %v5858 = vor.u32 1.1754944e-38, %v5857
  %v5859 = vsel %vm5856, %v5858, %v5854
  %v5860 = vmul.f32 1.0, %v5859
  %v5861 = vadd.f32 %v5386, %v5592
  %v5862 = vadd.f32 %v5389, %v5594
  %v5863 = vxor.u32 %v5861, 2147483648
  %v5864 = vxor.u32 %v5862, 2147483648
  %v5865 = vmul.f32 %v5863, 1.442695
  %v5866 = vpow.pop %v5865
  %v5867 = vmul.f32 %v5864, 1.442695
  %v5868 = vpow.pop %v5867
  %v5869 = vadd.f32 %v5866, 1.0
  %v5870 = vadd.f32 %v5868, 1.0
  %v5871 = vrcp.pop %v5869
  %v5872 = vmul.f32 %v5869, %v5871
  %v5873 = vsub.f32 1.0, %v5872
  %v5874 = vmul.f32 %v5871, %v5873
  %v5875 = vadd.f32 %v5871, %v5874
  %vm5876 = vweird.f32 %v5869
  %vm5877 = vweird.f32 %v5871
  %vm5878 = vmor %vm5876, %vm5877
  %v5879 = vsel %vm5878, %v5871, %v5875
  %v5880 = vand.u32 2147483647, %v5869
  %vm5881 = vcmp.eq.f32.partialorder %v5880, 8.507059e+37
  %v5882 = vand.u32 %v5869, 2147483648
  %v5883 = vor.u32 1.1754944e-38, %v5882
  %v5884 = vsel %vm5881, %v5883, %v5879
  %v5885 = vmul.f32 1.0, %v5884
  %v5886 = vrcp.pop %v5870
  %v5887 = vmul.f32 %v5870, %v5886
  %v5888 = vsub.f32 1.0, %v5887
  %v5889 = vmul.f32 %v5886, %v5888
  %v5890 = vadd.f32 %v5886, %v5889
  %vm5891 = vweird.f32 %v5870
  %vm5892 = vweird.f32 %v5886
  %vm5893 = vmor %vm5891, %vm5892
  %v5894 = vsel %vm5893, %v5886, %v5890
  %v5895 = vand.u32 2147483647, %v5870
  %vm5896 = vcmp.eq.f32.partialorder %v5895, 8.507059e+37
  %v5897 = vand.u32 %v5870, 2147483648
  %v5898 = vor.u32 1.1754944e-38, %v5897
  %v5899 = vsel %vm5896, %v5898, %v5894
  %v5900 = vmul.f32 1.0, %v5899
  %v5901 = vmul.f32 %v5845, %v5606
  %v5902 = vmul.f32 %v5860, %v5608
  %v5903 = vadd.f32 %v5387, %v5901
  %v5904 = vadd.f32 %v5390, %v5902
  %v5905 = vtanh.pop %v5903
  %v5906 = vtanh.pop %v5904
  %v5907 = vsub.f32 1.0, %v5885
  %v5908 = vsub.f32 1.0, %v5900
  %v5909 = vmul.f32 %v5907, %v5905
  %v5910 = vmul.f32 %v5908, %v5906
  %v5911 = vmul.f32 %v5885, %v5275
  %v5912 = vmul.f32 %v5900, %v5276
  %v5913 = vadd.f32 %v5909, %v5911
  %v5914 = vadd.f32 %v5910, %v5912
  %v5915 = vadd.f32 %v5393, %v5789
  %v5916 = vadd.f32 %v5396, %v5791
  %v5917 = vxor.u32 %v5915, 2147483648
  %v5918 = vxor.u32 %v5916, 2147483648
  %v5919 = vmul.f32 %v5917, 1.442695
  %v5920 = vpow.pop %v5919
  %v5921 = vmul.f32 %v5918, 1.442695
  %v5922 = vpow.pop %v5921
  %v5923 = vadd.f32 %v5920, 1.0
  %v5924 = vadd.f32 %v5922, 1.0
  %v5925 = vrcp.pop %v5923
  %v5926 = vmul.f32 %v5923, %v5925
  %v5927 = vsub.f32 1.0, %v5926
  %v5928 = vmul.f32 %v5925, %v5927
  %v5929 = vadd.f32 %v5925, %v5928
  %vm5930 = vweird.f32 %v5923
  %vm5931 = vweird.f32 %v5925
  %vm5932 = vmor %vm5930, %vm5931
  %v5933 = vsel %vm5932, %v5925, %v5929
  %v5934 = vand.u32 2147483647, %v5923
  %vm5935 = vcmp.eq.f32.partialorder %v5934, 8.507059e+37
  %v5936 = vand.u32 %v5923, 2147483648
  %v5937 = vor.u32 1.1754944e-38, %v5936
  %v5938 = vsel %vm5935, %v5937, %v5933
  %v5939 = vmul.f32 1.0, %v5938
  %v5940 = vrcp.pop %v5924
  %v5941 = vmul.f32 %v5924, %v5940
  %v5942 = vsub.f32 1.0, %v5941
  %v5943 = vmul.f32 %v5940, %v5942
  %v5944 = vadd.f32 %v5940, %v5943
  %vm5945 = vweird.f32 %v5924
  %vm5946 = vweird.f32 %v5940
  %vm5947 = vmor %vm5945, %vm5946
  %v5948 = vsel %vm5947, %v5940, %v5944
  %v5949 = vand.u32 2147483647, %v5924
  %vm5950 = vcmp.eq.f32.partialorder %v5949, 8.507059e+37
  %v5951 = vand.u32 %v5924, 2147483648
  %v5952 = vor.u32 1.1754944e-38, %v5951
  %v5953 = vsel %vm5950, %v5952, %v5948
  %v5954 = vmul.f32 1.0, %v5953
  %v5955 = vadd.f32 %v5394, %v5803
  %v5956 = vadd.f32 %v5397, %v5805
  %v5957 = vxor.u32 %v5955, 2147483648
  %v5958 = vxor.u32 %v5956, 2147483648
  %v5959 = vmul.f32 %v5957, 1.442695
  %v5960 = vpow.pop %v5959
  %v5961 = vmul.f32 %v5958, 1.442695
  %v5962 = vpow.pop %v5961
  %v5963 = vadd.f32 %v5960, 1.0
  %v5964 = vadd.f32 %v5962, 1.0
  %v5965 = vrcp.pop %v5963
  %v5966 = vmul.f32 %v5963, %v5965
  %v5967 = vsub.f32 1.0, %v5966
  %v5968 = vmul.f32 %v5965, %v5967
  %v5969 = vadd.f32 %v5965, %v5968
  %vm5970 = vweird.f32 %v5963
  %vm5971 = vweird.f32 %v5965
  %vm5972 = vmor %vm5970, %vm5971
  %v5973 = vsel %vm5972, %v5965, %v5969
  %v5974 = vand.u32 2147483647, %v5963
  %vm5975 = vcmp.eq.f32.partialorder %v5974, 8.507059e+37
  %v5976 = vand.u32 %v5963, 2147483648
  %v5977 = vor.u32 1.1754944e-38, %v5976
  %v5978 = vsel %vm5975, %v5977, %v5973
  %v5979 = vmul.f32 1.0, %v5978
  %v5980 = vrcp.pop %v5964
  %v5981 = vmul.f32 %v5964, %v5980
  %v5982 = vsub.f32 1.0, %v5981
  %v5983 = vmul.f32 %v5980, %v5982
  %v5984 = vadd.f32 %v5980, %v5983
  %vm5985 = vweird.f32 %v5964
  %vm5986 = vweird.f32 %v5980
  %vm5987 = vmor %vm5985, %vm5986
  %v5988 = vsel %vm5987, %v5980, %v5984
  %v5989 = vand.u32 2147483647, %v5964
  %vm5990 = vcmp.eq.f32.partialorder %v5989, 8.507059e+37
  %v5991 = vand.u32 %v5964, 2147483648
  %v5992 = vor.u32 1.1754944e-38, %v5991
  %v5993 = vsel %vm5990, %v5992, %v5988
  %v5994 = vmul.f32 1.0, %v5993
  %v5995 = vmul.f32 %v5939, %v5817
  %v5996 = vmul.f32 %v5954, %v5819
  %v5997 = vadd.f32 %v5395, %v5995
  %v5998 = vadd.f32 %v5398, %v5996
  %v5999 = vtanh.pop %v5997
  %v6000 = vtanh.pop %v5998
  %v6001 = vsub.f32 1.0, %v5979
  %v6002 = vsub.f32 1.0, %v5994
  %v6003 = vmul.f32 %v6001, %v5999
  %v6004 = vmul.f32 %v6002, %v6000
  %v6005 = vmul.f32 %v5979, %v5369
  %v6006 = vmul.f32 %v5994, %v5370
  %v6007 = vadd.f32 %v6003, %v6005
  %v6008 = vadd.f32 %v6004, %v6006
  %v6009 = vld [vmem:[%s1536] sm:$0xff]
  %v6010 = vld [vmem:[%s1536 + $0x8] sm:$0xff]
  %v6011 = vadd.f32 %v6009, %v5913
  %v6012 = vadd.f32 %v6010, %v5914
  %6013 = vst [vmem:[%s1536] sm:$0xff] %v6011
  %6014 = vst [vmem:[%s1536 + $0x8] sm:$0xff] %v6012
  %v6015 = vld [vmem:[%s6] sm:$0xff]
  %v6016 = vld [vmem:[%s6 + $0x8] sm:$0xff]
  %v6017 = vadd.f32 %v6015, %v6007
  %v6018 = vadd.f32 %v6016, %v6008
  %6019 = vst [vmem:[%s6] sm:$0xff] %v6017
  %6020 = vst [vmem:[%s6 + $0x8] sm:$0xff] %v6018
  %6021 = vst [vmem:[%s7] sm:$0xff] %v5913
  %6022 = vst [vmem:[%s7 + $0x8] sm:$0xff] %v5914
  %s6023 = scalar_lea.vmem %s7, 16
  %6024 = vst [vmem:[%s6023] sm:$0xff] %v6007
  %6025 = vst [vmem:[%s6023 + $0x8] sm:$0xff] %v6008
  // Predicated region
  $region26: #{encoder_forward.1} parent=0 // pred_check
    _
  $region27: #{encoder_forward.1} parent=0 // pred_check_branch
    %6027 = sbr.rel (0) target = $region29
  $region28: #{encoder_forward.1} parent=0 // pred_region
    _
  $region29: #{encoder_forward.1} parent=0 // pred_fallthru
    _
  // Predicated region
  $region30: #{encoder_forward.1} parent=0 // pred_check
    _
  $region31: #{encoder_forward.1} parent=0 // pred_check_branch
    %6029 = sbr.rel (0) target = $region33
  $region32: #{encoder_forward.1} parent=0 // pred_region
    _
  $region33: #{encoder_forward.1} parent=0 // pred_fallthru
    _
  // Predicated region
  $region34: #{encoder_forward.1} parent=0 // pred_check
    _
  $region35: #{encoder_forward.1} parent=0 // pred_check_branch
    %6031 = sbr.rel (0) target = $region37
  $region36: #{encoder_forward.1} parent=0 // pred_region
    _
  $region37: #{encoder_forward.1} parent=0 // pred_fallthru
    _
  // Predicated region
  $region38: #{encoder_forward.1} parent=0 // pred_check
    _
  $region39: #{encoder_forward.1} parent=0 // pred_check_branch
    %6033 = sbr.rel (0) target = $region41
  $region40: #{encoder_forward.1} parent=0 // pred_region
    _
  $region41: #{encoder_forward.1} parent=0 // pred_fallthru
    _

</llo_original>
